<compile_context>
chip_gen: v7x
topology: tpu7x:2x2x1
jax: 0.10.0
libtpu: 0.0.40
codegen_flags: <defaults>
</compile_context>

<pallas_src>
import functools

import jax
import jax.numpy as jnp
from jax import lax
from jax.experimental import pallas as pl
from jax.experimental.pallas import tpu as pltpu


# ----------------------------------------------------------------------------
# Fused whole-network Pallas kernel
# ----------------------------------------------------------------------------

def _bmm(a, b):
    """(M, I, K) @ (M, K, J) -> (M, I, J) batched matmul on the MXU."""
    return lax.dot_general(a, b, (((2,), (1,)), ((0,), (0,))),
                           preferred_element_type=jnp.float32)


def _gwnet_kernel(x_ref, sw_ref, sb_ref, n2t_ref, n1t_ref,
                  wl_ref, wr_ref, bfg_ref, wsk_ref, bsk_ref,
                  wgc0_ref, wgc1_ref, wgc2_ref, bgc_ref, bns_ref, bnt_ref,
                  e1w_ref, e1b_ref, e2w_ref, e2b_ref,
                  out_ref, *, dilations):
    f32 = jnp.float32
    B, T, V, Fin = x_ref.shape
    C = sw_ref.shape[1]
    Csk = wsk_ref.shape[2]
    n_layers = len(dilations)

    # ---- adaptive adjacency: adp = softmax(relu(n1 @ n2), dim=1) ----
    # Built directly transposed: adp_t[w, v] = adp[v, w]  (softmax over rows).
    rT = jnp.maximum(jnp.dot(n2t_ref[...], n1t_ref[...],
                             preferred_element_type=f32), 0.0)          # (W, V)
    rT = rT - jnp.max(rT, axis=0, keepdims=True)
    eT = jnp.exp(rT)
    adp_t = eT * pl.reciprocal(jnp.sum(eT, axis=0, keepdims=True), approx=True)

    # ---- start conv (1x1) ----
    h = (jnp.dot(x_ref[...].reshape(B * T * V, Fin), sw_ref[...],
                 preferred_element_type=f32)
         + sb_ref[...]).reshape(B, T, V, C)

    skip = None
    Tc = T
    for i, D in enumerate(dilations):
        Tn = Tc - D                          # kernel_size == 2 temporal taps
        residual = h                         # (B, Tc, V, C)

        # gated dilated temporal conv; filter|gate weights concatenated on N,
        # so only 2 MXU matmuls per layer instead of 4.
        xl = h[:, :Tn].reshape(B * Tn * V, C)
        xr = h[:, D:].reshape(B * Tn * V, C)
        fg = (jnp.dot(xl, wl_ref[i], preferred_element_type=f32)
              + jnp.dot(xr, wr_ref[i], preferred_element_type=f32)
              + bfg_ref[i])                                       # (M*V, 2C)
        xg = jnp.tanh(fg[:, :C]) * jax.nn.sigmoid(fg[:, C:])      # (M*V, C)

        # skip 1x1 conv + accumulate time-cropped running skip (VMEM-resident).
        s = (jnp.dot(xg, wsk_ref[i], preferred_element_type=f32)
             + bsk_ref[i]).reshape(B, Tn, V, Csk)
        skip = s if skip is None else s + skip[:, -Tn:]

        if i == n_layers - 1:
            break

        # graph convolution (order=2, single adaptive support) with the 1x1
        # conv accumulated in place: gout = xg@W0 + x1@W1 + x2@W2 + b.
        M = B * Tn
        xg3 = xg.reshape(M, V, C)
        at_b = jnp.broadcast_to(adp_t, (M, V, V))
        x1 = _bmm(at_b, xg3)                 # nconv(xg)
        x2 = _bmm(at_b, x1)                  # nconv(nconv(xg))
        gout = (jnp.dot(xg, wgc0_ref[i], preferred_element_type=f32)
                + jnp.dot(x1.reshape(M * V, C), wgc1_ref[i],
                          preferred_element_type=f32)
                + jnp.dot(x2.reshape(M * V, C), wgc2_ref[i],
                          preferred_element_type=f32)
                + bgc_ref[i])
        # TODO(synk): dropout inside GraphConvNet is identity (eval mode).

        # residual add + BatchNorm2d (inference-mode per-channel affine).
        res = residual[:, -Tn:].reshape(B * Tn * V, C)
        h = ((gout + res) * bns_ref[i] + bnt_ref[i]).reshape(B, Tn, V, C)
        Tc = Tn

    # ---- output head: relu(skip) -> end_conv_1 -> relu -> end_conv_2 ----
    Ts = skip.shape[1]
    sk = jnp.maximum(skip.reshape(B * Ts * V, Csk), 0.0)
    e1 = jnp.maximum(jnp.dot(sk, e1w_ref[...], preferred_element_type=f32)
                     + e1b_ref[...], 0.0)
    e2 = jnp.dot(e1, e2w_ref[...], preferred_element_type=f32) + e2b_ref[...]
    out_ref[...] = e2.reshape(B, Ts, V, e2.shape[-1])


# ----------------------------------------------------------------------------
# Wrapper (layout bookkeeping only; one pallas_call per forward)
# ----------------------------------------------------------------------------

def _dilations(cfg):
    dil = []
    for _ in range(cfg["blocks"]):
        d = 1
        for _ in range(cfg["layers"]):
            dil.append(d)
            d *= cfg["stride"]
    return dil


def _receptive_field(cfg):
    rf = 1
    for _ in range(cfg["blocks"]):
        scope = cfg["kernel_size"] - 1
        for _ in range(cfg["layers"]):
            rf += scope
            scope *= cfg["stride"]
    return rf


def gwnet_forward(x, packed, cfg):
    """x: (B, T_in, V, in_dim) -- same input convention as the PyTorch module."""
    assert cfg["kernel_size"] == 2
    assert cfg["dilation_channels"] == cfg["residual_channels"]
    B, T_in, V, Fin = x.shape
    O = cfg["out_seq_len"]

    dilations = _dilations(cfg)
    rf = _receptive_field(cfg)
    if T_in < rf:                              # left-pad time (as in PyTorch)
        x = jnp.pad(x, ((0, 0), (rf - T_in, 0), (0, 0), (0, 0)))
    T = x.shape[1]

    Ts = T
    for D in dilations:                        # static time-length bookkeeping
        Ts -= D
    assert Ts >= 1

    vmem = lambda: pl.BlockSpec(memory_space=pltpu.MemorySpace.VMEM)
    args = (x, packed["start_w"], packed["start_b"], packed["n2t"], packed["n1t"],
            packed["wl"], packed["wr"], packed["bfg"],
            packed["wskip"], packed["bskip"],
            packed["wgc0"], packed["wgc1"], packed["wgc2"], packed["bgc"],
            packed["bn_scale"], packed["bn_shift"],
            packed["end1_w"], packed["end1_b"], packed["end2_w"], packed["end2_b"])

    out4 = pl.pallas_call(
        functools.partial(_gwnet_kernel, dilations=tuple(dilations)),
        out_shape=jax.ShapeDtypeStruct((B, Ts, V, O), jnp.float32),
        in_specs=[vmem() for _ in args],
        out_specs=vmem(),
    )(*args)                                   # (B, Ts, V, O)

    out = jnp.transpose(out4, (0, 3, 2, 1))    # (B, out_seq_len, V, Ts)
    if out.shape[-1] == 1:                     # .squeeze(dim=-1)
        out = jnp.squeeze(out, axis=-1)
    return out


# ----------------------------------------------------------------------------
# Parameters: module-like init + one-time host-side repack for the fused kernel
# ----------------------------------------------------------------------------

def init_params(key, cfg):
    V, C = cfg["num_nodes"], cfg["residual_channels"]
    Csk, Cend = cfg["skip_channels"], cfg["end_channels"]
    Fin, apt = cfg["in_dim"], cfg["apt_size"]
    n_layers = cfg["blocks"] * cfg["layers"]

    keys = iter(jax.random.split(key, 8 + 12 * n_layers))

    def nrm(shape, scale=0.1):
        return scale * jax.random.normal(next(keys), shape, dtype=jnp.float32)

    eps = 1e-5
    params = {
        "start_w": nrm((Fin, C)),
        "start_b": nrm((1, C)),
        "nodevec1": jax.random.normal(next(keys), (V, apt), dtype=jnp.float32),
        "nodevec2": jax.random.normal(next(keys), (apt, V), dtype=jnp.float32),
        "end1_w": nrm((Csk, Cend)),
        "end1_b": nrm((1, Cend)),
        "end2_w": nrm((Cend, cfg["out_seq_len"])),
        "end2_b": nrm((1, cfg["out_seq_len"])),
        "layers": [],
    }
    for _ in range(n_layers):
        params["layers"].append(dict(
            wf0=nrm((C, C)), wf1=nrm((C, C)), bf=nrm((1, C)),
            wg0=nrm((C, C)), wg1=nrm((C, C)), bg=nrm((1, C)),
            wskip=nrm((C, Csk)), bskip=nrm((1, Csk)),
            wgc=nrm((3 * C, C)), bgc=nrm((1, C)),
            bn_scale=jnp.full((1, C), 1.0 / float(jnp.sqrt(1.0 + eps)),
                              dtype=jnp.float32),
            bn_shift=jnp.zeros((1, C), dtype=jnp.float32),
        ))
    return params


def pack_params(params, cfg):
    """One-time host-side repack: stack per-layer weights on a leading L axis,
    concatenate filter|gate weights along N, split the graph-conv weight into
    its three accumulation slices, pre-transpose the node embeddings."""
    C = cfg["residual_channels"]
    lay = params["layers"]
    stk = lambda k: jnp.stack([l[k] for l in lay], axis=0)
    return dict(
        start_w=params["start_w"], start_b=params["start_b"],
        n2t=jnp.transpose(params["nodevec2"]),      # (V, apt)
        n1t=jnp.transpose(params["nodevec1"]),      # (apt, V)
        wl=jnp.stack([jnp.concatenate([l["wf0"], l["wg0"]], axis=1) for l in lay]),
        wr=jnp.stack([jnp.concatenate([l["wf1"], l["wg1"]], axis=1) for l in lay]),
        bfg=jnp.stack([jnp.concatenate([l["bf"], l["bg"]], axis=1) for l in lay]),
        wskip=stk("wskip"), bskip=stk("bskip"),
        wgc0=jnp.stack([l["wgc"][:C] for l in lay]),
        wgc1=jnp.stack([l["wgc"][C:2 * C] for l in lay]),
        wgc2=jnp.stack([l["wgc"][2 * C:] for l in lay]),
        bgc=stk("bgc"), bn_scale=stk("bn_scale"), bn_shift=stk("bn_shift"),
        end1_w=params["end1_w"], end1_b=params["end1_b"],
        end2_w=params["end2_w"], end2_b=params["end2_b"],
    )


# ----------------------------------------------------------------------------
if __name__ == "__main__":
    cfg = dict(
        num_nodes=8, in_dim=2,
        residual_channels=32, dilation_channels=32,
        skip_channels=64, end_channels=128,
        out_seq_len=4, kernel_size=2, stride=2,
        blocks=2, layers=2, apt_size=4,
    )
    key = jax.random.PRNGKey(0)
    pkey, xkey = jax.random.split(key)
    params = init_params(pkey, cfg)
    packed = pack_params(params, cfg)          # one-time host-side repack

    B, T_in = 2, 6
    x = jax.random.normal(
        xkey, (B, T_in, cfg["num_nodes"], cfg["in_dim"]), dtype=jnp.float32)

    fwd = jax.jit(lambda xx, pp: gwnet_forward(xx, pp, cfg))
    out = jax.block_until_ready(fwd(x, packed))

    assert out.shape == (B, cfg["out_seq_len"], cfg["num_nodes"]), out.shape
    assert bool(jnp.all(jnp.isfinite(out)))
    print("KERNEL_OK")
</pallas_src>

<mosaic_0001>
module attributes {stable_mosaic.version = 11 : i64} {
  func.func @_gwnet_kernel(%arg0: memref<2x7x8x2xf32, #tpu.memory_space<vmem>>, %arg1: memref<2x32xf32, #tpu.memory_space<vmem>>, %arg2: memref<1x32xf32, #tpu.memory_space<vmem>>, %arg3: memref<8x4xf32, #tpu.memory_space<vmem>>, %arg4: memref<4x8xf32, #tpu.memory_space<vmem>>, %arg5: memref<4x32x64xf32, #tpu.memory_space<vmem>>, %arg6: memref<4x32x64xf32, #tpu.memory_space<vmem>>, %arg7: memref<4x1x64xf32, #tpu.memory_space<vmem>>, %arg8: memref<4x32x64xf32, #tpu.memory_space<vmem>>, %arg9: memref<4x1x64xf32, #tpu.memory_space<vmem>>, %arg10: memref<4x32x32xf32, #tpu.memory_space<vmem>>, %arg11: memref<4x32x32xf32, #tpu.memory_space<vmem>>, %arg12: memref<4x32x32xf32, #tpu.memory_space<vmem>>, %arg13: memref<4x1x32xf32, #tpu.memory_space<vmem>>, %arg14: memref<4x1x32xf32, #tpu.memory_space<vmem>>, %arg15: memref<4x1x32xf32, #tpu.memory_space<vmem>>, %arg16: memref<64x128xf32, #tpu.memory_space<vmem>>, %arg17: memref<1x128xf32, #tpu.memory_space<vmem>>, %arg18: memref<128x4xf32, #tpu.memory_space<vmem>>, %arg19: memref<1x4xf32, #tpu.memory_space<vmem>>, %arg20: memref<2x1x8x4xf32, #tpu.memory_space<vmem>>) attributes {dimension_semantics = [], scalar_prefetch = 0 : i64, scratch_operands = 0 : i64, tpu.core_type = #tpu.core_type<tc>} {
    %c0 = arith.constant 0 : index
    %c0_0 = arith.constant 0 : index
    %0 = vector.load %arg3[%c0, %c0_0] : memref<8x4xf32, #tpu.memory_space<vmem>>, vector<8x4xf32>
    %c0_1 = arith.constant 0 : index
    %c0_2 = arith.constant 0 : index
    %1 = vector.load %arg4[%c0_1, %c0_2] : memref<4x8xf32, #tpu.memory_space<vmem>>, vector<4x8xf32>
    %cst = arith.constant dense<0.000000e+00> : vector<8x8xf32>
    %2 = tpu.matmul %0, %1, %cst {dimension_numbers = #tpu.dot_dimension_numbers<[1], [0], [0], [1], [0, 0, 1, 1], [], []>} : vector<8x4xf32>, vector<4x8xf32>, vector<8x8xf32> -> vector<8x8xf32>
    %cst_3 = arith.constant 0.000000e+00 : f32
    %3 = vector.broadcast %cst_3 : f32 to vector<8x8xf32>
    %4 = arith.maximumf %2, %3 : vector<8x8xf32>
    %cst_4 = arith.constant dense<0xFF800000> : vector<8xf32>
    %5 = vector.multi_reduction <maximumf>, %4, %cst_4 [0] : vector<8x8xf32> to vector<8xf32>
    %6 = vector.shape_cast %5 : vector<8xf32> to vector<1x8xf32>
    %7 = vector.broadcast %6 : vector<1x8xf32> to vector<8x8xf32>
    %8 = arith.subf %4, %7 : vector<8x8xf32>
    %9 = math.exp %8 : vector<8x8xf32>
    %cst_5 = arith.constant dense<0.000000e+00> : vector<8xf32>
    %10 = vector.multi_reduction <add>, %9, %cst_5 [0] : vector<8x8xf32> to vector<8xf32>
    %11 = vector.shape_cast %10 : vector<8xf32> to vector<1x8xf32>
    %12 = tpu.reciprocal %11 {approx = true} : vector<1x8xf32> -> vector<1x8xf32>
    %13 = vector.broadcast %12 : vector<1x8xf32> to vector<8x8xf32>
    %14 = arith.mulf %9, %13 : vector<8x8xf32>
    %c0_6 = arith.constant 0 : index
    %c0_7 = arith.constant 0 : index
    %c0_8 = arith.constant 0 : index
    %c0_9 = arith.constant 0 : index
    %15 = vector.load %arg0[%c0_6, %c0_7, %c0_8, %c0_9] : memref<2x7x8x2xf32, #tpu.memory_space<vmem>>, vector<2x7x8x2xf32>
    %16 = vector.shape_cast %15 : vector<2x7x8x2xf32> to vector<112x2xf32>
    %c0_10 = arith.constant 0 : index
    %c0_11 = arith.constant 0 : index
    %17 = vector.load %arg1[%c0_10, %c0_11] : memref<2x32xf32, #tpu.memory_space<vmem>>, vector<2x32xf32>
    %cst_12 = arith.constant dense<0.000000e+00> : vector<112x32xf32>
    %18 = tpu.matmul %16, %17, %cst_12 {dimension_numbers = #tpu.dot_dimension_numbers<[1], [0], [0], [1], [0, 0, 1, 1], [], []>} : vector<112x2xf32>, vector<2x32xf32>, vector<112x32xf32> -> vector<112x32xf32>
    %c0_13 = arith.constant 0 : index
    %c0_14 = arith.constant 0 : index
    %19 = vector.load %arg2[%c0_13, %c0_14] : memref<1x32xf32, #tpu.memory_space<vmem>>, vector<1x32xf32>
    %20 = vector.broadcast %19 : vector<1x32xf32> to vector<112x32xf32>
    %21 = arith.addf %18, %20 : vector<112x32xf32>
    %22 = vector.shape_cast %21 : vector<112x32xf32> to vector<2x7x8x32xf32>
    %23 = vector.extract_strided_slice %22 {offsets = [0, 0, 0, 0], sizes = [2, 6, 8, 32], strides = [1, 1, 1, 1]} : vector<2x7x8x32xf32> to vector<2x6x8x32xf32>
    %24 = vector.shape_cast %23 : vector<2x6x8x32xf32> to vector<96x32xf32>
    %25 = vector.extract_strided_slice %22 {offsets = [0, 1, 0, 0], sizes = [2, 6, 8, 32], strides = [1, 1, 1, 1]} : vector<2x7x8x32xf32> to vector<2x6x8x32xf32>
    %26 = vector.shape_cast %25 : vector<2x6x8x32xf32> to vector<96x32xf32>
    %c0_15 = arith.constant 0 : index
    %c0_16 = arith.constant 0 : index
    %c0_17 = arith.constant 0 : index
    %27 = vector.load %arg5[%c0_15, %c0_16, %c0_17] : memref<4x32x64xf32, #tpu.memory_space<vmem>>, vector<1x32x64xf32>
    %28 = vector.shape_cast %27 : vector<1x32x64xf32> to vector<32x64xf32>
    %cst_18 = arith.constant dense<0.000000e+00> : vector<96x64xf32>
    %29 = tpu.matmul %24, %28, %cst_18 {dimension_numbers = #tpu.dot_dimension_numbers<[1], [0], [0], [1], [0, 0, 1, 1], [], []>} : vector<96x32xf32>, vector<32x64xf32>, vector<96x64xf32> -> vector<96x64xf32>
    %c0_19 = arith.constant 0 : index
    %c0_20 = arith.constant 0 : index
    %c0_21 = arith.constant 0 : index
    %30 = vector.load %arg6[%c0_19, %c0_20, %c0_21] : memref<4x32x64xf32, #tpu.memory_space<vmem>>, vector<1x32x64xf32>
    %31 = vector.shape_cast %30 : vector<1x32x64xf32> to vector<32x64xf32>
    %cst_22 = arith.constant dense<0.000000e+00> : vector<96x64xf32>
    %32 = tpu.matmul %26, %31, %cst_22 {dimension_numbers = #tpu.dot_dimension_numbers<[1], [0], [0], [1], [0, 0, 1, 1], [], []>} : vector<96x32xf32>, vector<32x64xf32>, vector<96x64xf32> -> vector<96x64xf32>
    %33 = arith.addf %29, %32 : vector<96x64xf32>
    %c0_23 = arith.constant 0 : index
    %c0_24 = arith.constant 0 : index
    %c0_25 = arith.constant 0 : index
    %34 = vector.load %arg7[%c0_23, %c0_24, %c0_25] : memref<4x1x64xf32, #tpu.memory_space<vmem>>, vector<1x1x64xf32>
    %35 = vector.shape_cast %34 : vector<1x1x64xf32> to vector<1x64xf32>
    %36 = vector.broadcast %35 : vector<1x64xf32> to vector<96x64xf32>
    %37 = arith.addf %33, %36 : vector<96x64xf32>
    %38 = vector.extract_strided_slice %37 {offsets = [0, 0], sizes = [96, 32], strides = [1, 1]} : vector<96x64xf32> to vector<96x32xf32>
    %39 = math.tanh %38 : vector<96x32xf32>
    %40 = vector.extract_strided_slice %37 {offsets = [0, 32], sizes = [96, 32], strides = [1, 1]} : vector<96x64xf32> to vector<96x32xf32>
    %41 = arith.negf %40 : vector<96x32xf32>
    %42 = math.exp %41 : vector<96x32xf32>
    %cst_26 = arith.constant 1.000000e+00 : f32
    %43 = vector.broadcast %cst_26 : f32 to vector<96x32xf32>
    %44 = arith.addf %43, %42 : vector<96x32xf32>
    %45 = arith.divf %43, %44 : vector<96x32xf32>
    %46 = arith.mulf %39, %45 : vector<96x32xf32>
    %c0_27 = arith.constant 0 : index
    %c0_28 = arith.constant 0 : index
    %c0_29 = arith.constant 0 : index
    %47 = vector.load %arg8[%c0_27, %c0_28, %c0_29] : memref<4x32x64xf32, #tpu.memory_space<vmem>>, vector<1x32x64xf32>
    %48 = vector.shape_cast %47 : vector<1x32x64xf32> to vector<32x64xf32>
    %cst_30 = arith.constant dense<0.000000e+00> : vector<96x64xf32>
    %49 = tpu.matmul %46, %48, %cst_30 {dimension_numbers = #tpu.dot_dimension_numbers<[1], [0], [0], [1], [0, 0, 1, 1], [], []>} : vector<96x32xf32>, vector<32x64xf32>, vector<96x64xf32> -> vector<96x64xf32>
    %c0_31 = arith.constant 0 : index
    %c0_32 = arith.constant 0 : index
    %c0_33 = arith.constant 0 : index
    %50 = vector.load %arg9[%c0_31, %c0_32, %c0_33] : memref<4x1x64xf32, #tpu.memory_space<vmem>>, vector<1x1x64xf32>
    %51 = vector.shape_cast %50 : vector<1x1x64xf32> to vector<1x64xf32>
    %52 = vector.broadcast %51 : vector<1x64xf32> to vector<96x64xf32>
    %53 = arith.addf %49, %52 : vector<96x64xf32>
    %54 = vector.shape_cast %53 : vector<96x64xf32> to vector<2x6x8x64xf32>
    %55 = vector.shape_cast %46 : vector<96x32xf32> to vector<12x8x32xf32>
    %56 = vector.shape_cast %14 : vector<8x8xf32> to vector<1x8x8xf32>
    %57 = vector.broadcast %56 : vector<1x8x8xf32> to vector<12x8x8xf32>
    %cst_34 = arith.constant dense<0.000000e+00> : vector<12x8x32xf32>
    %58 = tpu.matmul %57, %55, %cst_34 {dimension_numbers = #tpu.dot_dimension_numbers<[2], [1], [1], [2], [0, 0, 0, 1, 1, 2], [0], [0]>} : vector<12x8x8xf32>, vector<12x8x32xf32>, vector<12x8x32xf32> -> vector<12x8x32xf32>
    %cst_35 = arith.constant dense<0.000000e+00> : vector<12x8x32xf32>
    %59 = tpu.matmul %57, %58, %cst_35 {dimension_numbers = #tpu.dot_dimension_numbers<[2], [1], [1], [2], [0, 0, 0, 1, 1, 2], [0], [0]>} : vector<12x8x8xf32>, vector<12x8x32xf32>, vector<12x8x32xf32> -> vector<12x8x32xf32>
    %c0_36 = arith.constant 0 : index
    %c0_37 = arith.constant 0 : index
    %c0_38 = arith.constant 0 : index
    %60 = vector.load %arg10[%c0_36, %c0_37, %c0_38] : memref<4x32x32xf32, #tpu.memory_space<vmem>>, vector<1x32x32xf32>
    %61 = vector.shape_cast %60 : vector<1x32x32xf32> to vector<32x32xf32>
    %cst_39 = arith.constant dense<0.000000e+00> : vector<96x32xf32>
    %62 = tpu.matmul %46, %61, %cst_39 {dimension_numbers = #tpu.dot_dimension_numbers<[1], [0], [0], [1], [0, 0, 1, 1], [], []>} : vector<96x32xf32>, vector<32x32xf32>, vector<96x32xf32> -> vector<96x32xf32>
    %63 = vector.shape_cast %58 : vector<12x8x32xf32> to vector<96x32xf32>
    %c0_40 = arith.constant 0 : index
    %c0_41 = arith.constant 0 : index
    %c0_42 = arith.constant 0 : index
    %64 = vector.load %arg11[%c0_40, %c0_41, %c0_42] : memref<4x32x32xf32, #tpu.memory_space<vmem>>, vector<1x32x32xf32>
    %65 = vector.shape_cast %64 : vector<1x32x32xf32> to vector<32x32xf32>
    %cst_43 = arith.constant dense<0.000000e+00> : vector<96x32xf32>
    %66 = tpu.matmul %63, %65, %cst_43 {dimension_numbers = #tpu.dot_dimension_numbers<[1], [0], [0], [1], [0, 0, 1, 1], [], []>} : vector<96x32xf32>, vector<32x32xf32>, vector<96x32xf32> -> vector<96x32xf32>
    %67 = arith.addf %62, %66 : vector<96x32xf32>
    %68 = vector.shape_cast %59 : vector<12x8x32xf32> to vector<96x32xf32>
    %c0_44 = arith.constant 0 : index
    %c0_45 = arith.constant 0 : index
    %c0_46 = arith.constant 0 : index
    %69 = vector.load %arg12[%c0_44, %c0_45, %c0_46] : memref<4x32x32xf32, #tpu.memory_space<vmem>>, vector<1x32x32xf32>
    %70 = vector.shape_cast %69 : vector<1x32x32xf32> to vector<32x32xf32>
    %cst_47 = arith.constant dense<0.000000e+00> : vector<96x32xf32>
    %71 = tpu.matmul %68, %70, %cst_47 {dimension_numbers = #tpu.dot_dimension_numbers<[1], [0], [0], [1], [0, 0, 1, 1], [], []>} : vector<96x32xf32>, vector<32x32xf32>, vector<96x32xf32> -> vector<96x32xf32>
    %72 = arith.addf %67, %71 : vector<96x32xf32>
    %c0_48 = arith.constant 0 : index
    %c0_49 = arith.constant 0 : index
    %c0_50 = arith.constant 0 : index
    %73 = vector.load %arg13[%c0_48, %c0_49, %c0_50] : memref<4x1x32xf32, #tpu.memory_space<vmem>>, vector<1x1x32xf32>
    %74 = vector.shape_cast %73 : vector<1x1x32xf32> to vector<1x32xf32>
    %75 = vector.broadcast %74 : vector<1x32xf32> to vector<96x32xf32>
    %76 = arith.addf %72, %75 : vector<96x32xf32>
    %77 = vector.extract_strided_slice %22 {offsets = [0, 1, 0, 0], sizes = [2, 6, 8, 32], strides = [1, 1, 1, 1]} : vector<2x7x8x32xf32> to vector<2x6x8x32xf32>
    %78 = vector.shape_cast %77 : vector<2x6x8x32xf32> to vector<96x32xf32>
    %79 = arith.addf %76, %78 : vector<96x32xf32>
    %c0_51 = arith.constant 0 : index
    %c0_52 = arith.constant 0 : index
    %c0_53 = arith.constant 0 : index
    %80 = vector.load %arg14[%c0_51, %c0_52, %c0_53] : memref<4x1x32xf32, #tpu.memory_space<vmem>>, vector<1x1x32xf32>
    %81 = vector.shape_cast %80 : vector<1x1x32xf32> to vector<1x32xf32>
    %82 = vector.broadcast %81 : vector<1x32xf32> to vector<96x32xf32>
    %83 = arith.mulf %79, %82 : vector<96x32xf32>
    %c0_54 = arith.constant 0 : index
    %c0_55 = arith.constant 0 : index
    %c0_56 = arith.constant 0 : index
    %84 = vector.load %arg15[%c0_54, %c0_55, %c0_56] : memref<4x1x32xf32, #tpu.memory_space<vmem>>, vector<1x1x32xf32>
    %85 = vector.shape_cast %84 : vector<1x1x32xf32> to vector<1x32xf32>
    %86 = vector.broadcast %85 : vector<1x32xf32> to vector<96x32xf32>
    %87 = arith.addf %83, %86 : vector<96x32xf32>
    %88 = vector.shape_cast %87 : vector<96x32xf32> to vector<2x6x8x32xf32>
    %89 = vector.extract_strided_slice %88 {offsets = [0, 0, 0, 0], sizes = [2, 4, 8, 32], strides = [1, 1, 1, 1]} : vector<2x6x8x32xf32> to vector<2x4x8x32xf32>
    %90 = vector.shape_cast %89 : vector<2x4x8x32xf32> to vector<64x32xf32>
    %91 = vector.extract_strided_slice %88 {offsets = [0, 2, 0, 0], sizes = [2, 4, 8, 32], strides = [1, 1, 1, 1]} : vector<2x6x8x32xf32> to vector<2x4x8x32xf32>
    %92 = vector.shape_cast %91 : vector<2x4x8x32xf32> to vector<64x32xf32>
    %c1 = arith.constant 1 : index
    %c0_57 = arith.constant 0 : index
    %c0_58 = arith.constant 0 : index
    %93 = vector.load %arg5[%c1, %c0_57, %c0_58] : memref<4x32x64xf32, #tpu.memory_space<vmem>>, vector<1x32x64xf32>
    %94 = vector.shape_cast %93 : vector<1x32x64xf32> to vector<32x64xf32>
    %cst_59 = arith.constant dense<0.000000e+00> : vector<64x64xf32>
    %95 = tpu.matmul %90, %94, %cst_59 {dimension_numbers = #tpu.dot_dimension_numbers<[1], [0], [0], [1], [0, 0, 1, 1], [], []>} : vector<64x32xf32>, vector<32x64xf32>, vector<64x64xf32> -> vector<64x64xf32>
    %c1_60 = arith.constant 1 : index
    %c0_61 = arith.constant 0 : index
    %c0_62 = arith.constant 0 : index
    %96 = vector.load %arg6[%c1_60, %c0_61, %c0_62] : memref<4x32x64xf32, #tpu.memory_space<vmem>>, vector<1x32x64xf32>
    %97 = vector.shape_cast %96 : vector<1x32x64xf32> to vector<32x64xf32>
    %cst_63 = arith.constant dense<0.000000e+00> : vector<64x64xf32>
    %98 = tpu.matmul %92, %97, %cst_63 {dimension_numbers = #tpu.dot_dimension_numbers<[1], [0], [0], [1], [0, 0, 1, 1], [], []>} : vector<64x32xf32>, vector<32x64xf32>, vector<64x64xf32> -> vector<64x64xf32>
    %99 = arith.addf %95, %98 : vector<64x64xf32>
    %c1_64 = arith.constant 1 : index
    %c0_65 = arith.constant 0 : index
    %c0_66 = arith.constant 0 : index
    %100 = vector.load %arg7[%c1_64, %c0_65, %c0_66] : memref<4x1x64xf32, #tpu.memory_space<vmem>>, vector<1x1x64xf32>
    %101 = vector.shape_cast %100 : vector<1x1x64xf32> to vector<1x64xf32>
    %102 = vector.broadcast %101 : vector<1x64xf32> to vector<64x64xf32>
    %103 = arith.addf %99, %102 : vector<64x64xf32>
    %104 = vector.extract_strided_slice %103 {offsets = [0, 0], sizes = [64, 32], strides = [1, 1]} : vector<64x64xf32> to vector<64x32xf32>
    %105 = math.tanh %104 : vector<64x32xf32>
    %106 = vector.extract_strided_slice %103 {offsets = [0, 32], sizes = [64, 32], strides = [1, 1]} : vector<64x64xf32> to vector<64x32xf32>
    %107 = arith.negf %106 : vector<64x32xf32>
    %108 = math.exp %107 : vector<64x32xf32>
    %cst_67 = arith.constant 1.000000e+00 : f32
    %109 = vector.broadcast %cst_67 : f32 to vector<64x32xf32>
    %110 = arith.addf %109, %108 : vector<64x32xf32>
    %111 = arith.divf %109, %110 : vector<64x32xf32>
    %112 = arith.mulf %105, %111 : vector<64x32xf32>
    %c1_68 = arith.constant 1 : index
    %c0_69 = arith.constant 0 : index
    %c0_70 = arith.constant 0 : index
    %113 = vector.load %arg8[%c1_68, %c0_69, %c0_70] : memref<4x32x64xf32, #tpu.memory_space<vmem>>, vector<1x32x64xf32>
    %114 = vector.shape_cast %113 : vector<1x32x64xf32> to vector<32x64xf32>
    %cst_71 = arith.constant dense<0.000000e+00> : vector<64x64xf32>
    %115 = tpu.matmul %112, %114, %cst_71 {dimension_numbers = #tpu.dot_dimension_numbers<[1], [0], [0], [1], [0, 0, 1, 1], [], []>} : vector<64x32xf32>, vector<32x64xf32>, vector<64x64xf32> -> vector<64x64xf32>
    %c1_72 = arith.constant 1 : index
    %c0_73 = arith.constant 0 : index
    %c0_74 = arith.constant 0 : index
    %116 = vector.load %arg9[%c1_72, %c0_73, %c0_74] : memref<4x1x64xf32, #tpu.memory_space<vmem>>, vector<1x1x64xf32>
    %117 = vector.shape_cast %116 : vector<1x1x64xf32> to vector<1x64xf32>
    %118 = vector.broadcast %117 : vector<1x64xf32> to vector<64x64xf32>
    %119 = arith.addf %115, %118 : vector<64x64xf32>
    %120 = vector.shape_cast %119 : vector<64x64xf32> to vector<2x4x8x64xf32>
    %121 = vector.extract_strided_slice %54 {offsets = [0, 2, 0, 0], sizes = [2, 4, 8, 64], strides = [1, 1, 1, 1]} : vector<2x6x8x64xf32> to vector<2x4x8x64xf32>
    %122 = arith.addf %120, %121 : vector<2x4x8x64xf32>
    %123 = vector.shape_cast %112 : vector<64x32xf32> to vector<8x8x32xf32>
    %124 = vector.shape_cast %14 : vector<8x8xf32> to vector<1x8x8xf32>
    %125 = vector.broadcast %124 : vector<1x8x8xf32> to vector<8x8x8xf32>
    %cst_75 = arith.constant dense<0.000000e+00> : vector<8x8x32xf32>
    %126 = tpu.matmul %125, %123, %cst_75 {dimension_numbers = #tpu.dot_dimension_numbers<[2], [1], [1], [2], [0, 0, 0, 1, 1, 2], [0], [0]>} : vector<8x8x8xf32>, vector<8x8x32xf32>, vector<8x8x32xf32> -> vector<8x8x32xf32>
    %cst_76 = arith.constant dense<0.000000e+00> : vector<8x8x32xf32>
    %127 = tpu.matmul %125, %126, %cst_76 {dimension_numbers = #tpu.dot_dimension_numbers<[2], [1], [1], [2], [0, 0, 0, 1, 1, 2], [0], [0]>} : vector<8x8x8xf32>, vector<8x8x32xf32>, vector<8x8x32xf32> -> vector<8x8x32xf32>
    %c1_77 = arith.constant 1 : index
    %c0_78 = arith.constant 0 : index
    %c0_79 = arith.constant 0 : index
    %128 = vector.load %arg10[%c1_77, %c0_78, %c0_79] : memref<4x32x32xf32, #tpu.memory_space<vmem>>, vector<1x32x32xf32>
    %129 = vector.shape_cast %128 : vector<1x32x32xf32> to vector<32x32xf32>
    %cst_80 = arith.constant dense<0.000000e+00> : vector<64x32xf32>
    %130 = tpu.matmul %112, %129, %cst_80 {dimension_numbers = #tpu.dot_dimension_numbers<[1], [0], [0], [1], [0, 0, 1, 1], [], []>} : vector<64x32xf32>, vector<32x32xf32>, vector<64x32xf32> -> vector<64x32xf32>
    %131 = vector.shape_cast %126 : vector<8x8x32xf32> to vector<64x32xf32>
    %c1_81 = arith.constant 1 : index
    %c0_82 = arith.constant 0 : index
    %c0_83 = arith.constant 0 : index
    %132 = vector.load %arg11[%c1_81, %c0_82, %c0_83] : memref<4x32x32xf32, #tpu.memory_space<vmem>>, vector<1x32x32xf32>
    %133 = vector.shape_cast %132 : vector<1x32x32xf32> to vector<32x32xf32>
    %cst_84 = arith.constant dense<0.000000e+00> : vector<64x32xf32>
    %134 = tpu.matmul %131, %133, %cst_84 {dimension_numbers = #tpu.dot_dimension_numbers<[1], [0], [0], [1], [0, 0, 1, 1], [], []>} : vector<64x32xf32>, vector<32x32xf32>, vector<64x32xf32> -> vector<64x32xf32>
    %135 = arith.addf %130, %134 : vector<64x32xf32>
    %136 = vector.shape_cast %127 : vector<8x8x32xf32> to vector<64x32xf32>
    %c1_85 = arith.constant 1 : index
    %c0_86 = arith.constant 0 : index
    %c0_87 = arith.constant 0 : index
    %137 = vector.load %arg12[%c1_85, %c0_86, %c0_87] : memref<4x32x32xf32, #tpu.memory_space<vmem>>, vector<1x32x32xf32>
    %138 = vector.shape_cast %137 : vector<1x32x32xf32> to vector<32x32xf32>
    %cst_88 = arith.constant dense<0.000000e+00> : vector<64x32xf32>
    %139 = tpu.matmul %136, %138, %cst_88 {dimension_numbers = #tpu.dot_dimension_numbers<[1], [0], [0], [1], [0, 0, 1, 1], [], []>} : vector<64x32xf32>, vector<32x32xf32>, vector<64x32xf32> -> vector<64x32xf32>
    %140 = arith.addf %135, %139 : vector<64x32xf32>
    %c1_89 = arith.constant 1 : index
    %c0_90 = arith.constant 0 : index
    %c0_91 = arith.constant 0 : index
    %141 = vector.load %arg13[%c1_89, %c0_90, %c0_91] : memref<4x1x32xf32, #tpu.memory_space<vmem>>, vector<1x1x32xf32>
    %142 = vector.shape_cast %141 : vector<1x1x32xf32> to vector<1x32xf32>
    %143 = vector.broadcast %142 : vector<1x32xf32> to vector<64x32xf32>
    %144 = arith.addf %140, %143 : vector<64x32xf32>
    %145 = vector.extract_strided_slice %88 {offsets = [0, 2, 0, 0], sizes = [2, 4, 8, 32], strides = [1, 1, 1, 1]} : vector<2x6x8x32xf32> to vector<2x4x8x32xf32>
    %146 = vector.shape_cast %145 : vector<2x4x8x32xf32> to vector<64x32xf32>
    %147 = arith.addf %144, %146 : vector<64x32xf32>
    %c1_92 = arith.constant 1 : index
    %c0_93 = arith.constant 0 : index
    %c0_94 = arith.constant 0 : index
    %148 = vector.load %arg14[%c1_92, %c0_93, %c0_94] : memref<4x1x32xf32, #tpu.memory_space<vmem>>, vector<1x1x32xf32>
    %149 = vector.shape_cast %148 : vector<1x1x32xf32> to vector<1x32xf32>
    %150 = vector.broadcast %149 : vector<1x32xf32> to vector<64x32xf32>
    %151 = arith.mulf %147, %150 : vector<64x32xf32>
    %c1_95 = arith.constant 1 : index
    %c0_96 = arith.constant 0 : index
    %c0_97 = arith.constant 0 : index
    %152 = vector.load %arg15[%c1_95, %c0_96, %c0_97] : memref<4x1x32xf32, #tpu.memory_space<vmem>>, vector<1x1x32xf32>
    %153 = vector.shape_cast %152 : vector<1x1x32xf32> to vector<1x32xf32>
    %154 = vector.broadcast %153 : vector<1x32xf32> to vector<64x32xf32>
    %155 = arith.addf %151, %154 : vector<64x32xf32>
    %156 = vector.shape_cast %155 : vector<64x32xf32> to vector<2x4x8x32xf32>
    %157 = vector.extract_strided_slice %156 {offsets = [0, 0, 0, 0], sizes = [2, 3, 8, 32], strides = [1, 1, 1, 1]} : vector<2x4x8x32xf32> to vector<2x3x8x32xf32>
    %158 = vector.shape_cast %157 : vector<2x3x8x32xf32> to vector<48x32xf32>
    %159 = vector.extract_strided_slice %156 {offsets = [0, 1, 0, 0], sizes = [2, 3, 8, 32], strides = [1, 1, 1, 1]} : vector<2x4x8x32xf32> to vector<2x3x8x32xf32>
    %160 = vector.shape_cast %159 : vector<2x3x8x32xf32> to vector<48x32xf32>
    %c2 = arith.constant 2 : index
    %c0_98 = arith.constant 0 : index
    %c0_99 = arith.constant 0 : index
    %161 = vector.load %arg5[%c2, %c0_98, %c0_99] : memref<4x32x64xf32, #tpu.memory_space<vmem>>, vector<1x32x64xf32>
    %162 = vector.shape_cast %161 : vector<1x32x64xf32> to vector<32x64xf32>
    %cst_100 = arith.constant dense<0.000000e+00> : vector<48x64xf32>
    %163 = tpu.matmul %158, %162, %cst_100 {dimension_numbers = #tpu.dot_dimension_numbers<[1], [0], [0], [1], [0, 0, 1, 1], [], []>} : vector<48x32xf32>, vector<32x64xf32>, vector<48x64xf32> -> vector<48x64xf32>
    %c2_101 = arith.constant 2 : index
    %c0_102 = arith.constant 0 : index
    %c0_103 = arith.constant 0 : index
    %164 = vector.load %arg6[%c2_101, %c0_102, %c0_103] : memref<4x32x64xf32, #tpu.memory_space<vmem>>, vector<1x32x64xf32>
    %165 = vector.shape_cast %164 : vector<1x32x64xf32> to vector<32x64xf32>
    %cst_104 = arith.constant dense<0.000000e+00> : vector<48x64xf32>
    %166 = tpu.matmul %160, %165, %cst_104 {dimension_numbers = #tpu.dot_dimension_numbers<[1], [0], [0], [1], [0, 0, 1, 1], [], []>} : vector<48x32xf32>, vector<32x64xf32>, vector<48x64xf32> -> vector<48x64xf32>
    %167 = arith.addf %163, %166 : vector<48x64xf32>
    %c2_105 = arith.constant 2 : index
    %c0_106 = arith.constant 0 : index
    %c0_107 = arith.constant 0 : index
    %168 = vector.load %arg7[%c2_105, %c0_106, %c0_107] : memref<4x1x64xf32, #tpu.memory_space<vmem>>, vector<1x1x64xf32>
    %169 = vector.shape_cast %168 : vector<1x1x64xf32> to vector<1x64xf32>
    %170 = vector.broadcast %169 : vector<1x64xf32> to vector<48x64xf32>
    %171 = arith.addf %167, %170 : vector<48x64xf32>
    %172 = vector.extract_strided_slice %171 {offsets = [0, 0], sizes = [48, 32], strides = [1, 1]} : vector<48x64xf32> to vector<48x32xf32>
    %173 = math.tanh %172 : vector<48x32xf32>
    %174 = vector.extract_strided_slice %171 {offsets = [0, 32], sizes = [48, 32], strides = [1, 1]} : vector<48x64xf32> to vector<48x32xf32>
    %175 = arith.negf %174 : vector<48x32xf32>
    %176 = math.exp %175 : vector<48x32xf32>
    %cst_108 = arith.constant 1.000000e+00 : f32
    %177 = vector.broadcast %cst_108 : f32 to vector<48x32xf32>
    %178 = arith.addf %177, %176 : vector<48x32xf32>
    %179 = arith.divf %177, %178 : vector<48x32xf32>
    %180 = arith.mulf %173, %179 : vector<48x32xf32>
    %c2_109 = arith.constant 2 : index
    %c0_110 = arith.constant 0 : index
    %c0_111 = arith.constant 0 : index
    %181 = vector.load %arg8[%c2_109, %c0_110, %c0_111] : memref<4x32x64xf32, #tpu.memory_space<vmem>>, vector<1x32x64xf32>
    %182 = vector.shape_cast %181 : vector<1x32x64xf32> to vector<32x64xf32>
    %cst_112 = arith.constant dense<0.000000e+00> : vector<48x64xf32>
    %183 = tpu.matmul %180, %182, %cst_112 {dimension_numbers = #tpu.dot_dimension_numbers<[1], [0], [0], [1], [0, 0, 1, 1], [], []>} : vector<48x32xf32>, vector<32x64xf32>, vector<48x64xf32> -> vector<48x64xf32>
    %c2_113 = arith.constant 2 : index
    %c0_114 = arith.constant 0 : index
    %c0_115 = arith.constant 0 : index
    %184 = vector.load %arg9[%c2_113, %c0_114, %c0_115] : memref<4x1x64xf32, #tpu.memory_space<vmem>>, vector<1x1x64xf32>
    %185 = vector.shape_cast %184 : vector<1x1x64xf32> to vector<1x64xf32>
    %186 = vector.broadcast %185 : vector<1x64xf32> to vector<48x64xf32>
    %187 = arith.addf %183, %186 : vector<48x64xf32>
    %188 = vector.shape_cast %187 : vector<48x64xf32> to vector<2x3x8x64xf32>
    %189 = vector.extract_strided_slice %122 {offsets = [0, 1, 0, 0], sizes = [2, 3, 8, 64], strides = [1, 1, 1, 1]} : vector<2x4x8x64xf32> to vector<2x3x8x64xf32>
    %190 = arith.addf %188, %189 : vector<2x3x8x64xf32>
    %191 = vector.shape_cast %180 : vector<48x32xf32> to vector<6x8x32xf32>
    %192 = vector.shape_cast %14 : vector<8x8xf32> to vector<1x8x8xf32>
    %193 = vector.broadcast %192 : vector<1x8x8xf32> to vector<6x8x8xf32>
    %cst_116 = arith.constant dense<0.000000e+00> : vector<6x8x32xf32>
    %194 = tpu.matmul %193, %191, %cst_116 {dimension_numbers = #tpu.dot_dimension_numbers<[2], [1], [1], [2], [0, 0, 0, 1, 1, 2], [0], [0]>} : vector<6x8x8xf32>, vector<6x8x32xf32>, vector<6x8x32xf32> -> vector<6x8x32xf32>
    %cst_117 = arith.constant dense<0.000000e+00> : vector<6x8x32xf32>
    %195 = tpu.matmul %193, %194, %cst_117 {dimension_numbers = #tpu.dot_dimension_numbers<[2], [1], [1], [2], [0, 0, 0, 1, 1, 2], [0], [0]>} : vector<6x8x8xf32>, vector<6x8x32xf32>, vector<6x8x32xf32> -> vector<6x8x32xf32>
    %c2_118 = arith.constant 2 : index
    %c0_119 = arith.constant 0 : index
    %c0_120 = arith.constant 0 : index
    %196 = vector.load %arg10[%c2_118, %c0_119, %c0_120] : memref<4x32x32xf32, #tpu.memory_space<vmem>>, vector<1x32x32xf32>
    %197 = vector.shape_cast %196 : vector<1x32x32xf32> to vector<32x32xf32>
    %cst_121 = arith.constant dense<0.000000e+00> : vector<48x32xf32>
    %198 = tpu.matmul %180, %197, %cst_121 {dimension_numbers = #tpu.dot_dimension_numbers<[1], [0], [0], [1], [0, 0, 1, 1], [], []>} : vector<48x32xf32>, vector<32x32xf32>, vector<48x32xf32> -> vector<48x32xf32>
    %199 = vector.shape_cast %194 : vector<6x8x32xf32> to vector<48x32xf32>
    %c2_122 = arith.constant 2 : index
    %c0_123 = arith.constant 0 : index
    %c0_124 = arith.constant 0 : index
    %200 = vector.load %arg11[%c2_122, %c0_123, %c0_124] : memref<4x32x32xf32, #tpu.memory_space<vmem>>, vector<1x32x32xf32>
    %201 = vector.shape_cast %200 : vector<1x32x32xf32> to vector<32x32xf32>
    %cst_125 = arith.constant dense<0.000000e+00> : vector<48x32xf32>
    %202 = tpu.matmul %199, %201, %cst_125 {dimension_numbers = #tpu.dot_dimension_numbers<[1], [0], [0], [1], [0, 0, 1, 1], [], []>} : vector<48x32xf32>, vector<32x32xf32>, vector<48x32xf32> -> vector<48x32xf32>
    %203 = arith.addf %198, %202 : vector<48x32xf32>
    %204 = vector.shape_cast %195 : vector<6x8x32xf32> to vector<48x32xf32>
    %c2_126 = arith.constant 2 : index
    %c0_127 = arith.constant 0 : index
    %c0_128 = arith.constant 0 : index
    %205 = vector.load %arg12[%c2_126, %c0_127, %c0_128] : memref<4x32x32xf32, #tpu.memory_space<vmem>>, vector<1x32x32xf32>
    %206 = vector.shape_cast %205 : vector<1x32x32xf32> to vector<32x32xf32>
    %cst_129 = arith.constant dense<0.000000e+00> : vector<48x32xf32>
    %207 = tpu.matmul %204, %206, %cst_129 {dimension_numbers = #tpu.dot_dimension_numbers<[1], [0], [0], [1], [0, 0, 1, 1], [], []>} : vector<48x32xf32>, vector<32x32xf32>, vector<48x32xf32> -> vector<48x32xf32>
    %208 = arith.addf %203, %207 : vector<48x32xf32>
    %c2_130 = arith.constant 2 : index
    %c0_131 = arith.constant 0 : index
    %c0_132 = arith.constant 0 : index
    %209 = vector.load %arg13[%c2_130, %c0_131, %c0_132] : memref<4x1x32xf32, #tpu.memory_space<vmem>>, vector<1x1x32xf32>
    %210 = vector.shape_cast %209 : vector<1x1x32xf32> to vector<1x32xf32>
    %211 = vector.broadcast %210 : vector<1x32xf32> to vector<48x32xf32>
    %212 = arith.addf %208, %211 : vector<48x32xf32>
    %213 = vector.extract_strided_slice %156 {offsets = [0, 1, 0, 0], sizes = [2, 3, 8, 32], strides = [1, 1, 1, 1]} : vector<2x4x8x32xf32> to vector<2x3x8x32xf32>
    %214 = vector.shape_cast %213 : vector<2x3x8x32xf32> to vector<48x32xf32>
    %215 = arith.addf %212, %214 : vector<48x32xf32>
    %c2_133 = arith.constant 2 : index
    %c0_134 = arith.constant 0 : index
    %c0_135 = arith.constant 0 : index
    %216 = vector.load %arg14[%c2_133, %c0_134, %c0_135] : memref<4x1x32xf32, #tpu.memory_space<vmem>>, vector<1x1x32xf32>
    %217 = vector.shape_cast %216 : vector<1x1x32xf32> to vector<1x32xf32>
    %218 = vector.broadcast %217 : vector<1x32xf32> to vector<48x32xf32>
    %219 = arith.mulf %215, %218 : vector<48x32xf32>
    %c2_136 = arith.constant 2 : index
    %c0_137 = arith.constant 0 : index
    %c0_138 = arith.constant 0 : index
    %220 = vector.load %arg15[%c2_136, %c0_137, %c0_138] : memref<4x1x32xf32, #tpu.memory_space<vmem>>, vector<1x1x32xf32>
    %221 = vector.shape_cast %220 : vector<1x1x32xf32> to vector<1x32xf32>
    %222 = vector.broadcast %221 : vector<1x32xf32> to vector<48x32xf32>
    %223 = arith.addf %219, %222 : vector<48x32xf32>
    %224 = vector.shape_cast %223 : vector<48x32xf32> to vector<2x3x8x32xf32>
    %225 = vector.extract_strided_slice %224 {offsets = [0, 0, 0, 0], sizes = [2, 1, 8, 32], strides = [1, 1, 1, 1]} : vector<2x3x8x32xf32> to vector<2x1x8x32xf32>
    %226 = vector.shape_cast %225 : vector<2x1x8x32xf32> to vector<16x32xf32>
    %227 = vector.extract_strided_slice %224 {offsets = [0, 2, 0, 0], sizes = [2, 1, 8, 32], strides = [1, 1, 1, 1]} : vector<2x3x8x32xf32> to vector<2x1x8x32xf32>
    %228 = vector.shape_cast %227 : vector<2x1x8x32xf32> to vector<16x32xf32>
    %c3 = arith.constant 3 : index
    %c0_139 = arith.constant 0 : index
    %c0_140 = arith.constant 0 : index
    %229 = vector.load %arg5[%c3, %c0_139, %c0_140] : memref<4x32x64xf32, #tpu.memory_space<vmem>>, vector<1x32x64xf32>
    %230 = vector.shape_cast %229 : vector<1x32x64xf32> to vector<32x64xf32>
    %cst_141 = arith.constant dense<0.000000e+00> : vector<16x64xf32>
    %231 = tpu.matmul %226, %230, %cst_141 {dimension_numbers = #tpu.dot_dimension_numbers<[1], [0], [0], [1], [0, 0, 1, 1], [], []>} : vector<16x32xf32>, vector<32x64xf32>, vector<16x64xf32> -> vector<16x64xf32>
    %c3_142 = arith.constant 3 : index
    %c0_143 = arith.constant 0 : index
    %c0_144 = arith.constant 0 : index
    %232 = vector.load %arg6[%c3_142, %c0_143, %c0_144] : memref<4x32x64xf32, #tpu.memory_space<vmem>>, vector<1x32x64xf32>
    %233 = vector.shape_cast %232 : vector<1x32x64xf32> to vector<32x64xf32>
    %cst_145 = arith.constant dense<0.000000e+00> : vector<16x64xf32>
    %234 = tpu.matmul %228, %233, %cst_145 {dimension_numbers = #tpu.dot_dimension_numbers<[1], [0], [0], [1], [0, 0, 1, 1], [], []>} : vector<16x32xf32>, vector<32x64xf32>, vector<16x64xf32> -> vector<16x64xf32>
    %235 = arith.addf %231, %234 : vector<16x64xf32>
    %c3_146 = arith.constant 3 : index
    %c0_147 = arith.constant 0 : index
    %c0_148 = arith.constant 0 : index
    %236 = vector.load %arg7[%c3_146, %c0_147, %c0_148] : memref<4x1x64xf32, #tpu.memory_space<vmem>>, vector<1x1x64xf32>
    %237 = vector.shape_cast %236 : vector<1x1x64xf32> to vector<1x64xf32>
    %238 = vector.broadcast %237 : vector<1x64xf32> to vector<16x64xf32>
    %239 = arith.addf %235, %238 : vector<16x64xf32>
    %240 = vector.extract_strided_slice %239 {offsets = [0, 0], sizes = [16, 32], strides = [1, 1]} : vector<16x64xf32> to vector<16x32xf32>
    %241 = math.tanh %240 : vector<16x32xf32>
    %242 = vector.extract_strided_slice %239 {offsets = [0, 32], sizes = [16, 32], strides = [1, 1]} : vector<16x64xf32> to vector<16x32xf32>
    %243 = arith.negf %242 : vector<16x32xf32>
    %244 = math.exp %243 : vector<16x32xf32>
    %cst_149 = arith.constant 1.000000e+00 : f32
    %245 = vector.broadcast %cst_149 : f32 to vector<16x32xf32>
    %246 = arith.addf %245, %244 : vector<16x32xf32>
    %247 = arith.divf %245, %246 : vector<16x32xf32>
    %248 = arith.mulf %241, %247 : vector<16x32xf32>
    %c3_150 = arith.constant 3 : index
    %c0_151 = arith.constant 0 : index
    %c0_152 = arith.constant 0 : index
    %249 = vector.load %arg8[%c3_150, %c0_151, %c0_152] : memref<4x32x64xf32, #tpu.memory_space<vmem>>, vector<1x32x64xf32>
    %250 = vector.shape_cast %249 : vector<1x32x64xf32> to vector<32x64xf32>
    %cst_153 = arith.constant dense<0.000000e+00> : vector<16x64xf32>
    %251 = tpu.matmul %248, %250, %cst_153 {dimension_numbers = #tpu.dot_dimension_numbers<[1], [0], [0], [1], [0, 0, 1, 1], [], []>} : vector<16x32xf32>, vector<32x64xf32>, vector<16x64xf32> -> vector<16x64xf32>
    %c3_154 = arith.constant 3 : index
    %c0_155 = arith.constant 0 : index
    %c0_156 = arith.constant 0 : index
    %252 = vector.load %arg9[%c3_154, %c0_155, %c0_156] : memref<4x1x64xf32, #tpu.memory_space<vmem>>, vector<1x1x64xf32>
    %253 = vector.shape_cast %252 : vector<1x1x64xf32> to vector<1x64xf32>
    %254 = vector.broadcast %253 : vector<1x64xf32> to vector<16x64xf32>
    %255 = arith.addf %251, %254 : vector<16x64xf32>
    %256 = vector.shape_cast %255 : vector<16x64xf32> to vector<2x1x8x64xf32>
    %257 = vector.extract_strided_slice %190 {offsets = [0, 2, 0, 0], sizes = [2, 1, 8, 64], strides = [1, 1, 1, 1]} : vector<2x3x8x64xf32> to vector<2x1x8x64xf32>
    %258 = arith.addf %256, %257 : vector<2x1x8x64xf32>
    %259 = vector.shape_cast %258 : vector<2x1x8x64xf32> to vector<16x64xf32>
    %cst_157 = arith.constant 0.000000e+00 : f32
    %260 = vector.broadcast %cst_157 : f32 to vector<16x64xf32>
    %261 = arith.maximumf %259, %260 : vector<16x64xf32>
    %c0_158 = arith.constant 0 : index
    %c0_159 = arith.constant 0 : index
    %262 = vector.load %arg16[%c0_158, %c0_159] : memref<64x128xf32, #tpu.memory_space<vmem>>, vector<64x128xf32>
    %cst_160 = arith.constant dense<0.000000e+00> : vector<16x128xf32>
    %263 = tpu.matmul %261, %262, %cst_160 {dimension_numbers = #tpu.dot_dimension_numbers<[1], [0], [0], [1], [0, 0, 1, 1], [], []>} : vector<16x64xf32>, vector<64x128xf32>, vector<16x128xf32> -> vector<16x128xf32>
    %c0_161 = arith.constant 0 : index
    %c0_162 = arith.constant 0 : index
    %264 = vector.load %arg17[%c0_161, %c0_162] : memref<1x128xf32, #tpu.memory_space<vmem>>, vector<1x128xf32>
    %265 = vector.broadcast %264 : vector<1x128xf32> to vector<16x128xf32>
    %266 = arith.addf %263, %265 : vector<16x128xf32>
    %cst_163 = arith.constant 0.000000e+00 : f32
    %267 = vector.broadcast %cst_163 : f32 to vector<16x128xf32>
    %268 = arith.maximumf %266, %267 : vector<16x128xf32>
    %c0_164 = arith.constant 0 : index
    %c0_165 = arith.constant 0 : index
    %269 = vector.load %arg18[%c0_164, %c0_165] : memref<128x4xf32, #tpu.memory_space<vmem>>, vector<128x4xf32>
    %cst_166 = arith.constant dense<0.000000e+00> : vector<16x4xf32>
    %270 = tpu.matmul %268, %269, %cst_166 {dimension_numbers = #tpu.dot_dimension_numbers<[1], [0], [0], [1], [0, 0, 1, 1], [], []>} : vector<16x128xf32>, vector<128x4xf32>, vector<16x4xf32> -> vector<16x4xf32>
    %c0_167 = arith.constant 0 : index
    %c0_168 = arith.constant 0 : index
    %271 = vector.load %arg19[%c0_167, %c0_168] : memref<1x4xf32, #tpu.memory_space<vmem>>, vector<1x4xf32>
    %272 = vector.broadcast %271 : vector<1x4xf32> to vector<16x4xf32>
    %273 = arith.addf %270, %272 : vector<16x4xf32>
    %274 = vector.shape_cast %273 : vector<16x4xf32> to vector<2x1x8x4xf32>
    %c0_169 = arith.constant 0 : index
    %c0_170 = arith.constant 0 : index
    %c0_171 = arith.constant 0 : index
    %c0_172 = arith.constant 0 : index
    %275 = vector.load %arg20[%c0_169, %c0_170, %c0_171, %c0_172] : memref<2x1x8x4xf32, #tpu.memory_space<vmem>>, vector<2x1x8x4xf32>
    tpu.vector_store %arg20[%c0_169, %c0_170, %c0_171, %c0_172], %274 {strides = array<i32>} : memref<2x1x8x4xf32, #tpu.memory_space<vmem>>, vector<2x1x8x4xf32>,
    return
  }
}

</mosaic_0001>

<llo_original>
// kernel: _lambda_.1
$region0: #{_lambda_.1}
  #allocation0 [shape = 'u32[]', space=smem, size = 0x4, offset = 0x4, fixed_abs, tag = 'smem constant byte address 0x4 - core index']
  #allocation1 [shape = 'u32[144,128]{1,0:T(1,128)}', space=vmem, size = 0x12000, scoped, tag = 'internal scratch']
  %s0 = inlined_call_operand.vmem [shape: f32[2,7,8,2], index: 0, kind: input, shape index: {}]
  %s1 = inlined_call_operand.vmem [shape: f32[2,32], index: 1, kind: input, shape index: {}]
  %s2 = inlined_call_operand.hbm [shape: f32[1,32], index: 2, kind: input, shape index: {}]
  %s3 = inlined_call_operand.vmem [shape: f32[8,4], index: 3, kind: input, shape index: {}]
  %s4 = inlined_call_operand.vmem [shape: f32[4,8], index: 4, kind: input, shape index: {}]
  %s5 = inlined_call_operand.vmem [shape: f32[4,32,64], index: 5, kind: input, shape index: {}]
  %s6 = inlined_call_operand.vmem [shape: f32[4,32,64], index: 6, kind: input, shape index: {}]
  %s7 = inlined_call_operand.hbm [shape: f32[4,1,64], index: 7, kind: input, shape index: {}]
  %s8 = inlined_call_operand.vmem [shape: f32[4,32,64], index: 8, kind: input, shape index: {}]
  %s9 = inlined_call_operand.hbm [shape: f32[4,1,64], index: 9, kind: input, shape index: {}]
  %s10 = inlined_call_operand.vmem [shape: f32[4,32,32], index: 10, kind: input, shape index: {}]
  %s11 = inlined_call_operand.hbm [shape: f32[4,32,32], index: 11, kind: input, shape index: {}]
  %s12 = inlined_call_operand.hbm [shape: f32[4,32,32], index: 12, kind: input, shape index: {}]
  %s13 = inlined_call_operand.hbm [shape: f32[4,1,32], index: 13, kind: input, shape index: {}]
  %s14 = inlined_call_operand.hbm [shape: f32[4,1,32], index: 14, kind: input, shape index: {}]
  %s15 = inlined_call_operand.hbm [shape: f32[4,1,32], index: 15, kind: input, shape index: {}]
  %s16 = inlined_call_operand.hbm [shape: f32[64,128], index: 16, kind: input, shape index: {}]
  %s17 = inlined_call_operand.hbm [shape: f32[1,128], index: 17, kind: input, shape index: {}]
  %s18 = inlined_call_operand.vmem [shape: f32[128,4], index: 18, kind: input, shape index: {}]
  %s19 = inlined_call_operand.hbm [shape: f32[1,4], index: 19, kind: input, shape index: {}]
  %s20 = inlined_call_operand.vmem [shape: f32[2,1,8,4], index: 20, kind: output, shape index: {}]
  %s21 = sld [smem:[#allocation0]]
  $region134: #{_lambda_.1} parent=0
    _
  %s23 = ssub.s32 1, %s21
  %s24 = scalar_select 0, %s23, %s21
  $region1: #{_lambda_.1} parent=0
    #allocation2 [shape = 'u8[512]{0}', space=vmem, size = 0x400, scoped, tag = 'input window, operand 2, single buffered']
    #allocation3 [shape = 's32[1]{0}', space=sflag, size = 0x4, scoped, tag = 'scoped memory for _lambda_.1']
    #allocation4 [shape = 'u8[2048]{0}', space=vmem, size = 0x800, scoped, tag = 'input window, operand 7, single buffered']
    #allocation5 [shape = 's32[1]{0}', space=sflag, size = 0x4, scoped, tag = 'scoped memory for _lambda_.1']
    #allocation6 [shape = 'u8[2048]{0}', space=vmem, size = 0x800, scoped, tag = 'input window, operand 9, single buffered']
    #allocation7 [shape = 'u8[65536]{0}', space=vmem, size = 0x10000, scoped, tag = 'input window, operand 11, single buffered']
    #allocation8 [shape = 's32[1]{0}', space=sflag, size = 0x4, scoped, tag = 'scoped memory for _lambda_.1']
    #allocation9 [shape = 'u8[65536]{0}', space=vmem, size = 0x10000, scoped, tag = 'input window, operand 12, single buffered']
    #allocation10 [shape = 'u8[2048]{0}', space=vmem, size = 0x800, scoped, tag = 'input window, operand 13, single buffered']
    #allocation11 [shape = 's32[1]{0}', space=sflag, size = 0x4, scoped, tag = 'scoped memory for _lambda_.1']
    #allocation12 [shape = 'u8[2048]{0}', space=vmem, size = 0x800, scoped, tag = 'input window, operand 14, single buffered']
    #allocation13 [shape = 'u8[2048]{0}', space=vmem, size = 0x800, scoped, tag = 'input window, operand 15, single buffered']
    #allocation14 [shape = 's32[1]{0}', space=sflag, size = 0x4, scoped, tag = 'scoped memory for _lambda_.1']
    #allocation15 [shape = 'u8[32768]{0}', space=vmem, size = 0x8000, scoped, tag = 'input window, operand 16, single buffered']
    #allocation16 [shape = 'u8[512]{0}', space=vmem, size = 0x400, scoped, tag = 'input window, operand 17, single buffered']
    #allocation17 [shape = 's32[1]{0}', space=sflag, size = 0x4, scoped, tag = 'scoped memory for _lambda_.1']
    #allocation18 [shape = 'u8[512]{0}', space=vmem, size = 0x400, scoped, tag = 'input window, operand 19, single buffered']
    %25 = vsyncpa [#allocation3], 0
    %26 = vsyncpa [#allocation5], 0
    %27 = vsyncpa [#allocation8], 0
    %28 = vsyncpa [#allocation11], 0
    %29 = vsyncpa [#allocation14], 0
    %30 = vsyncpa [#allocation17], 0
    // Predicated region
    $region2: #{_lambda_.1} parent=1 // pred_check
      _
    $region3: #{_lambda_.1} parent=1 // pred_check_branch
      %32 = sbr.rel (0) target = $region5
    $region4: #{_lambda_.1} parent=1 // pred_region
      _
    $region5: #{_lambda_.1} parent=1 // pred_fallthru
      _
    // Predicated region
    $region6: #{_lambda_.1} parent=1 // pred_check
      _
    $region7: #{_lambda_.1} parent=1 // pred_check_branch
      %34 = sbr.rel (0) target = $region9
    $region8: #{_lambda_.1} parent=1 // pred_region
      _
    $region9: #{_lambda_.1} parent=1 // pred_fallthru
      _
    // Predicated region
    $region10: #{_lambda_.1} parent=1 // pred_check
      _
    $region11: #{_lambda_.1} parent=1 // pred_check_branch
      %36 = sbr.rel (0) target = $region13
    $region12: #{_lambda_.1} parent=1 // pred_region
      %s38 = ssub.s32 16, 16
      %39 = vsyncadd [#allocation3], %s38
      %s41 = sshll.u32 [#allocation2], 4
      %s42 = int_to_ptr.vmem [resolvable:$true] %s41
      %44 = dma.hbm_to_vmem [thread:$0]  %s2, 16, %s42, [#allocation3]
    $region13: #{_lambda_.1} parent=1 // pred_fallthru
      _
    // Predicated region
    $region14: #{_lambda_.1} parent=1 // pred_check
      _
    $region15: #{_lambda_.1} parent=1 // pred_check_branch
      %46 = sbr.rel (0) target = $region17
    $region16: #{_lambda_.1} parent=1 // pred_region
      _
    $region17: #{_lambda_.1} parent=1 // pred_fallthru
      _
    // Predicated region
    $region18: #{_lambda_.1} parent=1 // pred_check
      _
    $region19: #{_lambda_.1} parent=1 // pred_check_branch
      %48 = sbr.rel (0) target = $region21
    $region20: #{_lambda_.1} parent=1 // pred_region
      _
    $region21: #{_lambda_.1} parent=1 // pred_fallthru
      _
    // Predicated region
    $region22: #{_lambda_.1} parent=1 // pred_check
      _
    $region23: #{_lambda_.1} parent=1 // pred_check_branch
      %50 = sbr.rel (0) target = $region25
    $region24: #{_lambda_.1} parent=1 // pred_region
      _
    $region25: #{_lambda_.1} parent=1 // pred_fallthru
      _
    // Predicated region
    $region26: #{_lambda_.1} parent=1 // pred_check
      _
    $region27: #{_lambda_.1} parent=1 // pred_check_branch
      %52 = sbr.rel (0) target = $region29
    $region28: #{_lambda_.1} parent=1 // pred_region
      _
    $region29: #{_lambda_.1} parent=1 // pred_fallthru
      _
    // Predicated region
    $region30: #{_lambda_.1} parent=1 // pred_check
      _
    $region31: #{_lambda_.1} parent=1 // pred_check_branch
      %54 = sbr.rel (0) target = $region33
    $region32: #{_lambda_.1} parent=1 // pred_region
      %s56 = ssub.s32 64, 64
      %57 = vsyncadd [#allocation5], %s56
      %s58 = sshll.u32 [#allocation4], 4
      %s59 = int_to_ptr.vmem [resolvable:$true] %s58
      %64 = dma.hbm_to_vmem [thread:$0]  %s7, 64, %s59, [#allocation5], 16, 16, 1
    $region33: #{_lambda_.1} parent=1 // pred_fallthru
      _
    // Predicated region
    $region34: #{_lambda_.1} parent=1 // pred_check
      _
    $region35: #{_lambda_.1} parent=1 // pred_check_branch
      %66 = sbr.rel (0) target = $region37
    $region36: #{_lambda_.1} parent=1 // pred_region
      _
    $region37: #{_lambda_.1} parent=1 // pred_fallthru
      _
    // Predicated region
    $region38: #{_lambda_.1} parent=1 // pred_check
      _
    $region39: #{_lambda_.1} parent=1 // pred_check_branch
      %68 = sbr.rel (0) target = $region41
    $region40: #{_lambda_.1} parent=1 // pred_region
      %s70 = ssub.s32 64, 64
      %71 = vsyncadd [#allocation5], %s70
      %s72 = sshll.u32 [#allocation6], 4
      %s73 = int_to_ptr.vmem [resolvable:$true] %s72
      %78 = dma.hbm_to_vmem [thread:$0]  %s9, 64, %s73, [#allocation5], 16, 16, 1
    $region41: #{_lambda_.1} parent=1 // pred_fallthru
      _
    // Predicated region
    $region42: #{_lambda_.1} parent=1 // pred_check
      _
    $region43: #{_lambda_.1} parent=1 // pred_check_branch
      %80 = sbr.rel (0) target = $region45
    $region44: #{_lambda_.1} parent=1 // pred_region
      _
    $region45: #{_lambda_.1} parent=1 // pred_fallthru
      _
    // Predicated region
    $region46: #{_lambda_.1} parent=1 // pred_check
      _
    $region47: #{_lambda_.1} parent=1 // pred_check_branch
      %82 = sbr.rel (0) target = $region49
    $region48: #{_lambda_.1} parent=1 // pred_region
      %s84 = ssub.s32 2048, 2048
      %85 = vsyncadd [#allocation8], %s84
      %s86 = sshll.u32 [#allocation7], 4
      %s87 = int_to_ptr.vmem [resolvable:$true] %s86
      %92 = dma.hbm_to_vmem [thread:$0]  %s11, 2048, %s87, [#allocation8], 128, 128, 8
    $region49: #{_lambda_.1} parent=1 // pred_fallthru
      _
    // Predicated region
    $region50: #{_lambda_.1} parent=1 // pred_check
      _
    $region51: #{_lambda_.1} parent=1 // pred_check_branch
      %94 = sbr.rel (0) target = $region53
    $region52: #{_lambda_.1} parent=1 // pred_region
      %s96 = ssub.s32 2048, 2048
      %97 = vsyncadd [#allocation8], %s96
      %s98 = sshll.u32 [#allocation9], 4
      %s99 = int_to_ptr.vmem [resolvable:$true] %s98
      %104 = dma.hbm_to_vmem [thread:$0]  %s12, 2048, %s99, [#allocation8], 128, 128, 8
    $region53: #{_lambda_.1} parent=1 // pred_fallthru
      _
    // Predicated region
    $region54: #{_lambda_.1} parent=1 // pred_check
      _
    $region55: #{_lambda_.1} parent=1 // pred_check_branch
      %106 = sbr.rel (0) target = $region57
    $region56: #{_lambda_.1} parent=1 // pred_region
      %s108 = ssub.s32 64, 64
      %109 = vsyncadd [#allocation11], %s108
      %s110 = sshll.u32 [#allocation10], 4
      %s111 = int_to_ptr.vmem [resolvable:$true] %s110
      %116 = dma.hbm_to_vmem [thread:$0]  %s13, 64, %s111, [#allocation11], 16, 16, 1
    $region57: #{_lambda_.1} parent=1 // pred_fallthru
      _
    // Predicated region
    $region58: #{_lambda_.1} parent=1 // pred_check
      _
    $region59: #{_lambda_.1} parent=1 // pred_check_branch
      %118 = sbr.rel (0) target = $region61
    $region60: #{_lambda_.1} parent=1 // pred_region
      %s120 = ssub.s32 64, 64
      %121 = vsyncadd [#allocation11], %s120
      %s122 = sshll.u32 [#allocation12], 4
      %s123 = int_to_ptr.vmem [resolvable:$true] %s122
      %128 = dma.hbm_to_vmem [thread:$0]  %s14, 64, %s123, [#allocation11], 16, 16, 1
    $region61: #{_lambda_.1} parent=1 // pred_fallthru
      _
    // Predicated region
    $region62: #{_lambda_.1} parent=1 // pred_check
      _
    $region63: #{_lambda_.1} parent=1 // pred_check_branch
      %130 = sbr.rel (0) target = $region65
    $region64: #{_lambda_.1} parent=1 // pred_region
      %s132 = ssub.s32 64, 64
      %133 = vsyncadd [#allocation14], %s132
      %s134 = sshll.u32 [#allocation13], 4
      %s135 = int_to_ptr.vmem [resolvable:$true] %s134
      %140 = dma.hbm_to_vmem [thread:$0]  %s15, 64, %s135, [#allocation14], 16, 16, 1
    $region65: #{_lambda_.1} parent=1 // pred_fallthru
      _
    // Predicated region
    $region66: #{_lambda_.1} parent=1 // pred_check
      _
    $region67: #{_lambda_.1} parent=1 // pred_check_branch
      %142 = sbr.rel (0) target = $region69
    $region68: #{_lambda_.1} parent=1 // pred_region
      %s144 = ssub.s32 1024, 1024
      %145 = vsyncadd [#allocation14], %s144
      %s146 = sshll.u32 [#allocation15], 4
      %s147 = int_to_ptr.vmem [resolvable:$true] %s146
      %152 = dma.hbm_to_vmem [thread:$0]  %s16, 1024, %s147, [#allocation14], 128, 128, 8
    $region69: #{_lambda_.1} parent=1 // pred_fallthru
      _
    // Predicated region
    $region70: #{_lambda_.1} parent=1 // pred_check
      _
    $region71: #{_lambda_.1} parent=1 // pred_check_branch
      %154 = sbr.rel (0) target = $region73
    $region72: #{_lambda_.1} parent=1 // pred_region
      %s156 = ssub.s32 16, 16
      %157 = vsyncadd [#allocation17], %s156
      %s159 = sshll.u32 [#allocation16], 4
      %s160 = int_to_ptr.vmem [resolvable:$true] %s159
      %162 = dma.hbm_to_vmem [thread:$0]  %s17, 16, %s160, [#allocation17]
    $region73: #{_lambda_.1} parent=1 // pred_fallthru
      _
    // Predicated region
    $region74: #{_lambda_.1} parent=1 // pred_check
      _
    $region75: #{_lambda_.1} parent=1 // pred_check_branch
      %164 = sbr.rel (0) target = $region77
    $region76: #{_lambda_.1} parent=1 // pred_region
      _
    $region77: #{_lambda_.1} parent=1 // pred_fallthru
      _
    // Predicated region
    $region78: #{_lambda_.1} parent=1 // pred_check
      _
    $region79: #{_lambda_.1} parent=1 // pred_check_branch
      %166 = sbr.rel (0) target = $region81
    $region80: #{_lambda_.1} parent=1 // pred_region
      %s168 = ssub.s32 16, 16
      %169 = vsyncadd [#allocation17], %s168
      %s171 = sshll.u32 [#allocation18], 4
      %s172 = int_to_ptr.vmem [resolvable:$true] %s171
      %174 = dma.hbm_to_vmem [thread:$0]  %s19, 16, %s172, [#allocation17]
    $region81: #{_lambda_.1} parent=1 // pred_fallthru
      _
    // Predicated region
    $region82: #{_lambda_.1} parent=1 // pred_check
      _
    $region83: #{_lambda_.1} parent=1 // pred_check_branch
      %176 = sbr.rel (0) target = $region85
    $region84: #{_lambda_.1} parent=1 // pred_region
      %177 = dma.done [#allocation3], 16
    $region85: #{_lambda_.1} parent=1 // pred_fallthru
      _
    // Predicated region
    $region86: #{_lambda_.1} parent=1 // pred_check
      _
    $region87: #{_lambda_.1} parent=1 // pred_check_branch
      %179 = sbr.rel (0) target = $region89
    $region88: #{_lambda_.1} parent=1 // pred_region
      %180 = dma.done [#allocation5], 64
    $region89: #{_lambda_.1} parent=1 // pred_fallthru
      _
    // Predicated region
    $region90: #{_lambda_.1} parent=1 // pred_check
      _
    $region91: #{_lambda_.1} parent=1 // pred_check_branch
      %182 = sbr.rel (0) target = $region93
    $region92: #{_lambda_.1} parent=1 // pred_region
      %183 = dma.done [#allocation5], 64
    $region93: #{_lambda_.1} parent=1 // pred_fallthru
      _
    // Predicated region
    $region94: #{_lambda_.1} parent=1 // pred_check
      _
    $region95: #{_lambda_.1} parent=1 // pred_check_branch
      %185 = sbr.rel (0) target = $region97
    $region96: #{_lambda_.1} parent=1 // pred_region
      %186 = dma.done [#allocation8], 2048
    $region97: #{_lambda_.1} parent=1 // pred_fallthru
      _
    // Predicated region
    $region98: #{_lambda_.1} parent=1 // pred_check
      _
    $region99: #{_lambda_.1} parent=1 // pred_check_branch
      %188 = sbr.rel (0) target = $region101
    $region100: #{_lambda_.1} parent=1 // pred_region
      %189 = dma.done [#allocation8], 2048
    $region101: #{_lambda_.1} parent=1 // pred_fallthru
      _
    // Predicated region
    $region102: #{_lambda_.1} parent=1 // pred_check
      _
    $region103: #{_lambda_.1} parent=1 // pred_check_branch
      %191 = sbr.rel (0) target = $region105
    $region104: #{_lambda_.1} parent=1 // pred_region
      %192 = dma.done [#allocation11], 64
    $region105: #{_lambda_.1} parent=1 // pred_fallthru
      _
    // Predicated region
    $region106: #{_lambda_.1} parent=1 // pred_check
      _
    $region107: #{_lambda_.1} parent=1 // pred_check_branch
      %194 = sbr.rel (0) target = $region109
    $region108: #{_lambda_.1} parent=1 // pred_region
      %195 = dma.done [#allocation11], 64
    $region109: #{_lambda_.1} parent=1 // pred_fallthru
      _
    // Predicated region
    $region110: #{_lambda_.1} parent=1 // pred_check
      _
    $region111: #{_lambda_.1} parent=1 // pred_check_branch
      %197 = sbr.rel (0) target = $region113
    $region112: #{_lambda_.1} parent=1 // pred_region
      %198 = dma.done [#allocation14], 64
    $region113: #{_lambda_.1} parent=1 // pred_fallthru
      _
    // Predicated region
    $region114: #{_lambda_.1} parent=1 // pred_check
      _
    $region115: #{_lambda_.1} parent=1 // pred_check_branch
      %200 = sbr.rel (0) target = $region117
    $region116: #{_lambda_.1} parent=1 // pred_region
      %201 = dma.done [#allocation14], 1024
    $region117: #{_lambda_.1} parent=1 // pred_fallthru
      _
    // Predicated region
    $region118: #{_lambda_.1} parent=1 // pred_check
      _
    $region119: #{_lambda_.1} parent=1 // pred_check_branch
      %203 = sbr.rel (0) target = $region121
    $region120: #{_lambda_.1} parent=1 // pred_region
      %204 = dma.done [#allocation17], 16
    $region121: #{_lambda_.1} parent=1 // pred_fallthru
      _
    // Predicated region
    $region122: #{_lambda_.1} parent=1 // pred_check
      _
    $region123: #{_lambda_.1} parent=1 // pred_check_branch
      %206 = sbr.rel (0) target = $region125
    $region124: #{_lambda_.1} parent=1 // pred_region
      %207 = dma.done [#allocation17], 16
    $region125: #{_lambda_.1} parent=1 // pred_fallthru
      _
    %v208 = vld [vmem:[%s3] sm:$0xff]
    %v209 = vld [vmem:[%s4] sm:$0xf]
    %vm210 = vcmask 31744
    %v212 = vsel %vm210, %v208, 0
    %vm214 = vcmask 1043456
    %v216 = vsel %vm214, %v209, 0
    %218 = vmatprep.subr.mxu0 0.0
    %219 = vmatpush1.msra.mxu0 %v216
    %220 = vmatprep.subr.mxu0 0.0
    %221 = vmatpush1.msra.mxu0 0.0
    %222 = vmatprep.subr.mxu0 0.0
    %223 = vmatpush1.msra.mxu0 0.0
    %224 = vmatprep.subr.mxu0 0.0
    %225 = vmatpush1.msra.mxu0 0.0
    %226 = vmatprep.subr.mxu0 0.0
    %227 = vmatpush1.msra.mxu0 0.0
    %228 = vmatprep.subr.mxu0 0.0
    %229 = vmatpush1.msra.mxu0 0.0
    %230 = vmatprep.subr.mxu0 0.0
    %231 = vmatpush1.msra.mxu0 0.0
    %232 = vmatprep.subr.mxu0 0.0
    %233 = vmatpush1.msra.mxu0 0.0
    %234 = vmatprep.subr.mxu0 0.0
    %235 = vmatpush1.msra.mxu0 0.0
    %236 = vmatprep.subr.mxu0 0.0
    %237 = vmatpush1.msra.mxu0 0.0
    %238 = vmatprep.subr.mxu0 0.0
    %239 = vmatpush1.msra.mxu0 0.0
    %240 = vmatprep.subr.mxu0 0.0
    %241 = vmatpush1.msra.mxu0 0.0
    %242 = vmatprep.subr.mxu0 0.0
    %243 = vmatpush1.msra.mxu0 0.0
    %244 = vmatprep.subr.mxu0 0.0
    %245 = vmatpush1.msra.mxu0 0.0
    %246 = vmatprep.subr.mxu0 0.0
    %247 = vmatpush1.msra.mxu0 0.0
    %248 = vmatprep.subr.mxu0 0.0
    %249 = vmatpush1.msra.mxu0 0.0
    %250 = vmatprep.subr.mxu0 0.0
    %251 = vmatpush1.msra.mxu0 0.0
    %252 = vmatprep.subr.mxu0 0.0
    %253 = vmatpush1.msra.mxu0 0.0
    %254 = vmatprep.subr.mxu0 0.0
    %255 = vmatpush1.msra.mxu0 0.0
    %256 = vmatprep.subr.mxu0 0.0
    %257 = vmatpush1.msra.mxu0 0.0
    %258 = vmatprep.subr.mxu0 0.0
    %259 = vmatpush1.msra.mxu0 0.0
    %260 = vmatprep.subr.mxu0 0.0
    %261 = vmatpush1.msra.mxu0 0.0
    %262 = vmatprep.subr.mxu0 0.0
    %263 = vmatpush1.msra.mxu0 0.0
    %264 = vmatprep.subr.mxu0 0.0
    %265 = vmatpush1.msra.mxu0 0.0
    %266 = vmatprep.subr.mxu0 0.0
    %267 = vmatpush1.msra.mxu0 0.0
    %268 = vmatprep.subr.mxu0 0.0
    %269 = vmatpush1.msra.mxu0 0.0
    %270 = vmatprep.subr.mxu0 0.0
    %271 = vmatpush1.msra.mxu0 0.0
    %272 = vmatprep.subr.mxu0 0.0
    %273 = vmatpush1.msra.mxu0 0.0
    %274 = vmatprep.subr.mxu0 0.0
    %275 = vmatpush1.msra.mxu0 0.0
    %276 = vmatprep.subr.mxu0 0.0
    %277 = vmatpush1.msra.mxu0 0.0
    %278 = vmatprep.subr.mxu0 0.0
    %279 = vmatpush1.msra.mxu0 0.0
    %280 = vmatprep.subr.mxu0 0.0
    %281 = vmatpush1.msra.mxu0 0.0
    %282 = vmatprep.mubr.f32.mxu0 0.0
    %283 = vmatmul.mubr.f32.gmra.mrb[0].mxu0 %v212
    %v284 = vpop.f32.mrb[0].mxu0
    %v285 = vadd.f32 0.0, %v284
    %v286 = vpop.f32.mrb[0].mxu0
    %287 = vdwg.mxu0
    %v288 = vmax.f32 %v285, 0.0
    %vm289 = vcmask 64512
    %v290 = vsel %vm289, %v288, -inf
    %v291 = vrot.slane %v290, 4
    %v292 = vmax.f32 %v290, %v291
    %v293 = vrot.slane %v292, 2
    %v294 = vmax.f32 %v292, %v293
    %v295 = vrot.slane %v294, 1
    %v296 = vmax.f32 %v294, %v295
    %v297 = vsub.f32 %v288, %v296
    %v298 = vmul.f32 %v297, 1.442695
    %v299 = vpow.pop %v298
    %v300 = vsel %vm289, %v299, 0.0
    %v301 = vrot.slane %v300, 4
    %v302 = vadd.f32 %v300, %v301
    %v303 = vrot.slane %v302, 2
    %v304 = vadd.f32 %v302, %v303
    %v305 = vrot.slane %v304, 1
    %v306 = vadd.f32 %v304, %v305
    %v307 = vrcp.pop %v306
    %v308 = vmul.f32 %v299, %v307
    %v309 = vld [vmem:[%s0] sm:$0xff]
    %v310 = vld [vmem:[%s0 + $0x8] sm:$0xff]
    %v311 = vld [vmem:[%s0 + $0x10] sm:$0xff]
    %v312 = vld [vmem:[%s0 + $0x18] sm:$0xff]
    %v313 = vld [vmem:[%s0 + $0x20] sm:$0xff]
    %v314 = vld [vmem:[%s0 + $0x28] sm:$0xff]
    %v315 = vld [vmem:[%s0 + $0x30] sm:$0xff]
    %v316 = vld [vmem:[%s0 + $0x38] sm:$0xff]
    %v317 = vld [vmem:[%s0 + $0x40] sm:$0xff]
    %v318 = vld [vmem:[%s0 + $0x48] sm:$0xff]
    %v319 = vld [vmem:[%s0 + $0x50] sm:$0xff]
    %v320 = vld [vmem:[%s0 + $0x58] sm:$0xff]
    %v321 = vld [vmem:[%s0 + $0x60] sm:$0xff]
    %v322 = vld [vmem:[%s0 + $0x68] sm:$0xff]
    %v323 = vld [vmem:[%s1] sm:$0x3]
    %v324 = vld [vmem:[#allocation2] sm:$0x1]
    %v326 = vlaneseq
    %v327 = vshrl.u32 %v326, 7
    %v328 = vsub.s32 0, %v327
    %v329 = vrot.slane %v324, %v328
    %vm331 = vcmask 15360
    %v333 = vsel %vm331, %v309, 0
    %v336 = vsel %vm331, %v310, 0
    %v339 = vsel %vm331, %v311, 0
    %v342 = vsel %vm331, %v312, 0
    %v345 = vsel %vm331, %v313, 0
    %v348 = vsel %vm331, %v314, 0
    %v351 = vsel %vm331, %v315, 0
    %v354 = vsel %vm331, %v316, 0
    %v357 = vsel %vm331, %v317, 0
    %v360 = vsel %vm331, %v318, 0
    %v363 = vsel %vm331, %v319, 0
    %v366 = vsel %vm331, %v320, 0
    %v369 = vsel %vm331, %v321, 0
    %v372 = vsel %vm331, %v322, 0
    %vm374 = vcmask 1041408
    %v376 = vsel %vm374, %v323, 0
    %378 = vmatprep.subr.mxu0 0.0
    %379 = vmatpush1.msra.mxu0 %v376
    %380 = vmatprep.subr.mxu0 0.0
    %381 = vmatpush1.msra.mxu0 0.0
    %382 = vmatprep.subr.mxu0 0.0
    %383 = vmatpush1.msra.mxu0 0.0
    %384 = vmatprep.subr.mxu0 0.0
    %385 = vmatpush1.msra.mxu0 0.0
    %386 = vmatprep.subr.mxu0 0.0
    %387 = vmatpush1.msra.mxu0 0.0
    %388 = vmatprep.subr.mxu0 0.0
    %389 = vmatpush1.msra.mxu0 0.0
    %390 = vmatprep.subr.mxu0 0.0
    %391 = vmatpush1.msra.mxu0 0.0
    %392 = vmatprep.subr.mxu0 0.0
    %393 = vmatpush1.msra.mxu0 0.0
    %394 = vmatprep.subr.mxu0 0.0
    %395 = vmatpush1.msra.mxu0 0.0
    %396 = vmatprep.subr.mxu0 0.0
    %397 = vmatpush1.msra.mxu0 0.0
    %398 = vmatprep.subr.mxu0 0.0
    %399 = vmatpush1.msra.mxu0 0.0
    %400 = vmatprep.subr.mxu0 0.0
    %401 = vmatpush1.msra.mxu0 0.0
    %402 = vmatprep.subr.mxu0 0.0
    %403 = vmatpush1.msra.mxu0 0.0
    %404 = vmatprep.subr.mxu0 0.0
    %405 = vmatpush1.msra.mxu0 0.0
    %406 = vmatprep.subr.mxu0 0.0
    %407 = vmatpush1.msra.mxu0 0.0
    %408 = vmatprep.subr.mxu0 0.0
    %409 = vmatpush1.msra.mxu0 0.0
    %410 = vmatprep.subr.mxu0 0.0
    %411 = vmatpush1.msra.mxu0 0.0
    %412 = vmatprep.subr.mxu0 0.0
    %413 = vmatpush1.msra.mxu0 0.0
    %414 = vmatprep.subr.mxu0 0.0
    %415 = vmatpush1.msra.mxu0 0.0
    %416 = vmatprep.subr.mxu0 0.0
    %417 = vmatpush1.msra.mxu0 0.0
    %418 = vmatprep.subr.mxu0 0.0
    %419 = vmatpush1.msra.mxu0 0.0
    %420 = vmatprep.subr.mxu0 0.0
    %421 = vmatpush1.msra.mxu0 0.0
    %422 = vmatprep.subr.mxu0 0.0
    %423 = vmatpush1.msra.mxu0 0.0
    %424 = vmatprep.subr.mxu0 0.0
    %425 = vmatpush1.msra.mxu0 0.0
    %426 = vmatprep.subr.mxu0 0.0
    %427 = vmatpush1.msra.mxu0 0.0
    %428 = vmatprep.subr.mxu0 0.0
    %429 = vmatpush1.msra.mxu0 0.0
    %430 = vmatprep.subr.mxu0 0.0
    %431 = vmatpush1.msra.mxu0 0.0
    %432 = vmatprep.subr.mxu0 0.0
    %433 = vmatpush1.msra.mxu0 0.0
    %434 = vmatprep.subr.mxu0 0.0
    %435 = vmatpush1.msra.mxu0 0.0
    %436 = vmatprep.subr.mxu0 0.0
    %437 = vmatpush1.msra.mxu0 0.0
    %438 = vmatprep.subr.mxu0 0.0
    %439 = vmatpush1.msra.mxu0 0.0
    %440 = vmatprep.subr.mxu0 0.0
    %441 = vmatpush1.msra.mxu0 0.0
    %442 = vmatprep.mubr.f32.mxu0 0.0
    %443 = vmatmul.mubr.f32.gmra.mrb[0].mxu0 %v333
    %v444 = vpop.f32.mrb[0].mxu0
    %v445 = vadd.f32 %v329, %v444
    %v446 = vpop.f32.mrb[0].mxu0
    %447 = vmatprep.mubr.f32.mxu0 0.0
    %448 = vmatmul.mubr.f32.gmra.mrb[0].mxu0 %v336
    %v449 = vpop.f32.mrb[0].mxu0
    %v450 = vadd.f32 %v329, %v449
    %v451 = vpop.f32.mrb[0].mxu0
    %452 = vmatprep.mubr.f32.mxu0 0.0
    %453 = vmatmul.mubr.f32.gmra.mrb[0].mxu0 %v339
    %v454 = vpop.f32.mrb[0].mxu0
    %v455 = vadd.f32 %v329, %v454
    %v456 = vpop.f32.mrb[0].mxu0
    %457 = vmatprep.mubr.f32.mxu0 0.0
    %458 = vmatmul.mubr.f32.gmra.mrb[0].mxu0 %v342
    %v459 = vpop.f32.mrb[0].mxu0
    %v460 = vadd.f32 %v329, %v459
    %v461 = vpop.f32.mrb[0].mxu0
    %462 = vmatprep.mubr.f32.mxu0 0.0
    %463 = vmatmul.mubr.f32.gmra.mrb[0].mxu0 %v345
    %v464 = vpop.f32.mrb[0].mxu0
    %v465 = vadd.f32 %v329, %v464
    %v466 = vpop.f32.mrb[0].mxu0
    %467 = vmatprep.mubr.f32.mxu0 0.0
    %468 = vmatmul.mubr.f32.gmra.mrb[0].mxu0 %v348
    %v469 = vpop.f32.mrb[0].mxu0
    %v470 = vadd.f32 %v329, %v469
    %v471 = vpop.f32.mrb[0].mxu0
    %472 = vmatprep.mubr.f32.mxu0 0.0
    %473 = vmatmul.mubr.f32.gmra.mrb[0].mxu0 %v351
    %v474 = vpop.f32.mrb[0].mxu0
    %v475 = vadd.f32 %v329, %v474
    %v476 = vpop.f32.mrb[0].mxu0
    %477 = vmatprep.mubr.f32.mxu0 0.0
    %478 = vmatmul.mubr.f32.gmra.mrb[0].mxu0 %v354
    %v479 = vpop.f32.mrb[0].mxu0
    %v480 = vadd.f32 %v329, %v479
    %v481 = vpop.f32.mrb[0].mxu0
    %482 = vmatprep.mubr.f32.mxu0 0.0
    %483 = vmatmul.mubr.f32.gmra.mrb[0].mxu0 %v357
    %v484 = vpop.f32.mrb[0].mxu0
    %v485 = vadd.f32 %v329, %v484
    %v486 = vpop.f32.mrb[0].mxu0
    %487 = vmatprep.mubr.f32.mxu0 0.0
    %488 = vmatmul.mubr.f32.gmra.mrb[0].mxu0 %v360
    %v489 = vpop.f32.mrb[0].mxu0
    %v490 = vadd.f32 %v329, %v489
    %v491 = vpop.f32.mrb[0].mxu0
    %492 = vmatprep.mubr.f32.mxu0 0.0
    %493 = vmatmul.mubr.f32.gmra.mrb[0].mxu0 %v363
    %v494 = vpop.f32.mrb[0].mxu0
    %v495 = vadd.f32 %v329, %v494
    %v496 = vpop.f32.mrb[0].mxu0
    %497 = vmatprep.mubr.f32.mxu0 0.0
    %498 = vmatmul.mubr.f32.gmra.mrb[0].mxu0 %v366
    %v499 = vpop.f32.mrb[0].mxu0
    %v500 = vadd.f32 %v329, %v499
    %v501 = vpop.f32.mrb[0].mxu0
    %502 = vmatprep.mubr.f32.mxu0 0.0
    %503 = vmatmul.mubr.f32.gmra.mrb[0].mxu0 %v369
    %v504 = vpop.f32.mrb[0].mxu0
    %v505 = vadd.f32 %v329, %v504
    %v506 = vpop.f32.mrb[0].mxu0
    %507 = vmatprep.mubr.f32.mxu0 0.0
    %508 = vmatmul.mubr.f32.gmra.mrb[0].mxu0 %v372
    %v509 = vpop.f32.mrb[0].mxu0
    %v510 = vadd.f32 %v329, %v509
    %v511 = vpop.f32.mrb[0].mxu0
    %512 = vdwg.mxu0
    %v513 = vld [vmem:[%s5] sm:$0xff]
    %v514 = vld [vmem:[%s5 + $0x8] sm:$0xff]
    %v515 = vld [vmem:[%s5 + $0x10] sm:$0xff]
    %v516 = vld [vmem:[%s5 + $0x18] sm:$0xff]
    %v517 = vld [vmem:[%s6] sm:$0xff]
    %v518 = vld [vmem:[%s6 + $0x8] sm:$0xff]
    %v519 = vld [vmem:[%s6 + $0x10] sm:$0xff]
    %v520 = vld [vmem:[%s6 + $0x18] sm:$0xff]
    %vm521 = vcmask 261120
    %v523 = vsel %vm521, %v450, 0
    %v526 = vsel %vm521, %v455, 0
    %v529 = vsel %vm521, %v460, 0
    %v532 = vsel %vm521, %v465, 0
    %v535 = vsel %vm521, %v470, 0
    %v538 = vsel %vm521, %v475, 0
    %v541 = vsel %vm521, %v485, 0
    %v544 = vsel %vm521, %v490, 0
    %v547 = vsel %vm521, %v495, 0
    %v550 = vsel %vm521, %v500, 0
    %v553 = vsel %vm521, %v505, 0
    %v556 = vsel %vm521, %v510, 0
    %558 = vmatprep.subr.mxu0 0.0
    %559 = vmatpush1.msra.mxu0 %v517
    %560 = vmatprep.subr.mxu0 0.0
    %561 = vmatpush1.msra.mxu0 %v518
    %562 = vmatprep.subr.mxu0 0.0
    %563 = vmatpush1.msra.mxu0 %v519
    %564 = vmatprep.subr.mxu0 0.0
    %565 = vmatpush1.msra.mxu0 %v520
    %566 = vmatprep.subr.mxu0 0.0
    %567 = vmatpush1.msra.mxu0 0.0
    %568 = vmatprep.subr.mxu0 0.0
    %569 = vmatpush1.msra.mxu0 0.0
    %570 = vmatprep.subr.mxu0 0.0
    %571 = vmatpush1.msra.mxu0 0.0
    %572 = vmatprep.subr.mxu0 0.0
    %573 = vmatpush1.msra.mxu0 0.0
    %574 = vmatprep.subr.mxu0 0.0
    %575 = vmatpush1.msra.mxu0 0.0
    %576 = vmatprep.subr.mxu0 0.0
    %577 = vmatpush1.msra.mxu0 0.0
    %578 = vmatprep.subr.mxu0 0.0
    %579 = vmatpush1.msra.mxu0 0.0
    %580 = vmatprep.subr.mxu0 0.0
    %581 = vmatpush1.msra.mxu0 0.0
    %582 = vmatprep.subr.mxu0 0.0
    %583 = vmatpush1.msra.mxu0 0.0
    %584 = vmatprep.subr.mxu0 0.0
    %585 = vmatpush1.msra.mxu0 0.0
    %586 = vmatprep.subr.mxu0 0.0
    %587 = vmatpush1.msra.mxu0 0.0
    %588 = vmatprep.subr.mxu0 0.0
    %589 = vmatpush1.msra.mxu0 0.0
    %590 = vmatprep.subr.mxu0 0.0
    %591 = vmatpush1.msra.mxu0 0.0
    %592 = vmatprep.subr.mxu0 0.0
    %593 = vmatpush1.msra.mxu0 0.0
    %594 = vmatprep.subr.mxu0 0.0
    %595 = vmatpush1.msra.mxu0 0.0
    %596 = vmatprep.subr.mxu0 0.0
    %597 = vmatpush1.msra.mxu0 0.0
    %598 = vmatprep.subr.mxu0 0.0
    %599 = vmatpush1.msra.mxu0 0.0
    %600 = vmatprep.subr.mxu0 0.0
    %601 = vmatpush1.msra.mxu0 0.0
    %602 = vmatprep.subr.mxu0 0.0
    %603 = vmatpush1.msra.mxu0 0.0
    %604 = vmatprep.subr.mxu0 0.0
    %605 = vmatpush1.msra.mxu0 0.0
    %606 = vmatprep.subr.mxu0 0.0
    %607 = vmatpush1.msra.mxu0 0.0
    %608 = vmatprep.subr.mxu0 0.0
    %609 = vmatpush1.msra.mxu0 0.0
    %610 = vmatprep.subr.mxu0 0.0
    %611 = vmatpush1.msra.mxu0 0.0
    %612 = vmatprep.subr.mxu0 0.0
    %613 = vmatpush1.msra.mxu0 0.0
    %614 = vmatprep.subr.mxu0 0.0
    %615 = vmatpush1.msra.mxu0 0.0
    %616 = vmatprep.subr.mxu0 0.0
    %617 = vmatpush1.msra.mxu0 0.0
    %618 = vmatprep.subr.mxu0 0.0
    %619 = vmatpush1.msra.mxu0 0.0
    %620 = vmatprep.subr.mxu0 0.0
    %621 = vmatpush1.msra.mxu0 0.0
    %622 = vmatprep.mubr.f32.mxu0 0.0
    %623 = vmatmul.mubr.f32.gmra.mrb[0].mxu0 %v523
    %v624 = vpop.f32.mrb[0].mxu0
    %v625 = vadd.f32 0.0, %v624
    %v626 = vpop.f32.mrb[0].mxu0
    %627 = vmatprep.mubr.f32.mxu0 0.0
    %628 = vmatmul.mubr.f32.gmra.mrb[0].mxu0 %v526
    %v629 = vpop.f32.mrb[0].mxu0
    %v630 = vadd.f32 0.0, %v629
    %v631 = vpop.f32.mrb[0].mxu0
    %632 = vmatprep.mubr.f32.mxu0 0.0
    %633 = vmatmul.mubr.f32.gmra.mrb[0].mxu0 %v529
    %v634 = vpop.f32.mrb[0].mxu0
    %v635 = vadd.f32 0.0, %v634
    %v636 = vpop.f32.mrb[0].mxu0
    %637 = vmatprep.mubr.f32.mxu0 0.0
    %638 = vmatmul.mubr.f32.gmra.mrb[0].mxu0 %v532
    %v639 = vpop.f32.mrb[0].mxu0
    %v640 = vadd.f32 0.0, %v639
    %v641 = vpop.f32.mrb[0].mxu0
    %642 = vmatprep.mubr.f32.mxu0 0.0
    %643 = vmatmul.mubr.f32.gmra.mrb[0].mxu0 %v535
    %v644 = vpop.f32.mrb[0].mxu0
    %v645 = vadd.f32 0.0, %v644
    %v646 = vpop.f32.mrb[0].mxu0
    %647 = vmatprep.mubr.f32.mxu0 0.0
    %648 = vmatmul.mubr.f32.gmra.mrb[0].mxu0 %v538
    %v649 = vpop.f32.mrb[0].mxu0
    %v650 = vadd.f32 0.0, %v649
    %v651 = vpop.f32.mrb[0].mxu0
    %652 = vmatprep.mubr.f32.mxu0 0.0
    %653 = vmatmul.mubr.f32.gmra.mrb[0].mxu0 %v541
    %v654 = vpop.f32.mrb[0].mxu0
    %v655 = vadd.f32 0.0, %v654
    %v656 = vpop.f32.mrb[0].mxu0
    %657 = vmatprep.mubr.f32.mxu0 0.0
    %658 = vmatmul.mubr.f32.gmra.mrb[0].mxu0 %v544
    %v659 = vpop.f32.mrb[0].mxu0
    %v660 = vadd.f32 0.0, %v659
    %v661 = vpop.f32.mrb[0].mxu0
    %662 = vmatprep.mubr.f32.mxu0 0.0
    %663 = vmatmul.mubr.f32.gmra.mrb[0].mxu0 %v547
    %v664 = vpop.f32.mrb[0].mxu0
    %v665 = vadd.f32 0.0, %v664
    %v666 = vpop.f32.mrb[0].mxu0
    %667 = vmatprep.mubr.f32.mxu0 0.0
    %668 = vmatmul.mubr.f32.gmra.mrb[0].mxu0 %v550
    %v669 = vpop.f32.mrb[0].mxu0
    %v670 = vadd.f32 0.0, %v669
    %v671 = vpop.f32.mrb[0].mxu0
    %672 = vmatprep.mubr.f32.mxu0 0.0
    %673 = vmatmul.mubr.f32.gmra.mrb[0].mxu0 %v553
    %v674 = vpop.f32.mrb[0].mxu0
    %v675 = vadd.f32 0.0, %v674
    %v676 = vpop.f32.mrb[0].mxu0
    %677 = vmatprep.mubr.f32.mxu0 0.0
    %678 = vmatmul.mubr.f32.gmra.mrb[0].mxu0 %v556
    %v679 = vpop.f32.mrb[0].mxu0
    %v680 = vadd.f32 0.0, %v679
    %v681 = vpop.f32.mrb[0].mxu0
    %682 = vdwg.mxu0
    %v684 = vsel %vm521, %v445, 0
    %v687 = vsel %vm521, %v480, 0
    %689 = vmatprep.subr.mxu0 0.0
    %690 = vmatpush1.msra.mxu0 %v513
    %691 = vmatprep.subr.mxu0 0.0
    %692 = vmatpush1.msra.mxu0 %v514
    %693 = vmatprep.subr.mxu0 0.0
    %694 = vmatpush1.msra.mxu0 %v515
    %695 = vmatprep.subr.mxu0 0.0
    %696 = vmatpush1.msra.mxu0 %v516
    %697 = vmatprep.subr.mxu0 0.0
    %698 = vmatpush1.msra.mxu0 0.0
    %699 = vmatprep.subr.mxu0 0.0
    %700 = vmatpush1.msra.mxu0 0.0
    %701 = vmatprep.subr.mxu0 0.0
    %702 = vmatpush1.msra.mxu0 0.0
    %703 = vmatprep.subr.mxu0 0.0
    %704 = vmatpush1.msra.mxu0 0.0
    %705 = vmatprep.subr.mxu0 0.0
    %706 = vmatpush1.msra.mxu0 0.0
    %707 = vmatprep.subr.mxu0 0.0
    %708 = vmatpush1.msra.mxu0 0.0
    %709 = vmatprep.subr.mxu0 0.0
    %710 = vmatpush1.msra.mxu0 0.0
    %711 = vmatprep.subr.mxu0 0.0
    %712 = vmatpush1.msra.mxu0 0.0
    %713 = vmatprep.subr.mxu0 0.0
    %714 = vmatpush1.msra.mxu0 0.0
    %715 = vmatprep.subr.mxu0 0.0
    %716 = vmatpush1.msra.mxu0 0.0
    %717 = vmatprep.subr.mxu0 0.0
    %718 = vmatpush1.msra.mxu0 0.0
    %719 = vmatprep.subr.mxu0 0.0
    %720 = vmatpush1.msra.mxu0 0.0
    %721 = vmatprep.subr.mxu0 0.0
    %722 = vmatpush1.msra.mxu0 0.0
    %723 = vmatprep.subr.mxu0 0.0
    %724 = vmatpush1.msra.mxu0 0.0
    %725 = vmatprep.subr.mxu0 0.0
    %726 = vmatpush1.msra.mxu0 0.0
    %727 = vmatprep.subr.mxu0 0.0
    %728 = vmatpush1.msra.mxu0 0.0
    %729 = vmatprep.subr.mxu0 0.0
    %730 = vmatpush1.msra.mxu0 0.0
    %731 = vmatprep.subr.mxu0 0.0
    %732 = vmatpush1.msra.mxu0 0.0
    %733 = vmatprep.subr.mxu0 0.0
    %734 = vmatpush1.msra.mxu0 0.0
    %735 = vmatprep.subr.mxu0 0.0
    %736 = vmatpush1.msra.mxu0 0.0
    %737 = vmatprep.subr.mxu0 0.0
    %738 = vmatpush1.msra.mxu0 0.0
    %739 = vmatprep.subr.mxu0 0.0
    %740 = vmatpush1.msra.mxu0 0.0
    %741 = vmatprep.subr.mxu0 0.0
    %742 = vmatpush1.msra.mxu0 0.0
    %743 = vmatprep.subr.mxu0 0.0
    %744 = vmatpush1.msra.mxu0 0.0
    %745 = vmatprep.subr.mxu0 0.0
    %746 = vmatpush1.msra.mxu0 0.0
    %747 = vmatprep.subr.mxu0 0.0
    %748 = vmatpush1.msra.mxu0 0.0
    %749 = vmatprep.subr.mxu0 0.0
    %750 = vmatpush1.msra.mxu0 0.0
    %751 = vmatprep.subr.mxu0 0.0
    %752 = vmatpush1.msra.mxu0 0.0
    %753 = vmatprep.mubr.f32.mxu0 0.0
    %754 = vmatmul.mubr.f32.gmra.mrb[0].mxu0 %v684
    %v755 = vpop.f32.mrb[0].mxu0
    %v756 = vadd.f32 %v625, %v755
    %v757 = vpop.f32.mrb[0].mxu0
    %758 = vmatprep.mubr.f32.mxu0 0.0
    %759 = vmatmul.mubr.f32.gmra.mrb[0].mxu0 %v523
    %v760 = vpop.f32.mrb[0].mxu0
    %v761 = vadd.f32 %v630, %v760
    %v762 = vpop.f32.mrb[0].mxu0
    %763 = vmatprep.mubr.f32.mxu0 0.0
    %764 = vmatmul.mubr.f32.gmra.mrb[0].mxu0 %v526
    %v765 = vpop.f32.mrb[0].mxu0
    %v766 = vadd.f32 %v635, %v765
    %v767 = vpop.f32.mrb[0].mxu0
    %768 = vmatprep.mubr.f32.mxu0 0.0
    %769 = vmatmul.mubr.f32.gmra.mrb[0].mxu0 %v529
    %v770 = vpop.f32.mrb[0].mxu0
    %v771 = vadd.f32 %v640, %v770
    %v772 = vpop.f32.mrb[0].mxu0
    %773 = vmatprep.mubr.f32.mxu0 0.0
    %774 = vmatmul.mubr.f32.gmra.mrb[0].mxu0 %v532
    %v775 = vpop.f32.mrb[0].mxu0
    %v776 = vadd.f32 %v645, %v775
    %v777 = vpop.f32.mrb[0].mxu0
    %778 = vmatprep.mubr.f32.mxu0 0.0
    %779 = vmatmul.mubr.f32.gmra.mrb[0].mxu0 %v535
    %v780 = vpop.f32.mrb[0].mxu0
    %v781 = vadd.f32 %v650, %v780
    %v782 = vpop.f32.mrb[0].mxu0
    %783 = vmatprep.mubr.f32.mxu0 0.0
    %784 = vmatmul.mubr.f32.gmra.mrb[0].mxu0 %v687
    %v785 = vpop.f32.mrb[0].mxu0
    %v786 = vadd.f32 %v655, %v785
    %v787 = vpop.f32.mrb[0].mxu0
    %788 = vmatprep.mubr.f32.mxu0 0.0
    %789 = vmatmul.mubr.f32.gmra.mrb[0].mxu0 %v541
    %v790 = vpop.f32.mrb[0].mxu0
    %v791 = vadd.f32 %v660, %v790
    %v792 = vpop.f32.mrb[0].mxu0
    %793 = vmatprep.mubr.f32.mxu0 0.0
    %794 = vmatmul.mubr.f32.gmra.mrb[0].mxu0 %v544
    %v795 = vpop.f32.mrb[0].mxu0
    %v796 = vadd.f32 %v665, %v795
    %v797 = vpop.f32.mrb[0].mxu0
    %798 = vmatprep.mubr.f32.mxu0 0.0
    %799 = vmatmul.mubr.f32.gmra.mrb[0].mxu0 %v547
    %v800 = vpop.f32.mrb[0].mxu0
    %v801 = vadd.f32 %v670, %v800
    %v802 = vpop.f32.mrb[0].mxu0
    %803 = vmatprep.mubr.f32.mxu0 0.0
    %804 = vmatmul.mubr.f32.gmra.mrb[0].mxu0 %v550
    %v805 = vpop.f32.mrb[0].mxu0
    %v806 = vadd.f32 %v675, %v805
    %v807 = vpop.f32.mrb[0].mxu0
    %808 = vmatprep.mubr.f32.mxu0 0.0
    %809 = vmatmul.mubr.f32.gmra.mrb[0].mxu0 %v553
    %v810 = vpop.f32.mrb[0].mxu0
    %v811 = vadd.f32 %v680, %v810
    %v812 = vpop.f32.mrb[0].mxu0
    %813 = vdwg.mxu0
    %v814 = vld [vmem:[#allocation4] sm:$0x1]
    %v816 = vlaneseq
    %v817 = vshrl.u32 %v816, 7
    %v818 = vsub.s32 0, %v817
    %v819 = vrot.slane %v814, %v818
    %v821 = vadd.f32 %v756, %v819
    %v822 = vadd.f32 %v761, %v819
    %v823 = vadd.f32 %v766, %v819
    %v824 = vadd.f32 %v771, %v819
    %v825 = vadd.f32 %v776, %v819
    %v826 = vadd.f32 %v781, %v819
    %v827 = vadd.f32 %v786, %v819
    %v828 = vadd.f32 %v791, %v819
    %v829 = vadd.f32 %v796, %v819
    %v830 = vadd.f32 %v801, %v819
    %v831 = vadd.f32 %v806, %v819
    %v832 = vadd.f32 %v811, %v819
    %v833 = vtanh.pop %v821
    %v834 = vtanh.pop %v822
    %v835 = vtanh.pop %v823
    %v836 = vtanh.pop %v824
    %v837 = vtanh.pop %v825
    %v838 = vtanh.pop %v826
    %v839 = vtanh.pop %v827
    %v840 = vtanh.pop %v828
    %v841 = vtanh.pop %v829
    %v842 = vtanh.pop %v830
    %v843 = vtanh.pop %v831
    %v844 = vtanh.pop %v832
    %v845 = vxor.u32 %v821, 2147483648
    %v846 = vxor.u32 %v822, 2147483648
    %v847 = vxor.u32 %v823, 2147483648
    %v848 = vxor.u32 %v824, 2147483648
    %v849 = vxor.u32 %v825, 2147483648
    %v850 = vxor.u32 %v826, 2147483648
    %v851 = vxor.u32 %v827, 2147483648
    %v852 = vxor.u32 %v828, 2147483648
    %v853 = vxor.u32 %v829, 2147483648
    %v854 = vxor.u32 %v830, 2147483648
    %v855 = vxor.u32 %v831, 2147483648
    %v856 = vxor.u32 %v832, 2147483648
    %v857 = vmul.f32 %v845, 1.442695
    %v858 = vpow.pop %v857
    %v859 = vmul.f32 %v846, 1.442695
    %v860 = vpow.pop %v859
    %v861 = vmul.f32 %v847, 1.442695
    %v862 = vpow.pop %v861
    %v863 = vmul.f32 %v848, 1.442695
    %v864 = vpow.pop %v863
    %v865 = vmul.f32 %v849, 1.442695
    %v866 = vpow.pop %v865
    %v867 = vmul.f32 %v850, 1.442695
    %v868 = vpow.pop %v867
    %v869 = vmul.f32 %v851, 1.442695
    %v870 = vpow.pop %v869
    %v871 = vmul.f32 %v852, 1.442695
    %v872 = vpow.pop %v871
    %v873 = vmul.f32 %v853, 1.442695
    %v874 = vpow.pop %v873
    %v875 = vmul.f32 %v854, 1.442695
    %v876 = vpow.pop %v875
    %v877 = vmul.f32 %v855, 1.442695
    %v878 = vpow.pop %v877
    %v879 = vmul.f32 %v856, 1.442695
    %v880 = vpow.pop %v879
    %v881 = vadd.f32 %v858, 1.0
    %v882 = vadd.f32 %v860, 1.0
    %v883 = vadd.f32 %v862, 1.0
    %v884 = vadd.f32 %v864, 1.0
    %v885 = vadd.f32 %v866, 1.0
    %v886 = vadd.f32 %v868, 1.0
    %v887 = vadd.f32 %v870, 1.0
    %v888 = vadd.f32 %v872, 1.0
    %v889 = vadd.f32 %v874, 1.0
    %v890 = vadd.f32 %v876, 1.0
    %v891 = vadd.f32 %v878, 1.0
    %v892 = vadd.f32 %v880, 1.0
    %v893 = vrcp.pop %v881
    %v894 = vmul.f32 1.0, %v893
    %v895 = vrcp.pop %v882
    %v896 = vmul.f32 1.0, %v895
    %v897 = vrcp.pop %v883
    %v898 = vmul.f32 1.0, %v897
    %v899 = vrcp.pop %v884
    %v900 = vmul.f32 1.0, %v899
    %v901 = vrcp.pop %v885
    %v902 = vmul.f32 1.0, %v901
    %v903 = vrcp.pop %v886
    %v904 = vmul.f32 1.0, %v903
    %v905 = vrcp.pop %v887
    %v906 = vmul.f32 1.0, %v905
    %v907 = vrcp.pop %v888
    %v908 = vmul.f32 1.0, %v907
    %v909 = vrcp.pop %v889
    %v910 = vmul.f32 1.0, %v909
    %v911 = vrcp.pop %v890
    %v912 = vmul.f32 1.0, %v911
    %v913 = vrcp.pop %v891
    %v914 = vmul.f32 1.0, %v913
    %v915 = vrcp.pop %v892
    %v916 = vmul.f32 1.0, %v915
    %929 = vrot.lane.b32.xlu0 %v894, 96
    %v930 = vpop.permute.xlu0 %929
    %931 = vrot.lane.b32.xlu0 %v896, 96
    %v932 = vpop.permute.xlu0 %931
    %933 = vrot.lane.b32.xlu0 %v898, 96
    %v934 = vpop.permute.xlu0 %933
    %935 = vrot.lane.b32.xlu0 %v900, 96
    %v936 = vpop.permute.xlu0 %935
    %937 = vrot.lane.b32.xlu0 %v902, 96
    %v938 = vpop.permute.xlu0 %937
    %939 = vrot.lane.b32.xlu0 %v904, 96
    %v940 = vpop.permute.xlu0 %939
    %941 = vrot.lane.b32.xlu0 %v906, 96
    %v942 = vpop.permute.xlu0 %941
    %943 = vrot.lane.b32.xlu0 %v908, 96
    %v944 = vpop.permute.xlu0 %943
    %945 = vrot.lane.b32.xlu0 %v910, 96
    %v946 = vpop.permute.xlu0 %945
    %947 = vrot.lane.b32.xlu0 %v912, 96
    %v948 = vpop.permute.xlu0 %947
    %949 = vrot.lane.b32.xlu0 %v914, 96
    %v950 = vpop.permute.xlu0 %949
    %951 = vrot.lane.b32.xlu0 %v916, 96
    %v952 = vpop.permute.xlu0 %951
    %v965 = vmul.f32 %v833, %v930
    %v966 = vmul.f32 %v834, %v932
    %v967 = vmul.f32 %v835, %v934
    %v968 = vmul.f32 %v836, %v936
    %v969 = vmul.f32 %v837, %v938
    %v970 = vmul.f32 %v838, %v940
    %v971 = vmul.f32 %v839, %v942
    %v972 = vmul.f32 %v840, %v944
    %v973 = vmul.f32 %v841, %v946
    %v974 = vmul.f32 %v842, %v948
    %v975 = vmul.f32 %v843, %v950
    %v976 = vmul.f32 %v844, %v952
    %v977 = vld [vmem:[%s8] sm:$0xff]
    %v978 = vld [vmem:[%s8 + $0x8] sm:$0xff]
    %v979 = vld [vmem:[%s8 + $0x10] sm:$0xff]
    %v980 = vld [vmem:[%s8 + $0x18] sm:$0xff]
    %v981 = vld [vmem:[#allocation6] sm:$0x1]
    %v983 = vlaneseq
    %v984 = vshrl.u32 %v983, 7
    %v985 = vsub.s32 0, %v984
    %v986 = vrot.slane %v981, %v985
    %v989 = vsel %vm521, %v965, 0
    %v992 = vsel %vm521, %v966, 0
    %v995 = vsel %vm521, %v967, 0
    %v998 = vsel %vm521, %v968, 0
    %v1001 = vsel %vm521, %v969, 0
    %v1004 = vsel %vm521, %v970, 0
    %v1007 = vsel %vm521, %v971, 0
    %v1010 = vsel %vm521, %v972, 0
    %v1013 = vsel %vm521, %v973, 0
    %v1016 = vsel %vm521, %v974, 0
    %v1019 = vsel %vm521, %v975, 0
    %v1022 = vsel %vm521, %v976, 0
    %1024 = vmatprep.subr.mxu0 0.0
    %1025 = vmatpush1.msra.mxu0 %v977
    %1026 = vmatprep.subr.mxu0 0.0
    %1027 = vmatpush1.msra.mxu0 %v978
    %1028 = vmatprep.subr.mxu0 0.0
    %1029 = vmatpush1.msra.mxu0 %v979
    %1030 = vmatprep.subr.mxu0 0.0
    %1031 = vmatpush1.msra.mxu0 %v980
    %1032 = vmatprep.subr.mxu0 0.0
    %1033 = vmatpush1.msra.mxu0 0.0
    %1034 = vmatprep.subr.mxu0 0.0
    %1035 = vmatpush1.msra.mxu0 0.0
    %1036 = vmatprep.subr.mxu0 0.0
    %1037 = vmatpush1.msra.mxu0 0.0
    %1038 = vmatprep.subr.mxu0 0.0
    %1039 = vmatpush1.msra.mxu0 0.0
    %1040 = vmatprep.subr.mxu0 0.0
    %1041 = vmatpush1.msra.mxu0 0.0
    %1042 = vmatprep.subr.mxu0 0.0
    %1043 = vmatpush1.msra.mxu0 0.0
    %1044 = vmatprep.subr.mxu0 0.0
    %1045 = vmatpush1.msra.mxu0 0.0
    %1046 = vmatprep.subr.mxu0 0.0
    %1047 = vmatpush1.msra.mxu0 0.0
    %1048 = vmatprep.subr.mxu0 0.0
    %1049 = vmatpush1.msra.mxu0 0.0
    %1050 = vmatprep.subr.mxu0 0.0
    %1051 = vmatpush1.msra.mxu0 0.0
    %1052 = vmatprep.subr.mxu0 0.0
    %1053 = vmatpush1.msra.mxu0 0.0
    %1054 = vmatprep.subr.mxu0 0.0
    %1055 = vmatpush1.msra.mxu0 0.0
    %1056 = vmatprep.subr.mxu0 0.0
    %1057 = vmatpush1.msra.mxu0 0.0
    %1058 = vmatprep.subr.mxu0 0.0
    %1059 = vmatpush1.msra.mxu0 0.0
    %1060 = vmatprep.subr.mxu0 0.0
    %1061 = vmatpush1.msra.mxu0 0.0
    %1062 = vmatprep.subr.mxu0 0.0
    %1063 = vmatpush1.msra.mxu0 0.0
    %1064 = vmatprep.subr.mxu0 0.0
    %1065 = vmatpush1.msra.mxu0 0.0
    %1066 = vmatprep.subr.mxu0 0.0
    %1067 = vmatpush1.msra.mxu0 0.0
    %1068 = vmatprep.subr.mxu0 0.0
    %1069 = vmatpush1.msra.mxu0 0.0
    %1070 = vmatprep.subr.mxu0 0.0
    %1071 = vmatpush1.msra.mxu0 0.0
    %1072 = vmatprep.subr.mxu0 0.0
    %1073 = vmatpush1.msra.mxu0 0.0
    %1074 = vmatprep.subr.mxu0 0.0
    %1075 = vmatpush1.msra.mxu0 0.0
    %1076 = vmatprep.subr.mxu0 0.0
    %1077 = vmatpush1.msra.mxu0 0.0
    %1078 = vmatprep.subr.mxu0 0.0
    %1079 = vmatpush1.msra.mxu0 0.0
    %1080 = vmatprep.subr.mxu0 0.0
    %1081 = vmatpush1.msra.mxu0 0.0
    %1082 = vmatprep.subr.mxu0 0.0
    %1083 = vmatpush1.msra.mxu0 0.0
    %1084 = vmatprep.subr.mxu0 0.0
    %1085 = vmatpush1.msra.mxu0 0.0
    %1086 = vmatprep.subr.mxu0 0.0
    %1087 = vmatpush1.msra.mxu0 0.0
    %1088 = vmatprep.mubr.f32.mxu0 0.0
    %1089 = vmatmul.mubr.f32.gmra.mrb[0].mxu0 %v989
    %v1090 = vpop.f32.mrb[0].mxu0
    %v1091 = vpop.f32.mrb[0].mxu0
    %1092 = vmatprep.mubr.f32.mxu0 0.0
    %1093 = vmatmul.mubr.f32.gmra.mrb[0].mxu0 %v992
    %v1094 = vpop.f32.mrb[0].mxu0
    %v1095 = vpop.f32.mrb[0].mxu0
    %1096 = vmatprep.mubr.f32.mxu0 0.0
    %1097 = vmatmul.mubr.f32.gmra.mrb[0].mxu0 %v995
    %v1098 = vpop.f32.mrb[0].mxu0
    %v1099 = vpop.f32.mrb[0].mxu0
    %1100 = vmatprep.mubr.f32.mxu0 0.0
    %1101 = vmatmul.mubr.f32.gmra.mrb[0].mxu0 %v998
    %v1102 = vpop.f32.mrb[0].mxu0
    %v1103 = vpop.f32.mrb[0].mxu0
    %1104 = vmatprep.mubr.f32.mxu0 0.0
    %1105 = vmatmul.mubr.f32.gmra.mrb[0].mxu0 %v1001
    %v1106 = vpop.f32.mrb[0].mxu0
    %v1107 = vpop.f32.mrb[0].mxu0
    %1108 = vmatprep.mubr.f32.mxu0 0.0
    %1109 = vmatmul.mubr.f32.gmra.mrb[0].mxu0 %v1004
    %v1110 = vpop.f32.mrb[0].mxu0
    %v1111 = vadd.f32 %v986, %v1110
    %v1112 = vpop.f32.mrb[0].mxu0
    %1113 = vmatprep.mubr.f32.mxu0 0.0
    %1114 = vmatmul.mubr.f32.gmra.mrb[0].mxu0 %v1007
    %v1115 = vpop.f32.mrb[0].mxu0
    %v1116 = vpop.f32.mrb[0].mxu0
    %1117 = vmatprep.mubr.f32.mxu0 0.0
    %1118 = vmatmul.mubr.f32.gmra.mrb[0].mxu0 %v1010
    %v1119 = vpop.f32.mrb[0].mxu0
    %v1120 = vpop.f32.mrb[0].mxu0
    %1121 = vmatprep.mubr.f32.mxu0 0.0
    %1122 = vmatmul.mubr.f32.gmra.mrb[0].mxu0 %v1013
    %v1123 = vpop.f32.mrb[0].mxu0
    %v1124 = vpop.f32.mrb[0].mxu0
    %1125 = vmatprep.mubr.f32.mxu0 0.0
    %1126 = vmatmul.mubr.f32.gmra.mrb[0].mxu0 %v1016
    %v1127 = vpop.f32.mrb[0].mxu0
    %v1128 = vpop.f32.mrb[0].mxu0
    %1129 = vmatprep.mubr.f32.mxu0 0.0
    %1130 = vmatmul.mubr.f32.gmra.mrb[0].mxu0 %v1019
    %v1131 = vpop.f32.mrb[0].mxu0
    %v1132 = vpop.f32.mrb[0].mxu0
    %1133 = vmatprep.mubr.f32.mxu0 0.0
    %1134 = vmatmul.mubr.f32.gmra.mrb[0].mxu0 %v1022
    %v1135 = vpop.f32.mrb[0].mxu0
    %v1136 = vadd.f32 %v986, %v1135
    %v1137 = vpop.f32.mrb[0].mxu0
    %1138 = vdwg.mxu0
    %v1140 = vsel %vm289, %v308, 0
    %1142 = vmatprep.subr.mxu0 0.0
    %1143 = vmatpush1.msra.mxu0 %v965
    %1144 = vmatprep.subr.mxu0 0.0
    %1145 = vmatpush1.msra.mxu0 0.0
    %1146 = vmatprep.subr.mxu0 0.0
    %1147 = vmatpush1.msra.mxu0 0.0
    %1148 = vmatprep.subr.mxu0 0.0
    %1149 = vmatpush1.msra.mxu0 0.0
    %1150 = vmatprep.subr.mxu0 0.0
    %1151 = vmatpush1.msra.mxu0 0.0
    %1152 = vmatprep.subr.mxu0 0.0
    %1153 = vmatpush1.msra.mxu0 0.0
    %1154 = vmatprep.subr.mxu0 0.0
    %1155 = vmatpush1.msra.mxu0 0.0
    %1156 = vmatprep.subr.mxu0 0.0
    %1157 = vmatpush1.msra.mxu0 0.0
    %1158 = vmatprep.subr.mxu0 0.0
    %1159 = vmatpush1.msra.mxu0 0.0
    %1160 = vmatprep.subr.mxu0 0.0
    %1161 = vmatpush1.msra.mxu0 0.0
    %1162 = vmatprep.subr.mxu0 0.0
    %1163 = vmatpush1.msra.mxu0 0.0
    %1164 = vmatprep.subr.mxu0 0.0
    %1165 = vmatpush1.msra.mxu0 0.0
    %1166 = vmatprep.subr.mxu0 0.0
    %1167 = vmatpush1.msra.mxu0 0.0
    %1168 = vmatprep.subr.mxu0 0.0
    %1169 = vmatpush1.msra.mxu0 0.0
    %1170 = vmatprep.subr.mxu0 0.0
    %1171 = vmatpush1.msra.mxu0 0.0
    %1172 = vmatprep.subr.mxu0 0.0
    %1173 = vmatpush1.msra.mxu0 0.0
    %1174 = vmatprep.subr.mxu0 0.0
    %1175 = vmatpush1.msra.mxu0 0.0
    %1176 = vmatprep.subr.mxu0 0.0
    %1177 = vmatpush1.msra.mxu0 0.0
    %1178 = vmatprep.subr.mxu0 0.0
    %1179 = vmatpush1.msra.mxu0 0.0
    %1180 = vmatprep.subr.mxu0 0.0
    %1181 = vmatpush1.msra.mxu0 0.0
    %1182 = vmatprep.subr.mxu0 0.0
    %1183 = vmatpush1.msra.mxu0 0.0
    %1184 = vmatprep.subr.mxu0 0.0
    %1185 = vmatpush1.msra.mxu0 0.0
    %1186 = vmatprep.subr.mxu0 0.0
    %1187 = vmatpush1.msra.mxu0 0.0
    %1188 = vmatprep.subr.mxu0 0.0
    %1189 = vmatpush1.msra.mxu0 0.0
    %1190 = vmatprep.subr.mxu0 0.0
    %1191 = vmatpush1.msra.mxu0 0.0
    %1192 = vmatprep.subr.mxu0 0.0
    %1193 = vmatpush1.msra.mxu0 0.0
    %1194 = vmatprep.subr.mxu0 0.0
    %1195 = vmatpush1.msra.mxu0 0.0
    %1196 = vmatprep.subr.mxu0 0.0
    %1197 = vmatpush1.msra.mxu0 0.0
    %1198 = vmatprep.subr.mxu0 0.0
    %1199 = vmatpush1.msra.mxu0 0.0
    %1200 = vmatprep.subr.mxu0 0.0
    %1201 = vmatpush1.msra.mxu0 0.0
    %1202 = vmatprep.subr.mxu0 0.0
    %1203 = vmatpush1.msra.mxu0 0.0
    %1204 = vmatprep.subr.mxu0 0.0
    %1205 = vmatpush1.msra.mxu0 0.0
    %1206 = vmatprep.mubr.f32.mxu0 0.0
    %1207 = vmatmul.mubr.f32.gmra.mrb[0].mxu0 %v1140
    %v1208 = vpop.f32.mrb[0].mxu0
    %v1209 = vadd.f32 0.0, %v1208
    %v1210 = vpop.f32.mrb[0].mxu0
    %1211 = vdwg.mxu0
    %1212 = vmatprep.subr.mxu0 0.0
    %1213 = vmatpush1.msra.mxu0 %v966
    %1214 = vmatprep.subr.mxu0 0.0
    %1215 = vmatpush1.msra.mxu0 0.0
    %1216 = vmatprep.subr.mxu0 0.0
    %1217 = vmatpush1.msra.mxu0 0.0
    %1218 = vmatprep.subr.mxu0 0.0
    %1219 = vmatpush1.msra.mxu0 0.0
    %1220 = vmatprep.subr.mxu0 0.0
    %1221 = vmatpush1.msra.mxu0 0.0
    %1222 = vmatprep.subr.mxu0 0.0
    %1223 = vmatpush1.msra.mxu0 0.0
    %1224 = vmatprep.subr.mxu0 0.0
    %1225 = vmatpush1.msra.mxu0 0.0
    %1226 = vmatprep.subr.mxu0 0.0
    %1227 = vmatpush1.msra.mxu0 0.0
    %1228 = vmatprep.subr.mxu0 0.0
    %1229 = vmatpush1.msra.mxu0 0.0
    %1230 = vmatprep.subr.mxu0 0.0
    %1231 = vmatpush1.msra.mxu0 0.0
    %1232 = vmatprep.subr.mxu0 0.0
    %1233 = vmatpush1.msra.mxu0 0.0
    %1234 = vmatprep.subr.mxu0 0.0
    %1235 = vmatpush1.msra.mxu0 0.0
    %1236 = vmatprep.subr.mxu0 0.0
    %1237 = vmatpush1.msra.mxu0 0.0
    %1238 = vmatprep.subr.mxu0 0.0
    %1239 = vmatpush1.msra.mxu0 0.0
    %1240 = vmatprep.subr.mxu0 0.0
    %1241 = vmatpush1.msra.mxu0 0.0
    %1242 = vmatprep.subr.mxu0 0.0
    %1243 = vmatpush1.msra.mxu0 0.0
    %1244 = vmatprep.subr.mxu0 0.0
    %1245 = vmatpush1.msra.mxu0 0.0
    %1246 = vmatprep.subr.mxu0 0.0
    %1247 = vmatpush1.msra.mxu0 0.0
    %1248 = vmatprep.subr.mxu0 0.0
    %1249 = vmatpush1.msra.mxu0 0.0
    %1250 = vmatprep.subr.mxu0 0.0
    %1251 = vmatpush1.msra.mxu0 0.0
    %1252 = vmatprep.subr.mxu0 0.0
    %1253 = vmatpush1.msra.mxu0 0.0
    %1254 = vmatprep.subr.mxu0 0.0
    %1255 = vmatpush1.msra.mxu0 0.0
    %1256 = vmatprep.subr.mxu0 0.0
    %1257 = vmatpush1.msra.mxu0 0.0
    %1258 = vmatprep.subr.mxu0 0.0
    %1259 = vmatpush1.msra.mxu0 0.0
    %1260 = vmatprep.subr.mxu0 0.0
    %1261 = vmatpush1.msra.mxu0 0.0
    %1262 = vmatprep.subr.mxu0 0.0
    %1263 = vmatpush1.msra.mxu0 0.0
    %1264 = vmatprep.subr.mxu0 0.0
    %1265 = vmatpush1.msra.mxu0 0.0
    %1266 = vmatprep.subr.mxu0 0.0
    %1267 = vmatpush1.msra.mxu0 0.0
    %1268 = vmatprep.subr.mxu0 0.0
    %1269 = vmatpush1.msra.mxu0 0.0
    %1270 = vmatprep.subr.mxu0 0.0
    %1271 = vmatpush1.msra.mxu0 0.0
    %1272 = vmatprep.subr.mxu0 0.0
    %1273 = vmatpush1.msra.mxu0 0.0
    %1274 = vmatprep.subr.mxu0 0.0
    %1275 = vmatpush1.msra.mxu0 0.0
    %1276 = vmatprep.mubr.f32.mxu0 0.0
    %1277 = vmatmul.mubr.f32.gmra.mrb[0].mxu0 %v1140
    %v1278 = vpop.f32.mrb[0].mxu0
    %v1279 = vadd.f32 0.0, %v1278
    %v1280 = vpop.f32.mrb[0].mxu0
    %1281 = vdwg.mxu0
    %1282 = vmatprep.subr.mxu0 0.0
    %1283 = vmatpush1.msra.mxu0 %v967
    %1284 = vmatprep.subr.mxu0 0.0
    %1285 = vmatpush1.msra.mxu0 0.0
    %1286 = vmatprep.subr.mxu0 0.0
    %1287 = vmatpush1.msra.mxu0 0.0
    %1288 = vmatprep.subr.mxu0 0.0
    %1289 = vmatpush1.msra.mxu0 0.0
    %1290 = vmatprep.subr.mxu0 0.0
    %1291 = vmatpush1.msra.mxu0 0.0
    %1292 = vmatprep.subr.mxu0 0.0
    %1293 = vmatpush1.msra.mxu0 0.0
    %1294 = vmatprep.subr.mxu0 0.0
    %1295 = vmatpush1.msra.mxu0 0.0
    %1296 = vmatprep.subr.mxu0 0.0
    %1297 = vmatpush1.msra.mxu0 0.0
    %1298 = vmatprep.subr.mxu0 0.0
    %1299 = vmatpush1.msra.mxu0 0.0
    %1300 = vmatprep.subr.mxu0 0.0
    %1301 = vmatpush1.msra.mxu0 0.0
    %1302 = vmatprep.subr.mxu0 0.0
    %1303 = vmatpush1.msra.mxu0 0.0
    %1304 = vmatprep.subr.mxu0 0.0
    %1305 = vmatpush1.msra.mxu0 0.0
    %1306 = vmatprep.subr.mxu0 0.0
    %1307 = vmatpush1.msra.mxu0 0.0
    %1308 = vmatprep.subr.mxu0 0.0
    %1309 = vmatpush1.msra.mxu0 0.0
    %1310 = vmatprep.subr.mxu0 0.0
    %1311 = vmatpush1.msra.mxu0 0.0
    %1312 = vmatprep.subr.mxu0 0.0
    %1313 = vmatpush1.msra.mxu0 0.0
    %1314 = vmatprep.subr.mxu0 0.0
    %1315 = vmatpush1.msra.mxu0 0.0
    %1316 = vmatprep.subr.mxu0 0.0
    %1317 = vmatpush1.msra.mxu0 0.0
    %1318 = vmatprep.subr.mxu0 0.0
    %1319 = vmatpush1.msra.mxu0 0.0
    %1320 = vmatprep.subr.mxu0 0.0
    %1321 = vmatpush1.msra.mxu0 0.0
    %1322 = vmatprep.subr.mxu0 0.0
    %1323 = vmatpush1.msra.mxu0 0.0
    %1324 = vmatprep.subr.mxu0 0.0
    %1325 = vmatpush1.msra.mxu0 0.0
    %1326 = vmatprep.subr.mxu0 0.0
    %1327 = vmatpush1.msra.mxu0 0.0
    %1328 = vmatprep.subr.mxu0 0.0
    %1329 = vmatpush1.msra.mxu0 0.0
    %1330 = vmatprep.subr.mxu0 0.0
    %1331 = vmatpush1.msra.mxu0 0.0
    %1332 = vmatprep.subr.mxu0 0.0
    %1333 = vmatpush1.msra.mxu0 0.0
    %1334 = vmatprep.subr.mxu0 0.0
    %1335 = vmatpush1.msra.mxu0 0.0
    %1336 = vmatprep.subr.mxu0 0.0
    %1337 = vmatpush1.msra.mxu0 0.0
    %1338 = vmatprep.subr.mxu0 0.0
    %1339 = vmatpush1.msra.mxu0 0.0
    %1340 = vmatprep.subr.mxu0 0.0
    %1341 = vmatpush1.msra.mxu0 0.0
    %1342 = vmatprep.subr.mxu0 0.0
    %1343 = vmatpush1.msra.mxu0 0.0
    %1344 = vmatprep.subr.mxu0 0.0
    %1345 = vmatpush1.msra.mxu0 0.0
    %1346 = vmatprep.mubr.f32.mxu0 0.0
    %1347 = vmatmul.mubr.f32.gmra.mrb[0].mxu0 %v1140
    %v1348 = vpop.f32.mrb[0].mxu0
    %v1349 = vadd.f32 0.0, %v1348
    %v1350 = vpop.f32.mrb[0].mxu0
    %1351 = vdwg.mxu0
    %1352 = vmatprep.subr.mxu0 0.0
    %1353 = vmatpush1.msra.mxu0 %v968
    %1354 = vmatprep.subr.mxu0 0.0
    %1355 = vmatpush1.msra.mxu0 0.0
    %1356 = vmatprep.subr.mxu0 0.0
    %1357 = vmatpush1.msra.mxu0 0.0
    %1358 = vmatprep.subr.mxu0 0.0
    %1359 = vmatpush1.msra.mxu0 0.0
    %1360 = vmatprep.subr.mxu0 0.0
    %1361 = vmatpush1.msra.mxu0 0.0
    %1362 = vmatprep.subr.mxu0 0.0
    %1363 = vmatpush1.msra.mxu0 0.0
    %1364 = vmatprep.subr.mxu0 0.0
    %1365 = vmatpush1.msra.mxu0 0.0
    %1366 = vmatprep.subr.mxu0 0.0
    %1367 = vmatpush1.msra.mxu0 0.0
    %1368 = vmatprep.subr.mxu0 0.0
    %1369 = vmatpush1.msra.mxu0 0.0
    %1370 = vmatprep.subr.mxu0 0.0
    %1371 = vmatpush1.msra.mxu0 0.0
    %1372 = vmatprep.subr.mxu0 0.0
    %1373 = vmatpush1.msra.mxu0 0.0
    %1374 = vmatprep.subr.mxu0 0.0
    %1375 = vmatpush1.msra.mxu0 0.0
    %1376 = vmatprep.subr.mxu0 0.0
    %1377 = vmatpush1.msra.mxu0 0.0
    %1378 = vmatprep.subr.mxu0 0.0
    %1379 = vmatpush1.msra.mxu0 0.0
    %1380 = vmatprep.subr.mxu0 0.0
    %1381 = vmatpush1.msra.mxu0 0.0
    %1382 = vmatprep.subr.mxu0 0.0
    %1383 = vmatpush1.msra.mxu0 0.0
    %1384 = vmatprep.subr.mxu0 0.0
    %1385 = vmatpush1.msra.mxu0 0.0
    %1386 = vmatprep.subr.mxu0 0.0
    %1387 = vmatpush1.msra.mxu0 0.0
    %1388 = vmatprep.subr.mxu0 0.0
    %1389 = vmatpush1.msra.mxu0 0.0
    %1390 = vmatprep.subr.mxu0 0.0
    %1391 = vmatpush1.msra.mxu0 0.0
    %1392 = vmatprep.subr.mxu0 0.0
    %1393 = vmatpush1.msra.mxu0 0.0
    %1394 = vmatprep.subr.mxu0 0.0
    %1395 = vmatpush1.msra.mxu0 0.0
    %1396 = vmatprep.subr.mxu0 0.0
    %1397 = vmatpush1.msra.mxu0 0.0
    %1398 = vmatprep.subr.mxu0 0.0
    %1399 = vmatpush1.msra.mxu0 0.0
    %1400 = vmatprep.subr.mxu0 0.0
    %1401 = vmatpush1.msra.mxu0 0.0
    %1402 = vmatprep.subr.mxu0 0.0
    %1403 = vmatpush1.msra.mxu0 0.0
    %1404 = vmatprep.subr.mxu0 0.0
    %1405 = vmatpush1.msra.mxu0 0.0
    %1406 = vmatprep.subr.mxu0 0.0
    %1407 = vmatpush1.msra.mxu0 0.0
    %1408 = vmatprep.subr.mxu0 0.0
    %1409 = vmatpush1.msra.mxu0 0.0
    %1410 = vmatprep.subr.mxu0 0.0
    %1411 = vmatpush1.msra.mxu0 0.0
    %1412 = vmatprep.subr.mxu0 0.0
    %1413 = vmatpush1.msra.mxu0 0.0
    %1414 = vmatprep.subr.mxu0 0.0
    %1415 = vmatpush1.msra.mxu0 0.0
    %1416 = vmatprep.mubr.f32.mxu0 0.0
    %1417 = vmatmul.mubr.f32.gmra.mrb[0].mxu0 %v1140
    %v1418 = vpop.f32.mrb[0].mxu0
    %v1419 = vadd.f32 0.0, %v1418
    %v1420 = vpop.f32.mrb[0].mxu0
    %1421 = vdwg.mxu0
    %1422 = vmatprep.subr.mxu0 0.0
    %1423 = vmatpush1.msra.mxu0 %v969
    %1424 = vmatprep.subr.mxu0 0.0
    %1425 = vmatpush1.msra.mxu0 0.0
    %1426 = vmatprep.subr.mxu0 0.0
    %1427 = vmatpush1.msra.mxu0 0.0
    %1428 = vmatprep.subr.mxu0 0.0
    %1429 = vmatpush1.msra.mxu0 0.0
    %1430 = vmatprep.subr.mxu0 0.0
    %1431 = vmatpush1.msra.mxu0 0.0
    %1432 = vmatprep.subr.mxu0 0.0
    %1433 = vmatpush1.msra.mxu0 0.0
    %1434 = vmatprep.subr.mxu0 0.0
    %1435 = vmatpush1.msra.mxu0 0.0
    %1436 = vmatprep.subr.mxu0 0.0
    %1437 = vmatpush1.msra.mxu0 0.0
    %1438 = vmatprep.subr.mxu0 0.0
    %1439 = vmatpush1.msra.mxu0 0.0
    %1440 = vmatprep.subr.mxu0 0.0
    %1441 = vmatpush1.msra.mxu0 0.0
    %1442 = vmatprep.subr.mxu0 0.0
    %1443 = vmatpush1.msra.mxu0 0.0
    %1444 = vmatprep.subr.mxu0 0.0
    %1445 = vmatpush1.msra.mxu0 0.0
    %1446 = vmatprep.subr.mxu0 0.0
    %1447 = vmatpush1.msra.mxu0 0.0
    %1448 = vmatprep.subr.mxu0 0.0
    %1449 = vmatpush1.msra.mxu0 0.0
    %1450 = vmatprep.subr.mxu0 0.0
    %1451 = vmatpush1.msra.mxu0 0.0
    %1452 = vmatprep.subr.mxu0 0.0
    %1453 = vmatpush1.msra.mxu0 0.0
    %1454 = vmatprep.subr.mxu0 0.0
    %1455 = vmatpush1.msra.mxu0 0.0
    %1456 = vmatprep.subr.mxu0 0.0
    %1457 = vmatpush1.msra.mxu0 0.0
    %1458 = vmatprep.subr.mxu0 0.0
    %1459 = vmatpush1.msra.mxu0 0.0
    %1460 = vmatprep.subr.mxu0 0.0
    %1461 = vmatpush1.msra.mxu0 0.0
    %1462 = vmatprep.subr.mxu0 0.0
    %1463 = vmatpush1.msra.mxu0 0.0
    %1464 = vmatprep.subr.mxu0 0.0
    %1465 = vmatpush1.msra.mxu0 0.0
    %1466 = vmatprep.subr.mxu0 0.0
    %1467 = vmatpush1.msra.mxu0 0.0
    %1468 = vmatprep.subr.mxu0 0.0
    %1469 = vmatpush1.msra.mxu0 0.0
    %1470 = vmatprep.subr.mxu0 0.0
    %1471 = vmatpush1.msra.mxu0 0.0
    %1472 = vmatprep.subr.mxu0 0.0
    %1473 = vmatpush1.msra.mxu0 0.0
    %1474 = vmatprep.subr.mxu0 0.0
    %1475 = vmatpush1.msra.mxu0 0.0
    %1476 = vmatprep.subr.mxu0 0.0
    %1477 = vmatpush1.msra.mxu0 0.0
    %1478 = vmatprep.subr.mxu0 0.0
    %1479 = vmatpush1.msra.mxu0 0.0
    %1480 = vmatprep.subr.mxu0 0.0
    %1481 = vmatpush1.msra.mxu0 0.0
    %1482 = vmatprep.subr.mxu0 0.0
    %1483 = vmatpush1.msra.mxu0 0.0
    %1484 = vmatprep.subr.mxu0 0.0
    %1485 = vmatpush1.msra.mxu0 0.0
    %1486 = vmatprep.mubr.f32.mxu0 0.0
    %1487 = vmatmul.mubr.f32.gmra.mrb[0].mxu0 %v1140
    %v1488 = vpop.f32.mrb[0].mxu0
    %v1489 = vadd.f32 0.0, %v1488
    %v1490 = vpop.f32.mrb[0].mxu0
    %1491 = vdwg.mxu0
    %1492 = vmatprep.subr.mxu0 0.0
    %1493 = vmatpush1.msra.mxu0 %v970
    %1494 = vmatprep.subr.mxu0 0.0
    %1495 = vmatpush1.msra.mxu0 0.0
    %1496 = vmatprep.subr.mxu0 0.0
    %1497 = vmatpush1.msra.mxu0 0.0
    %1498 = vmatprep.subr.mxu0 0.0
    %1499 = vmatpush1.msra.mxu0 0.0
    %1500 = vmatprep.subr.mxu0 0.0
    %1501 = vmatpush1.msra.mxu0 0.0
    %1502 = vmatprep.subr.mxu0 0.0
    %1503 = vmatpush1.msra.mxu0 0.0
    %1504 = vmatprep.subr.mxu0 0.0
    %1505 = vmatpush1.msra.mxu0 0.0
    %1506 = vmatprep.subr.mxu0 0.0
    %1507 = vmatpush1.msra.mxu0 0.0
    %1508 = vmatprep.subr.mxu0 0.0
    %1509 = vmatpush1.msra.mxu0 0.0
    %1510 = vmatprep.subr.mxu0 0.0
    %1511 = vmatpush1.msra.mxu0 0.0
    %1512 = vmatprep.subr.mxu0 0.0
    %1513 = vmatpush1.msra.mxu0 0.0
    %1514 = vmatprep.subr.mxu0 0.0
    %1515 = vmatpush1.msra.mxu0 0.0
    %1516 = vmatprep.subr.mxu0 0.0
    %1517 = vmatpush1.msra.mxu0 0.0
    %1518 = vmatprep.subr.mxu0 0.0
    %1519 = vmatpush1.msra.mxu0 0.0
    %1520 = vmatprep.subr.mxu0 0.0
    %1521 = vmatpush1.msra.mxu0 0.0
    %1522 = vmatprep.subr.mxu0 0.0
    %1523 = vmatpush1.msra.mxu0 0.0
    %1524 = vmatprep.subr.mxu0 0.0
    %1525 = vmatpush1.msra.mxu0 0.0
    %1526 = vmatprep.subr.mxu0 0.0
    %1527 = vmatpush1.msra.mxu0 0.0
    %1528 = vmatprep.subr.mxu0 0.0
    %1529 = vmatpush1.msra.mxu0 0.0
    %1530 = vmatprep.subr.mxu0 0.0
    %1531 = vmatpush1.msra.mxu0 0.0
    %1532 = vmatprep.subr.mxu0 0.0
    %1533 = vmatpush1.msra.mxu0 0.0
    %1534 = vmatprep.subr.mxu0 0.0
    %1535 = vmatpush1.msra.mxu0 0.0
    %1536 = vmatprep.subr.mxu0 0.0
    %1537 = vmatpush1.msra.mxu0 0.0
    %1538 = vmatprep.subr.mxu0 0.0
    %1539 = vmatpush1.msra.mxu0 0.0
    %1540 = vmatprep.subr.mxu0 0.0
    %1541 = vmatpush1.msra.mxu0 0.0
    %1542 = vmatprep.subr.mxu0 0.0
    %1543 = vmatpush1.msra.mxu0 0.0
    %1544 = vmatprep.subr.mxu0 0.0
    %1545 = vmatpush1.msra.mxu0 0.0
    %1546 = vmatprep.subr.mxu0 0.0
    %1547 = vmatpush1.msra.mxu0 0.0
    %1548 = vmatprep.subr.mxu0 0.0
    %1549 = vmatpush1.msra.mxu0 0.0
    %1550 = vmatprep.subr.mxu0 0.0
    %1551 = vmatpush1.msra.mxu0 0.0
    %1552 = vmatprep.subr.mxu0 0.0
    %1553 = vmatpush1.msra.mxu0 0.0
    %1554 = vmatprep.subr.mxu0 0.0
    %1555 = vmatpush1.msra.mxu0 0.0
    %1556 = vmatprep.mubr.f32.mxu0 0.0
    %1557 = vmatmul.mubr.f32.gmra.mrb[0].mxu0 %v1140
    %v1558 = vpop.f32.mrb[0].mxu0
    %v1559 = vadd.f32 0.0, %v1558
    %v1560 = vpop.f32.mrb[0].mxu0
    %1561 = vdwg.mxu0
    %1562 = vmatprep.subr.mxu0 0.0
    %1563 = vmatpush1.msra.mxu0 %v971
    %1564 = vmatprep.subr.mxu0 0.0
    %1565 = vmatpush1.msra.mxu0 0.0
    %1566 = vmatprep.subr.mxu0 0.0
    %1567 = vmatpush1.msra.mxu0 0.0
    %1568 = vmatprep.subr.mxu0 0.0
    %1569 = vmatpush1.msra.mxu0 0.0
    %1570 = vmatprep.subr.mxu0 0.0
    %1571 = vmatpush1.msra.mxu0 0.0
    %1572 = vmatprep.subr.mxu0 0.0
    %1573 = vmatpush1.msra.mxu0 0.0
    %1574 = vmatprep.subr.mxu0 0.0
    %1575 = vmatpush1.msra.mxu0 0.0
    %1576 = vmatprep.subr.mxu0 0.0
    %1577 = vmatpush1.msra.mxu0 0.0
    %1578 = vmatprep.subr.mxu0 0.0
    %1579 = vmatpush1.msra.mxu0 0.0
    %1580 = vmatprep.subr.mxu0 0.0
    %1581 = vmatpush1.msra.mxu0 0.0
    %1582 = vmatprep.subr.mxu0 0.0
    %1583 = vmatpush1.msra.mxu0 0.0
    %1584 = vmatprep.subr.mxu0 0.0
    %1585 = vmatpush1.msra.mxu0 0.0
    %1586 = vmatprep.subr.mxu0 0.0
    %1587 = vmatpush1.msra.mxu0 0.0
    %1588 = vmatprep.subr.mxu0 0.0
    %1589 = vmatpush1.msra.mxu0 0.0
    %1590 = vmatprep.subr.mxu0 0.0
    %1591 = vmatpush1.msra.mxu0 0.0
    %1592 = vmatprep.subr.mxu0 0.0
    %1593 = vmatpush1.msra.mxu0 0.0
    %1594 = vmatprep.subr.mxu0 0.0
    %1595 = vmatpush1.msra.mxu0 0.0
    %1596 = vmatprep.subr.mxu0 0.0
    %1597 = vmatpush1.msra.mxu0 0.0
    %1598 = vmatprep.subr.mxu0 0.0
    %1599 = vmatpush1.msra.mxu0 0.0
    %1600 = vmatprep.subr.mxu0 0.0
    %1601 = vmatpush1.msra.mxu0 0.0
    %1602 = vmatprep.subr.mxu0 0.0
    %1603 = vmatpush1.msra.mxu0 0.0
    %1604 = vmatprep.subr.mxu0 0.0
    %1605 = vmatpush1.msra.mxu0 0.0
    %1606 = vmatprep.subr.mxu0 0.0
    %1607 = vmatpush1.msra.mxu0 0.0
    %1608 = vmatprep.subr.mxu0 0.0
    %1609 = vmatpush1.msra.mxu0 0.0
    %1610 = vmatprep.subr.mxu0 0.0
    %1611 = vmatpush1.msra.mxu0 0.0
    %1612 = vmatprep.subr.mxu0 0.0
    %1613 = vmatpush1.msra.mxu0 0.0
    %1614 = vmatprep.subr.mxu0 0.0
    %1615 = vmatpush1.msra.mxu0 0.0
    %1616 = vmatprep.subr.mxu0 0.0
    %1617 = vmatpush1.msra.mxu0 0.0
    %1618 = vmatprep.subr.mxu0 0.0
    %1619 = vmatpush1.msra.mxu0 0.0
    %1620 = vmatprep.subr.mxu0 0.0
    %1621 = vmatpush1.msra.mxu0 0.0
    %1622 = vmatprep.subr.mxu0 0.0
    %1623 = vmatpush1.msra.mxu0 0.0
    %1624 = vmatprep.subr.mxu0 0.0
    %1625 = vmatpush1.msra.mxu0 0.0
    %1626 = vmatprep.mubr.f32.mxu0 0.0
    %1627 = vmatmul.mubr.f32.gmra.mrb[0].mxu0 %v1140
    %v1628 = vpop.f32.mrb[0].mxu0
    %v1629 = vadd.f32 0.0, %v1628
    %v1630 = vpop.f32.mrb[0].mxu0
    %1631 = vdwg.mxu0
    %1632 = vmatprep.subr.mxu0 0.0
    %1633 = vmatpush1.msra.mxu0 %v972
    %1634 = vmatprep.subr.mxu0 0.0
    %1635 = vmatpush1.msra.mxu0 0.0
    %1636 = vmatprep.subr.mxu0 0.0
    %1637 = vmatpush1.msra.mxu0 0.0
    %1638 = vmatprep.subr.mxu0 0.0
    %1639 = vmatpush1.msra.mxu0 0.0
    %1640 = vmatprep.subr.mxu0 0.0
    %1641 = vmatpush1.msra.mxu0 0.0
    %1642 = vmatprep.subr.mxu0 0.0
    %1643 = vmatpush1.msra.mxu0 0.0
    %1644 = vmatprep.subr.mxu0 0.0
    %1645 = vmatpush1.msra.mxu0 0.0
    %1646 = vmatprep.subr.mxu0 0.0
    %1647 = vmatpush1.msra.mxu0 0.0
    %1648 = vmatprep.subr.mxu0 0.0
    %1649 = vmatpush1.msra.mxu0 0.0
    %1650 = vmatprep.subr.mxu0 0.0
    %1651 = vmatpush1.msra.mxu0 0.0
    %1652 = vmatprep.subr.mxu0 0.0
    %1653 = vmatpush1.msra.mxu0 0.0
    %1654 = vmatprep.subr.mxu0 0.0
    %1655 = vmatpush1.msra.mxu0 0.0
    %1656 = vmatprep.subr.mxu0 0.0
    %1657 = vmatpush1.msra.mxu0 0.0
    %1658 = vmatprep.subr.mxu0 0.0
    %1659 = vmatpush1.msra.mxu0 0.0
    %1660 = vmatprep.subr.mxu0 0.0
    %1661 = vmatpush1.msra.mxu0 0.0
    %1662 = vmatprep.subr.mxu0 0.0
    %1663 = vmatpush1.msra.mxu0 0.0
    %1664 = vmatprep.subr.mxu0 0.0
    %1665 = vmatpush1.msra.mxu0 0.0
    %1666 = vmatprep.subr.mxu0 0.0
    %1667 = vmatpush1.msra.mxu0 0.0
    %1668 = vmatprep.subr.mxu0 0.0
    %1669 = vmatpush1.msra.mxu0 0.0
    %1670 = vmatprep.subr.mxu0 0.0
    %1671 = vmatpush1.msra.mxu0 0.0
    %1672 = vmatprep.subr.mxu0 0.0
    %1673 = vmatpush1.msra.mxu0 0.0
    %1674 = vmatprep.subr.mxu0 0.0
    %1675 = vmatpush1.msra.mxu0 0.0
    %1676 = vmatprep.subr.mxu0 0.0
    %1677 = vmatpush1.msra.mxu0 0.0
    %1678 = vmatprep.subr.mxu0 0.0
    %1679 = vmatpush1.msra.mxu0 0.0
    %1680 = vmatprep.subr.mxu0 0.0
    %1681 = vmatpush1.msra.mxu0 0.0
    %1682 = vmatprep.subr.mxu0 0.0
    %1683 = vmatpush1.msra.mxu0 0.0
    %1684 = vmatprep.subr.mxu0 0.0
    %1685 = vmatpush1.msra.mxu0 0.0
    %1686 = vmatprep.subr.mxu0 0.0
    %1687 = vmatpush1.msra.mxu0 0.0
    %1688 = vmatprep.subr.mxu0 0.0
    %1689 = vmatpush1.msra.mxu0 0.0
    %1690 = vmatprep.subr.mxu0 0.0
    %1691 = vmatpush1.msra.mxu0 0.0
    %1692 = vmatprep.subr.mxu0 0.0
    %1693 = vmatpush1.msra.mxu0 0.0
    %1694 = vmatprep.subr.mxu0 0.0
    %1695 = vmatpush1.msra.mxu0 0.0
    %1696 = vmatprep.mubr.f32.mxu0 0.0
    %1697 = vmatmul.mubr.f32.gmra.mrb[0].mxu0 %v1140
    %v1698 = vpop.f32.mrb[0].mxu0
    %v1699 = vadd.f32 0.0, %v1698
    %v1700 = vpop.f32.mrb[0].mxu0
    %1701 = vdwg.mxu0
    %1702 = vmatprep.subr.mxu0 0.0
    %1703 = vmatpush1.msra.mxu0 %v973
    %1704 = vmatprep.subr.mxu0 0.0
    %1705 = vmatpush1.msra.mxu0 0.0
    %1706 = vmatprep.subr.mxu0 0.0
    %1707 = vmatpush1.msra.mxu0 0.0
    %1708 = vmatprep.subr.mxu0 0.0
    %1709 = vmatpush1.msra.mxu0 0.0
    %1710 = vmatprep.subr.mxu0 0.0
    %1711 = vmatpush1.msra.mxu0 0.0
    %1712 = vmatprep.subr.mxu0 0.0
    %1713 = vmatpush1.msra.mxu0 0.0
    %1714 = vmatprep.subr.mxu0 0.0
    %1715 = vmatpush1.msra.mxu0 0.0
    %1716 = vmatprep.subr.mxu0 0.0
    %1717 = vmatpush1.msra.mxu0 0.0
    %1718 = vmatprep.subr.mxu0 0.0
    %1719 = vmatpush1.msra.mxu0 0.0
    %1720 = vmatprep.subr.mxu0 0.0
    %1721 = vmatpush1.msra.mxu0 0.0
    %1722 = vmatprep.subr.mxu0 0.0
    %1723 = vmatpush1.msra.mxu0 0.0
    %1724 = vmatprep.subr.mxu0 0.0
    %1725 = vmatpush1.msra.mxu0 0.0
    %1726 = vmatprep.subr.mxu0 0.0
    %1727 = vmatpush1.msra.mxu0 0.0
    %1728 = vmatprep.subr.mxu0 0.0
    %1729 = vmatpush1.msra.mxu0 0.0
    %1730 = vmatprep.subr.mxu0 0.0
    %1731 = vmatpush1.msra.mxu0 0.0
    %1732 = vmatprep.subr.mxu0 0.0
    %1733 = vmatpush1.msra.mxu0 0.0
    %1734 = vmatprep.subr.mxu0 0.0
    %1735 = vmatpush1.msra.mxu0 0.0
    %1736 = vmatprep.subr.mxu0 0.0
    %1737 = vmatpush1.msra.mxu0 0.0
    %1738 = vmatprep.subr.mxu0 0.0
    %1739 = vmatpush1.msra.mxu0 0.0
    %1740 = vmatprep.subr.mxu0 0.0
    %1741 = vmatpush1.msra.mxu0 0.0
    %1742 = vmatprep.subr.mxu0 0.0
    %1743 = vmatpush1.msra.mxu0 0.0
    %1744 = vmatprep.subr.mxu0 0.0
    %1745 = vmatpush1.msra.mxu0 0.0
    %1746 = vmatprep.subr.mxu0 0.0
    %1747 = vmatpush1.msra.mxu0 0.0
    %1748 = vmatprep.subr.mxu0 0.0
    %1749 = vmatpush1.msra.mxu0 0.0
    %1750 = vmatprep.subr.mxu0 0.0
    %1751 = vmatpush1.msra.mxu0 0.0
    %1752 = vmatprep.subr.mxu0 0.0
    %1753 = vmatpush1.msra.mxu0 0.0
    %1754 = vmatprep.subr.mxu0 0.0
    %1755 = vmatpush1.msra.mxu0 0.0
    %1756 = vmatprep.subr.mxu0 0.0
    %1757 = vmatpush1.msra.mxu0 0.0
    %1758 = vmatprep.subr.mxu0 0.0
    %1759 = vmatpush1.msra.mxu0 0.0
    %1760 = vmatprep.subr.mxu0 0.0
    %1761 = vmatpush1.msra.mxu0 0.0
    %1762 = vmatprep.subr.mxu0 0.0
    %1763 = vmatpush1.msra.mxu0 0.0
    %1764 = vmatprep.subr.mxu0 0.0
    %1765 = vmatpush1.msra.mxu0 0.0
    %1766 = vmatprep.mubr.f32.mxu0 0.0
    %1767 = vmatmul.mubr.f32.gmra.mrb[0].mxu0 %v1140
    %v1768 = vpop.f32.mrb[0].mxu0
    %v1769 = vadd.f32 0.0, %v1768
    %v1770 = vpop.f32.mrb[0].mxu0
    %1771 = vdwg.mxu0
    %1772 = vmatprep.subr.mxu0 0.0
    %1773 = vmatpush1.msra.mxu0 %v974
    %1774 = vmatprep.subr.mxu0 0.0
    %1775 = vmatpush1.msra.mxu0 0.0
    %1776 = vmatprep.subr.mxu0 0.0
    %1777 = vmatpush1.msra.mxu0 0.0
    %1778 = vmatprep.subr.mxu0 0.0
    %1779 = vmatpush1.msra.mxu0 0.0
    %1780 = vmatprep.subr.mxu0 0.0
    %1781 = vmatpush1.msra.mxu0 0.0
    %1782 = vmatprep.subr.mxu0 0.0
    %1783 = vmatpush1.msra.mxu0 0.0
    %1784 = vmatprep.subr.mxu0 0.0
    %1785 = vmatpush1.msra.mxu0 0.0
    %1786 = vmatprep.subr.mxu0 0.0
    %1787 = vmatpush1.msra.mxu0 0.0
    %1788 = vmatprep.subr.mxu0 0.0
    %1789 = vmatpush1.msra.mxu0 0.0
    %1790 = vmatprep.subr.mxu0 0.0
    %1791 = vmatpush1.msra.mxu0 0.0
    %1792 = vmatprep.subr.mxu0 0.0
    %1793 = vmatpush1.msra.mxu0 0.0
    %1794 = vmatprep.subr.mxu0 0.0
    %1795 = vmatpush1.msra.mxu0 0.0
    %1796 = vmatprep.subr.mxu0 0.0
    %1797 = vmatpush1.msra.mxu0 0.0
    %1798 = vmatprep.subr.mxu0 0.0
    %1799 = vmatpush1.msra.mxu0 0.0
    %1800 = vmatprep.subr.mxu0 0.0
    %1801 = vmatpush1.msra.mxu0 0.0
    %1802 = vmatprep.subr.mxu0 0.0
    %1803 = vmatpush1.msra.mxu0 0.0
    %1804 = vmatprep.subr.mxu0 0.0
    %1805 = vmatpush1.msra.mxu0 0.0
    %1806 = vmatprep.subr.mxu0 0.0
    %1807 = vmatpush1.msra.mxu0 0.0
    %1808 = vmatprep.subr.mxu0 0.0
    %1809 = vmatpush1.msra.mxu0 0.0
    %1810 = vmatprep.subr.mxu0 0.0
    %1811 = vmatpush1.msra.mxu0 0.0
    %1812 = vmatprep.subr.mxu0 0.0
    %1813 = vmatpush1.msra.mxu0 0.0
    %1814 = vmatprep.subr.mxu0 0.0
    %1815 = vmatpush1.msra.mxu0 0.0
    %1816 = vmatprep.subr.mxu0 0.0
    %1817 = vmatpush1.msra.mxu0 0.0
    %1818 = vmatprep.subr.mxu0 0.0
    %1819 = vmatpush1.msra.mxu0 0.0
    %1820 = vmatprep.subr.mxu0 0.0
    %1821 = vmatpush1.msra.mxu0 0.0
    %1822 = vmatprep.subr.mxu0 0.0
    %1823 = vmatpush1.msra.mxu0 0.0
    %1824 = vmatprep.subr.mxu0 0.0
    %1825 = vmatpush1.msra.mxu0 0.0
    %1826 = vmatprep.subr.mxu0 0.0
    %1827 = vmatpush1.msra.mxu0 0.0
    %1828 = vmatprep.subr.mxu0 0.0
    %1829 = vmatpush1.msra.mxu0 0.0
    %1830 = vmatprep.subr.mxu0 0.0
    %1831 = vmatpush1.msra.mxu0 0.0
    %1832 = vmatprep.subr.mxu0 0.0
    %1833 = vmatpush1.msra.mxu0 0.0
    %1834 = vmatprep.subr.mxu0 0.0
    %1835 = vmatpush1.msra.mxu0 0.0
    %1836 = vmatprep.mubr.f32.mxu0 0.0
    %1837 = vmatmul.mubr.f32.gmra.mrb[0].mxu0 %v1140
    %v1838 = vpop.f32.mrb[0].mxu0
    %v1839 = vadd.f32 0.0, %v1838
    %v1840 = vpop.f32.mrb[0].mxu0
    %1841 = vdwg.mxu0
    %1842 = vmatprep.subr.mxu0 0.0
    %1843 = vmatpush1.msra.mxu0 %v975
    %1844 = vmatprep.subr.mxu0 0.0
    %1845 = vmatpush1.msra.mxu0 0.0
    %1846 = vmatprep.subr.mxu0 0.0
    %1847 = vmatpush1.msra.mxu0 0.0
    %1848 = vmatprep.subr.mxu0 0.0
    %1849 = vmatpush1.msra.mxu0 0.0
    %1850 = vmatprep.subr.mxu0 0.0
    %1851 = vmatpush1.msra.mxu0 0.0
    %1852 = vmatprep.subr.mxu0 0.0
    %1853 = vmatpush1.msra.mxu0 0.0
    %1854 = vmatprep.subr.mxu0 0.0
    %1855 = vmatpush1.msra.mxu0 0.0
    %1856 = vmatprep.subr.mxu0 0.0
    %1857 = vmatpush1.msra.mxu0 0.0
    %1858 = vmatprep.subr.mxu0 0.0
    %1859 = vmatpush1.msra.mxu0 0.0
    %1860 = vmatprep.subr.mxu0 0.0
    %1861 = vmatpush1.msra.mxu0 0.0
    %1862 = vmatprep.subr.mxu0 0.0
    %1863 = vmatpush1.msra.mxu0 0.0
    %1864 = vmatprep.subr.mxu0 0.0
    %1865 = vmatpush1.msra.mxu0 0.0
    %1866 = vmatprep.subr.mxu0 0.0
    %1867 = vmatpush1.msra.mxu0 0.0
    %1868 = vmatprep.subr.mxu0 0.0
    %1869 = vmatpush1.msra.mxu0 0.0
    %1870 = vmatprep.subr.mxu0 0.0
    %1871 = vmatpush1.msra.mxu0 0.0
    %1872 = vmatprep.subr.mxu0 0.0
    %1873 = vmatpush1.msra.mxu0 0.0
    %1874 = vmatprep.subr.mxu0 0.0
    %1875 = vmatpush1.msra.mxu0 0.0
    %1876 = vmatprep.subr.mxu0 0.0
    %1877 = vmatpush1.msra.mxu0 0.0
    %1878 = vmatprep.subr.mxu0 0.0
    %1879 = vmatpush1.msra.mxu0 0.0
    %1880 = vmatprep.subr.mxu0 0.0
    %1881 = vmatpush1.msra.mxu0 0.0
    %1882 = vmatprep.subr.mxu0 0.0
    %1883 = vmatpush1.msra.mxu0 0.0
    %1884 = vmatprep.subr.mxu0 0.0
    %1885 = vmatpush1.msra.mxu0 0.0
    %1886 = vmatprep.subr.mxu0 0.0
    %1887 = vmatpush1.msra.mxu0 0.0
    %1888 = vmatprep.subr.mxu0 0.0
    %1889 = vmatpush1.msra.mxu0 0.0
    %1890 = vmatprep.subr.mxu0 0.0
    %1891 = vmatpush1.msra.mxu0 0.0
    %1892 = vmatprep.subr.mxu0 0.0
    %1893 = vmatpush1.msra.mxu0 0.0
    %1894 = vmatprep.subr.mxu0 0.0
    %1895 = vmatpush1.msra.mxu0 0.0
    %1896 = vmatprep.subr.mxu0 0.0
    %1897 = vmatpush1.msra.mxu0 0.0
    %1898 = vmatprep.subr.mxu0 0.0
    %1899 = vmatpush1.msra.mxu0 0.0
    %1900 = vmatprep.subr.mxu0 0.0
    %1901 = vmatpush1.msra.mxu0 0.0
    %1902 = vmatprep.subr.mxu0 0.0
    %1903 = vmatpush1.msra.mxu0 0.0
    %1904 = vmatprep.subr.mxu0 0.0
    %1905 = vmatpush1.msra.mxu0 0.0
    %1906 = vmatprep.mubr.f32.mxu0 0.0
    %1907 = vmatmul.mubr.f32.gmra.mrb[0].mxu0 %v1140
    %v1908 = vpop.f32.mrb[0].mxu0
    %v1909 = vadd.f32 0.0, %v1908
    %v1910 = vpop.f32.mrb[0].mxu0
    %1911 = vdwg.mxu0
    %1912 = vmatprep.subr.mxu0 0.0
    %1913 = vmatpush1.msra.mxu0 %v976
    %1914 = vmatprep.subr.mxu0 0.0
    %1915 = vmatpush1.msra.mxu0 0.0
    %1916 = vmatprep.subr.mxu0 0.0
    %1917 = vmatpush1.msra.mxu0 0.0
    %1918 = vmatprep.subr.mxu0 0.0
    %1919 = vmatpush1.msra.mxu0 0.0
    %1920 = vmatprep.subr.mxu0 0.0
    %1921 = vmatpush1.msra.mxu0 0.0
    %1922 = vmatprep.subr.mxu0 0.0
    %1923 = vmatpush1.msra.mxu0 0.0
    %1924 = vmatprep.subr.mxu0 0.0
    %1925 = vmatpush1.msra.mxu0 0.0
    %1926 = vmatprep.subr.mxu0 0.0
    %1927 = vmatpush1.msra.mxu0 0.0
    %1928 = vmatprep.subr.mxu0 0.0
    %1929 = vmatpush1.msra.mxu0 0.0
    %1930 = vmatprep.subr.mxu0 0.0
    %1931 = vmatpush1.msra.mxu0 0.0
    %1932 = vmatprep.subr.mxu0 0.0
    %1933 = vmatpush1.msra.mxu0 0.0
    %1934 = vmatprep.subr.mxu0 0.0
    %1935 = vmatpush1.msra.mxu0 0.0
    %1936 = vmatprep.subr.mxu0 0.0
    %1937 = vmatpush1.msra.mxu0 0.0
    %1938 = vmatprep.subr.mxu0 0.0
    %1939 = vmatpush1.msra.mxu0 0.0
    %1940 = vmatprep.subr.mxu0 0.0
    %1941 = vmatpush1.msra.mxu0 0.0
    %1942 = vmatprep.subr.mxu0 0.0
    %1943 = vmatpush1.msra.mxu0 0.0
    %1944 = vmatprep.subr.mxu0 0.0
    %1945 = vmatpush1.msra.mxu0 0.0
    %1946 = vmatprep.subr.mxu0 0.0
    %1947 = vmatpush1.msra.mxu0 0.0
    %1948 = vmatprep.subr.mxu0 0.0
    %1949 = vmatpush1.msra.mxu0 0.0
    %1950 = vmatprep.subr.mxu0 0.0
    %1951 = vmatpush1.msra.mxu0 0.0
    %1952 = vmatprep.subr.mxu0 0.0
    %1953 = vmatpush1.msra.mxu0 0.0
    %1954 = vmatprep.subr.mxu0 0.0
    %1955 = vmatpush1.msra.mxu0 0.0
    %1956 = vmatprep.subr.mxu0 0.0
    %1957 = vmatpush1.msra.mxu0 0.0
    %1958 = vmatprep.subr.mxu0 0.0
    %1959 = vmatpush1.msra.mxu0 0.0
    %1960 = vmatprep.subr.mxu0 0.0
    %1961 = vmatpush1.msra.mxu0 0.0
    %1962 = vmatprep.subr.mxu0 0.0
    %1963 = vmatpush1.msra.mxu0 0.0
    %1964 = vmatprep.subr.mxu0 0.0
    %1965 = vmatpush1.msra.mxu0 0.0
    %1966 = vmatprep.subr.mxu0 0.0
    %1967 = vmatpush1.msra.mxu0 0.0
    %1968 = vmatprep.subr.mxu0 0.0
    %1969 = vmatpush1.msra.mxu0 0.0
    %1970 = vmatprep.subr.mxu0 0.0
    %1971 = vmatpush1.msra.mxu0 0.0
    %1972 = vmatprep.subr.mxu0 0.0
    %1973 = vmatpush1.msra.mxu0 0.0
    %1974 = vmatprep.subr.mxu0 0.0
    %1975 = vmatpush1.msra.mxu0 0.0
    %1976 = vmatprep.mubr.f32.mxu0 0.0
    %1977 = vmatmul.mubr.f32.gmra.mrb[0].mxu0 %v1140
    %v1978 = vpop.f32.mrb[0].mxu0
    %v1979 = vadd.f32 0.0, %v1978
    %v1980 = vpop.f32.mrb[0].mxu0
    %1981 = vdwg.mxu0
    %1982 = vmatprep.subr.mxu0 0.0
    %1983 = vmatpush1.msra.mxu0 %v1209
    %1984 = vmatprep.subr.mxu0 0.0
    %1985 = vmatpush1.msra.mxu0 0.0
    %1986 = vmatprep.subr.mxu0 0.0
    %1987 = vmatpush1.msra.mxu0 0.0
    %1988 = vmatprep.subr.mxu0 0.0
    %1989 = vmatpush1.msra.mxu0 0.0
    %1990 = vmatprep.subr.mxu0 0.0
    %1991 = vmatpush1.msra.mxu0 0.0
    %1992 = vmatprep.subr.mxu0 0.0
    %1993 = vmatpush1.msra.mxu0 0.0
    %1994 = vmatprep.subr.mxu0 0.0
    %1995 = vmatpush1.msra.mxu0 0.0
    %1996 = vmatprep.subr.mxu0 0.0
    %1997 = vmatpush1.msra.mxu0 0.0
    %1998 = vmatprep.subr.mxu0 0.0
    %1999 = vmatpush1.msra.mxu0 0.0
    %2000 = vmatprep.subr.mxu0 0.0
    %2001 = vmatpush1.msra.mxu0 0.0
    %2002 = vmatprep.subr.mxu0 0.0
    %2003 = vmatpush1.msra.mxu0 0.0
    %2004 = vmatprep.subr.mxu0 0.0
    %2005 = vmatpush1.msra.mxu0 0.0
    %2006 = vmatprep.subr.mxu0 0.0
    %2007 = vmatpush1.msra.mxu0 0.0
    %2008 = vmatprep.subr.mxu0 0.0
    %2009 = vmatpush1.msra.mxu0 0.0
    %2010 = vmatprep.subr.mxu0 0.0
    %2011 = vmatpush1.msra.mxu0 0.0
    %2012 = vmatprep.subr.mxu0 0.0
    %2013 = vmatpush1.msra.mxu0 0.0
    %2014 = vmatprep.subr.mxu0 0.0
    %2015 = vmatpush1.msra.mxu0 0.0
    %2016 = vmatprep.subr.mxu0 0.0
    %2017 = vmatpush1.msra.mxu0 0.0
    %2018 = vmatprep.subr.mxu0 0.0
    %2019 = vmatpush1.msra.mxu0 0.0
    %2020 = vmatprep.subr.mxu0 0.0
    %2021 = vmatpush1.msra.mxu0 0.0
    %2022 = vmatprep.subr.mxu0 0.0
    %2023 = vmatpush1.msra.mxu0 0.0
    %2024 = vmatprep.subr.mxu0 0.0
    %2025 = vmatpush1.msra.mxu0 0.0
    %2026 = vmatprep.subr.mxu0 0.0
    %2027 = vmatpush1.msra.mxu0 0.0
    %2028 = vmatprep.subr.mxu0 0.0
    %2029 = vmatpush1.msra.mxu0 0.0
    %2030 = vmatprep.subr.mxu0 0.0
    %2031 = vmatpush1.msra.mxu0 0.0
    %2032 = vmatprep.subr.mxu0 0.0
    %2033 = vmatpush1.msra.mxu0 0.0
    %2034 = vmatprep.subr.mxu0 0.0
    %2035 = vmatpush1.msra.mxu0 0.0
    %2036 = vmatprep.subr.mxu0 0.0
    %2037 = vmatpush1.msra.mxu0 0.0
    %2038 = vmatprep.subr.mxu0 0.0
    %2039 = vmatpush1.msra.mxu0 0.0
    %2040 = vmatprep.subr.mxu0 0.0
    %2041 = vmatpush1.msra.mxu0 0.0
    %2042 = vmatprep.subr.mxu0 0.0
    %2043 = vmatpush1.msra.mxu0 0.0
    %2044 = vmatprep.subr.mxu0 0.0
    %2045 = vmatpush1.msra.mxu0 0.0
    %2046 = vmatprep.mubr.f32.mxu0 0.0
    %2047 = vmatmul.mubr.f32.gmra.mrb[0].mxu0 %v1140
    %v2048 = vpop.f32.mrb[0].mxu0
    %v2049 = vadd.f32 0.0, %v2048
    %v2050 = vpop.f32.mrb[0].mxu0
    %2051 = vdwg.mxu0
    %2052 = vmatprep.subr.mxu0 0.0
    %2053 = vmatpush1.msra.mxu0 %v1279
    %2054 = vmatprep.subr.mxu0 0.0
    %2055 = vmatpush1.msra.mxu0 0.0
    %2056 = vmatprep.subr.mxu0 0.0
    %2057 = vmatpush1.msra.mxu0 0.0
    %2058 = vmatprep.subr.mxu0 0.0
    %2059 = vmatpush1.msra.mxu0 0.0
    %2060 = vmatprep.subr.mxu0 0.0
    %2061 = vmatpush1.msra.mxu0 0.0
    %2062 = vmatprep.subr.mxu0 0.0
    %2063 = vmatpush1.msra.mxu0 0.0
    %2064 = vmatprep.subr.mxu0 0.0
    %2065 = vmatpush1.msra.mxu0 0.0
    %2066 = vmatprep.subr.mxu0 0.0
    %2067 = vmatpush1.msra.mxu0 0.0
    %2068 = vmatprep.subr.mxu0 0.0
    %2069 = vmatpush1.msra.mxu0 0.0
    %2070 = vmatprep.subr.mxu0 0.0
    %2071 = vmatpush1.msra.mxu0 0.0
    %2072 = vmatprep.subr.mxu0 0.0
    %2073 = vmatpush1.msra.mxu0 0.0
    %2074 = vmatprep.subr.mxu0 0.0
    %2075 = vmatpush1.msra.mxu0 0.0
    %2076 = vmatprep.subr.mxu0 0.0
    %2077 = vmatpush1.msra.mxu0 0.0
    %2078 = vmatprep.subr.mxu0 0.0
    %2079 = vmatpush1.msra.mxu0 0.0
    %2080 = vmatprep.subr.mxu0 0.0
    %2081 = vmatpush1.msra.mxu0 0.0
    %2082 = vmatprep.subr.mxu0 0.0
    %2083 = vmatpush1.msra.mxu0 0.0
    %2084 = vmatprep.subr.mxu0 0.0
    %2085 = vmatpush1.msra.mxu0 0.0
    %2086 = vmatprep.subr.mxu0 0.0
    %2087 = vmatpush1.msra.mxu0 0.0
    %2088 = vmatprep.subr.mxu0 0.0
    %2089 = vmatpush1.msra.mxu0 0.0
    %2090 = vmatprep.subr.mxu0 0.0
    %2091 = vmatpush1.msra.mxu0 0.0
    %2092 = vmatprep.subr.mxu0 0.0
    %2093 = vmatpush1.msra.mxu0 0.0
    %2094 = vmatprep.subr.mxu0 0.0
    %2095 = vmatpush1.msra.mxu0 0.0
    %2096 = vmatprep.subr.mxu0 0.0
    %2097 = vmatpush1.msra.mxu0 0.0
    %2098 = vmatprep.subr.mxu0 0.0
    %2099 = vmatpush1.msra.mxu0 0.0
    %2100 = vmatprep.subr.mxu0 0.0
    %2101 = vmatpush1.msra.mxu0 0.0
    %2102 = vmatprep.subr.mxu0 0.0
    %2103 = vmatpush1.msra.mxu0 0.0
    %2104 = vmatprep.subr.mxu0 0.0
    %2105 = vmatpush1.msra.mxu0 0.0
    %2106 = vmatprep.subr.mxu0 0.0
    %2107 = vmatpush1.msra.mxu0 0.0
    %2108 = vmatprep.subr.mxu0 0.0
    %2109 = vmatpush1.msra.mxu0 0.0
    %2110 = vmatprep.subr.mxu0 0.0
    %2111 = vmatpush1.msra.mxu0 0.0
    %2112 = vmatprep.subr.mxu0 0.0
    %2113 = vmatpush1.msra.mxu0 0.0
    %2114 = vmatprep.subr.mxu0 0.0
    %2115 = vmatpush1.msra.mxu0 0.0
    %2116 = vmatprep.mubr.f32.mxu0 0.0
    %2117 = vmatmul.mubr.f32.gmra.mrb[0].mxu0 %v1140
    %v2118 = vpop.f32.mrb[0].mxu0
    %v2119 = vadd.f32 0.0, %v2118
    %v2120 = vpop.f32.mrb[0].mxu0
    %2121 = vdwg.mxu0
    %2122 = vmatprep.subr.mxu0 0.0
    %2123 = vmatpush1.msra.mxu0 %v1349
    %2124 = vmatprep.subr.mxu0 0.0
    %2125 = vmatpush1.msra.mxu0 0.0
    %2126 = vmatprep.subr.mxu0 0.0
    %2127 = vmatpush1.msra.mxu0 0.0
    %2128 = vmatprep.subr.mxu0 0.0
    %2129 = vmatpush1.msra.mxu0 0.0
    %2130 = vmatprep.subr.mxu0 0.0
    %2131 = vmatpush1.msra.mxu0 0.0
    %2132 = vmatprep.subr.mxu0 0.0
    %2133 = vmatpush1.msra.mxu0 0.0
    %2134 = vmatprep.subr.mxu0 0.0
    %2135 = vmatpush1.msra.mxu0 0.0
    %2136 = vmatprep.subr.mxu0 0.0
    %2137 = vmatpush1.msra.mxu0 0.0
    %2138 = vmatprep.subr.mxu0 0.0
    %2139 = vmatpush1.msra.mxu0 0.0
    %2140 = vmatprep.subr.mxu0 0.0
    %2141 = vmatpush1.msra.mxu0 0.0
    %2142 = vmatprep.subr.mxu0 0.0
    %2143 = vmatpush1.msra.mxu0 0.0
    %2144 = vmatprep.subr.mxu0 0.0
    %2145 = vmatpush1.msra.mxu0 0.0
    %2146 = vmatprep.subr.mxu0 0.0
    %2147 = vmatpush1.msra.mxu0 0.0
    %2148 = vmatprep.subr.mxu0 0.0
    %2149 = vmatpush1.msra.mxu0 0.0
    %2150 = vmatprep.subr.mxu0 0.0
    %2151 = vmatpush1.msra.mxu0 0.0
    %2152 = vmatprep.subr.mxu0 0.0
    %2153 = vmatpush1.msra.mxu0 0.0
    %2154 = vmatprep.subr.mxu0 0.0
    %2155 = vmatpush1.msra.mxu0 0.0
    %2156 = vmatprep.subr.mxu0 0.0
    %2157 = vmatpush1.msra.mxu0 0.0
    %2158 = vmatprep.subr.mxu0 0.0
    %2159 = vmatpush1.msra.mxu0 0.0
    %2160 = vmatprep.subr.mxu0 0.0
    %2161 = vmatpush1.msra.mxu0 0.0
    %2162 = vmatprep.subr.mxu0 0.0
    %2163 = vmatpush1.msra.mxu0 0.0
    %2164 = vmatprep.subr.mxu0 0.0
    %2165 = vmatpush1.msra.mxu0 0.0
    %2166 = vmatprep.subr.mxu0 0.0
    %2167 = vmatpush1.msra.mxu0 0.0
    %2168 = vmatprep.subr.mxu0 0.0
    %2169 = vmatpush1.msra.mxu0 0.0
    %2170 = vmatprep.subr.mxu0 0.0
    %2171 = vmatpush1.msra.mxu0 0.0
    %2172 = vmatprep.subr.mxu0 0.0
    %2173 = vmatpush1.msra.mxu0 0.0
    %2174 = vmatprep.subr.mxu0 0.0
    %2175 = vmatpush1.msra.mxu0 0.0
    %2176 = vmatprep.subr.mxu0 0.0
    %2177 = vmatpush1.msra.mxu0 0.0
    %2178 = vmatprep.subr.mxu0 0.0
    %2179 = vmatpush1.msra.mxu0 0.0
    %2180 = vmatprep.subr.mxu0 0.0
    %2181 = vmatpush1.msra.mxu0 0.0
    %2182 = vmatprep.subr.mxu0 0.0
    %2183 = vmatpush1.msra.mxu0 0.0
    %2184 = vmatprep.subr.mxu0 0.0
    %2185 = vmatpush1.msra.mxu0 0.0
    %2186 = vmatprep.mubr.f32.mxu0 0.0
    %2187 = vmatmul.mubr.f32.gmra.mrb[0].mxu0 %v1140
    %v2188 = vpop.f32.mrb[0].mxu0
    %v2189 = vadd.f32 0.0, %v2188
    %v2190 = vpop.f32.mrb[0].mxu0
    %2191 = vdwg.mxu0
    %2192 = vmatprep.subr.mxu0 0.0
    %2193 = vmatpush1.msra.mxu0 %v1419
    %2194 = vmatprep.subr.mxu0 0.0
    %2195 = vmatpush1.msra.mxu0 0.0
    %2196 = vmatprep.subr.mxu0 0.0
    %2197 = vmatpush1.msra.mxu0 0.0
    %2198 = vmatprep.subr.mxu0 0.0
    %2199 = vmatpush1.msra.mxu0 0.0
    %2200 = vmatprep.subr.mxu0 0.0
    %2201 = vmatpush1.msra.mxu0 0.0
    %2202 = vmatprep.subr.mxu0 0.0
    %2203 = vmatpush1.msra.mxu0 0.0
    %2204 = vmatprep.subr.mxu0 0.0
    %2205 = vmatpush1.msra.mxu0 0.0
    %2206 = vmatprep.subr.mxu0 0.0
    %2207 = vmatpush1.msra.mxu0 0.0
    %2208 = vmatprep.subr.mxu0 0.0
    %2209 = vmatpush1.msra.mxu0 0.0
    %2210 = vmatprep.subr.mxu0 0.0
    %2211 = vmatpush1.msra.mxu0 0.0
    %2212 = vmatprep.subr.mxu0 0.0
    %2213 = vmatpush1.msra.mxu0 0.0
    %2214 = vmatprep.subr.mxu0 0.0
    %2215 = vmatpush1.msra.mxu0 0.0
    %2216 = vmatprep.subr.mxu0 0.0
    %2217 = vmatpush1.msra.mxu0 0.0
    %2218 = vmatprep.subr.mxu0 0.0
    %2219 = vmatpush1.msra.mxu0 0.0
    %2220 = vmatprep.subr.mxu0 0.0
    %2221 = vmatpush1.msra.mxu0 0.0
    %2222 = vmatprep.subr.mxu0 0.0
    %2223 = vmatpush1.msra.mxu0 0.0
    %2224 = vmatprep.subr.mxu0 0.0
    %2225 = vmatpush1.msra.mxu0 0.0
    %2226 = vmatprep.subr.mxu0 0.0
    %2227 = vmatpush1.msra.mxu0 0.0
    %2228 = vmatprep.subr.mxu0 0.0
    %2229 = vmatpush1.msra.mxu0 0.0
    %2230 = vmatprep.subr.mxu0 0.0
    %2231 = vmatpush1.msra.mxu0 0.0
    %2232 = vmatprep.subr.mxu0 0.0
    %2233 = vmatpush1.msra.mxu0 0.0
    %2234 = vmatprep.subr.mxu0 0.0
    %2235 = vmatpush1.msra.mxu0 0.0
    %2236 = vmatprep.subr.mxu0 0.0
    %2237 = vmatpush1.msra.mxu0 0.0
    %2238 = vmatprep.subr.mxu0 0.0
    %2239 = vmatpush1.msra.mxu0 0.0
    %2240 = vmatprep.subr.mxu0 0.0
    %2241 = vmatpush1.msra.mxu0 0.0
    %2242 = vmatprep.subr.mxu0 0.0
    %2243 = vmatpush1.msra.mxu0 0.0
    %2244 = vmatprep.subr.mxu0 0.0
    %2245 = vmatpush1.msra.mxu0 0.0
    %2246 = vmatprep.subr.mxu0 0.0
    %2247 = vmatpush1.msra.mxu0 0.0
    %2248 = vmatprep.subr.mxu0 0.0
    %2249 = vmatpush1.msra.mxu0 0.0
    %2250 = vmatprep.subr.mxu0 0.0
    %2251 = vmatpush1.msra.mxu0 0.0
    %2252 = vmatprep.subr.mxu0 0.0
    %2253 = vmatpush1.msra.mxu0 0.0
    %2254 = vmatprep.subr.mxu0 0.0
    %2255 = vmatpush1.msra.mxu0 0.0
    %2256 = vmatprep.mubr.f32.mxu0 0.0
    %2257 = vmatmul.mubr.f32.gmra.mrb[0].mxu0 %v1140
    %v2258 = vpop.f32.mrb[0].mxu0
    %v2259 = vadd.f32 0.0, %v2258
    %v2260 = vpop.f32.mrb[0].mxu0
    %2261 = vdwg.mxu0
    %2262 = vmatprep.subr.mxu0 0.0
    %2263 = vmatpush1.msra.mxu0 %v1489
    %2264 = vmatprep.subr.mxu0 0.0
    %2265 = vmatpush1.msra.mxu0 0.0
    %2266 = vmatprep.subr.mxu0 0.0
    %2267 = vmatpush1.msra.mxu0 0.0
    %2268 = vmatprep.subr.mxu0 0.0
    %2269 = vmatpush1.msra.mxu0 0.0
    %2270 = vmatprep.subr.mxu0 0.0
    %2271 = vmatpush1.msra.mxu0 0.0
    %2272 = vmatprep.subr.mxu0 0.0
    %2273 = vmatpush1.msra.mxu0 0.0
    %2274 = vmatprep.subr.mxu0 0.0
    %2275 = vmatpush1.msra.mxu0 0.0
    %2276 = vmatprep.subr.mxu0 0.0
    %2277 = vmatpush1.msra.mxu0 0.0
    %2278 = vmatprep.subr.mxu0 0.0
    %2279 = vmatpush1.msra.mxu0 0.0
    %2280 = vmatprep.subr.mxu0 0.0
    %2281 = vmatpush1.msra.mxu0 0.0
    %2282 = vmatprep.subr.mxu0 0.0
    %2283 = vmatpush1.msra.mxu0 0.0
    %2284 = vmatprep.subr.mxu0 0.0
    %2285 = vmatpush1.msra.mxu0 0.0
    %2286 = vmatprep.subr.mxu0 0.0
    %2287 = vmatpush1.msra.mxu0 0.0
    %2288 = vmatprep.subr.mxu0 0.0
    %2289 = vmatpush1.msra.mxu0 0.0
    %2290 = vmatprep.subr.mxu0 0.0
    %2291 = vmatpush1.msra.mxu0 0.0
    %2292 = vmatprep.subr.mxu0 0.0
    %2293 = vmatpush1.msra.mxu0 0.0
    %2294 = vmatprep.subr.mxu0 0.0
    %2295 = vmatpush1.msra.mxu0 0.0
    %2296 = vmatprep.subr.mxu0 0.0
    %2297 = vmatpush1.msra.mxu0 0.0
    %2298 = vmatprep.subr.mxu0 0.0
    %2299 = vmatpush1.msra.mxu0 0.0
    %2300 = vmatprep.subr.mxu0 0.0
    %2301 = vmatpush1.msra.mxu0 0.0
    %2302 = vmatprep.subr.mxu0 0.0
    %2303 = vmatpush1.msra.mxu0 0.0
    %2304 = vmatprep.subr.mxu0 0.0
    %2305 = vmatpush1.msra.mxu0 0.0
    %2306 = vmatprep.subr.mxu0 0.0
    %2307 = vmatpush1.msra.mxu0 0.0
    %2308 = vmatprep.subr.mxu0 0.0
    %2309 = vmatpush1.msra.mxu0 0.0
    %2310 = vmatprep.subr.mxu0 0.0
    %2311 = vmatpush1.msra.mxu0 0.0
    %2312 = vmatprep.subr.mxu0 0.0
    %2313 = vmatpush1.msra.mxu0 0.0
    %2314 = vmatprep.subr.mxu0 0.0
    %2315 = vmatpush1.msra.mxu0 0.0
    %2316 = vmatprep.subr.mxu0 0.0
    %2317 = vmatpush1.msra.mxu0 0.0
    %2318 = vmatprep.subr.mxu0 0.0
    %2319 = vmatpush1.msra.mxu0 0.0
    %2320 = vmatprep.subr.mxu0 0.0
    %2321 = vmatpush1.msra.mxu0 0.0
    %2322 = vmatprep.subr.mxu0 0.0
    %2323 = vmatpush1.msra.mxu0 0.0
    %2324 = vmatprep.subr.mxu0 0.0
    %2325 = vmatpush1.msra.mxu0 0.0
    %2326 = vmatprep.mubr.f32.mxu0 0.0
    %2327 = vmatmul.mubr.f32.gmra.mrb[0].mxu0 %v1140
    %v2328 = vpop.f32.mrb[0].mxu0
    %v2329 = vadd.f32 0.0, %v2328
    %v2330 = vpop.f32.mrb[0].mxu0
    %2331 = vdwg.mxu0
    %2332 = vmatprep.subr.mxu0 0.0
    %2333 = vmatpush1.msra.mxu0 %v1559
    %2334 = vmatprep.subr.mxu0 0.0
    %2335 = vmatpush1.msra.mxu0 0.0
    %2336 = vmatprep.subr.mxu0 0.0
    %2337 = vmatpush1.msra.mxu0 0.0
    %2338 = vmatprep.subr.mxu0 0.0
    %2339 = vmatpush1.msra.mxu0 0.0
    %2340 = vmatprep.subr.mxu0 0.0
    %2341 = vmatpush1.msra.mxu0 0.0
    %2342 = vmatprep.subr.mxu0 0.0
    %2343 = vmatpush1.msra.mxu0 0.0
    %2344 = vmatprep.subr.mxu0 0.0
    %2345 = vmatpush1.msra.mxu0 0.0
    %2346 = vmatprep.subr.mxu0 0.0
    %2347 = vmatpush1.msra.mxu0 0.0
    %2348 = vmatprep.subr.mxu0 0.0
    %2349 = vmatpush1.msra.mxu0 0.0
    %2350 = vmatprep.subr.mxu0 0.0
    %2351 = vmatpush1.msra.mxu0 0.0
    %2352 = vmatprep.subr.mxu0 0.0
    %2353 = vmatpush1.msra.mxu0 0.0
    %2354 = vmatprep.subr.mxu0 0.0
    %2355 = vmatpush1.msra.mxu0 0.0
    %2356 = vmatprep.subr.mxu0 0.0
    %2357 = vmatpush1.msra.mxu0 0.0
    %2358 = vmatprep.subr.mxu0 0.0
    %2359 = vmatpush1.msra.mxu0 0.0
    %2360 = vmatprep.subr.mxu0 0.0
    %2361 = vmatpush1.msra.mxu0 0.0
    %2362 = vmatprep.subr.mxu0 0.0
    %2363 = vmatpush1.msra.mxu0 0.0
    %2364 = vmatprep.subr.mxu0 0.0
    %2365 = vmatpush1.msra.mxu0 0.0
    %2366 = vmatprep.subr.mxu0 0.0
    %2367 = vmatpush1.msra.mxu0 0.0
    %2368 = vmatprep.subr.mxu0 0.0
    %2369 = vmatpush1.msra.mxu0 0.0
    %2370 = vmatprep.subr.mxu0 0.0
    %2371 = vmatpush1.msra.mxu0 0.0
    %2372 = vmatprep.subr.mxu0 0.0
    %2373 = vmatpush1.msra.mxu0 0.0
    %2374 = vmatprep.subr.mxu0 0.0
    %2375 = vmatpush1.msra.mxu0 0.0
    %2376 = vmatprep.subr.mxu0 0.0
    %2377 = vmatpush1.msra.mxu0 0.0
    %2378 = vmatprep.subr.mxu0 0.0
    %2379 = vmatpush1.msra.mxu0 0.0
    %2380 = vmatprep.subr.mxu0 0.0
    %2381 = vmatpush1.msra.mxu0 0.0
    %2382 = vmatprep.subr.mxu0 0.0
    %2383 = vmatpush1.msra.mxu0 0.0
    %2384 = vmatprep.subr.mxu0 0.0
    %2385 = vmatpush1.msra.mxu0 0.0
    %2386 = vmatprep.subr.mxu0 0.0
    %2387 = vmatpush1.msra.mxu0 0.0
    %2388 = vmatprep.subr.mxu0 0.0
    %2389 = vmatpush1.msra.mxu0 0.0
    %2390 = vmatprep.subr.mxu0 0.0
    %2391 = vmatpush1.msra.mxu0 0.0
    %2392 = vmatprep.subr.mxu0 0.0
    %2393 = vmatpush1.msra.mxu0 0.0
    %2394 = vmatprep.subr.mxu0 0.0
    %2395 = vmatpush1.msra.mxu0 0.0
    %2396 = vmatprep.mubr.f32.mxu0 0.0
    %2397 = vmatmul.mubr.f32.gmra.mrb[0].mxu0 %v1140
    %v2398 = vpop.f32.mrb[0].mxu0
    %v2399 = vadd.f32 0.0, %v2398
    %v2400 = vpop.f32.mrb[0].mxu0
    %2401 = vdwg.mxu0
    %2402 = vmatprep.subr.mxu0 0.0
    %2403 = vmatpush1.msra.mxu0 %v1629
    %2404 = vmatprep.subr.mxu0 0.0
    %2405 = vmatpush1.msra.mxu0 0.0
    %2406 = vmatprep.subr.mxu0 0.0
    %2407 = vmatpush1.msra.mxu0 0.0
    %2408 = vmatprep.subr.mxu0 0.0
    %2409 = vmatpush1.msra.mxu0 0.0
    %2410 = vmatprep.subr.mxu0 0.0
    %2411 = vmatpush1.msra.mxu0 0.0
    %2412 = vmatprep.subr.mxu0 0.0
    %2413 = vmatpush1.msra.mxu0 0.0
    %2414 = vmatprep.subr.mxu0 0.0
    %2415 = vmatpush1.msra.mxu0 0.0
    %2416 = vmatprep.subr.mxu0 0.0
    %2417 = vmatpush1.msra.mxu0 0.0
    %2418 = vmatprep.subr.mxu0 0.0
    %2419 = vmatpush1.msra.mxu0 0.0
    %2420 = vmatprep.subr.mxu0 0.0
    %2421 = vmatpush1.msra.mxu0 0.0
    %2422 = vmatprep.subr.mxu0 0.0
    %2423 = vmatpush1.msra.mxu0 0.0
    %2424 = vmatprep.subr.mxu0 0.0
    %2425 = vmatpush1.msra.mxu0 0.0
    %2426 = vmatprep.subr.mxu0 0.0
    %2427 = vmatpush1.msra.mxu0 0.0
    %2428 = vmatprep.subr.mxu0 0.0
    %2429 = vmatpush1.msra.mxu0 0.0
    %2430 = vmatprep.subr.mxu0 0.0
    %2431 = vmatpush1.msra.mxu0 0.0
    %2432 = vmatprep.subr.mxu0 0.0
    %2433 = vmatpush1.msra.mxu0 0.0
    %2434 = vmatprep.subr.mxu0 0.0
    %2435 = vmatpush1.msra.mxu0 0.0
    %2436 = vmatprep.subr.mxu0 0.0
    %2437 = vmatpush1.msra.mxu0 0.0
    %2438 = vmatprep.subr.mxu0 0.0
    %2439 = vmatpush1.msra.mxu0 0.0
    %2440 = vmatprep.subr.mxu0 0.0
    %2441 = vmatpush1.msra.mxu0 0.0
    %2442 = vmatprep.subr.mxu0 0.0
    %2443 = vmatpush1.msra.mxu0 0.0
    %2444 = vmatprep.subr.mxu0 0.0
    %2445 = vmatpush1.msra.mxu0 0.0
    %2446 = vmatprep.subr.mxu0 0.0
    %2447 = vmatpush1.msra.mxu0 0.0
    %2448 = vmatprep.subr.mxu0 0.0
    %2449 = vmatpush1.msra.mxu0 0.0
    %2450 = vmatprep.subr.mxu0 0.0
    %2451 = vmatpush1.msra.mxu0 0.0
    %2452 = vmatprep.subr.mxu0 0.0
    %2453 = vmatpush1.msra.mxu0 0.0
    %2454 = vmatprep.subr.mxu0 0.0
    %2455 = vmatpush1.msra.mxu0 0.0
    %2456 = vmatprep.subr.mxu0 0.0
    %2457 = vmatpush1.msra.mxu0 0.0
    %2458 = vmatprep.subr.mxu0 0.0
    %2459 = vmatpush1.msra.mxu0 0.0
    %2460 = vmatprep.subr.mxu0 0.0
    %2461 = vmatpush1.msra.mxu0 0.0
    %2462 = vmatprep.subr.mxu0 0.0
    %2463 = vmatpush1.msra.mxu0 0.0
    %2464 = vmatprep.subr.mxu0 0.0
    %2465 = vmatpush1.msra.mxu0 0.0
    %2466 = vmatprep.mubr.f32.mxu0 0.0
    %2467 = vmatmul.mubr.f32.gmra.mrb[0].mxu0 %v1140
    %v2468 = vpop.f32.mrb[0].mxu0
    %v2469 = vadd.f32 0.0, %v2468
    %v2470 = vpop.f32.mrb[0].mxu0
    %2471 = vdwg.mxu0
    %2472 = vmatprep.subr.mxu0 0.0
    %2473 = vmatpush1.msra.mxu0 %v1699
    %2474 = vmatprep.subr.mxu0 0.0
    %2475 = vmatpush1.msra.mxu0 0.0
    %2476 = vmatprep.subr.mxu0 0.0
    %2477 = vmatpush1.msra.mxu0 0.0
    %2478 = vmatprep.subr.mxu0 0.0
    %2479 = vmatpush1.msra.mxu0 0.0
    %2480 = vmatprep.subr.mxu0 0.0
    %2481 = vmatpush1.msra.mxu0 0.0
    %2482 = vmatprep.subr.mxu0 0.0
    %2483 = vmatpush1.msra.mxu0 0.0
    %2484 = vmatprep.subr.mxu0 0.0
    %2485 = vmatpush1.msra.mxu0 0.0
    %2486 = vmatprep.subr.mxu0 0.0
    %2487 = vmatpush1.msra.mxu0 0.0
    %2488 = vmatprep.subr.mxu0 0.0
    %2489 = vmatpush1.msra.mxu0 0.0
    %2490 = vmatprep.subr.mxu0 0.0
    %2491 = vmatpush1.msra.mxu0 0.0
    %2492 = vmatprep.subr.mxu0 0.0
    %2493 = vmatpush1.msra.mxu0 0.0
    %2494 = vmatprep.subr.mxu0 0.0
    %2495 = vmatpush1.msra.mxu0 0.0
    %2496 = vmatprep.subr.mxu0 0.0
    %2497 = vmatpush1.msra.mxu0 0.0
    %2498 = vmatprep.subr.mxu0 0.0
    %2499 = vmatpush1.msra.mxu0 0.0
    %2500 = vmatprep.subr.mxu0 0.0
    %2501 = vmatpush1.msra.mxu0 0.0
    %2502 = vmatprep.subr.mxu0 0.0
    %2503 = vmatpush1.msra.mxu0 0.0
    %2504 = vmatprep.subr.mxu0 0.0
    %2505 = vmatpush1.msra.mxu0 0.0
    %2506 = vmatprep.subr.mxu0 0.0
    %2507 = vmatpush1.msra.mxu0 0.0
    %2508 = vmatprep.subr.mxu0 0.0
    %2509 = vmatpush1.msra.mxu0 0.0
    %2510 = vmatprep.subr.mxu0 0.0
    %2511 = vmatpush1.msra.mxu0 0.0
    %2512 = vmatprep.subr.mxu0 0.0
    %2513 = vmatpush1.msra.mxu0 0.0
    %2514 = vmatprep.subr.mxu0 0.0
    %2515 = vmatpush1.msra.mxu0 0.0
    %2516 = vmatprep.subr.mxu0 0.0
    %2517 = vmatpush1.msra.mxu0 0.0
    %2518 = vmatprep.subr.mxu0 0.0
    %2519 = vmatpush1.msra.mxu0 0.0
    %2520 = vmatprep.subr.mxu0 0.0
    %2521 = vmatpush1.msra.mxu0 0.0
    %2522 = vmatprep.subr.mxu0 0.0
    %2523 = vmatpush1.msra.mxu0 0.0
    %2524 = vmatprep.subr.mxu0 0.0
    %2525 = vmatpush1.msra.mxu0 0.0
    %2526 = vmatprep.subr.mxu0 0.0
    %2527 = vmatpush1.msra.mxu0 0.0
    %2528 = vmatprep.subr.mxu0 0.0
    %2529 = vmatpush1.msra.mxu0 0.0
    %2530 = vmatprep.subr.mxu0 0.0
    %2531 = vmatpush1.msra.mxu0 0.0
    %2532 = vmatprep.subr.mxu0 0.0
    %2533 = vmatpush1.msra.mxu0 0.0
    %2534 = vmatprep.subr.mxu0 0.0
    %2535 = vmatpush1.msra.mxu0 0.0
    %2536 = vmatprep.mubr.f32.mxu0 0.0
    %2537 = vmatmul.mubr.f32.gmra.mrb[0].mxu0 %v1140
    %v2538 = vpop.f32.mrb[0].mxu0
    %v2539 = vadd.f32 0.0, %v2538
    %v2540 = vpop.f32.mrb[0].mxu0
    %2541 = vdwg.mxu0
    %2542 = vmatprep.subr.mxu0 0.0
    %2543 = vmatpush1.msra.mxu0 %v1769
    %2544 = vmatprep.subr.mxu0 0.0
    %2545 = vmatpush1.msra.mxu0 0.0
    %2546 = vmatprep.subr.mxu0 0.0
    %2547 = vmatpush1.msra.mxu0 0.0
    %2548 = vmatprep.subr.mxu0 0.0
    %2549 = vmatpush1.msra.mxu0 0.0
    %2550 = vmatprep.subr.mxu0 0.0
    %2551 = vmatpush1.msra.mxu0 0.0
    %2552 = vmatprep.subr.mxu0 0.0
    %2553 = vmatpush1.msra.mxu0 0.0
    %2554 = vmatprep.subr.mxu0 0.0
    %2555 = vmatpush1.msra.mxu0 0.0
    %2556 = vmatprep.subr.mxu0 0.0
    %2557 = vmatpush1.msra.mxu0 0.0
    %2558 = vmatprep.subr.mxu0 0.0
    %2559 = vmatpush1.msra.mxu0 0.0
    %2560 = vmatprep.subr.mxu0 0.0
    %2561 = vmatpush1.msra.mxu0 0.0
    %2562 = vmatprep.subr.mxu0 0.0
    %2563 = vmatpush1.msra.mxu0 0.0
    %2564 = vmatprep.subr.mxu0 0.0
    %2565 = vmatpush1.msra.mxu0 0.0
    %2566 = vmatprep.subr.mxu0 0.0
    %2567 = vmatpush1.msra.mxu0 0.0
    %2568 = vmatprep.subr.mxu0 0.0
    %2569 = vmatpush1.msra.mxu0 0.0
    %2570 = vmatprep.subr.mxu0 0.0
    %2571 = vmatpush1.msra.mxu0 0.0
    %2572 = vmatprep.subr.mxu0 0.0
    %2573 = vmatpush1.msra.mxu0 0.0
    %2574 = vmatprep.subr.mxu0 0.0
    %2575 = vmatpush1.msra.mxu0 0.0
    %2576 = vmatprep.subr.mxu0 0.0
    %2577 = vmatpush1.msra.mxu0 0.0
    %2578 = vmatprep.subr.mxu0 0.0
    %2579 = vmatpush1.msra.mxu0 0.0
    %2580 = vmatprep.subr.mxu0 0.0
    %2581 = vmatpush1.msra.mxu0 0.0
    %2582 = vmatprep.subr.mxu0 0.0
    %2583 = vmatpush1.msra.mxu0 0.0
    %2584 = vmatprep.subr.mxu0 0.0
    %2585 = vmatpush1.msra.mxu0 0.0
    %2586 = vmatprep.subr.mxu0 0.0
    %2587 = vmatpush1.msra.mxu0 0.0
    %2588 = vmatprep.subr.mxu0 0.0
    %2589 = vmatpush1.msra.mxu0 0.0
    %2590 = vmatprep.subr.mxu0 0.0
    %2591 = vmatpush1.msra.mxu0 0.0
    %2592 = vmatprep.subr.mxu0 0.0
    %2593 = vmatpush1.msra.mxu0 0.0
    %2594 = vmatprep.subr.mxu0 0.0
    %2595 = vmatpush1.msra.mxu0 0.0
    %2596 = vmatprep.subr.mxu0 0.0
    %2597 = vmatpush1.msra.mxu0 0.0
    %2598 = vmatprep.subr.mxu0 0.0
    %2599 = vmatpush1.msra.mxu0 0.0
    %2600 = vmatprep.subr.mxu0 0.0
    %2601 = vmatpush1.msra.mxu0 0.0
    %2602 = vmatprep.subr.mxu0 0.0
    %2603 = vmatpush1.msra.mxu0 0.0
    %2604 = vmatprep.subr.mxu0 0.0
    %2605 = vmatpush1.msra.mxu0 0.0
    %2606 = vmatprep.mubr.f32.mxu0 0.0
    %2607 = vmatmul.mubr.f32.gmra.mrb[0].mxu0 %v1140
    %v2608 = vpop.f32.mrb[0].mxu0
    %v2609 = vadd.f32 0.0, %v2608
    %v2610 = vpop.f32.mrb[0].mxu0
    %2611 = vdwg.mxu0
    %2612 = vmatprep.subr.mxu0 0.0
    %2613 = vmatpush1.msra.mxu0 %v1839
    %2614 = vmatprep.subr.mxu0 0.0
    %2615 = vmatpush1.msra.mxu0 0.0
    %2616 = vmatprep.subr.mxu0 0.0
    %2617 = vmatpush1.msra.mxu0 0.0
    %2618 = vmatprep.subr.mxu0 0.0
    %2619 = vmatpush1.msra.mxu0 0.0
    %2620 = vmatprep.subr.mxu0 0.0
    %2621 = vmatpush1.msra.mxu0 0.0
    %2622 = vmatprep.subr.mxu0 0.0
    %2623 = vmatpush1.msra.mxu0 0.0
    %2624 = vmatprep.subr.mxu0 0.0
    %2625 = vmatpush1.msra.mxu0 0.0
    %2626 = vmatprep.subr.mxu0 0.0
    %2627 = vmatpush1.msra.mxu0 0.0
    %2628 = vmatprep.subr.mxu0 0.0
    %2629 = vmatpush1.msra.mxu0 0.0
    %2630 = vmatprep.subr.mxu0 0.0
    %2631 = vmatpush1.msra.mxu0 0.0
    %2632 = vmatprep.subr.mxu0 0.0
    %2633 = vmatpush1.msra.mxu0 0.0
    %2634 = vmatprep.subr.mxu0 0.0
    %2635 = vmatpush1.msra.mxu0 0.0
    %2636 = vmatprep.subr.mxu0 0.0
    %2637 = vmatpush1.msra.mxu0 0.0
    %2638 = vmatprep.subr.mxu0 0.0
    %2639 = vmatpush1.msra.mxu0 0.0
    %2640 = vmatprep.subr.mxu0 0.0
    %2641 = vmatpush1.msra.mxu0 0.0
    %2642 = vmatprep.subr.mxu0 0.0
    %2643 = vmatpush1.msra.mxu0 0.0
    %2644 = vmatprep.subr.mxu0 0.0
    %2645 = vmatpush1.msra.mxu0 0.0
    %2646 = vmatprep.subr.mxu0 0.0
    %2647 = vmatpush1.msra.mxu0 0.0
    %2648 = vmatprep.subr.mxu0 0.0
    %2649 = vmatpush1.msra.mxu0 0.0
    %2650 = vmatprep.subr.mxu0 0.0
    %2651 = vmatpush1.msra.mxu0 0.0
    %2652 = vmatprep.subr.mxu0 0.0
    %2653 = vmatpush1.msra.mxu0 0.0
    %2654 = vmatprep.subr.mxu0 0.0
    %2655 = vmatpush1.msra.mxu0 0.0
    %2656 = vmatprep.subr.mxu0 0.0
    %2657 = vmatpush1.msra.mxu0 0.0
    %2658 = vmatprep.subr.mxu0 0.0
    %2659 = vmatpush1.msra.mxu0 0.0
    %2660 = vmatprep.subr.mxu0 0.0
    %2661 = vmatpush1.msra.mxu0 0.0
    %2662 = vmatprep.subr.mxu0 0.0
    %2663 = vmatpush1.msra.mxu0 0.0
    %2664 = vmatprep.subr.mxu0 0.0
    %2665 = vmatpush1.msra.mxu0 0.0
    %2666 = vmatprep.subr.mxu0 0.0
    %2667 = vmatpush1.msra.mxu0 0.0
    %2668 = vmatprep.subr.mxu0 0.0
    %2669 = vmatpush1.msra.mxu0 0.0
    %2670 = vmatprep.subr.mxu0 0.0
    %2671 = vmatpush1.msra.mxu0 0.0
    %2672 = vmatprep.subr.mxu0 0.0
    %2673 = vmatpush1.msra.mxu0 0.0
    %2674 = vmatprep.subr.mxu0 0.0
    %2675 = vmatpush1.msra.mxu0 0.0
    %2676 = vmatprep.mubr.f32.mxu0 0.0
    %2677 = vmatmul.mubr.f32.gmra.mrb[0].mxu0 %v1140
    %v2678 = vpop.f32.mrb[0].mxu0
    %v2679 = vadd.f32 0.0, %v2678
    %v2680 = vpop.f32.mrb[0].mxu0
    %2681 = vdwg.mxu0
    %2682 = vmatprep.subr.mxu0 0.0
    %2683 = vmatpush1.msra.mxu0 %v1909
    %2684 = vmatprep.subr.mxu0 0.0
    %2685 = vmatpush1.msra.mxu0 0.0
    %2686 = vmatprep.subr.mxu0 0.0
    %2687 = vmatpush1.msra.mxu0 0.0
    %2688 = vmatprep.subr.mxu0 0.0
    %2689 = vmatpush1.msra.mxu0 0.0
    %2690 = vmatprep.subr.mxu0 0.0
    %2691 = vmatpush1.msra.mxu0 0.0
    %2692 = vmatprep.subr.mxu0 0.0
    %2693 = vmatpush1.msra.mxu0 0.0
    %2694 = vmatprep.subr.mxu0 0.0
    %2695 = vmatpush1.msra.mxu0 0.0
    %2696 = vmatprep.subr.mxu0 0.0
    %2697 = vmatpush1.msra.mxu0 0.0
    %2698 = vmatprep.subr.mxu0 0.0
    %2699 = vmatpush1.msra.mxu0 0.0
    %2700 = vmatprep.subr.mxu0 0.0
    %2701 = vmatpush1.msra.mxu0 0.0
    %2702 = vmatprep.subr.mxu0 0.0
    %2703 = vmatpush1.msra.mxu0 0.0
    %2704 = vmatprep.subr.mxu0 0.0
    %2705 = vmatpush1.msra.mxu0 0.0
    %2706 = vmatprep.subr.mxu0 0.0
    %2707 = vmatpush1.msra.mxu0 0.0
    %2708 = vmatprep.subr.mxu0 0.0
    %2709 = vmatpush1.msra.mxu0 0.0
    %2710 = vmatprep.subr.mxu0 0.0
    %2711 = vmatpush1.msra.mxu0 0.0
    %2712 = vmatprep.subr.mxu0 0.0
    %2713 = vmatpush1.msra.mxu0 0.0
    %2714 = vmatprep.subr.mxu0 0.0
    %2715 = vmatpush1.msra.mxu0 0.0
    %2716 = vmatprep.subr.mxu0 0.0
    %2717 = vmatpush1.msra.mxu0 0.0
    %2718 = vmatprep.subr.mxu0 0.0
    %2719 = vmatpush1.msra.mxu0 0.0
    %2720 = vmatprep.subr.mxu0 0.0
    %2721 = vmatpush1.msra.mxu0 0.0
    %2722 = vmatprep.subr.mxu0 0.0
    %2723 = vmatpush1.msra.mxu0 0.0
    %2724 = vmatprep.subr.mxu0 0.0
    %2725 = vmatpush1.msra.mxu0 0.0
    %2726 = vmatprep.subr.mxu0 0.0
    %2727 = vmatpush1.msra.mxu0 0.0
    %2728 = vmatprep.subr.mxu0 0.0
    %2729 = vmatpush1.msra.mxu0 0.0
    %2730 = vmatprep.subr.mxu0 0.0
    %2731 = vmatpush1.msra.mxu0 0.0
    %2732 = vmatprep.subr.mxu0 0.0
    %2733 = vmatpush1.msra.mxu0 0.0
    %2734 = vmatprep.subr.mxu0 0.0
    %2735 = vmatpush1.msra.mxu0 0.0
    %2736 = vmatprep.subr.mxu0 0.0
    %2737 = vmatpush1.msra.mxu0 0.0
    %2738 = vmatprep.subr.mxu0 0.0
    %2739 = vmatpush1.msra.mxu0 0.0
    %2740 = vmatprep.subr.mxu0 0.0
    %2741 = vmatpush1.msra.mxu0 0.0
    %2742 = vmatprep.subr.mxu0 0.0
    %2743 = vmatpush1.msra.mxu0 0.0
    %2744 = vmatprep.subr.mxu0 0.0
    %2745 = vmatpush1.msra.mxu0 0.0
    %2746 = vmatprep.mubr.f32.mxu0 0.0
    %2747 = vmatmul.mubr.f32.gmra.mrb[0].mxu0 %v1140
    %v2748 = vpop.f32.mrb[0].mxu0
    %v2749 = vadd.f32 0.0, %v2748
    %v2750 = vpop.f32.mrb[0].mxu0
    %2751 = vdwg.mxu0
    %2752 = vmatprep.subr.mxu0 0.0
    %2753 = vmatpush1.msra.mxu0 %v1979
    %2754 = vmatprep.subr.mxu0 0.0
    %2755 = vmatpush1.msra.mxu0 0.0
    %2756 = vmatprep.subr.mxu0 0.0
    %2757 = vmatpush1.msra.mxu0 0.0
    %2758 = vmatprep.subr.mxu0 0.0
    %2759 = vmatpush1.msra.mxu0 0.0
    %2760 = vmatprep.subr.mxu0 0.0
    %2761 = vmatpush1.msra.mxu0 0.0
    %2762 = vmatprep.subr.mxu0 0.0
    %2763 = vmatpush1.msra.mxu0 0.0
    %2764 = vmatprep.subr.mxu0 0.0
    %2765 = vmatpush1.msra.mxu0 0.0
    %2766 = vmatprep.subr.mxu0 0.0
    %2767 = vmatpush1.msra.mxu0 0.0
    %2768 = vmatprep.subr.mxu0 0.0
    %2769 = vmatpush1.msra.mxu0 0.0
    %2770 = vmatprep.subr.mxu0 0.0
    %2771 = vmatpush1.msra.mxu0 0.0
    %2772 = vmatprep.subr.mxu0 0.0
    %2773 = vmatpush1.msra.mxu0 0.0
    %2774 = vmatprep.subr.mxu0 0.0
    %2775 = vmatpush1.msra.mxu0 0.0
    %2776 = vmatprep.subr.mxu0 0.0
    %2777 = vmatpush1.msra.mxu0 0.0
    %2778 = vmatprep.subr.mxu0 0.0
    %2779 = vmatpush1.msra.mxu0 0.0
    %2780 = vmatprep.subr.mxu0 0.0
    %2781 = vmatpush1.msra.mxu0 0.0
    %2782 = vmatprep.subr.mxu0 0.0
    %2783 = vmatpush1.msra.mxu0 0.0
    %2784 = vmatprep.subr.mxu0 0.0
    %2785 = vmatpush1.msra.mxu0 0.0
    %2786 = vmatprep.subr.mxu0 0.0
    %2787 = vmatpush1.msra.mxu0 0.0
    %2788 = vmatprep.subr.mxu0 0.0
    %2789 = vmatpush1.msra.mxu0 0.0
    %2790 = vmatprep.subr.mxu0 0.0
    %2791 = vmatpush1.msra.mxu0 0.0
    %2792 = vmatprep.subr.mxu0 0.0
    %2793 = vmatpush1.msra.mxu0 0.0
    %2794 = vmatprep.subr.mxu0 0.0
    %2795 = vmatpush1.msra.mxu0 0.0
    %2796 = vmatprep.subr.mxu0 0.0
    %2797 = vmatpush1.msra.mxu0 0.0
    %2798 = vmatprep.subr.mxu0 0.0
    %2799 = vmatpush1.msra.mxu0 0.0
    %2800 = vmatprep.subr.mxu0 0.0
    %2801 = vmatpush1.msra.mxu0 0.0
    %2802 = vmatprep.subr.mxu0 0.0
    %2803 = vmatpush1.msra.mxu0 0.0
    %2804 = vmatprep.subr.mxu0 0.0
    %2805 = vmatpush1.msra.mxu0 0.0
    %2806 = vmatprep.subr.mxu0 0.0
    %2807 = vmatpush1.msra.mxu0 0.0
    %2808 = vmatprep.subr.mxu0 0.0
    %2809 = vmatpush1.msra.mxu0 0.0
    %2810 = vmatprep.subr.mxu0 0.0
    %2811 = vmatpush1.msra.mxu0 0.0
    %2812 = vmatprep.subr.mxu0 0.0
    %2813 = vmatpush1.msra.mxu0 0.0
    %2814 = vmatprep.subr.mxu0 0.0
    %2815 = vmatpush1.msra.mxu0 0.0
    %2816 = vmatprep.mubr.f32.mxu0 0.0
    %2817 = vmatmul.mubr.f32.gmra.mrb[0].mxu0 %v1140
    %v2818 = vpop.f32.mrb[0].mxu0
    %v2819 = vadd.f32 0.0, %v2818
    %v2820 = vpop.f32.mrb[0].mxu0
    %2821 = vdwg.mxu0
    %v2822 = vld [vmem:[%s10] sm:$0xff]
    %v2823 = vld [vmem:[%s10 + $0x8] sm:$0xff]
    %v2824 = vld [vmem:[%s10 + $0x10] sm:$0xff]
    %v2825 = vld [vmem:[%s10 + $0x18] sm:$0xff]
    %v2826 = vld [vmem:[#allocation7] sm:$0xff]
    %v2827 = vld [vmem:[#allocation7 + $0x8] sm:$0xff]
    %v2828 = vld [vmem:[#allocation7 + $0x10] sm:$0xff]
    %v2829 = vld [vmem:[#allocation7 + $0x18] sm:$0xff]
    %v2831 = vsel %vm521, %v1209, 0
    %v2834 = vsel %vm521, %v1279, 0
    %v2837 = vsel %vm521, %v1349, 0
    %v2840 = vsel %vm521, %v1419, 0
    %v2843 = vsel %vm521, %v1489, 0
    %v2846 = vsel %vm521, %v1559, 0
    %v2849 = vsel %vm521, %v1629, 0
    %v2852 = vsel %vm521, %v1699, 0
    %v2855 = vsel %vm521, %v1769, 0
    %v2858 = vsel %vm521, %v1839, 0
    %v2861 = vsel %vm521, %v1909, 0
    %v2864 = vsel %vm521, %v1979, 0
    %2866 = vmatprep.subr.mxu0 0.0
    %2867 = vmatpush1.msra.mxu0 %v2826
    %2868 = vmatprep.subr.mxu0 0.0
    %2869 = vmatpush1.msra.mxu0 %v2827
    %2870 = vmatprep.subr.mxu0 0.0
    %2871 = vmatpush1.msra.mxu0 %v2828
    %2872 = vmatprep.subr.mxu0 0.0
    %2873 = vmatpush1.msra.mxu0 %v2829
    %2874 = vmatprep.subr.mxu0 0.0
    %2875 = vmatpush1.msra.mxu0 0.0
    %2876 = vmatprep.subr.mxu0 0.0
    %2877 = vmatpush1.msra.mxu0 0.0
    %2878 = vmatprep.subr.mxu0 0.0
    %2879 = vmatpush1.msra.mxu0 0.0
    %2880 = vmatprep.subr.mxu0 0.0
    %2881 = vmatpush1.msra.mxu0 0.0
    %2882 = vmatprep.subr.mxu0 0.0
    %2883 = vmatpush1.msra.mxu0 0.0
    %2884 = vmatprep.subr.mxu0 0.0
    %2885 = vmatpush1.msra.mxu0 0.0
    %2886 = vmatprep.subr.mxu0 0.0
    %2887 = vmatpush1.msra.mxu0 0.0
    %2888 = vmatprep.subr.mxu0 0.0
    %2889 = vmatpush1.msra.mxu0 0.0
    %2890 = vmatprep.subr.mxu0 0.0
    %2891 = vmatpush1.msra.mxu0 0.0
    %2892 = vmatprep.subr.mxu0 0.0
    %2893 = vmatpush1.msra.mxu0 0.0
    %2894 = vmatprep.subr.mxu0 0.0
    %2895 = vmatpush1.msra.mxu0 0.0
    %2896 = vmatprep.subr.mxu0 0.0
    %2897 = vmatpush1.msra.mxu0 0.0
    %2898 = vmatprep.subr.mxu0 0.0
    %2899 = vmatpush1.msra.mxu0 0.0
    %2900 = vmatprep.subr.mxu0 0.0
    %2901 = vmatpush1.msra.mxu0 0.0
    %2902 = vmatprep.subr.mxu0 0.0
    %2903 = vmatpush1.msra.mxu0 0.0
    %2904 = vmatprep.subr.mxu0 0.0
    %2905 = vmatpush1.msra.mxu0 0.0
    %2906 = vmatprep.subr.mxu0 0.0
    %2907 = vmatpush1.msra.mxu0 0.0
    %2908 = vmatprep.subr.mxu0 0.0
    %2909 = vmatpush1.msra.mxu0 0.0
    %2910 = vmatprep.subr.mxu0 0.0
    %2911 = vmatpush1.msra.mxu0 0.0
    %2912 = vmatprep.subr.mxu0 0.0
    %2913 = vmatpush1.msra.mxu0 0.0
    %2914 = vmatprep.subr.mxu0 0.0
    %2915 = vmatpush1.msra.mxu0 0.0
    %2916 = vmatprep.subr.mxu0 0.0
    %2917 = vmatpush1.msra.mxu0 0.0
    %2918 = vmatprep.subr.mxu0 0.0
    %2919 = vmatpush1.msra.mxu0 0.0
    %2920 = vmatprep.subr.mxu0 0.0
    %2921 = vmatpush1.msra.mxu0 0.0
    %2922 = vmatprep.subr.mxu0 0.0
    %2923 = vmatpush1.msra.mxu0 0.0
    %2924 = vmatprep.subr.mxu0 0.0
    %2925 = vmatpush1.msra.mxu0 0.0
    %2926 = vmatprep.subr.mxu0 0.0
    %2927 = vmatpush1.msra.mxu0 0.0
    %2928 = vmatprep.subr.mxu0 0.0
    %2929 = vmatpush1.msra.mxu0 0.0
    %2930 = vmatprep.mubr.f32.mxu0 0.0
    %2931 = vmatmul.mubr.f32.gmra.mrb[0].mxu0 %v2831
    %v2932 = vpop.f32.mrb[0].mxu0
    %v2933 = vadd.f32 0.0, %v2932
    %v2934 = vpop.f32.mrb[0].mxu0
    %2935 = vmatprep.mubr.f32.mxu0 0.0
    %2936 = vmatmul.mubr.f32.gmra.mrb[0].mxu0 %v2834
    %v2937 = vpop.f32.mrb[0].mxu0
    %v2938 = vadd.f32 0.0, %v2937
    %v2939 = vpop.f32.mrb[0].mxu0
    %2940 = vmatprep.mubr.f32.mxu0 0.0
    %2941 = vmatmul.mubr.f32.gmra.mrb[0].mxu0 %v2837
    %v2942 = vpop.f32.mrb[0].mxu0
    %v2943 = vadd.f32 0.0, %v2942
    %v2944 = vpop.f32.mrb[0].mxu0
    %2945 = vmatprep.mubr.f32.mxu0 0.0
    %2946 = vmatmul.mubr.f32.gmra.mrb[0].mxu0 %v2840
    %v2947 = vpop.f32.mrb[0].mxu0
    %v2948 = vadd.f32 0.0, %v2947
    %v2949 = vpop.f32.mrb[0].mxu0
    %2950 = vmatprep.mubr.f32.mxu0 0.0
    %2951 = vmatmul.mubr.f32.gmra.mrb[0].mxu0 %v2843
    %v2952 = vpop.f32.mrb[0].mxu0
    %v2953 = vadd.f32 0.0, %v2952
    %v2954 = vpop.f32.mrb[0].mxu0
    %2955 = vmatprep.mubr.f32.mxu0 0.0
    %2956 = vmatmul.mubr.f32.gmra.mrb[0].mxu0 %v2846
    %v2957 = vpop.f32.mrb[0].mxu0
    %v2958 = vadd.f32 0.0, %v2957
    %v2959 = vpop.f32.mrb[0].mxu0
    %2960 = vmatprep.mubr.f32.mxu0 0.0
    %2961 = vmatmul.mubr.f32.gmra.mrb[0].mxu0 %v2849
    %v2962 = vpop.f32.mrb[0].mxu0
    %v2963 = vadd.f32 0.0, %v2962
    %v2964 = vpop.f32.mrb[0].mxu0
    %2965 = vmatprep.mubr.f32.mxu0 0.0
    %2966 = vmatmul.mubr.f32.gmra.mrb[0].mxu0 %v2852
    %v2967 = vpop.f32.mrb[0].mxu0
    %v2968 = vadd.f32 0.0, %v2967
    %v2969 = vpop.f32.mrb[0].mxu0
    %2970 = vmatprep.mubr.f32.mxu0 0.0
    %2971 = vmatmul.mubr.f32.gmra.mrb[0].mxu0 %v2855
    %v2972 = vpop.f32.mrb[0].mxu0
    %v2973 = vadd.f32 0.0, %v2972
    %v2974 = vpop.f32.mrb[0].mxu0
    %2975 = vmatprep.mubr.f32.mxu0 0.0
    %2976 = vmatmul.mubr.f32.gmra.mrb[0].mxu0 %v2858
    %v2977 = vpop.f32.mrb[0].mxu0
    %v2978 = vadd.f32 0.0, %v2977
    %v2979 = vpop.f32.mrb[0].mxu0
    %2980 = vmatprep.mubr.f32.mxu0 0.0
    %2981 = vmatmul.mubr.f32.gmra.mrb[0].mxu0 %v2861
    %v2982 = vpop.f32.mrb[0].mxu0
    %v2983 = vadd.f32 0.0, %v2982
    %v2984 = vpop.f32.mrb[0].mxu0
    %2985 = vmatprep.mubr.f32.mxu0 0.0
    %2986 = vmatmul.mubr.f32.gmra.mrb[0].mxu0 %v2864
    %v2987 = vpop.f32.mrb[0].mxu0
    %v2988 = vadd.f32 0.0, %v2987
    %v2989 = vpop.f32.mrb[0].mxu0
    %2990 = vdwg.mxu0
    %2991 = vmatprep.subr.mxu0 0.0
    %2992 = vmatpush1.msra.mxu0 %v2822
    %2993 = vmatprep.subr.mxu0 0.0
    %2994 = vmatpush1.msra.mxu0 %v2823
    %2995 = vmatprep.subr.mxu0 0.0
    %2996 = vmatpush1.msra.mxu0 %v2824
    %2997 = vmatprep.subr.mxu0 0.0
    %2998 = vmatpush1.msra.mxu0 %v2825
    %2999 = vmatprep.subr.mxu0 0.0
    %3000 = vmatpush1.msra.mxu0 0.0
    %3001 = vmatprep.subr.mxu0 0.0
    %3002 = vmatpush1.msra.mxu0 0.0
    %3003 = vmatprep.subr.mxu0 0.0
    %3004 = vmatpush1.msra.mxu0 0.0
    %3005 = vmatprep.subr.mxu0 0.0
    %3006 = vmatpush1.msra.mxu0 0.0
    %3007 = vmatprep.subr.mxu0 0.0
    %3008 = vmatpush1.msra.mxu0 0.0
    %3009 = vmatprep.subr.mxu0 0.0
    %3010 = vmatpush1.msra.mxu0 0.0
    %3011 = vmatprep.subr.mxu0 0.0
    %3012 = vmatpush1.msra.mxu0 0.0
    %3013 = vmatprep.subr.mxu0 0.0
    %3014 = vmatpush1.msra.mxu0 0.0
    %3015 = vmatprep.subr.mxu0 0.0
    %3016 = vmatpush1.msra.mxu0 0.0
    %3017 = vmatprep.subr.mxu0 0.0
    %3018 = vmatpush1.msra.mxu0 0.0
    %3019 = vmatprep.subr.mxu0 0.0
    %3020 = vmatpush1.msra.mxu0 0.0
    %3021 = vmatprep.subr.mxu0 0.0
    %3022 = vmatpush1.msra.mxu0 0.0
    %3023 = vmatprep.subr.mxu0 0.0
    %3024 = vmatpush1.msra.mxu0 0.0
    %3025 = vmatprep.subr.mxu0 0.0
    %3026 = vmatpush1.msra.mxu0 0.0
    %3027 = vmatprep.subr.mxu0 0.0
    %3028 = vmatpush1.msra.mxu0 0.0
    %3029 = vmatprep.subr.mxu0 0.0
    %3030 = vmatpush1.msra.mxu0 0.0
    %3031 = vmatprep.subr.mxu0 0.0
    %3032 = vmatpush1.msra.mxu0 0.0
    %3033 = vmatprep.subr.mxu0 0.0
    %3034 = vmatpush1.msra.mxu0 0.0
    %3035 = vmatprep.subr.mxu0 0.0
    %3036 = vmatpush1.msra.mxu0 0.0
    %3037 = vmatprep.subr.mxu0 0.0
    %3038 = vmatpush1.msra.mxu0 0.0
    %3039 = vmatprep.subr.mxu0 0.0
    %3040 = vmatpush1.msra.mxu0 0.0
    %3041 = vmatprep.subr.mxu0 0.0
    %3042 = vmatpush1.msra.mxu0 0.0
    %3043 = vmatprep.subr.mxu0 0.0
    %3044 = vmatpush1.msra.mxu0 0.0
    %3045 = vmatprep.subr.mxu0 0.0
    %3046 = vmatpush1.msra.mxu0 0.0
    %3047 = vmatprep.subr.mxu0 0.0
    %3048 = vmatpush1.msra.mxu0 0.0
    %3049 = vmatprep.subr.mxu0 0.0
    %3050 = vmatpush1.msra.mxu0 0.0
    %3051 = vmatprep.subr.mxu0 0.0
    %3052 = vmatpush1.msra.mxu0 0.0
    %3053 = vmatprep.subr.mxu0 0.0
    %3054 = vmatpush1.msra.mxu0 0.0
    %3055 = vmatprep.mubr.f32.mxu0 0.0
    %3056 = vmatmul.mubr.f32.gmra.mrb[0].mxu0 %v989
    %v3057 = vpop.f32.mrb[0].mxu0
    %v3058 = vadd.f32 %v2933, %v3057
    %v3059 = vpop.f32.mrb[0].mxu0
    %3060 = vmatprep.mubr.f32.mxu0 0.0
    %3061 = vmatmul.mubr.f32.gmra.mrb[0].mxu0 %v992
    %v3062 = vpop.f32.mrb[0].mxu0
    %v3063 = vadd.f32 %v2938, %v3062
    %v3064 = vpop.f32.mrb[0].mxu0
    %3065 = vmatprep.mubr.f32.mxu0 0.0
    %3066 = vmatmul.mubr.f32.gmra.mrb[0].mxu0 %v995
    %v3067 = vpop.f32.mrb[0].mxu0
    %v3068 = vadd.f32 %v2943, %v3067
    %v3069 = vpop.f32.mrb[0].mxu0
    %3070 = vmatprep.mubr.f32.mxu0 0.0
    %3071 = vmatmul.mubr.f32.gmra.mrb[0].mxu0 %v998
    %v3072 = vpop.f32.mrb[0].mxu0
    %v3073 = vadd.f32 %v2948, %v3072
    %v3074 = vpop.f32.mrb[0].mxu0
    %3075 = vmatprep.mubr.f32.mxu0 0.0
    %3076 = vmatmul.mubr.f32.gmra.mrb[0].mxu0 %v1001
    %v3077 = vpop.f32.mrb[0].mxu0
    %v3078 = vadd.f32 %v2953, %v3077
    %v3079 = vpop.f32.mrb[0].mxu0
    %3080 = vmatprep.mubr.f32.mxu0 0.0
    %3081 = vmatmul.mubr.f32.gmra.mrb[0].mxu0 %v1004
    %v3082 = vpop.f32.mrb[0].mxu0
    %v3083 = vadd.f32 %v2958, %v3082
    %v3084 = vpop.f32.mrb[0].mxu0
    %3085 = vmatprep.mubr.f32.mxu0 0.0
    %3086 = vmatmul.mubr.f32.gmra.mrb[0].mxu0 %v1007
    %v3087 = vpop.f32.mrb[0].mxu0
    %v3088 = vadd.f32 %v2963, %v3087
    %v3089 = vpop.f32.mrb[0].mxu0
    %3090 = vmatprep.mubr.f32.mxu0 0.0
    %3091 = vmatmul.mubr.f32.gmra.mrb[0].mxu0 %v1010
    %v3092 = vpop.f32.mrb[0].mxu0
    %v3093 = vadd.f32 %v2968, %v3092
    %v3094 = vpop.f32.mrb[0].mxu0
    %3095 = vmatprep.mubr.f32.mxu0 0.0
    %3096 = vmatmul.mubr.f32.gmra.mrb[0].mxu0 %v1013
    %v3097 = vpop.f32.mrb[0].mxu0
    %v3098 = vadd.f32 %v2973, %v3097
    %v3099 = vpop.f32.mrb[0].mxu0
    %3100 = vmatprep.mubr.f32.mxu0 0.0
    %3101 = vmatmul.mubr.f32.gmra.mrb[0].mxu0 %v1016
    %v3102 = vpop.f32.mrb[0].mxu0
    %v3103 = vadd.f32 %v2978, %v3102
    %v3104 = vpop.f32.mrb[0].mxu0
    %3105 = vmatprep.mubr.f32.mxu0 0.0
    %3106 = vmatmul.mubr.f32.gmra.mrb[0].mxu0 %v1019
    %v3107 = vpop.f32.mrb[0].mxu0
    %v3108 = vadd.f32 %v2983, %v3107
    %v3109 = vpop.f32.mrb[0].mxu0
    %3110 = vmatprep.mubr.f32.mxu0 0.0
    %3111 = vmatmul.mubr.f32.gmra.mrb[0].mxu0 %v1022
    %v3112 = vpop.f32.mrb[0].mxu0
    %v3113 = vadd.f32 %v2988, %v3112
    %v3114 = vpop.f32.mrb[0].mxu0
    %3115 = vdwg.mxu0
    %v3116 = vld [vmem:[#allocation9] sm:$0xff]
    %v3117 = vld [vmem:[#allocation9 + $0x8] sm:$0xff]
    %v3118 = vld [vmem:[#allocation9 + $0x10] sm:$0xff]
    %v3119 = vld [vmem:[#allocation9 + $0x18] sm:$0xff]
    %v3121 = vsel %vm521, %v2049, 0
    %v3124 = vsel %vm521, %v2119, 0
    %v3127 = vsel %vm521, %v2189, 0
    %v3130 = vsel %vm521, %v2259, 0
    %v3133 = vsel %vm521, %v2329, 0
    %v3136 = vsel %vm521, %v2399, 0
    %v3139 = vsel %vm521, %v2469, 0
    %v3142 = vsel %vm521, %v2539, 0
    %v3145 = vsel %vm521, %v2609, 0
    %v3148 = vsel %vm521, %v2679, 0
    %v3151 = vsel %vm521, %v2749, 0
    %v3154 = vsel %vm521, %v2819, 0
    %3156 = vmatprep.subr.mxu0 0.0
    %3157 = vmatpush1.msra.mxu0 %v3116
    %3158 = vmatprep.subr.mxu0 0.0
    %3159 = vmatpush1.msra.mxu0 %v3117
    %3160 = vmatprep.subr.mxu0 0.0
    %3161 = vmatpush1.msra.mxu0 %v3118
    %3162 = vmatprep.subr.mxu0 0.0
    %3163 = vmatpush1.msra.mxu0 %v3119
    %3164 = vmatprep.subr.mxu0 0.0
    %3165 = vmatpush1.msra.mxu0 0.0
    %3166 = vmatprep.subr.mxu0 0.0
    %3167 = vmatpush1.msra.mxu0 0.0
    %3168 = vmatprep.subr.mxu0 0.0
    %3169 = vmatpush1.msra.mxu0 0.0
    %3170 = vmatprep.subr.mxu0 0.0
    %3171 = vmatpush1.msra.mxu0 0.0
    %3172 = vmatprep.subr.mxu0 0.0
    %3173 = vmatpush1.msra.mxu0 0.0
    %3174 = vmatprep.subr.mxu0 0.0
    %3175 = vmatpush1.msra.mxu0 0.0
    %3176 = vmatprep.subr.mxu0 0.0
    %3177 = vmatpush1.msra.mxu0 0.0
    %3178 = vmatprep.subr.mxu0 0.0
    %3179 = vmatpush1.msra.mxu0 0.0
    %3180 = vmatprep.subr.mxu0 0.0
    %3181 = vmatpush1.msra.mxu0 0.0
    %3182 = vmatprep.subr.mxu0 0.0
    %3183 = vmatpush1.msra.mxu0 0.0
    %3184 = vmatprep.subr.mxu0 0.0
    %3185 = vmatpush1.msra.mxu0 0.0
    %3186 = vmatprep.subr.mxu0 0.0
    %3187 = vmatpush1.msra.mxu0 0.0
    %3188 = vmatprep.subr.mxu0 0.0
    %3189 = vmatpush1.msra.mxu0 0.0
    %3190 = vmatprep.subr.mxu0 0.0
    %3191 = vmatpush1.msra.mxu0 0.0
    %3192 = vmatprep.subr.mxu0 0.0
    %3193 = vmatpush1.msra.mxu0 0.0
    %3194 = vmatprep.subr.mxu0 0.0
    %3195 = vmatpush1.msra.mxu0 0.0
    %3196 = vmatprep.subr.mxu0 0.0
    %3197 = vmatpush1.msra.mxu0 0.0
    %3198 = vmatprep.subr.mxu0 0.0
    %3199 = vmatpush1.msra.mxu0 0.0
    %3200 = vmatprep.subr.mxu0 0.0
    %3201 = vmatpush1.msra.mxu0 0.0
    %3202 = vmatprep.subr.mxu0 0.0
    %3203 = vmatpush1.msra.mxu0 0.0
    %3204 = vmatprep.subr.mxu0 0.0
    %3205 = vmatpush1.msra.mxu0 0.0
    %3206 = vmatprep.subr.mxu0 0.0
    %3207 = vmatpush1.msra.mxu0 0.0
    %3208 = vmatprep.subr.mxu0 0.0
    %3209 = vmatpush1.msra.mxu0 0.0
    %3210 = vmatprep.subr.mxu0 0.0
    %3211 = vmatpush1.msra.mxu0 0.0
    %3212 = vmatprep.subr.mxu0 0.0
    %3213 = vmatpush1.msra.mxu0 0.0
    %3214 = vmatprep.subr.mxu0 0.0
    %3215 = vmatpush1.msra.mxu0 0.0
    %3216 = vmatprep.subr.mxu0 0.0
    %3217 = vmatpush1.msra.mxu0 0.0
    %3218 = vmatprep.subr.mxu0 0.0
    %3219 = vmatpush1.msra.mxu0 0.0
    %3220 = vmatprep.mubr.f32.mxu0 0.0
    %3221 = vmatmul.mubr.f32.gmra.mrb[0].mxu0 %v3121
    %v3222 = vpop.f32.mrb[0].mxu0
    %v3223 = vadd.f32 0.0, %v3222
    %v3224 = vpop.f32.mrb[0].mxu0
    %3225 = vmatprep.mubr.f32.mxu0 0.0
    %3226 = vmatmul.mubr.f32.gmra.mrb[0].mxu0 %v3124
    %v3227 = vpop.f32.mrb[0].mxu0
    %v3228 = vadd.f32 0.0, %v3227
    %v3229 = vpop.f32.mrb[0].mxu0
    %3230 = vmatprep.mubr.f32.mxu0 0.0
    %3231 = vmatmul.mubr.f32.gmra.mrb[0].mxu0 %v3127
    %v3232 = vpop.f32.mrb[0].mxu0
    %v3233 = vadd.f32 0.0, %v3232
    %v3234 = vpop.f32.mrb[0].mxu0
    %3235 = vmatprep.mubr.f32.mxu0 0.0
    %3236 = vmatmul.mubr.f32.gmra.mrb[0].mxu0 %v3130
    %v3237 = vpop.f32.mrb[0].mxu0
    %v3238 = vadd.f32 0.0, %v3237
    %v3239 = vpop.f32.mrb[0].mxu0
    %3240 = vmatprep.mubr.f32.mxu0 0.0
    %3241 = vmatmul.mubr.f32.gmra.mrb[0].mxu0 %v3133
    %v3242 = vpop.f32.mrb[0].mxu0
    %v3243 = vadd.f32 0.0, %v3242
    %v3244 = vpop.f32.mrb[0].mxu0
    %3245 = vmatprep.mubr.f32.mxu0 0.0
    %3246 = vmatmul.mubr.f32.gmra.mrb[0].mxu0 %v3136
    %v3247 = vpop.f32.mrb[0].mxu0
    %v3248 = vadd.f32 0.0, %v3247
    %v3249 = vpop.f32.mrb[0].mxu0
    %3250 = vmatprep.mubr.f32.mxu0 0.0
    %3251 = vmatmul.mubr.f32.gmra.mrb[0].mxu0 %v3139
    %v3252 = vpop.f32.mrb[0].mxu0
    %v3253 = vadd.f32 0.0, %v3252
    %v3254 = vpop.f32.mrb[0].mxu0
    %3255 = vmatprep.mubr.f32.mxu0 0.0
    %3256 = vmatmul.mubr.f32.gmra.mrb[0].mxu0 %v3142
    %v3257 = vpop.f32.mrb[0].mxu0
    %v3258 = vadd.f32 0.0, %v3257
    %v3259 = vpop.f32.mrb[0].mxu0
    %3260 = vmatprep.mubr.f32.mxu0 0.0
    %3261 = vmatmul.mubr.f32.gmra.mrb[0].mxu0 %v3145
    %v3262 = vpop.f32.mrb[0].mxu0
    %v3263 = vadd.f32 0.0, %v3262
    %v3264 = vpop.f32.mrb[0].mxu0
    %3265 = vmatprep.mubr.f32.mxu0 0.0
    %3266 = vmatmul.mubr.f32.gmra.mrb[0].mxu0 %v3148
    %v3267 = vpop.f32.mrb[0].mxu0
    %v3268 = vadd.f32 0.0, %v3267
    %v3269 = vpop.f32.mrb[0].mxu0
    %3270 = vmatprep.mubr.f32.mxu0 0.0
    %3271 = vmatmul.mubr.f32.gmra.mrb[0].mxu0 %v3151
    %v3272 = vpop.f32.mrb[0].mxu0
    %v3273 = vadd.f32 0.0, %v3272
    %v3274 = vpop.f32.mrb[0].mxu0
    %3275 = vmatprep.mubr.f32.mxu0 0.0
    %3276 = vmatmul.mubr.f32.gmra.mrb[0].mxu0 %v3154
    %v3277 = vpop.f32.mrb[0].mxu0
    %v3278 = vadd.f32 0.0, %v3277
    %v3279 = vpop.f32.mrb[0].mxu0
    %3280 = vdwg.mxu0
    %v3281 = vadd.f32 %v3058, %v3223
    %v3282 = vadd.f32 %v3063, %v3228
    %v3283 = vadd.f32 %v3068, %v3233
    %v3284 = vadd.f32 %v3073, %v3238
    %v3285 = vadd.f32 %v3078, %v3243
    %v3286 = vadd.f32 %v3083, %v3248
    %v3287 = vadd.f32 %v3088, %v3253
    %v3288 = vadd.f32 %v3093, %v3258
    %v3289 = vadd.f32 %v3098, %v3263
    %v3290 = vadd.f32 %v3103, %v3268
    %v3291 = vadd.f32 %v3108, %v3273
    %v3292 = vadd.f32 %v3113, %v3278
    %v3293 = vld [vmem:[#allocation10] sm:$0x1]
    %v3295 = vlaneseq
    %v3296 = vshrl.u32 %v3295, 7
    %v3297 = vsub.s32 0, %v3296
    %v3298 = vrot.slane %v3293, %v3297
    %v3300 = vadd.f32 %v3281, %v3298
    %v3301 = vadd.f32 %v3282, %v3298
    %v3302 = vadd.f32 %v3283, %v3298
    %v3303 = vadd.f32 %v3284, %v3298
    %v3304 = vadd.f32 %v3285, %v3298
    %v3305 = vadd.f32 %v3286, %v3298
    %v3306 = vadd.f32 %v3287, %v3298
    %v3307 = vadd.f32 %v3288, %v3298
    %v3308 = vadd.f32 %v3289, %v3298
    %v3309 = vadd.f32 %v3290, %v3298
    %v3310 = vadd.f32 %v3291, %v3298
    %v3311 = vadd.f32 %v3292, %v3298
    %v3312 = vadd.f32 %v3300, %v450
    %v3313 = vadd.f32 %v3301, %v455
    %v3314 = vadd.f32 %v3302, %v460
    %v3315 = vadd.f32 %v3303, %v465
    %v3316 = vadd.f32 %v3304, %v470
    %v3317 = vadd.f32 %v3305, %v475
    %v3318 = vadd.f32 %v3306, %v485
    %v3319 = vadd.f32 %v3307, %v490
    %v3320 = vadd.f32 %v3308, %v495
    %v3321 = vadd.f32 %v3309, %v500
    %v3322 = vadd.f32 %v3310, %v505
    %v3323 = vadd.f32 %v3311, %v510
    %v3324 = vld [vmem:[#allocation12] sm:$0x1]
    %v3326 = vlaneseq
    %v3327 = vshrl.u32 %v3326, 7
    %v3328 = vsub.s32 0, %v3327
    %v3329 = vrot.slane %v3324, %v3328
    %v3331 = vmul.f32 %v3312, %v3329
    %v3332 = vmul.f32 %v3313, %v3329
    %v3333 = vmul.f32 %v3314, %v3329
    %v3334 = vmul.f32 %v3315, %v3329
    %v3335 = vmul.f32 %v3316, %v3329
    %v3336 = vmul.f32 %v3317, %v3329
    %v3337 = vmul.f32 %v3318, %v3329
    %v3338 = vmul.f32 %v3319, %v3329
    %v3339 = vmul.f32 %v3320, %v3329
    %v3340 = vmul.f32 %v3321, %v3329
    %v3341 = vmul.f32 %v3322, %v3329
    %v3342 = vmul.f32 %v3323, %v3329
    %v3343 = vld [vmem:[#allocation13] sm:$0x1]
    %v3345 = vlaneseq
    %v3346 = vshrl.u32 %v3345, 7
    %v3347 = vsub.s32 0, %v3346
    %v3348 = vrot.slane %v3343, %v3347
    %v3350 = vadd.f32 %v3331, %v3348
    %v3351 = vadd.f32 %v3332, %v3348
    %v3352 = vadd.f32 %v3333, %v3348
    %v3353 = vadd.f32 %v3334, %v3348
    %v3354 = vadd.f32 %v3335, %v3348
    %v3355 = vadd.f32 %v3336, %v3348
    %v3356 = vadd.f32 %v3337, %v3348
    %v3357 = vadd.f32 %v3338, %v3348
    %v3358 = vadd.f32 %v3339, %v3348
    %v3359 = vadd.f32 %v3340, %v3348
    %v3360 = vadd.f32 %v3341, %v3348
    %v3361 = vadd.f32 %v3342, %v3348
    %s3362 = scalar_lea.vmem %s5, 32
    %v3363 = vld [vmem:[%s3362] sm:$0xff]
    %v3364 = vld [vmem:[%s3362 + $0x8] sm:$0xff]
    %v3365 = vld [vmem:[%s3362 + $0x10] sm:$0xff]
    %v3366 = vld [vmem:[%s3362 + $0x18] sm:$0xff]
    %s3367 = scalar_lea.vmem %s6, 32
    %v3368 = vld [vmem:[%s3367] sm:$0xff]
    %v3369 = vld [vmem:[%s3367 + $0x8] sm:$0xff]
    %v3370 = vld [vmem:[%s3367 + $0x10] sm:$0xff]
    %v3371 = vld [vmem:[%s3367 + $0x18] sm:$0xff]
    %v3373 = vsel %vm521, %v3352, 0
    %v3376 = vsel %vm521, %v3353, 0
    %v3379 = vsel %vm521, %v3354, 0
    %v3382 = vsel %vm521, %v3355, 0
    %v3385 = vsel %vm521, %v3358, 0
    %v3388 = vsel %vm521, %v3359, 0
    %v3391 = vsel %vm521, %v3360, 0
    %v3394 = vsel %vm521, %v3361, 0
    %3396 = vmatprep.subr.mxu0 0.0
    %3397 = vmatpush1.msra.mxu0 %v3368
    %3398 = vmatprep.subr.mxu0 0.0
    %3399 = vmatpush1.msra.mxu0 %v3369
    %3400 = vmatprep.subr.mxu0 0.0
    %3401 = vmatpush1.msra.mxu0 %v3370
    %3402 = vmatprep.subr.mxu0 0.0
    %3403 = vmatpush1.msra.mxu0 %v3371
    %3404 = vmatprep.subr.mxu0 0.0
    %3405 = vmatpush1.msra.mxu0 0.0
    %3406 = vmatprep.subr.mxu0 0.0
    %3407 = vmatpush1.msra.mxu0 0.0
    %3408 = vmatprep.subr.mxu0 0.0
    %3409 = vmatpush1.msra.mxu0 0.0
    %3410 = vmatprep.subr.mxu0 0.0
    %3411 = vmatpush1.msra.mxu0 0.0
    %3412 = vmatprep.subr.mxu0 0.0
    %3413 = vmatpush1.msra.mxu0 0.0
    %3414 = vmatprep.subr.mxu0 0.0
    %3415 = vmatpush1.msra.mxu0 0.0
    %3416 = vmatprep.subr.mxu0 0.0
    %3417 = vmatpush1.msra.mxu0 0.0
    %3418 = vmatprep.subr.mxu0 0.0
    %3419 = vmatpush1.msra.mxu0 0.0
    %3420 = vmatprep.subr.mxu0 0.0
    %3421 = vmatpush1.msra.mxu0 0.0
    %3422 = vmatprep.subr.mxu0 0.0
    %3423 = vmatpush1.msra.mxu0 0.0
    %3424 = vmatprep.subr.mxu0 0.0
    %3425 = vmatpush1.msra.mxu0 0.0
    %3426 = vmatprep.subr.mxu0 0.0
    %3427 = vmatpush1.msra.mxu0 0.0
    %3428 = vmatprep.subr.mxu0 0.0
    %3429 = vmatpush1.msra.mxu0 0.0
    %3430 = vmatprep.subr.mxu0 0.0
    %3431 = vmatpush1.msra.mxu0 0.0
    %3432 = vmatprep.subr.mxu0 0.0
    %3433 = vmatpush1.msra.mxu0 0.0
    %3434 = vmatprep.subr.mxu0 0.0
    %3435 = vmatpush1.msra.mxu0 0.0
    %3436 = vmatprep.subr.mxu0 0.0
    %3437 = vmatpush1.msra.mxu0 0.0
    %3438 = vmatprep.subr.mxu0 0.0
    %3439 = vmatpush1.msra.mxu0 0.0
    %3440 = vmatprep.subr.mxu0 0.0
    %3441 = vmatpush1.msra.mxu0 0.0
    %3442 = vmatprep.subr.mxu0 0.0
    %3443 = vmatpush1.msra.mxu0 0.0
    %3444 = vmatprep.subr.mxu0 0.0
    %3445 = vmatpush1.msra.mxu0 0.0
    %3446 = vmatprep.subr.mxu0 0.0
    %3447 = vmatpush1.msra.mxu0 0.0
    %3448 = vmatprep.subr.mxu0 0.0
    %3449 = vmatpush1.msra.mxu0 0.0
    %3450 = vmatprep.subr.mxu0 0.0
    %3451 = vmatpush1.msra.mxu0 0.0
    %3452 = vmatprep.subr.mxu0 0.0
    %3453 = vmatpush1.msra.mxu0 0.0
    %3454 = vmatprep.subr.mxu0 0.0
    %3455 = vmatpush1.msra.mxu0 0.0
    %3456 = vmatprep.subr.mxu0 0.0
    %3457 = vmatpush1.msra.mxu0 0.0
    %3458 = vmatprep.subr.mxu0 0.0
    %3459 = vmatpush1.msra.mxu0 0.0
    %3460 = vmatprep.mubr.f32.mxu0 0.0
    %3461 = vmatmul.mubr.f32.gmra.mrb[0].mxu0 %v3373
    %v3462 = vpop.f32.mrb[0].mxu0
    %v3463 = vadd.f32 0.0, %v3462
    %v3464 = vpop.f32.mrb[0].mxu0
    %3465 = vmatprep.mubr.f32.mxu0 0.0
    %3466 = vmatmul.mubr.f32.gmra.mrb[0].mxu0 %v3376
    %v3467 = vpop.f32.mrb[0].mxu0
    %v3468 = vadd.f32 0.0, %v3467
    %v3469 = vpop.f32.mrb[0].mxu0
    %3470 = vmatprep.mubr.f32.mxu0 0.0
    %3471 = vmatmul.mubr.f32.gmra.mrb[0].mxu0 %v3379
    %v3472 = vpop.f32.mrb[0].mxu0
    %v3473 = vadd.f32 0.0, %v3472
    %v3474 = vpop.f32.mrb[0].mxu0
    %3475 = vmatprep.mubr.f32.mxu0 0.0
    %3476 = vmatmul.mubr.f32.gmra.mrb[0].mxu0 %v3382
    %v3477 = vpop.f32.mrb[0].mxu0
    %v3478 = vadd.f32 0.0, %v3477
    %v3479 = vpop.f32.mrb[0].mxu0
    %3480 = vmatprep.mubr.f32.mxu0 0.0
    %3481 = vmatmul.mubr.f32.gmra.mrb[0].mxu0 %v3385
    %v3482 = vpop.f32.mrb[0].mxu0
    %v3483 = vadd.f32 0.0, %v3482
    %v3484 = vpop.f32.mrb[0].mxu0
    %3485 = vmatprep.mubr.f32.mxu0 0.0
    %3486 = vmatmul.mubr.f32.gmra.mrb[0].mxu0 %v3388
    %v3487 = vpop.f32.mrb[0].mxu0
    %v3488 = vadd.f32 0.0, %v3487
    %v3489 = vpop.f32.mrb[0].mxu0
    %3490 = vmatprep.mubr.f32.mxu0 0.0
    %3491 = vmatmul.mubr.f32.gmra.mrb[0].mxu0 %v3391
    %v3492 = vpop.f32.mrb[0].mxu0
    %v3493 = vadd.f32 0.0, %v3492
    %v3494 = vpop.f32.mrb[0].mxu0
    %3495 = vmatprep.mubr.f32.mxu0 0.0
    %3496 = vmatmul.mubr.f32.gmra.mrb[0].mxu0 %v3394
    %v3497 = vpop.f32.mrb[0].mxu0
    %v3498 = vadd.f32 0.0, %v3497
    %v3499 = vpop.f32.mrb[0].mxu0
    %3500 = vdwg.mxu0
    %v3502 = vsel %vm521, %v3350, 0
    %v3505 = vsel %vm521, %v3351, 0
    %v3508 = vsel %vm521, %v3356, 0
    %v3511 = vsel %vm521, %v3357, 0
    %3513 = vmatprep.subr.mxu0 0.0
    %3514 = vmatpush1.msra.mxu0 %v3363
    %3515 = vmatprep.subr.mxu0 0.0
    %3516 = vmatpush1.msra.mxu0 %v3364
    %3517 = vmatprep.subr.mxu0 0.0
    %3518 = vmatpush1.msra.mxu0 %v3365
    %3519 = vmatprep.subr.mxu0 0.0
    %3520 = vmatpush1.msra.mxu0 %v3366
    %3521 = vmatprep.subr.mxu0 0.0
    %3522 = vmatpush1.msra.mxu0 0.0
    %3523 = vmatprep.subr.mxu0 0.0
    %3524 = vmatpush1.msra.mxu0 0.0
    %3525 = vmatprep.subr.mxu0 0.0
    %3526 = vmatpush1.msra.mxu0 0.0
    %3527 = vmatprep.subr.mxu0 0.0
    %3528 = vmatpush1.msra.mxu0 0.0
    %3529 = vmatprep.subr.mxu0 0.0
    %3530 = vmatpush1.msra.mxu0 0.0
    %3531 = vmatprep.subr.mxu0 0.0
    %3532 = vmatpush1.msra.mxu0 0.0
    %3533 = vmatprep.subr.mxu0 0.0
    %3534 = vmatpush1.msra.mxu0 0.0
    %3535 = vmatprep.subr.mxu0 0.0
    %3536 = vmatpush1.msra.mxu0 0.0
    %3537 = vmatprep.subr.mxu0 0.0
    %3538 = vmatpush1.msra.mxu0 0.0
    %3539 = vmatprep.subr.mxu0 0.0
    %3540 = vmatpush1.msra.mxu0 0.0
    %3541 = vmatprep.subr.mxu0 0.0
    %3542 = vmatpush1.msra.mxu0 0.0
    %3543 = vmatprep.subr.mxu0 0.0
    %3544 = vmatpush1.msra.mxu0 0.0
    %3545 = vmatprep.subr.mxu0 0.0
    %3546 = vmatpush1.msra.mxu0 0.0
    %3547 = vmatprep.subr.mxu0 0.0
    %3548 = vmatpush1.msra.mxu0 0.0
    %3549 = vmatprep.subr.mxu0 0.0
    %3550 = vmatpush1.msra.mxu0 0.0
    %3551 = vmatprep.subr.mxu0 0.0
    %3552 = vmatpush1.msra.mxu0 0.0
    %3553 = vmatprep.subr.mxu0 0.0
    %3554 = vmatpush1.msra.mxu0 0.0
    %3555 = vmatprep.subr.mxu0 0.0
    %3556 = vmatpush1.msra.mxu0 0.0
    %3557 = vmatprep.subr.mxu0 0.0
    %3558 = vmatpush1.msra.mxu0 0.0
    %3559 = vmatprep.subr.mxu0 0.0
    %3560 = vmatpush1.msra.mxu0 0.0
    %3561 = vmatprep.subr.mxu0 0.0
    %3562 = vmatpush1.msra.mxu0 0.0
    %3563 = vmatprep.subr.mxu0 0.0
    %3564 = vmatpush1.msra.mxu0 0.0
    %3565 = vmatprep.subr.mxu0 0.0
    %3566 = vmatpush1.msra.mxu0 0.0
    %3567 = vmatprep.subr.mxu0 0.0
    %3568 = vmatpush1.msra.mxu0 0.0
    %3569 = vmatprep.subr.mxu0 0.0
    %3570 = vmatpush1.msra.mxu0 0.0
    %3571 = vmatprep.subr.mxu0 0.0
    %3572 = vmatpush1.msra.mxu0 0.0
    %3573 = vmatprep.subr.mxu0 0.0
    %3574 = vmatpush1.msra.mxu0 0.0
    %3575 = vmatprep.subr.mxu0 0.0
    %3576 = vmatpush1.msra.mxu0 0.0
    %3577 = vmatprep.mubr.f32.mxu0 0.0
    %3578 = vmatmul.mubr.f32.gmra.mrb[0].mxu0 %v3502
    %v3579 = vpop.f32.mrb[0].mxu0
    %v3580 = vadd.f32 %v3463, %v3579
    %v3581 = vpop.f32.mrb[0].mxu0
    %3582 = vmatprep.mubr.f32.mxu0 0.0
    %3583 = vmatmul.mubr.f32.gmra.mrb[0].mxu0 %v3505
    %v3584 = vpop.f32.mrb[0].mxu0
    %v3585 = vadd.f32 %v3468, %v3584
    %v3586 = vpop.f32.mrb[0].mxu0
    %3587 = vmatprep.mubr.f32.mxu0 0.0
    %3588 = vmatmul.mubr.f32.gmra.mrb[0].mxu0 %v3373
    %v3589 = vpop.f32.mrb[0].mxu0
    %v3590 = vadd.f32 %v3473, %v3589
    %v3591 = vpop.f32.mrb[0].mxu0
    %3592 = vmatprep.mubr.f32.mxu0 0.0
    %3593 = vmatmul.mubr.f32.gmra.mrb[0].mxu0 %v3376
    %v3594 = vpop.f32.mrb[0].mxu0
    %v3595 = vadd.f32 %v3478, %v3594
    %v3596 = vpop.f32.mrb[0].mxu0
    %3597 = vmatprep.mubr.f32.mxu0 0.0
    %3598 = vmatmul.mubr.f32.gmra.mrb[0].mxu0 %v3508
    %v3599 = vpop.f32.mrb[0].mxu0
    %v3600 = vadd.f32 %v3483, %v3599
    %v3601 = vpop.f32.mrb[0].mxu0
    %3602 = vmatprep.mubr.f32.mxu0 0.0
    %3603 = vmatmul.mubr.f32.gmra.mrb[0].mxu0 %v3511
    %v3604 = vpop.f32.mrb[0].mxu0
    %v3605 = vadd.f32 %v3488, %v3604
    %v3606 = vpop.f32.mrb[0].mxu0
    %3607 = vmatprep.mubr.f32.mxu0 0.0
    %3608 = vmatmul.mubr.f32.gmra.mrb[0].mxu0 %v3385
    %v3609 = vpop.f32.mrb[0].mxu0
    %v3610 = vadd.f32 %v3493, %v3609
    %v3611 = vpop.f32.mrb[0].mxu0
    %3612 = vmatprep.mubr.f32.mxu0 0.0
    %3613 = vmatmul.mubr.f32.gmra.mrb[0].mxu0 %v3388
    %v3614 = vpop.f32.mrb[0].mxu0
    %v3615 = vadd.f32 %v3498, %v3614
    %v3616 = vpop.f32.mrb[0].mxu0
    %3617 = vdwg.mxu0
    %s3618 = scalar_lea.vmem [#allocation4], 1
    %v3619 = vld [vmem:[%s3618] sm:$0x1]
    %v3621 = vlaneseq
    %v3622 = vshrl.u32 %v3621, 7
    %v3623 = vsub.s32 0, %v3622
    %v3624 = vrot.slane %v3619, %v3623
    %v3626 = vadd.f32 %v3580, %v3624
    %v3627 = vadd.f32 %v3585, %v3624
    %v3628 = vadd.f32 %v3590, %v3624
    %v3629 = vadd.f32 %v3595, %v3624
    %v3630 = vadd.f32 %v3600, %v3624
    %v3631 = vadd.f32 %v3605, %v3624
    %v3632 = vadd.f32 %v3610, %v3624
    %v3633 = vadd.f32 %v3615, %v3624
    %v3634 = vtanh.pop %v3626
    %v3635 = vtanh.pop %v3627
    %v3636 = vtanh.pop %v3628
    %v3637 = vtanh.pop %v3629
    %v3638 = vtanh.pop %v3630
    %v3639 = vtanh.pop %v3631
    %v3640 = vtanh.pop %v3632
    %v3641 = vtanh.pop %v3633
    %v3642 = vxor.u32 %v3626, 2147483648
    %v3643 = vxor.u32 %v3627, 2147483648
    %v3644 = vxor.u32 %v3628, 2147483648
    %v3645 = vxor.u32 %v3629, 2147483648
    %v3646 = vxor.u32 %v3630, 2147483648
    %v3647 = vxor.u32 %v3631, 2147483648
    %v3648 = vxor.u32 %v3632, 2147483648
    %v3649 = vxor.u32 %v3633, 2147483648
    %v3650 = vmul.f32 %v3642, 1.442695
    %v3651 = vpow.pop %v3650
    %v3652 = vmul.f32 %v3643, 1.442695
    %v3653 = vpow.pop %v3652
    %v3654 = vmul.f32 %v3644, 1.442695
    %v3655 = vpow.pop %v3654
    %v3656 = vmul.f32 %v3645, 1.442695
    %v3657 = vpow.pop %v3656
    %v3658 = vmul.f32 %v3646, 1.442695
    %v3659 = vpow.pop %v3658
    %v3660 = vmul.f32 %v3647, 1.442695
    %v3661 = vpow.pop %v3660
    %v3662 = vmul.f32 %v3648, 1.442695
    %v3663 = vpow.pop %v3662
    %v3664 = vmul.f32 %v3649, 1.442695
    %v3665 = vpow.pop %v3664
    %v3666 = vadd.f32 %v3651, 1.0
    %v3667 = vadd.f32 %v3653, 1.0
    %v3668 = vadd.f32 %v3655, 1.0
    %v3669 = vadd.f32 %v3657, 1.0
    %v3670 = vadd.f32 %v3659, 1.0
    %v3671 = vadd.f32 %v3661, 1.0
    %v3672 = vadd.f32 %v3663, 1.0
    %v3673 = vadd.f32 %v3665, 1.0
    %v3674 = vrcp.pop %v3666
    %v3675 = vmul.f32 1.0, %v3674
    %v3676 = vrcp.pop %v3667
    %v3677 = vmul.f32 1.0, %v3676
    %v3678 = vrcp.pop %v3668
    %v3679 = vmul.f32 1.0, %v3678
    %v3680 = vrcp.pop %v3669
    %v3681 = vmul.f32 1.0, %v3680
    %v3682 = vrcp.pop %v3670
    %v3683 = vmul.f32 1.0, %v3682
    %v3684 = vrcp.pop %v3671
    %v3685 = vmul.f32 1.0, %v3684
    %v3686 = vrcp.pop %v3672
    %v3687 = vmul.f32 1.0, %v3686
    %v3688 = vrcp.pop %v3673
    %v3689 = vmul.f32 1.0, %v3688
    %3698 = vrot.lane.b32.xlu0 %v3675, 96
    %v3699 = vpop.permute.xlu0 %3698
    %3700 = vrot.lane.b32.xlu0 %v3677, 96
    %v3701 = vpop.permute.xlu0 %3700
    %3702 = vrot.lane.b32.xlu0 %v3679, 96
    %v3703 = vpop.permute.xlu0 %3702
    %3704 = vrot.lane.b32.xlu0 %v3681, 96
    %v3705 = vpop.permute.xlu0 %3704
    %3706 = vrot.lane.b32.xlu0 %v3683, 96
    %v3707 = vpop.permute.xlu0 %3706
    %3708 = vrot.lane.b32.xlu0 %v3685, 96
    %v3709 = vpop.permute.xlu0 %3708
    %3710 = vrot.lane.b32.xlu0 %v3687, 96
    %v3711 = vpop.permute.xlu0 %3710
    %3712 = vrot.lane.b32.xlu0 %v3689, 96
    %v3713 = vpop.permute.xlu0 %3712
    %v3722 = vmul.f32 %v3634, %v3699
    %v3723 = vmul.f32 %v3635, %v3701
    %v3724 = vmul.f32 %v3636, %v3703
    %v3725 = vmul.f32 %v3637, %v3705
    %v3726 = vmul.f32 %v3638, %v3707
    %v3727 = vmul.f32 %v3639, %v3709
    %v3728 = vmul.f32 %v3640, %v3711
    %v3729 = vmul.f32 %v3641, %v3713
    %s3730 = scalar_lea.vmem %s8, 32
    %v3731 = vld [vmem:[%s3730] sm:$0xff]
    %v3732 = vld [vmem:[%s3730 + $0x8] sm:$0xff]
    %v3733 = vld [vmem:[%s3730 + $0x10] sm:$0xff]
    %v3734 = vld [vmem:[%s3730 + $0x18] sm:$0xff]
    %s3735 = scalar_lea.vmem [#allocation6], 1
    %v3736 = vld [vmem:[%s3735] sm:$0x1]
    %v3738 = vlaneseq
    %v3739 = vshrl.u32 %v3738, 7
    %v3740 = vsub.s32 0, %v3739
    %v3741 = vrot.slane %v3736, %v3740
    %v3744 = vsel %vm521, %v3722, 0
    %v3747 = vsel %vm521, %v3723, 0
    %v3750 = vsel %vm521, %v3724, 0
    %v3753 = vsel %vm521, %v3725, 0
    %v3756 = vsel %vm521, %v3726, 0
    %v3759 = vsel %vm521, %v3727, 0
    %v3762 = vsel %vm521, %v3728, 0
    %v3765 = vsel %vm521, %v3729, 0
    %3767 = vmatprep.subr.mxu0 0.0
    %3768 = vmatpush1.msra.mxu0 %v3731
    %3769 = vmatprep.subr.mxu0 0.0
    %3770 = vmatpush1.msra.mxu0 %v3732
    %3771 = vmatprep.subr.mxu0 0.0
    %3772 = vmatpush1.msra.mxu0 %v3733
    %3773 = vmatprep.subr.mxu0 0.0
    %3774 = vmatpush1.msra.mxu0 %v3734
    %3775 = vmatprep.subr.mxu0 0.0
    %3776 = vmatpush1.msra.mxu0 0.0
    %3777 = vmatprep.subr.mxu0 0.0
    %3778 = vmatpush1.msra.mxu0 0.0
    %3779 = vmatprep.subr.mxu0 0.0
    %3780 = vmatpush1.msra.mxu0 0.0
    %3781 = vmatprep.subr.mxu0 0.0
    %3782 = vmatpush1.msra.mxu0 0.0
    %3783 = vmatprep.subr.mxu0 0.0
    %3784 = vmatpush1.msra.mxu0 0.0
    %3785 = vmatprep.subr.mxu0 0.0
    %3786 = vmatpush1.msra.mxu0 0.0
    %3787 = vmatprep.subr.mxu0 0.0
    %3788 = vmatpush1.msra.mxu0 0.0
    %3789 = vmatprep.subr.mxu0 0.0
    %3790 = vmatpush1.msra.mxu0 0.0
    %3791 = vmatprep.subr.mxu0 0.0
    %3792 = vmatpush1.msra.mxu0 0.0
    %3793 = vmatprep.subr.mxu0 0.0
    %3794 = vmatpush1.msra.mxu0 0.0
    %3795 = vmatprep.subr.mxu0 0.0
    %3796 = vmatpush1.msra.mxu0 0.0
    %3797 = vmatprep.subr.mxu0 0.0
    %3798 = vmatpush1.msra.mxu0 0.0
    %3799 = vmatprep.subr.mxu0 0.0
    %3800 = vmatpush1.msra.mxu0 0.0
    %3801 = vmatprep.subr.mxu0 0.0
    %3802 = vmatpush1.msra.mxu0 0.0
    %3803 = vmatprep.subr.mxu0 0.0
    %3804 = vmatpush1.msra.mxu0 0.0
    %3805 = vmatprep.subr.mxu0 0.0
    %3806 = vmatpush1.msra.mxu0 0.0
    %3807 = vmatprep.subr.mxu0 0.0
    %3808 = vmatpush1.msra.mxu0 0.0
    %3809 = vmatprep.subr.mxu0 0.0
    %3810 = vmatpush1.msra.mxu0 0.0
    %3811 = vmatprep.subr.mxu0 0.0
    %3812 = vmatpush1.msra.mxu0 0.0
    %3813 = vmatprep.subr.mxu0 0.0
    %3814 = vmatpush1.msra.mxu0 0.0
    %3815 = vmatprep.subr.mxu0 0.0
    %3816 = vmatpush1.msra.mxu0 0.0
    %3817 = vmatprep.subr.mxu0 0.0
    %3818 = vmatpush1.msra.mxu0 0.0
    %3819 = vmatprep.subr.mxu0 0.0
    %3820 = vmatpush1.msra.mxu0 0.0
    %3821 = vmatprep.subr.mxu0 0.0
    %3822 = vmatpush1.msra.mxu0 0.0
    %3823 = vmatprep.subr.mxu0 0.0
    %3824 = vmatpush1.msra.mxu0 0.0
    %3825 = vmatprep.subr.mxu0 0.0
    %3826 = vmatpush1.msra.mxu0 0.0
    %3827 = vmatprep.subr.mxu0 0.0
    %3828 = vmatpush1.msra.mxu0 0.0
    %3829 = vmatprep.subr.mxu0 0.0
    %3830 = vmatpush1.msra.mxu0 0.0
    %3831 = vmatprep.mubr.f32.mxu0 0.0
    %3832 = vmatmul.mubr.f32.gmra.mrb[0].mxu0 %v3744
    %v3833 = vpop.f32.mrb[0].mxu0
    %v3834 = vpop.f32.mrb[0].mxu0
    %3835 = vmatprep.mubr.f32.mxu0 0.0
    %3836 = vmatmul.mubr.f32.gmra.mrb[0].mxu0 %v3747
    %v3837 = vpop.f32.mrb[0].mxu0
    %v3838 = vpop.f32.mrb[0].mxu0
    %3839 = vmatprep.mubr.f32.mxu0 0.0
    %3840 = vmatmul.mubr.f32.gmra.mrb[0].mxu0 %v3750
    %v3841 = vpop.f32.mrb[0].mxu0
    %v3842 = vpop.f32.mrb[0].mxu0
    %3843 = vmatprep.mubr.f32.mxu0 0.0
    %3844 = vmatmul.mubr.f32.gmra.mrb[0].mxu0 %v3753
    %v3845 = vpop.f32.mrb[0].mxu0
    %v3846 = vadd.f32 %v3741, %v3845
    %v3847 = vpop.f32.mrb[0].mxu0
    %3848 = vmatprep.mubr.f32.mxu0 0.0
    %3849 = vmatmul.mubr.f32.gmra.mrb[0].mxu0 %v3756
    %v3850 = vpop.f32.mrb[0].mxu0
    %v3851 = vpop.f32.mrb[0].mxu0
    %3852 = vmatprep.mubr.f32.mxu0 0.0
    %3853 = vmatmul.mubr.f32.gmra.mrb[0].mxu0 %v3759
    %v3854 = vpop.f32.mrb[0].mxu0
    %v3855 = vpop.f32.mrb[0].mxu0
    %3856 = vmatprep.mubr.f32.mxu0 0.0
    %3857 = vmatmul.mubr.f32.gmra.mrb[0].mxu0 %v3762
    %v3858 = vpop.f32.mrb[0].mxu0
    %v3859 = vpop.f32.mrb[0].mxu0
    %3860 = vmatprep.mubr.f32.mxu0 0.0
    %3861 = vmatmul.mubr.f32.gmra.mrb[0].mxu0 %v3765
    %v3862 = vpop.f32.mrb[0].mxu0
    %v3863 = vadd.f32 %v3741, %v3862
    %v3864 = vpop.f32.mrb[0].mxu0
    %3865 = vdwg.mxu0
    %v3866 = vadd.f32 %v3846, %v1111
    %v3867 = vadd.f32 %v3863, %v1136
    %3868 = vmatprep.subr.mxu0 0.0
    %3869 = vmatpush1.msra.mxu0 %v3722
    %3870 = vmatprep.subr.mxu0 0.0
    %3871 = vmatpush1.msra.mxu0 0.0
    %3872 = vmatprep.subr.mxu0 0.0
    %3873 = vmatpush1.msra.mxu0 0.0
    %3874 = vmatprep.subr.mxu0 0.0
    %3875 = vmatpush1.msra.mxu0 0.0
    %3876 = vmatprep.subr.mxu0 0.0
    %3877 = vmatpush1.msra.mxu0 0.0
    %3878 = vmatprep.subr.mxu0 0.0
    %3879 = vmatpush1.msra.mxu0 0.0
    %3880 = vmatprep.subr.mxu0 0.0
    %3881 = vmatpush1.msra.mxu0 0.0
    %3882 = vmatprep.subr.mxu0 0.0
    %3883 = vmatpush1.msra.mxu0 0.0
    %3884 = vmatprep.subr.mxu0 0.0
    %3885 = vmatpush1.msra.mxu0 0.0
    %3886 = vmatprep.subr.mxu0 0.0
    %3887 = vmatpush1.msra.mxu0 0.0
    %3888 = vmatprep.subr.mxu0 0.0
    %3889 = vmatpush1.msra.mxu0 0.0
    %3890 = vmatprep.subr.mxu0 0.0
    %3891 = vmatpush1.msra.mxu0 0.0
    %3892 = vmatprep.subr.mxu0 0.0
    %3893 = vmatpush1.msra.mxu0 0.0
    %3894 = vmatprep.subr.mxu0 0.0
    %3895 = vmatpush1.msra.mxu0 0.0
    %3896 = vmatprep.subr.mxu0 0.0
    %3897 = vmatpush1.msra.mxu0 0.0
    %3898 = vmatprep.subr.mxu0 0.0
    %3899 = vmatpush1.msra.mxu0 0.0
    %3900 = vmatprep.subr.mxu0 0.0
    %3901 = vmatpush1.msra.mxu0 0.0
    %3902 = vmatprep.subr.mxu0 0.0
    %3903 = vmatpush1.msra.mxu0 0.0
    %3904 = vmatprep.subr.mxu0 0.0
    %3905 = vmatpush1.msra.mxu0 0.0
    %3906 = vmatprep.subr.mxu0 0.0
    %3907 = vmatpush1.msra.mxu0 0.0
    %3908 = vmatprep.subr.mxu0 0.0
    %3909 = vmatpush1.msra.mxu0 0.0
    %3910 = vmatprep.subr.mxu0 0.0
    %3911 = vmatpush1.msra.mxu0 0.0
    %3912 = vmatprep.subr.mxu0 0.0
    %3913 = vmatpush1.msra.mxu0 0.0
    %3914 = vmatprep.subr.mxu0 0.0
    %3915 = vmatpush1.msra.mxu0 0.0
    %3916 = vmatprep.subr.mxu0 0.0
    %3917 = vmatpush1.msra.mxu0 0.0
    %3918 = vmatprep.subr.mxu0 0.0
    %3919 = vmatpush1.msra.mxu0 0.0
    %3920 = vmatprep.subr.mxu0 0.0
    %3921 = vmatpush1.msra.mxu0 0.0
    %3922 = vmatprep.subr.mxu0 0.0
    %3923 = vmatpush1.msra.mxu0 0.0
    %3924 = vmatprep.subr.mxu0 0.0
    %3925 = vmatpush1.msra.mxu0 0.0
    %3926 = vmatprep.subr.mxu0 0.0
    %3927 = vmatpush1.msra.mxu0 0.0
    %3928 = vmatprep.subr.mxu0 0.0
    %3929 = vmatpush1.msra.mxu0 0.0
    %3930 = vmatprep.subr.mxu0 0.0
    %3931 = vmatpush1.msra.mxu0 0.0
    %3932 = vmatprep.mubr.f32.mxu0 0.0
    %3933 = vmatmul.mubr.f32.gmra.mrb[0].mxu0 %v1140
    %v3934 = vpop.f32.mrb[0].mxu0
    %v3935 = vadd.f32 0.0, %v3934
    %v3936 = vpop.f32.mrb[0].mxu0
    %3937 = vdwg.mxu0
    %3938 = vmatprep.subr.mxu0 0.0
    %3939 = vmatpush1.msra.mxu0 %v3723
    %3940 = vmatprep.subr.mxu0 0.0
    %3941 = vmatpush1.msra.mxu0 0.0
    %3942 = vmatprep.subr.mxu0 0.0
    %3943 = vmatpush1.msra.mxu0 0.0
    %3944 = vmatprep.subr.mxu0 0.0
    %3945 = vmatpush1.msra.mxu0 0.0
    %3946 = vmatprep.subr.mxu0 0.0
    %3947 = vmatpush1.msra.mxu0 0.0
    %3948 = vmatprep.subr.mxu0 0.0
    %3949 = vmatpush1.msra.mxu0 0.0
    %3950 = vmatprep.subr.mxu0 0.0
    %3951 = vmatpush1.msra.mxu0 0.0
    %3952 = vmatprep.subr.mxu0 0.0
    %3953 = vmatpush1.msra.mxu0 0.0
    %3954 = vmatprep.subr.mxu0 0.0
    %3955 = vmatpush1.msra.mxu0 0.0
    %3956 = vmatprep.subr.mxu0 0.0
    %3957 = vmatpush1.msra.mxu0 0.0
    %3958 = vmatprep.subr.mxu0 0.0
    %3959 = vmatpush1.msra.mxu0 0.0
    %3960 = vmatprep.subr.mxu0 0.0
    %3961 = vmatpush1.msra.mxu0 0.0
    %3962 = vmatprep.subr.mxu0 0.0
    %3963 = vmatpush1.msra.mxu0 0.0
    %3964 = vmatprep.subr.mxu0 0.0
    %3965 = vmatpush1.msra.mxu0 0.0
    %3966 = vmatprep.subr.mxu0 0.0
    %3967 = vmatpush1.msra.mxu0 0.0
    %3968 = vmatprep.subr.mxu0 0.0
    %3969 = vmatpush1.msra.mxu0 0.0
    %3970 = vmatprep.subr.mxu0 0.0
    %3971 = vmatpush1.msra.mxu0 0.0
    %3972 = vmatprep.subr.mxu0 0.0
    %3973 = vmatpush1.msra.mxu0 0.0
    %3974 = vmatprep.subr.mxu0 0.0
    %3975 = vmatpush1.msra.mxu0 0.0
    %3976 = vmatprep.subr.mxu0 0.0
    %3977 = vmatpush1.msra.mxu0 0.0
    %3978 = vmatprep.subr.mxu0 0.0
    %3979 = vmatpush1.msra.mxu0 0.0
    %3980 = vmatprep.subr.mxu0 0.0
    %3981 = vmatpush1.msra.mxu0 0.0
    %3982 = vmatprep.subr.mxu0 0.0
    %3983 = vmatpush1.msra.mxu0 0.0
    %3984 = vmatprep.subr.mxu0 0.0
    %3985 = vmatpush1.msra.mxu0 0.0
    %3986 = vmatprep.subr.mxu0 0.0
    %3987 = vmatpush1.msra.mxu0 0.0
    %3988 = vmatprep.subr.mxu0 0.0
    %3989 = vmatpush1.msra.mxu0 0.0
    %3990 = vmatprep.subr.mxu0 0.0
    %3991 = vmatpush1.msra.mxu0 0.0
    %3992 = vmatprep.subr.mxu0 0.0
    %3993 = vmatpush1.msra.mxu0 0.0
    %3994 = vmatprep.subr.mxu0 0.0
    %3995 = vmatpush1.msra.mxu0 0.0
    %3996 = vmatprep.subr.mxu0 0.0
    %3997 = vmatpush1.msra.mxu0 0.0
    %3998 = vmatprep.subr.mxu0 0.0
    %3999 = vmatpush1.msra.mxu0 0.0
    %4000 = vmatprep.subr.mxu0 0.0
    %4001 = vmatpush1.msra.mxu0 0.0
    %4002 = vmatprep.mubr.f32.mxu0 0.0
    %4003 = vmatmul.mubr.f32.gmra.mrb[0].mxu0 %v1140
    %v4004 = vpop.f32.mrb[0].mxu0
    %v4005 = vadd.f32 0.0, %v4004
    %v4006 = vpop.f32.mrb[0].mxu0
    %4007 = vdwg.mxu0
    %4008 = vmatprep.subr.mxu0 0.0
    %4009 = vmatpush1.msra.mxu0 %v3724
    %4010 = vmatprep.subr.mxu0 0.0
    %4011 = vmatpush1.msra.mxu0 0.0
    %4012 = vmatprep.subr.mxu0 0.0
    %4013 = vmatpush1.msra.mxu0 0.0
    %4014 = vmatprep.subr.mxu0 0.0
    %4015 = vmatpush1.msra.mxu0 0.0
    %4016 = vmatprep.subr.mxu0 0.0
    %4017 = vmatpush1.msra.mxu0 0.0
    %4018 = vmatprep.subr.mxu0 0.0
    %4019 = vmatpush1.msra.mxu0 0.0
    %4020 = vmatprep.subr.mxu0 0.0
    %4021 = vmatpush1.msra.mxu0 0.0
    %4022 = vmatprep.subr.mxu0 0.0
    %4023 = vmatpush1.msra.mxu0 0.0
    %4024 = vmatprep.subr.mxu0 0.0
    %4025 = vmatpush1.msra.mxu0 0.0
    %4026 = vmatprep.subr.mxu0 0.0
    %4027 = vmatpush1.msra.mxu0 0.0
    %4028 = vmatprep.subr.mxu0 0.0
    %4029 = vmatpush1.msra.mxu0 0.0
    %4030 = vmatprep.subr.mxu0 0.0
    %4031 = vmatpush1.msra.mxu0 0.0
    %4032 = vmatprep.subr.mxu0 0.0
    %4033 = vmatpush1.msra.mxu0 0.0
    %4034 = vmatprep.subr.mxu0 0.0
    %4035 = vmatpush1.msra.mxu0 0.0
    %4036 = vmatprep.subr.mxu0 0.0
    %4037 = vmatpush1.msra.mxu0 0.0
    %4038 = vmatprep.subr.mxu0 0.0
    %4039 = vmatpush1.msra.mxu0 0.0
    %4040 = vmatprep.subr.mxu0 0.0
    %4041 = vmatpush1.msra.mxu0 0.0
    %4042 = vmatprep.subr.mxu0 0.0
    %4043 = vmatpush1.msra.mxu0 0.0
    %4044 = vmatprep.subr.mxu0 0.0
    %4045 = vmatpush1.msra.mxu0 0.0
    %4046 = vmatprep.subr.mxu0 0.0
    %4047 = vmatpush1.msra.mxu0 0.0
    %4048 = vmatprep.subr.mxu0 0.0
    %4049 = vmatpush1.msra.mxu0 0.0
    %4050 = vmatprep.subr.mxu0 0.0
    %4051 = vmatpush1.msra.mxu0 0.0
    %4052 = vmatprep.subr.mxu0 0.0
    %4053 = vmatpush1.msra.mxu0 0.0
    %4054 = vmatprep.subr.mxu0 0.0
    %4055 = vmatpush1.msra.mxu0 0.0
    %4056 = vmatprep.subr.mxu0 0.0
    %4057 = vmatpush1.msra.mxu0 0.0
    %4058 = vmatprep.subr.mxu0 0.0
    %4059 = vmatpush1.msra.mxu0 0.0
    %4060 = vmatprep.subr.mxu0 0.0
    %4061 = vmatpush1.msra.mxu0 0.0
    %4062 = vmatprep.subr.mxu0 0.0
    %4063 = vmatpush1.msra.mxu0 0.0
    %4064 = vmatprep.subr.mxu0 0.0
    %4065 = vmatpush1.msra.mxu0 0.0
    %4066 = vmatprep.subr.mxu0 0.0
    %4067 = vmatpush1.msra.mxu0 0.0
    %4068 = vmatprep.subr.mxu0 0.0
    %4069 = vmatpush1.msra.mxu0 0.0
    %4070 = vmatprep.subr.mxu0 0.0
    %4071 = vmatpush1.msra.mxu0 0.0
    %4072 = vmatprep.mubr.f32.mxu0 0.0
    %4073 = vmatmul.mubr.f32.gmra.mrb[0].mxu0 %v1140
    %v4074 = vpop.f32.mrb[0].mxu0
    %v4075 = vadd.f32 0.0, %v4074
    %v4076 = vpop.f32.mrb[0].mxu0
    %4077 = vdwg.mxu0
    %4078 = vmatprep.subr.mxu0 0.0
    %4079 = vmatpush1.msra.mxu0 %v3725
    %4080 = vmatprep.subr.mxu0 0.0
    %4081 = vmatpush1.msra.mxu0 0.0
    %4082 = vmatprep.subr.mxu0 0.0
    %4083 = vmatpush1.msra.mxu0 0.0
    %4084 = vmatprep.subr.mxu0 0.0
    %4085 = vmatpush1.msra.mxu0 0.0
    %4086 = vmatprep.subr.mxu0 0.0
    %4087 = vmatpush1.msra.mxu0 0.0
    %4088 = vmatprep.subr.mxu0 0.0
    %4089 = vmatpush1.msra.mxu0 0.0
    %4090 = vmatprep.subr.mxu0 0.0
    %4091 = vmatpush1.msra.mxu0 0.0
    %4092 = vmatprep.subr.mxu0 0.0
    %4093 = vmatpush1.msra.mxu0 0.0
    %4094 = vmatprep.subr.mxu0 0.0
    %4095 = vmatpush1.msra.mxu0 0.0
    %4096 = vmatprep.subr.mxu0 0.0
    %4097 = vmatpush1.msra.mxu0 0.0
    %4098 = vmatprep.subr.mxu0 0.0
    %4099 = vmatpush1.msra.mxu0 0.0
    %4100 = vmatprep.subr.mxu0 0.0
    %4101 = vmatpush1.msra.mxu0 0.0
    %4102 = vmatprep.subr.mxu0 0.0
    %4103 = vmatpush1.msra.mxu0 0.0
    %4104 = vmatprep.subr.mxu0 0.0
    %4105 = vmatpush1.msra.mxu0 0.0
    %4106 = vmatprep.subr.mxu0 0.0
    %4107 = vmatpush1.msra.mxu0 0.0
    %4108 = vmatprep.subr.mxu0 0.0
    %4109 = vmatpush1.msra.mxu0 0.0
    %4110 = vmatprep.subr.mxu0 0.0
    %4111 = vmatpush1.msra.mxu0 0.0
    %4112 = vmatprep.subr.mxu0 0.0
    %4113 = vmatpush1.msra.mxu0 0.0
    %4114 = vmatprep.subr.mxu0 0.0
    %4115 = vmatpush1.msra.mxu0 0.0
    %4116 = vmatprep.subr.mxu0 0.0
    %4117 = vmatpush1.msra.mxu0 0.0
    %4118 = vmatprep.subr.mxu0 0.0
    %4119 = vmatpush1.msra.mxu0 0.0
    %4120 = vmatprep.subr.mxu0 0.0
    %4121 = vmatpush1.msra.mxu0 0.0
    %4122 = vmatprep.subr.mxu0 0.0
    %4123 = vmatpush1.msra.mxu0 0.0
    %4124 = vmatprep.subr.mxu0 0.0
    %4125 = vmatpush1.msra.mxu0 0.0
    %4126 = vmatprep.subr.mxu0 0.0
    %4127 = vmatpush1.msra.mxu0 0.0
    %4128 = vmatprep.subr.mxu0 0.0
    %4129 = vmatpush1.msra.mxu0 0.0
    %4130 = vmatprep.subr.mxu0 0.0
    %4131 = vmatpush1.msra.mxu0 0.0
    %4132 = vmatprep.subr.mxu0 0.0
    %4133 = vmatpush1.msra.mxu0 0.0
    %4134 = vmatprep.subr.mxu0 0.0
    %4135 = vmatpush1.msra.mxu0 0.0
    %4136 = vmatprep.subr.mxu0 0.0
    %4137 = vmatpush1.msra.mxu0 0.0
    %4138 = vmatprep.subr.mxu0 0.0
    %4139 = vmatpush1.msra.mxu0 0.0
    %4140 = vmatprep.subr.mxu0 0.0
    %4141 = vmatpush1.msra.mxu0 0.0
    %4142 = vmatprep.mubr.f32.mxu0 0.0
    %4143 = vmatmul.mubr.f32.gmra.mrb[0].mxu0 %v1140
    %v4144 = vpop.f32.mrb[0].mxu0
    %v4145 = vadd.f32 0.0, %v4144
    %v4146 = vpop.f32.mrb[0].mxu0
    %4147 = vdwg.mxu0
    %4148 = vmatprep.subr.mxu0 0.0
    %4149 = vmatpush1.msra.mxu0 %v3726
    %4150 = vmatprep.subr.mxu0 0.0
    %4151 = vmatpush1.msra.mxu0 0.0
    %4152 = vmatprep.subr.mxu0 0.0
    %4153 = vmatpush1.msra.mxu0 0.0
    %4154 = vmatprep.subr.mxu0 0.0
    %4155 = vmatpush1.msra.mxu0 0.0
    %4156 = vmatprep.subr.mxu0 0.0
    %4157 = vmatpush1.msra.mxu0 0.0
    %4158 = vmatprep.subr.mxu0 0.0
    %4159 = vmatpush1.msra.mxu0 0.0
    %4160 = vmatprep.subr.mxu0 0.0
    %4161 = vmatpush1.msra.mxu0 0.0
    %4162 = vmatprep.subr.mxu0 0.0
    %4163 = vmatpush1.msra.mxu0 0.0
    %4164 = vmatprep.subr.mxu0 0.0
    %4165 = vmatpush1.msra.mxu0 0.0
    %4166 = vmatprep.subr.mxu0 0.0
    %4167 = vmatpush1.msra.mxu0 0.0
    %4168 = vmatprep.subr.mxu0 0.0
    %4169 = vmatpush1.msra.mxu0 0.0
    %4170 = vmatprep.subr.mxu0 0.0
    %4171 = vmatpush1.msra.mxu0 0.0
    %4172 = vmatprep.subr.mxu0 0.0
    %4173 = vmatpush1.msra.mxu0 0.0
    %4174 = vmatprep.subr.mxu0 0.0
    %4175 = vmatpush1.msra.mxu0 0.0
    %4176 = vmatprep.subr.mxu0 0.0
    %4177 = vmatpush1.msra.mxu0 0.0
    %4178 = vmatprep.subr.mxu0 0.0
    %4179 = vmatpush1.msra.mxu0 0.0
    %4180 = vmatprep.subr.mxu0 0.0
    %4181 = vmatpush1.msra.mxu0 0.0
    %4182 = vmatprep.subr.mxu0 0.0
    %4183 = vmatpush1.msra.mxu0 0.0
    %4184 = vmatprep.subr.mxu0 0.0
    %4185 = vmatpush1.msra.mxu0 0.0
    %4186 = vmatprep.subr.mxu0 0.0
    %4187 = vmatpush1.msra.mxu0 0.0
    %4188 = vmatprep.subr.mxu0 0.0
    %4189 = vmatpush1.msra.mxu0 0.0
    %4190 = vmatprep.subr.mxu0 0.0
    %4191 = vmatpush1.msra.mxu0 0.0
    %4192 = vmatprep.subr.mxu0 0.0
    %4193 = vmatpush1.msra.mxu0 0.0
    %4194 = vmatprep.subr.mxu0 0.0
    %4195 = vmatpush1.msra.mxu0 0.0
    %4196 = vmatprep.subr.mxu0 0.0
    %4197 = vmatpush1.msra.mxu0 0.0
    %4198 = vmatprep.subr.mxu0 0.0
    %4199 = vmatpush1.msra.mxu0 0.0
    %4200 = vmatprep.subr.mxu0 0.0
    %4201 = vmatpush1.msra.mxu0 0.0
    %4202 = vmatprep.subr.mxu0 0.0
    %4203 = vmatpush1.msra.mxu0 0.0
    %4204 = vmatprep.subr.mxu0 0.0
    %4205 = vmatpush1.msra.mxu0 0.0
    %4206 = vmatprep.subr.mxu0 0.0
    %4207 = vmatpush1.msra.mxu0 0.0
    %4208 = vmatprep.subr.mxu0 0.0
    %4209 = vmatpush1.msra.mxu0 0.0
    %4210 = vmatprep.subr.mxu0 0.0
    %4211 = vmatpush1.msra.mxu0 0.0
    %4212 = vmatprep.mubr.f32.mxu0 0.0
    %4213 = vmatmul.mubr.f32.gmra.mrb[0].mxu0 %v1140
    %v4214 = vpop.f32.mrb[0].mxu0
    %v4215 = vadd.f32 0.0, %v4214
    %v4216 = vpop.f32.mrb[0].mxu0
    %4217 = vdwg.mxu0
    %4218 = vmatprep.subr.mxu0 0.0
    %4219 = vmatpush1.msra.mxu0 %v3727
    %4220 = vmatprep.subr.mxu0 0.0
    %4221 = vmatpush1.msra.mxu0 0.0
    %4222 = vmatprep.subr.mxu0 0.0
    %4223 = vmatpush1.msra.mxu0 0.0
    %4224 = vmatprep.subr.mxu0 0.0
    %4225 = vmatpush1.msra.mxu0 0.0
    %4226 = vmatprep.subr.mxu0 0.0
    %4227 = vmatpush1.msra.mxu0 0.0
    %4228 = vmatprep.subr.mxu0 0.0
    %4229 = vmatpush1.msra.mxu0 0.0
    %4230 = vmatprep.subr.mxu0 0.0
    %4231 = vmatpush1.msra.mxu0 0.0
    %4232 = vmatprep.subr.mxu0 0.0
    %4233 = vmatpush1.msra.mxu0 0.0
    %4234 = vmatprep.subr.mxu0 0.0
    %4235 = vmatpush1.msra.mxu0 0.0
    %4236 = vmatprep.subr.mxu0 0.0
    %4237 = vmatpush1.msra.mxu0 0.0
    %4238 = vmatprep.subr.mxu0 0.0
    %4239 = vmatpush1.msra.mxu0 0.0
    %4240 = vmatprep.subr.mxu0 0.0
    %4241 = vmatpush1.msra.mxu0 0.0
    %4242 = vmatprep.subr.mxu0 0.0
    %4243 = vmatpush1.msra.mxu0 0.0
    %4244 = vmatprep.subr.mxu0 0.0
    %4245 = vmatpush1.msra.mxu0 0.0
    %4246 = vmatprep.subr.mxu0 0.0
    %4247 = vmatpush1.msra.mxu0 0.0
    %4248 = vmatprep.subr.mxu0 0.0
    %4249 = vmatpush1.msra.mxu0 0.0
    %4250 = vmatprep.subr.mxu0 0.0
    %4251 = vmatpush1.msra.mxu0 0.0
    %4252 = vmatprep.subr.mxu0 0.0
    %4253 = vmatpush1.msra.mxu0 0.0
    %4254 = vmatprep.subr.mxu0 0.0
    %4255 = vmatpush1.msra.mxu0 0.0
    %4256 = vmatprep.subr.mxu0 0.0
    %4257 = vmatpush1.msra.mxu0 0.0
    %4258 = vmatprep.subr.mxu0 0.0
    %4259 = vmatpush1.msra.mxu0 0.0
    %4260 = vmatprep.subr.mxu0 0.0
    %4261 = vmatpush1.msra.mxu0 0.0
    %4262 = vmatprep.subr.mxu0 0.0
    %4263 = vmatpush1.msra.mxu0 0.0
    %4264 = vmatprep.subr.mxu0 0.0
    %4265 = vmatpush1.msra.mxu0 0.0
    %4266 = vmatprep.subr.mxu0 0.0
    %4267 = vmatpush1.msra.mxu0 0.0
    %4268 = vmatprep.subr.mxu0 0.0
    %4269 = vmatpush1.msra.mxu0 0.0
    %4270 = vmatprep.subr.mxu0 0.0
    %4271 = vmatpush1.msra.mxu0 0.0
    %4272 = vmatprep.subr.mxu0 0.0
    %4273 = vmatpush1.msra.mxu0 0.0
    %4274 = vmatprep.subr.mxu0 0.0
    %4275 = vmatpush1.msra.mxu0 0.0
    %4276 = vmatprep.subr.mxu0 0.0
    %4277 = vmatpush1.msra.mxu0 0.0
    %4278 = vmatprep.subr.mxu0 0.0
    %4279 = vmatpush1.msra.mxu0 0.0
    %4280 = vmatprep.subr.mxu0 0.0
    %4281 = vmatpush1.msra.mxu0 0.0
    %4282 = vmatprep.mubr.f32.mxu0 0.0
    %4283 = vmatmul.mubr.f32.gmra.mrb[0].mxu0 %v1140
    %v4284 = vpop.f32.mrb[0].mxu0
    %v4285 = vadd.f32 0.0, %v4284
    %v4286 = vpop.f32.mrb[0].mxu0
    %4287 = vdwg.mxu0
    %4288 = vmatprep.subr.mxu0 0.0
    %4289 = vmatpush1.msra.mxu0 %v3728
    %4290 = vmatprep.subr.mxu0 0.0
    %4291 = vmatpush1.msra.mxu0 0.0
    %4292 = vmatprep.subr.mxu0 0.0
    %4293 = vmatpush1.msra.mxu0 0.0
    %4294 = vmatprep.subr.mxu0 0.0
    %4295 = vmatpush1.msra.mxu0 0.0
    %4296 = vmatprep.subr.mxu0 0.0
    %4297 = vmatpush1.msra.mxu0 0.0
    %4298 = vmatprep.subr.mxu0 0.0
    %4299 = vmatpush1.msra.mxu0 0.0
    %4300 = vmatprep.subr.mxu0 0.0
    %4301 = vmatpush1.msra.mxu0 0.0
    %4302 = vmatprep.subr.mxu0 0.0
    %4303 = vmatpush1.msra.mxu0 0.0
    %4304 = vmatprep.subr.mxu0 0.0
    %4305 = vmatpush1.msra.mxu0 0.0
    %4306 = vmatprep.subr.mxu0 0.0
    %4307 = vmatpush1.msra.mxu0 0.0
    %4308 = vmatprep.subr.mxu0 0.0
    %4309 = vmatpush1.msra.mxu0 0.0
    %4310 = vmatprep.subr.mxu0 0.0
    %4311 = vmatpush1.msra.mxu0 0.0
    %4312 = vmatprep.subr.mxu0 0.0
    %4313 = vmatpush1.msra.mxu0 0.0
    %4314 = vmatprep.subr.mxu0 0.0
    %4315 = vmatpush1.msra.mxu0 0.0
    %4316 = vmatprep.subr.mxu0 0.0
    %4317 = vmatpush1.msra.mxu0 0.0
    %4318 = vmatprep.subr.mxu0 0.0
    %4319 = vmatpush1.msra.mxu0 0.0
    %4320 = vmatprep.subr.mxu0 0.0
    %4321 = vmatpush1.msra.mxu0 0.0
    %4322 = vmatprep.subr.mxu0 0.0
    %4323 = vmatpush1.msra.mxu0 0.0
    %4324 = vmatprep.subr.mxu0 0.0
    %4325 = vmatpush1.msra.mxu0 0.0
    %4326 = vmatprep.subr.mxu0 0.0
    %4327 = vmatpush1.msra.mxu0 0.0
    %4328 = vmatprep.subr.mxu0 0.0
    %4329 = vmatpush1.msra.mxu0 0.0
    %4330 = vmatprep.subr.mxu0 0.0
    %4331 = vmatpush1.msra.mxu0 0.0
    %4332 = vmatprep.subr.mxu0 0.0
    %4333 = vmatpush1.msra.mxu0 0.0
    %4334 = vmatprep.subr.mxu0 0.0
    %4335 = vmatpush1.msra.mxu0 0.0
    %4336 = vmatprep.subr.mxu0 0.0
    %4337 = vmatpush1.msra.mxu0 0.0
    %4338 = vmatprep.subr.mxu0 0.0
    %4339 = vmatpush1.msra.mxu0 0.0
    %4340 = vmatprep.subr.mxu0 0.0
    %4341 = vmatpush1.msra.mxu0 0.0
    %4342 = vmatprep.subr.mxu0 0.0
    %4343 = vmatpush1.msra.mxu0 0.0
    %4344 = vmatprep.subr.mxu0 0.0
    %4345 = vmatpush1.msra.mxu0 0.0
    %4346 = vmatprep.subr.mxu0 0.0
    %4347 = vmatpush1.msra.mxu0 0.0
    %4348 = vmatprep.subr.mxu0 0.0
    %4349 = vmatpush1.msra.mxu0 0.0
    %4350 = vmatprep.subr.mxu0 0.0
    %4351 = vmatpush1.msra.mxu0 0.0
    %4352 = vmatprep.mubr.f32.mxu0 0.0
    %4353 = vmatmul.mubr.f32.gmra.mrb[0].mxu0 %v1140
    %v4354 = vpop.f32.mrb[0].mxu0
    %v4355 = vadd.f32 0.0, %v4354
    %v4356 = vpop.f32.mrb[0].mxu0
    %4357 = vdwg.mxu0
    %4358 = vmatprep.subr.mxu0 0.0
    %4359 = vmatpush1.msra.mxu0 %v3729
    %4360 = vmatprep.subr.mxu0 0.0
    %4361 = vmatpush1.msra.mxu0 0.0
    %4362 = vmatprep.subr.mxu0 0.0
    %4363 = vmatpush1.msra.mxu0 0.0
    %4364 = vmatprep.subr.mxu0 0.0
    %4365 = vmatpush1.msra.mxu0 0.0
    %4366 = vmatprep.subr.mxu0 0.0
    %4367 = vmatpush1.msra.mxu0 0.0
    %4368 = vmatprep.subr.mxu0 0.0
    %4369 = vmatpush1.msra.mxu0 0.0
    %4370 = vmatprep.subr.mxu0 0.0
    %4371 = vmatpush1.msra.mxu0 0.0
    %4372 = vmatprep.subr.mxu0 0.0
    %4373 = vmatpush1.msra.mxu0 0.0
    %4374 = vmatprep.subr.mxu0 0.0
    %4375 = vmatpush1.msra.mxu0 0.0
    %4376 = vmatprep.subr.mxu0 0.0
    %4377 = vmatpush1.msra.mxu0 0.0
    %4378 = vmatprep.subr.mxu0 0.0
    %4379 = vmatpush1.msra.mxu0 0.0
    %4380 = vmatprep.subr.mxu0 0.0
    %4381 = vmatpush1.msra.mxu0 0.0
    %4382 = vmatprep.subr.mxu0 0.0
    %4383 = vmatpush1.msra.mxu0 0.0
    %4384 = vmatprep.subr.mxu0 0.0
    %4385 = vmatpush1.msra.mxu0 0.0
    %4386 = vmatprep.subr.mxu0 0.0
    %4387 = vmatpush1.msra.mxu0 0.0
    %4388 = vmatprep.subr.mxu0 0.0
    %4389 = vmatpush1.msra.mxu0 0.0
    %4390 = vmatprep.subr.mxu0 0.0
    %4391 = vmatpush1.msra.mxu0 0.0
    %4392 = vmatprep.subr.mxu0 0.0
    %4393 = vmatpush1.msra.mxu0 0.0
    %4394 = vmatprep.subr.mxu0 0.0
    %4395 = vmatpush1.msra.mxu0 0.0
    %4396 = vmatprep.subr.mxu0 0.0
    %4397 = vmatpush1.msra.mxu0 0.0
    %4398 = vmatprep.subr.mxu0 0.0
    %4399 = vmatpush1.msra.mxu0 0.0
    %4400 = vmatprep.subr.mxu0 0.0
    %4401 = vmatpush1.msra.mxu0 0.0
    %4402 = vmatprep.subr.mxu0 0.0
    %4403 = vmatpush1.msra.mxu0 0.0
    %4404 = vmatprep.subr.mxu0 0.0
    %4405 = vmatpush1.msra.mxu0 0.0
    %4406 = vmatprep.subr.mxu0 0.0
    %4407 = vmatpush1.msra.mxu0 0.0
    %4408 = vmatprep.subr.mxu0 0.0
    %4409 = vmatpush1.msra.mxu0 0.0
    %4410 = vmatprep.subr.mxu0 0.0
    %4411 = vmatpush1.msra.mxu0 0.0
    %4412 = vmatprep.subr.mxu0 0.0
    %4413 = vmatpush1.msra.mxu0 0.0
    %4414 = vmatprep.subr.mxu0 0.0
    %4415 = vmatpush1.msra.mxu0 0.0
    %4416 = vmatprep.subr.mxu0 0.0
    %4417 = vmatpush1.msra.mxu0 0.0
    %4418 = vmatprep.subr.mxu0 0.0
    %4419 = vmatpush1.msra.mxu0 0.0
    %4420 = vmatprep.subr.mxu0 0.0
    %4421 = vmatpush1.msra.mxu0 0.0
    %4422 = vmatprep.mubr.f32.mxu0 0.0
    %4423 = vmatmul.mubr.f32.gmra.mrb[0].mxu0 %v1140
    %v4424 = vpop.f32.mrb[0].mxu0
    %v4425 = vadd.f32 0.0, %v4424
    %v4426 = vpop.f32.mrb[0].mxu0
    %4427 = vdwg.mxu0
    %4428 = vmatprep.subr.mxu0 0.0
    %4429 = vmatpush1.msra.mxu0 %v3935
    %4430 = vmatprep.subr.mxu0 0.0
    %4431 = vmatpush1.msra.mxu0 0.0
    %4432 = vmatprep.subr.mxu0 0.0
    %4433 = vmatpush1.msra.mxu0 0.0
    %4434 = vmatprep.subr.mxu0 0.0
    %4435 = vmatpush1.msra.mxu0 0.0
    %4436 = vmatprep.subr.mxu0 0.0
    %4437 = vmatpush1.msra.mxu0 0.0
    %4438 = vmatprep.subr.mxu0 0.0
    %4439 = vmatpush1.msra.mxu0 0.0
    %4440 = vmatprep.subr.mxu0 0.0
    %4441 = vmatpush1.msra.mxu0 0.0
    %4442 = vmatprep.subr.mxu0 0.0
    %4443 = vmatpush1.msra.mxu0 0.0
    %4444 = vmatprep.subr.mxu0 0.0
    %4445 = vmatpush1.msra.mxu0 0.0
    %4446 = vmatprep.subr.mxu0 0.0
    %4447 = vmatpush1.msra.mxu0 0.0
    %4448 = vmatprep.subr.mxu0 0.0
    %4449 = vmatpush1.msra.mxu0 0.0
    %4450 = vmatprep.subr.mxu0 0.0
    %4451 = vmatpush1.msra.mxu0 0.0
    %4452 = vmatprep.subr.mxu0 0.0
    %4453 = vmatpush1.msra.mxu0 0.0
    %4454 = vmatprep.subr.mxu0 0.0
    %4455 = vmatpush1.msra.mxu0 0.0
    %4456 = vmatprep.subr.mxu0 0.0
    %4457 = vmatpush1.msra.mxu0 0.0
    %4458 = vmatprep.subr.mxu0 0.0
    %4459 = vmatpush1.msra.mxu0 0.0
    %4460 = vmatprep.subr.mxu0 0.0
    %4461 = vmatpush1.msra.mxu0 0.0
    %4462 = vmatprep.subr.mxu0 0.0
    %4463 = vmatpush1.msra.mxu0 0.0
    %4464 = vmatprep.subr.mxu0 0.0
    %4465 = vmatpush1.msra.mxu0 0.0
    %4466 = vmatprep.subr.mxu0 0.0
    %4467 = vmatpush1.msra.mxu0 0.0
    %4468 = vmatprep.subr.mxu0 0.0
    %4469 = vmatpush1.msra.mxu0 0.0
    %4470 = vmatprep.subr.mxu0 0.0
    %4471 = vmatpush1.msra.mxu0 0.0
    %4472 = vmatprep.subr.mxu0 0.0
    %4473 = vmatpush1.msra.mxu0 0.0
    %4474 = vmatprep.subr.mxu0 0.0
    %4475 = vmatpush1.msra.mxu0 0.0
    %4476 = vmatprep.subr.mxu0 0.0
    %4477 = vmatpush1.msra.mxu0 0.0
    %4478 = vmatprep.subr.mxu0 0.0
    %4479 = vmatpush1.msra.mxu0 0.0
    %4480 = vmatprep.subr.mxu0 0.0
    %4481 = vmatpush1.msra.mxu0 0.0
    %4482 = vmatprep.subr.mxu0 0.0
    %4483 = vmatpush1.msra.mxu0 0.0
    %4484 = vmatprep.subr.mxu0 0.0
    %4485 = vmatpush1.msra.mxu0 0.0
    %4486 = vmatprep.subr.mxu0 0.0
    %4487 = vmatpush1.msra.mxu0 0.0
    %4488 = vmatprep.subr.mxu0 0.0
    %4489 = vmatpush1.msra.mxu0 0.0
    %4490 = vmatprep.subr.mxu0 0.0
    %4491 = vmatpush1.msra.mxu0 0.0
    %4492 = vmatprep.mubr.f32.mxu0 0.0
    %4493 = vmatmul.mubr.f32.gmra.mrb[0].mxu0 %v1140
    %v4494 = vpop.f32.mrb[0].mxu0
    %v4495 = vadd.f32 0.0, %v4494
    %v4496 = vpop.f32.mrb[0].mxu0
    %4497 = vdwg.mxu0
    %4498 = vmatprep.subr.mxu0 0.0
    %4499 = vmatpush1.msra.mxu0 %v4005
    %4500 = vmatprep.subr.mxu0 0.0
    %4501 = vmatpush1.msra.mxu0 0.0
    %4502 = vmatprep.subr.mxu0 0.0
    %4503 = vmatpush1.msra.mxu0 0.0
    %4504 = vmatprep.subr.mxu0 0.0
    %4505 = vmatpush1.msra.mxu0 0.0
    %4506 = vmatprep.subr.mxu0 0.0
    %4507 = vmatpush1.msra.mxu0 0.0
    %4508 = vmatprep.subr.mxu0 0.0
    %4509 = vmatpush1.msra.mxu0 0.0
    %4510 = vmatprep.subr.mxu0 0.0
    %4511 = vmatpush1.msra.mxu0 0.0
    %4512 = vmatprep.subr.mxu0 0.0
    %4513 = vmatpush1.msra.mxu0 0.0
    %4514 = vmatprep.subr.mxu0 0.0
    %4515 = vmatpush1.msra.mxu0 0.0
    %4516 = vmatprep.subr.mxu0 0.0
    %4517 = vmatpush1.msra.mxu0 0.0
    %4518 = vmatprep.subr.mxu0 0.0
    %4519 = vmatpush1.msra.mxu0 0.0
    %4520 = vmatprep.subr.mxu0 0.0
    %4521 = vmatpush1.msra.mxu0 0.0
    %4522 = vmatprep.subr.mxu0 0.0
    %4523 = vmatpush1.msra.mxu0 0.0
    %4524 = vmatprep.subr.mxu0 0.0
    %4525 = vmatpush1.msra.mxu0 0.0
    %4526 = vmatprep.subr.mxu0 0.0
    %4527 = vmatpush1.msra.mxu0 0.0
    %4528 = vmatprep.subr.mxu0 0.0
    %4529 = vmatpush1.msra.mxu0 0.0
    %4530 = vmatprep.subr.mxu0 0.0
    %4531 = vmatpush1.msra.mxu0 0.0
    %4532 = vmatprep.subr.mxu0 0.0
    %4533 = vmatpush1.msra.mxu0 0.0
    %4534 = vmatprep.subr.mxu0 0.0
    %4535 = vmatpush1.msra.mxu0 0.0
    %4536 = vmatprep.subr.mxu0 0.0
    %4537 = vmatpush1.msra.mxu0 0.0
    %4538 = vmatprep.subr.mxu0 0.0
    %4539 = vmatpush1.msra.mxu0 0.0
    %4540 = vmatprep.subr.mxu0 0.0
    %4541 = vmatpush1.msra.mxu0 0.0
    %4542 = vmatprep.subr.mxu0 0.0
    %4543 = vmatpush1.msra.mxu0 0.0
    %4544 = vmatprep.subr.mxu0 0.0
    %4545 = vmatpush1.msra.mxu0 0.0
    %4546 = vmatprep.subr.mxu0 0.0
    %4547 = vmatpush1.msra.mxu0 0.0
    %4548 = vmatprep.subr.mxu0 0.0
    %4549 = vmatpush1.msra.mxu0 0.0
    %4550 = vmatprep.subr.mxu0 0.0
    %4551 = vmatpush1.msra.mxu0 0.0
    %4552 = vmatprep.subr.mxu0 0.0
    %4553 = vmatpush1.msra.mxu0 0.0
    %4554 = vmatprep.subr.mxu0 0.0
    %4555 = vmatpush1.msra.mxu0 0.0
    %4556 = vmatprep.subr.mxu0 0.0
    %4557 = vmatpush1.msra.mxu0 0.0
    %4558 = vmatprep.subr.mxu0 0.0
    %4559 = vmatpush1.msra.mxu0 0.0
    %4560 = vmatprep.subr.mxu0 0.0
    %4561 = vmatpush1.msra.mxu0 0.0
    %4562 = vmatprep.mubr.f32.mxu0 0.0
    %4563 = vmatmul.mubr.f32.gmra.mrb[0].mxu0 %v1140
    %v4564 = vpop.f32.mrb[0].mxu0
    %v4565 = vadd.f32 0.0, %v4564
    %v4566 = vpop.f32.mrb[0].mxu0
    %4567 = vdwg.mxu0
    %4568 = vmatprep.subr.mxu0 0.0
    %4569 = vmatpush1.msra.mxu0 %v4075
    %4570 = vmatprep.subr.mxu0 0.0
    %4571 = vmatpush1.msra.mxu0 0.0
    %4572 = vmatprep.subr.mxu0 0.0
    %4573 = vmatpush1.msra.mxu0 0.0
    %4574 = vmatprep.subr.mxu0 0.0
    %4575 = vmatpush1.msra.mxu0 0.0
    %4576 = vmatprep.subr.mxu0 0.0
    %4577 = vmatpush1.msra.mxu0 0.0
    %4578 = vmatprep.subr.mxu0 0.0
    %4579 = vmatpush1.msra.mxu0 0.0
    %4580 = vmatprep.subr.mxu0 0.0
    %4581 = vmatpush1.msra.mxu0 0.0
    %4582 = vmatprep.subr.mxu0 0.0
    %4583 = vmatpush1.msra.mxu0 0.0
    %4584 = vmatprep.subr.mxu0 0.0
    %4585 = vmatpush1.msra.mxu0 0.0
    %4586 = vmatprep.subr.mxu0 0.0
    %4587 = vmatpush1.msra.mxu0 0.0
    %4588 = vmatprep.subr.mxu0 0.0
    %4589 = vmatpush1.msra.mxu0 0.0
    %4590 = vmatprep.subr.mxu0 0.0
    %4591 = vmatpush1.msra.mxu0 0.0
    %4592 = vmatprep.subr.mxu0 0.0
    %4593 = vmatpush1.msra.mxu0 0.0
    %4594 = vmatprep.subr.mxu0 0.0
    %4595 = vmatpush1.msra.mxu0 0.0
    %4596 = vmatprep.subr.mxu0 0.0
    %4597 = vmatpush1.msra.mxu0 0.0
    %4598 = vmatprep.subr.mxu0 0.0
    %4599 = vmatpush1.msra.mxu0 0.0
    %4600 = vmatprep.subr.mxu0 0.0
    %4601 = vmatpush1.msra.mxu0 0.0
    %4602 = vmatprep.subr.mxu0 0.0
    %4603 = vmatpush1.msra.mxu0 0.0
    %4604 = vmatprep.subr.mxu0 0.0
    %4605 = vmatpush1.msra.mxu0 0.0
    %4606 = vmatprep.subr.mxu0 0.0
    %4607 = vmatpush1.msra.mxu0 0.0
    %4608 = vmatprep.subr.mxu0 0.0
    %4609 = vmatpush1.msra.mxu0 0.0
    %4610 = vmatprep.subr.mxu0 0.0
    %4611 = vmatpush1.msra.mxu0 0.0
    %4612 = vmatprep.subr.mxu0 0.0
    %4613 = vmatpush1.msra.mxu0 0.0
    %4614 = vmatprep.subr.mxu0 0.0
    %4615 = vmatpush1.msra.mxu0 0.0
    %4616 = vmatprep.subr.mxu0 0.0
    %4617 = vmatpush1.msra.mxu0 0.0
    %4618 = vmatprep.subr.mxu0 0.0
    %4619 = vmatpush1.msra.mxu0 0.0
    %4620 = vmatprep.subr.mxu0 0.0
    %4621 = vmatpush1.msra.mxu0 0.0
    %4622 = vmatprep.subr.mxu0 0.0
    %4623 = vmatpush1.msra.mxu0 0.0
    %4624 = vmatprep.subr.mxu0 0.0
    %4625 = vmatpush1.msra.mxu0 0.0
    %4626 = vmatprep.subr.mxu0 0.0
    %4627 = vmatpush1.msra.mxu0 0.0
    %4628 = vmatprep.subr.mxu0 0.0
    %4629 = vmatpush1.msra.mxu0 0.0
    %4630 = vmatprep.subr.mxu0 0.0
    %4631 = vmatpush1.msra.mxu0 0.0
    %4632 = vmatprep.mubr.f32.mxu0 0.0
    %4633 = vmatmul.mubr.f32.gmra.mrb[0].mxu0 %v1140
    %v4634 = vpop.f32.mrb[0].mxu0
    %v4635 = vadd.f32 0.0, %v4634
    %v4636 = vpop.f32.mrb[0].mxu0
    %4637 = vdwg.mxu0
    %4638 = vmatprep.subr.mxu0 0.0
    %4639 = vmatpush1.msra.mxu0 %v4145
    %4640 = vmatprep.subr.mxu0 0.0
    %4641 = vmatpush1.msra.mxu0 0.0
    %4642 = vmatprep.subr.mxu0 0.0
    %4643 = vmatpush1.msra.mxu0 0.0
    %4644 = vmatprep.subr.mxu0 0.0
    %4645 = vmatpush1.msra.mxu0 0.0
    %4646 = vmatprep.subr.mxu0 0.0
    %4647 = vmatpush1.msra.mxu0 0.0
    %4648 = vmatprep.subr.mxu0 0.0
    %4649 = vmatpush1.msra.mxu0 0.0
    %4650 = vmatprep.subr.mxu0 0.0
    %4651 = vmatpush1.msra.mxu0 0.0
    %4652 = vmatprep.subr.mxu0 0.0
    %4653 = vmatpush1.msra.mxu0 0.0
    %4654 = vmatprep.subr.mxu0 0.0
    %4655 = vmatpush1.msra.mxu0 0.0
    %4656 = vmatprep.subr.mxu0 0.0
    %4657 = vmatpush1.msra.mxu0 0.0
    %4658 = vmatprep.subr.mxu0 0.0
    %4659 = vmatpush1.msra.mxu0 0.0
    %4660 = vmatprep.subr.mxu0 0.0
    %4661 = vmatpush1.msra.mxu0 0.0
    %4662 = vmatprep.subr.mxu0 0.0
    %4663 = vmatpush1.msra.mxu0 0.0
    %4664 = vmatprep.subr.mxu0 0.0
    %4665 = vmatpush1.msra.mxu0 0.0
    %4666 = vmatprep.subr.mxu0 0.0
    %4667 = vmatpush1.msra.mxu0 0.0
    %4668 = vmatprep.subr.mxu0 0.0
    %4669 = vmatpush1.msra.mxu0 0.0
    %4670 = vmatprep.subr.mxu0 0.0
    %4671 = vmatpush1.msra.mxu0 0.0
    %4672 = vmatprep.subr.mxu0 0.0
    %4673 = vmatpush1.msra.mxu0 0.0
    %4674 = vmatprep.subr.mxu0 0.0
    %4675 = vmatpush1.msra.mxu0 0.0
    %4676 = vmatprep.subr.mxu0 0.0
    %4677 = vmatpush1.msra.mxu0 0.0
    %4678 = vmatprep.subr.mxu0 0.0
    %4679 = vmatpush1.msra.mxu0 0.0
    %4680 = vmatprep.subr.mxu0 0.0
    %4681 = vmatpush1.msra.mxu0 0.0
    %4682 = vmatprep.subr.mxu0 0.0
    %4683 = vmatpush1.msra.mxu0 0.0
    %4684 = vmatprep.subr.mxu0 0.0
    %4685 = vmatpush1.msra.mxu0 0.0
    %4686 = vmatprep.subr.mxu0 0.0
    %4687 = vmatpush1.msra.mxu0 0.0
    %4688 = vmatprep.subr.mxu0 0.0
    %4689 = vmatpush1.msra.mxu0 0.0
    %4690 = vmatprep.subr.mxu0 0.0
    %4691 = vmatpush1.msra.mxu0 0.0
    %4692 = vmatprep.subr.mxu0 0.0
    %4693 = vmatpush1.msra.mxu0 0.0
    %4694 = vmatprep.subr.mxu0 0.0
    %4695 = vmatpush1.msra.mxu0 0.0
    %4696 = vmatprep.subr.mxu0 0.0
    %4697 = vmatpush1.msra.mxu0 0.0
    %4698 = vmatprep.subr.mxu0 0.0
    %4699 = vmatpush1.msra.mxu0 0.0
    %4700 = vmatprep.subr.mxu0 0.0
    %4701 = vmatpush1.msra.mxu0 0.0
    %4702 = vmatprep.mubr.f32.mxu0 0.0
    %4703 = vmatmul.mubr.f32.gmra.mrb[0].mxu0 %v1140
    %v4704 = vpop.f32.mrb[0].mxu0
    %v4705 = vadd.f32 0.0, %v4704
    %v4706 = vpop.f32.mrb[0].mxu0
    %4707 = vdwg.mxu0
    %4708 = vmatprep.subr.mxu0 0.0
    %4709 = vmatpush1.msra.mxu0 %v4215
    %4710 = vmatprep.subr.mxu0 0.0
    %4711 = vmatpush1.msra.mxu0 0.0
    %4712 = vmatprep.subr.mxu0 0.0
    %4713 = vmatpush1.msra.mxu0 0.0
    %4714 = vmatprep.subr.mxu0 0.0
    %4715 = vmatpush1.msra.mxu0 0.0
    %4716 = vmatprep.subr.mxu0 0.0
    %4717 = vmatpush1.msra.mxu0 0.0
    %4718 = vmatprep.subr.mxu0 0.0
    %4719 = vmatpush1.msra.mxu0 0.0
    %4720 = vmatprep.subr.mxu0 0.0
    %4721 = vmatpush1.msra.mxu0 0.0
    %4722 = vmatprep.subr.mxu0 0.0
    %4723 = vmatpush1.msra.mxu0 0.0
    %4724 = vmatprep.subr.mxu0 0.0
    %4725 = vmatpush1.msra.mxu0 0.0
    %4726 = vmatprep.subr.mxu0 0.0
    %4727 = vmatpush1.msra.mxu0 0.0
    %4728 = vmatprep.subr.mxu0 0.0
    %4729 = vmatpush1.msra.mxu0 0.0
    %4730 = vmatprep.subr.mxu0 0.0
    %4731 = vmatpush1.msra.mxu0 0.0
    %4732 = vmatprep.subr.mxu0 0.0
    %4733 = vmatpush1.msra.mxu0 0.0
    %4734 = vmatprep.subr.mxu0 0.0
    %4735 = vmatpush1.msra.mxu0 0.0
    %4736 = vmatprep.subr.mxu0 0.0
    %4737 = vmatpush1.msra.mxu0 0.0
    %4738 = vmatprep.subr.mxu0 0.0
    %4739 = vmatpush1.msra.mxu0 0.0
    %4740 = vmatprep.subr.mxu0 0.0
    %4741 = vmatpush1.msra.mxu0 0.0
    %4742 = vmatprep.subr.mxu0 0.0
    %4743 = vmatpush1.msra.mxu0 0.0
    %4744 = vmatprep.subr.mxu0 0.0
    %4745 = vmatpush1.msra.mxu0 0.0
    %4746 = vmatprep.subr.mxu0 0.0
    %4747 = vmatpush1.msra.mxu0 0.0
    %4748 = vmatprep.subr.mxu0 0.0
    %4749 = vmatpush1.msra.mxu0 0.0
    %4750 = vmatprep.subr.mxu0 0.0
    %4751 = vmatpush1.msra.mxu0 0.0
    %4752 = vmatprep.subr.mxu0 0.0
    %4753 = vmatpush1.msra.mxu0 0.0
    %4754 = vmatprep.subr.mxu0 0.0
    %4755 = vmatpush1.msra.mxu0 0.0
    %4756 = vmatprep.subr.mxu0 0.0
    %4757 = vmatpush1.msra.mxu0 0.0
    %4758 = vmatprep.subr.mxu0 0.0
    %4759 = vmatpush1.msra.mxu0 0.0
    %4760 = vmatprep.subr.mxu0 0.0
    %4761 = vmatpush1.msra.mxu0 0.0
    %4762 = vmatprep.subr.mxu0 0.0
    %4763 = vmatpush1.msra.mxu0 0.0
    %4764 = vmatprep.subr.mxu0 0.0
    %4765 = vmatpush1.msra.mxu0 0.0
    %4766 = vmatprep.subr.mxu0 0.0
    %4767 = vmatpush1.msra.mxu0 0.0
    %4768 = vmatprep.subr.mxu0 0.0
    %4769 = vmatpush1.msra.mxu0 0.0
    %4770 = vmatprep.subr.mxu0 0.0
    %4771 = vmatpush1.msra.mxu0 0.0
    %4772 = vmatprep.mubr.f32.mxu0 0.0
    %4773 = vmatmul.mubr.f32.gmra.mrb[0].mxu0 %v1140
    %v4774 = vpop.f32.mrb[0].mxu0
    %v4775 = vadd.f32 0.0, %v4774
    %v4776 = vpop.f32.mrb[0].mxu0
    %4777 = vdwg.mxu0
    %4778 = vmatprep.subr.mxu0 0.0
    %4779 = vmatpush1.msra.mxu0 %v4285
    %4780 = vmatprep.subr.mxu0 0.0
    %4781 = vmatpush1.msra.mxu0 0.0
    %4782 = vmatprep.subr.mxu0 0.0
    %4783 = vmatpush1.msra.mxu0 0.0
    %4784 = vmatprep.subr.mxu0 0.0
    %4785 = vmatpush1.msra.mxu0 0.0
    %4786 = vmatprep.subr.mxu0 0.0
    %4787 = vmatpush1.msra.mxu0 0.0
    %4788 = vmatprep.subr.mxu0 0.0
    %4789 = vmatpush1.msra.mxu0 0.0
    %4790 = vmatprep.subr.mxu0 0.0
    %4791 = vmatpush1.msra.mxu0 0.0
    %4792 = vmatprep.subr.mxu0 0.0
    %4793 = vmatpush1.msra.mxu0 0.0
    %4794 = vmatprep.subr.mxu0 0.0
    %4795 = vmatpush1.msra.mxu0 0.0
    %4796 = vmatprep.subr.mxu0 0.0
    %4797 = vmatpush1.msra.mxu0 0.0
    %4798 = vmatprep.subr.mxu0 0.0
    %4799 = vmatpush1.msra.mxu0 0.0
    %4800 = vmatprep.subr.mxu0 0.0
    %4801 = vmatpush1.msra.mxu0 0.0
    %4802 = vmatprep.subr.mxu0 0.0
    %4803 = vmatpush1.msra.mxu0 0.0
    %4804 = vmatprep.subr.mxu0 0.0
    %4805 = vmatpush1.msra.mxu0 0.0
    %4806 = vmatprep.subr.mxu0 0.0
    %4807 = vmatpush1.msra.mxu0 0.0
    %4808 = vmatprep.subr.mxu0 0.0
    %4809 = vmatpush1.msra.mxu0 0.0
    %4810 = vmatprep.subr.mxu0 0.0
    %4811 = vmatpush1.msra.mxu0 0.0
    %4812 = vmatprep.subr.mxu0 0.0
    %4813 = vmatpush1.msra.mxu0 0.0
    %4814 = vmatprep.subr.mxu0 0.0
    %4815 = vmatpush1.msra.mxu0 0.0
    %4816 = vmatprep.subr.mxu0 0.0
    %4817 = vmatpush1.msra.mxu0 0.0
    %4818 = vmatprep.subr.mxu0 0.0
    %4819 = vmatpush1.msra.mxu0 0.0
    %4820 = vmatprep.subr.mxu0 0.0
    %4821 = vmatpush1.msra.mxu0 0.0
    %4822 = vmatprep.subr.mxu0 0.0
    %4823 = vmatpush1.msra.mxu0 0.0
    %4824 = vmatprep.subr.mxu0 0.0
    %4825 = vmatpush1.msra.mxu0 0.0
    %4826 = vmatprep.subr.mxu0 0.0
    %4827 = vmatpush1.msra.mxu0 0.0
    %4828 = vmatprep.subr.mxu0 0.0
    %4829 = vmatpush1.msra.mxu0 0.0
    %4830 = vmatprep.subr.mxu0 0.0
    %4831 = vmatpush1.msra.mxu0 0.0
    %4832 = vmatprep.subr.mxu0 0.0
    %4833 = vmatpush1.msra.mxu0 0.0
    %4834 = vmatprep.subr.mxu0 0.0
    %4835 = vmatpush1.msra.mxu0 0.0
    %4836 = vmatprep.subr.mxu0 0.0
    %4837 = vmatpush1.msra.mxu0 0.0
    %4838 = vmatprep.subr.mxu0 0.0
    %4839 = vmatpush1.msra.mxu0 0.0
    %4840 = vmatprep.subr.mxu0 0.0
    %4841 = vmatpush1.msra.mxu0 0.0
    %4842 = vmatprep.mubr.f32.mxu0 0.0
    %4843 = vmatmul.mubr.f32.gmra.mrb[0].mxu0 %v1140
    %v4844 = vpop.f32.mrb[0].mxu0
    %v4845 = vadd.f32 0.0, %v4844
    %v4846 = vpop.f32.mrb[0].mxu0
    %4847 = vdwg.mxu0
    %4848 = vmatprep.subr.mxu0 0.0
    %4849 = vmatpush1.msra.mxu0 %v4355
    %4850 = vmatprep.subr.mxu0 0.0
    %4851 = vmatpush1.msra.mxu0 0.0
    %4852 = vmatprep.subr.mxu0 0.0
    %4853 = vmatpush1.msra.mxu0 0.0
    %4854 = vmatprep.subr.mxu0 0.0
    %4855 = vmatpush1.msra.mxu0 0.0
    %4856 = vmatprep.subr.mxu0 0.0
    %4857 = vmatpush1.msra.mxu0 0.0
    %4858 = vmatprep.subr.mxu0 0.0
    %4859 = vmatpush1.msra.mxu0 0.0
    %4860 = vmatprep.subr.mxu0 0.0
    %4861 = vmatpush1.msra.mxu0 0.0
    %4862 = vmatprep.subr.mxu0 0.0
    %4863 = vmatpush1.msra.mxu0 0.0
    %4864 = vmatprep.subr.mxu0 0.0
    %4865 = vmatpush1.msra.mxu0 0.0
    %4866 = vmatprep.subr.mxu0 0.0
    %4867 = vmatpush1.msra.mxu0 0.0
    %4868 = vmatprep.subr.mxu0 0.0
    %4869 = vmatpush1.msra.mxu0 0.0
    %4870 = vmatprep.subr.mxu0 0.0
    %4871 = vmatpush1.msra.mxu0 0.0
    %4872 = vmatprep.subr.mxu0 0.0
    %4873 = vmatpush1.msra.mxu0 0.0
    %4874 = vmatprep.subr.mxu0 0.0
    %4875 = vmatpush1.msra.mxu0 0.0
    %4876 = vmatprep.subr.mxu0 0.0
    %4877 = vmatpush1.msra.mxu0 0.0
    %4878 = vmatprep.subr.mxu0 0.0
    %4879 = vmatpush1.msra.mxu0 0.0
    %4880 = vmatprep.subr.mxu0 0.0
    %4881 = vmatpush1.msra.mxu0 0.0
    %4882 = vmatprep.subr.mxu0 0.0
    %4883 = vmatpush1.msra.mxu0 0.0
    %4884 = vmatprep.subr.mxu0 0.0
    %4885 = vmatpush1.msra.mxu0 0.0
    %4886 = vmatprep.subr.mxu0 0.0
    %4887 = vmatpush1.msra.mxu0 0.0
    %4888 = vmatprep.subr.mxu0 0.0
    %4889 = vmatpush1.msra.mxu0 0.0
    %4890 = vmatprep.subr.mxu0 0.0
    %4891 = vmatpush1.msra.mxu0 0.0
    %4892 = vmatprep.subr.mxu0 0.0
    %4893 = vmatpush1.msra.mxu0 0.0
    %4894 = vmatprep.subr.mxu0 0.0
    %4895 = vmatpush1.msra.mxu0 0.0
    %4896 = vmatprep.subr.mxu0 0.0
    %4897 = vmatpush1.msra.mxu0 0.0
    %4898 = vmatprep.subr.mxu0 0.0
    %4899 = vmatpush1.msra.mxu0 0.0
    %4900 = vmatprep.subr.mxu0 0.0
    %4901 = vmatpush1.msra.mxu0 0.0
    %4902 = vmatprep.subr.mxu0 0.0
    %4903 = vmatpush1.msra.mxu0 0.0
    %4904 = vmatprep.subr.mxu0 0.0
    %4905 = vmatpush1.msra.mxu0 0.0
    %4906 = vmatprep.subr.mxu0 0.0
    %4907 = vmatpush1.msra.mxu0 0.0
    %4908 = vmatprep.subr.mxu0 0.0
    %4909 = vmatpush1.msra.mxu0 0.0
    %4910 = vmatprep.subr.mxu0 0.0
    %4911 = vmatpush1.msra.mxu0 0.0
    %4912 = vmatprep.mubr.f32.mxu0 0.0
    %4913 = vmatmul.mubr.f32.gmra.mrb[0].mxu0 %v1140
    %v4914 = vpop.f32.mrb[0].mxu0
    %v4915 = vadd.f32 0.0, %v4914
    %v4916 = vpop.f32.mrb[0].mxu0
    %4917 = vdwg.mxu0
    %4918 = vmatprep.subr.mxu0 0.0
    %4919 = vmatpush1.msra.mxu0 %v4425
    %4920 = vmatprep.subr.mxu0 0.0
    %4921 = vmatpush1.msra.mxu0 0.0
    %4922 = vmatprep.subr.mxu0 0.0
    %4923 = vmatpush1.msra.mxu0 0.0
    %4924 = vmatprep.subr.mxu0 0.0
    %4925 = vmatpush1.msra.mxu0 0.0
    %4926 = vmatprep.subr.mxu0 0.0
    %4927 = vmatpush1.msra.mxu0 0.0
    %4928 = vmatprep.subr.mxu0 0.0
    %4929 = vmatpush1.msra.mxu0 0.0
    %4930 = vmatprep.subr.mxu0 0.0
    %4931 = vmatpush1.msra.mxu0 0.0
    %4932 = vmatprep.subr.mxu0 0.0
    %4933 = vmatpush1.msra.mxu0 0.0
    %4934 = vmatprep.subr.mxu0 0.0
    %4935 = vmatpush1.msra.mxu0 0.0
    %4936 = vmatprep.subr.mxu0 0.0
    %4937 = vmatpush1.msra.mxu0 0.0
    %4938 = vmatprep.subr.mxu0 0.0
    %4939 = vmatpush1.msra.mxu0 0.0
    %4940 = vmatprep.subr.mxu0 0.0
    %4941 = vmatpush1.msra.mxu0 0.0
    %4942 = vmatprep.subr.mxu0 0.0
    %4943 = vmatpush1.msra.mxu0 0.0
    %4944 = vmatprep.subr.mxu0 0.0
    %4945 = vmatpush1.msra.mxu0 0.0
    %4946 = vmatprep.subr.mxu0 0.0
    %4947 = vmatpush1.msra.mxu0 0.0
    %4948 = vmatprep.subr.mxu0 0.0
    %4949 = vmatpush1.msra.mxu0 0.0
    %4950 = vmatprep.subr.mxu0 0.0
    %4951 = vmatpush1.msra.mxu0 0.0
    %4952 = vmatprep.subr.mxu0 0.0
    %4953 = vmatpush1.msra.mxu0 0.0
    %4954 = vmatprep.subr.mxu0 0.0
    %4955 = vmatpush1.msra.mxu0 0.0
    %4956 = vmatprep.subr.mxu0 0.0
    %4957 = vmatpush1.msra.mxu0 0.0
    %4958 = vmatprep.subr.mxu0 0.0
    %4959 = vmatpush1.msra.mxu0 0.0
    %4960 = vmatprep.subr.mxu0 0.0
    %4961 = vmatpush1.msra.mxu0 0.0
    %4962 = vmatprep.subr.mxu0 0.0
    %4963 = vmatpush1.msra.mxu0 0.0
    %4964 = vmatprep.subr.mxu0 0.0
    %4965 = vmatpush1.msra.mxu0 0.0
    %4966 = vmatprep.subr.mxu0 0.0
    %4967 = vmatpush1.msra.mxu0 0.0
    %4968 = vmatprep.subr.mxu0 0.0
    %4969 = vmatpush1.msra.mxu0 0.0
    %4970 = vmatprep.subr.mxu0 0.0
    %4971 = vmatpush1.msra.mxu0 0.0
    %4972 = vmatprep.subr.mxu0 0.0
    %4973 = vmatpush1.msra.mxu0 0.0
    %4974 = vmatprep.subr.mxu0 0.0
    %4975 = vmatpush1.msra.mxu0 0.0
    %4976 = vmatprep.subr.mxu0 0.0
    %4977 = vmatpush1.msra.mxu0 0.0
    %4978 = vmatprep.subr.mxu0 0.0
    %4979 = vmatpush1.msra.mxu0 0.0
    %4980 = vmatprep.subr.mxu0 0.0
    %4981 = vmatpush1.msra.mxu0 0.0
    %4982 = vmatprep.mubr.f32.mxu0 0.0
    %4983 = vmatmul.mubr.f32.gmra.mrb[0].mxu0 %v1140
    %v4984 = vpop.f32.mrb[0].mxu0
    %v4985 = vadd.f32 0.0, %v4984
    %v4986 = vpop.f32.mrb[0].mxu0
    %4987 = vdwg.mxu0
    %s4988 = scalar_lea.vmem %s10, 32
    %v4989 = vld [vmem:[%s4988] sm:$0xff]
    %v4990 = vld [vmem:[%s4988 + $0x8] sm:$0xff]
    %v4991 = vld [vmem:[%s4988 + $0x10] sm:$0xff]
    %v4992 = vld [vmem:[%s4988 + $0x18] sm:$0xff]
    %s4993 = scalar_lea.vmem [#allocation7], 32
    %v4994 = vld [vmem:[%s4993] sm:$0xff]
    %v4995 = vld [vmem:[%s4993 + $0x8] sm:$0xff]
    %v4996 = vld [vmem:[%s4993 + $0x10] sm:$0xff]
    %v4997 = vld [vmem:[%s4993 + $0x18] sm:$0xff]
    %v4999 = vsel %vm521, %v3935, 0
    %v5002 = vsel %vm521, %v4005, 0
    %v5005 = vsel %vm521, %v4075, 0
    %v5008 = vsel %vm521, %v4145, 0
    %v5011 = vsel %vm521, %v4215, 0
    %v5014 = vsel %vm521, %v4285, 0
    %v5017 = vsel %vm521, %v4355, 0
    %v5020 = vsel %vm521, %v4425, 0
    %5022 = vmatprep.subr.mxu0 0.0
    %5023 = vmatpush1.msra.mxu0 %v4994
    %5024 = vmatprep.subr.mxu0 0.0
    %5025 = vmatpush1.msra.mxu0 %v4995
    %5026 = vmatprep.subr.mxu0 0.0
    %5027 = vmatpush1.msra.mxu0 %v4996
    %5028 = vmatprep.subr.mxu0 0.0
    %5029 = vmatpush1.msra.mxu0 %v4997
    %5030 = vmatprep.subr.mxu0 0.0
    %5031 = vmatpush1.msra.mxu0 0.0
    %5032 = vmatprep.subr.mxu0 0.0
    %5033 = vmatpush1.msra.mxu0 0.0
    %5034 = vmatprep.subr.mxu0 0.0
    %5035 = vmatpush1.msra.mxu0 0.0
    %5036 = vmatprep.subr.mxu0 0.0
    %5037 = vmatpush1.msra.mxu0 0.0
    %5038 = vmatprep.subr.mxu0 0.0
    %5039 = vmatpush1.msra.mxu0 0.0
    %5040 = vmatprep.subr.mxu0 0.0
    %5041 = vmatpush1.msra.mxu0 0.0
    %5042 = vmatprep.subr.mxu0 0.0
    %5043 = vmatpush1.msra.mxu0 0.0
    %5044 = vmatprep.subr.mxu0 0.0
    %5045 = vmatpush1.msra.mxu0 0.0
    %5046 = vmatprep.subr.mxu0 0.0
    %5047 = vmatpush1.msra.mxu0 0.0
    %5048 = vmatprep.subr.mxu0 0.0
    %5049 = vmatpush1.msra.mxu0 0.0
    %5050 = vmatprep.subr.mxu0 0.0
    %5051 = vmatpush1.msra.mxu0 0.0
    %5052 = vmatprep.subr.mxu0 0.0
    %5053 = vmatpush1.msra.mxu0 0.0
    %5054 = vmatprep.subr.mxu0 0.0
    %5055 = vmatpush1.msra.mxu0 0.0
    %5056 = vmatprep.subr.mxu0 0.0
    %5057 = vmatpush1.msra.mxu0 0.0
    %5058 = vmatprep.subr.mxu0 0.0
    %5059 = vmatpush1.msra.mxu0 0.0
    %5060 = vmatprep.subr.mxu0 0.0
    %5061 = vmatpush1.msra.mxu0 0.0
    %5062 = vmatprep.subr.mxu0 0.0
    %5063 = vmatpush1.msra.mxu0 0.0
    %5064 = vmatprep.subr.mxu0 0.0
    %5065 = vmatpush1.msra.mxu0 0.0
    %5066 = vmatprep.subr.mxu0 0.0
    %5067 = vmatpush1.msra.mxu0 0.0
    %5068 = vmatprep.subr.mxu0 0.0
    %5069 = vmatpush1.msra.mxu0 0.0
    %5070 = vmatprep.subr.mxu0 0.0
    %5071 = vmatpush1.msra.mxu0 0.0
    %5072 = vmatprep.subr.mxu0 0.0
    %5073 = vmatpush1.msra.mxu0 0.0
    %5074 = vmatprep.subr.mxu0 0.0
    %5075 = vmatpush1.msra.mxu0 0.0
    %5076 = vmatprep.subr.mxu0 0.0
    %5077 = vmatpush1.msra.mxu0 0.0
    %5078 = vmatprep.subr.mxu0 0.0
    %5079 = vmatpush1.msra.mxu0 0.0
    %5080 = vmatprep.subr.mxu0 0.0
    %5081 = vmatpush1.msra.mxu0 0.0
    %5082 = vmatprep.subr.mxu0 0.0
    %5083 = vmatpush1.msra.mxu0 0.0
    %5084 = vmatprep.subr.mxu0 0.0
    %5085 = vmatpush1.msra.mxu0 0.0
    %5086 = vmatprep.mubr.f32.mxu0 0.0
    %5087 = vmatmul.mubr.f32.gmra.mrb[0].mxu0 %v4999
    %v5088 = vpop.f32.mrb[0].mxu0
    %v5089 = vadd.f32 0.0, %v5088
    %v5090 = vpop.f32.mrb[0].mxu0
    %5091 = vmatprep.mubr.f32.mxu0 0.0
    %5092 = vmatmul.mubr.f32.gmra.mrb[0].mxu0 %v5002
    %v5093 = vpop.f32.mrb[0].mxu0
    %v5094 = vadd.f32 0.0, %v5093
    %v5095 = vpop.f32.mrb[0].mxu0
    %5096 = vmatprep.mubr.f32.mxu0 0.0
    %5097 = vmatmul.mubr.f32.gmra.mrb[0].mxu0 %v5005
    %v5098 = vpop.f32.mrb[0].mxu0
    %v5099 = vadd.f32 0.0, %v5098
    %v5100 = vpop.f32.mrb[0].mxu0
    %5101 = vmatprep.mubr.f32.mxu0 0.0
    %5102 = vmatmul.mubr.f32.gmra.mrb[0].mxu0 %v5008
    %v5103 = vpop.f32.mrb[0].mxu0
    %v5104 = vadd.f32 0.0, %v5103
    %v5105 = vpop.f32.mrb[0].mxu0
    %5106 = vmatprep.mubr.f32.mxu0 0.0
    %5107 = vmatmul.mubr.f32.gmra.mrb[0].mxu0 %v5011
    %v5108 = vpop.f32.mrb[0].mxu0
    %v5109 = vadd.f32 0.0, %v5108
    %v5110 = vpop.f32.mrb[0].mxu0
    %5111 = vmatprep.mubr.f32.mxu0 0.0
    %5112 = vmatmul.mubr.f32.gmra.mrb[0].mxu0 %v5014
    %v5113 = vpop.f32.mrb[0].mxu0
    %v5114 = vadd.f32 0.0, %v5113
    %v5115 = vpop.f32.mrb[0].mxu0
    %5116 = vmatprep.mubr.f32.mxu0 0.0
    %5117 = vmatmul.mubr.f32.gmra.mrb[0].mxu0 %v5017
    %v5118 = vpop.f32.mrb[0].mxu0
    %v5119 = vadd.f32 0.0, %v5118
    %v5120 = vpop.f32.mrb[0].mxu0
    %5121 = vmatprep.mubr.f32.mxu0 0.0
    %5122 = vmatmul.mubr.f32.gmra.mrb[0].mxu0 %v5020
    %v5123 = vpop.f32.mrb[0].mxu0
    %v5124 = vadd.f32 0.0, %v5123
    %v5125 = vpop.f32.mrb[0].mxu0
    %5126 = vdwg.mxu0
    %5127 = vmatprep.subr.mxu0 0.0
    %5128 = vmatpush1.msra.mxu0 %v4989
    %5129 = vmatprep.subr.mxu0 0.0
    %5130 = vmatpush1.msra.mxu0 %v4990
    %5131 = vmatprep.subr.mxu0 0.0
    %5132 = vmatpush1.msra.mxu0 %v4991
    %5133 = vmatprep.subr.mxu0 0.0
    %5134 = vmatpush1.msra.mxu0 %v4992
    %5135 = vmatprep.subr.mxu0 0.0
    %5136 = vmatpush1.msra.mxu0 0.0
    %5137 = vmatprep.subr.mxu0 0.0
    %5138 = vmatpush1.msra.mxu0 0.0
    %5139 = vmatprep.subr.mxu0 0.0
    %5140 = vmatpush1.msra.mxu0 0.0
    %5141 = vmatprep.subr.mxu0 0.0
    %5142 = vmatpush1.msra.mxu0 0.0
    %5143 = vmatprep.subr.mxu0 0.0
    %5144 = vmatpush1.msra.mxu0 0.0
    %5145 = vmatprep.subr.mxu0 0.0
    %5146 = vmatpush1.msra.mxu0 0.0
    %5147 = vmatprep.subr.mxu0 0.0
    %5148 = vmatpush1.msra.mxu0 0.0
    %5149 = vmatprep.subr.mxu0 0.0
    %5150 = vmatpush1.msra.mxu0 0.0
    %5151 = vmatprep.subr.mxu0 0.0
    %5152 = vmatpush1.msra.mxu0 0.0
    %5153 = vmatprep.subr.mxu0 0.0
    %5154 = vmatpush1.msra.mxu0 0.0
    %5155 = vmatprep.subr.mxu0 0.0
    %5156 = vmatpush1.msra.mxu0 0.0
    %5157 = vmatprep.subr.mxu0 0.0
    %5158 = vmatpush1.msra.mxu0 0.0
    %5159 = vmatprep.subr.mxu0 0.0
    %5160 = vmatpush1.msra.mxu0 0.0
    %5161 = vmatprep.subr.mxu0 0.0
    %5162 = vmatpush1.msra.mxu0 0.0
    %5163 = vmatprep.subr.mxu0 0.0
    %5164 = vmatpush1.msra.mxu0 0.0
    %5165 = vmatprep.subr.mxu0 0.0
    %5166 = vmatpush1.msra.mxu0 0.0
    %5167 = vmatprep.subr.mxu0 0.0
    %5168 = vmatpush1.msra.mxu0 0.0
    %5169 = vmatprep.subr.mxu0 0.0
    %5170 = vmatpush1.msra.mxu0 0.0
    %5171 = vmatprep.subr.mxu0 0.0
    %5172 = vmatpush1.msra.mxu0 0.0
    %5173 = vmatprep.subr.mxu0 0.0
    %5174 = vmatpush1.msra.mxu0 0.0
    %5175 = vmatprep.subr.mxu0 0.0
    %5176 = vmatpush1.msra.mxu0 0.0
    %5177 = vmatprep.subr.mxu0 0.0
    %5178 = vmatpush1.msra.mxu0 0.0
    %5179 = vmatprep.subr.mxu0 0.0
    %5180 = vmatpush1.msra.mxu0 0.0
    %5181 = vmatprep.subr.mxu0 0.0
    %5182 = vmatpush1.msra.mxu0 0.0
    %5183 = vmatprep.subr.mxu0 0.0
    %5184 = vmatpush1.msra.mxu0 0.0
    %5185 = vmatprep.subr.mxu0 0.0
    %5186 = vmatpush1.msra.mxu0 0.0
    %5187 = vmatprep.subr.mxu0 0.0
    %5188 = vmatpush1.msra.mxu0 0.0
    %5189 = vmatprep.subr.mxu0 0.0
    %5190 = vmatpush1.msra.mxu0 0.0
    %5191 = vmatprep.mubr.f32.mxu0 0.0
    %5192 = vmatmul.mubr.f32.gmra.mrb[0].mxu0 %v3744
    %v5193 = vpop.f32.mrb[0].mxu0
    %v5194 = vadd.f32 %v5089, %v5193
    %v5195 = vpop.f32.mrb[0].mxu0
    %5196 = vmatprep.mubr.f32.mxu0 0.0
    %5197 = vmatmul.mubr.f32.gmra.mrb[0].mxu0 %v3747
    %v5198 = vpop.f32.mrb[0].mxu0
    %v5199 = vadd.f32 %v5094, %v5198
    %v5200 = vpop.f32.mrb[0].mxu0
    %5201 = vmatprep.mubr.f32.mxu0 0.0
    %5202 = vmatmul.mubr.f32.gmra.mrb[0].mxu0 %v3750
    %v5203 = vpop.f32.mrb[0].mxu0
    %v5204 = vadd.f32 %v5099, %v5203
    %v5205 = vpop.f32.mrb[0].mxu0
    %5206 = vmatprep.mubr.f32.mxu0 0.0
    %5207 = vmatmul.mubr.f32.gmra.mrb[0].mxu0 %v3753
    %v5208 = vpop.f32.mrb[0].mxu0
    %v5209 = vadd.f32 %v5104, %v5208
    %v5210 = vpop.f32.mrb[0].mxu0
    %5211 = vmatprep.mubr.f32.mxu0 0.0
    %5212 = vmatmul.mubr.f32.gmra.mrb[0].mxu0 %v3756
    %v5213 = vpop.f32.mrb[0].mxu0
    %v5214 = vadd.f32 %v5109, %v5213
    %v5215 = vpop.f32.mrb[0].mxu0
    %5216 = vmatprep.mubr.f32.mxu0 0.0
    %5217 = vmatmul.mubr.f32.gmra.mrb[0].mxu0 %v3759
    %v5218 = vpop.f32.mrb[0].mxu0
    %v5219 = vadd.f32 %v5114, %v5218
    %v5220 = vpop.f32.mrb[0].mxu0
    %5221 = vmatprep.mubr.f32.mxu0 0.0
    %5222 = vmatmul.mubr.f32.gmra.mrb[0].mxu0 %v3762
    %v5223 = vpop.f32.mrb[0].mxu0
    %v5224 = vadd.f32 %v5119, %v5223
    %v5225 = vpop.f32.mrb[0].mxu0
    %5226 = vmatprep.mubr.f32.mxu0 0.0
    %5227 = vmatmul.mubr.f32.gmra.mrb[0].mxu0 %v3765
    %v5228 = vpop.f32.mrb[0].mxu0
    %v5229 = vadd.f32 %v5124, %v5228
    %v5230 = vpop.f32.mrb[0].mxu0
    %5231 = vdwg.mxu0
    %s5232 = scalar_lea.vmem [#allocation9], 32
    %v5233 = vld [vmem:[%s5232] sm:$0xff]
    %v5234 = vld [vmem:[%s5232 + $0x8] sm:$0xff]
    %v5235 = vld [vmem:[%s5232 + $0x10] sm:$0xff]
    %v5236 = vld [vmem:[%s5232 + $0x18] sm:$0xff]
    %v5238 = vsel %vm521, %v4495, 0
    %v5241 = vsel %vm521, %v4565, 0
    %v5244 = vsel %vm521, %v4635, 0
    %v5247 = vsel %vm521, %v4705, 0
    %v5250 = vsel %vm521, %v4775, 0
    %v5253 = vsel %vm521, %v4845, 0
    %v5256 = vsel %vm521, %v4915, 0
    %v5259 = vsel %vm521, %v4985, 0
    %5261 = vmatprep.subr.mxu0 0.0
    %5262 = vmatpush1.msra.mxu0 %v5233
    %5263 = vmatprep.subr.mxu0 0.0
    %5264 = vmatpush1.msra.mxu0 %v5234
    %5265 = vmatprep.subr.mxu0 0.0
    %5266 = vmatpush1.msra.mxu0 %v5235
    %5267 = vmatprep.subr.mxu0 0.0
    %5268 = vmatpush1.msra.mxu0 %v5236
    %5269 = vmatprep.subr.mxu0 0.0
    %5270 = vmatpush1.msra.mxu0 0.0
    %5271 = vmatprep.subr.mxu0 0.0
    %5272 = vmatpush1.msra.mxu0 0.0
    %5273 = vmatprep.subr.mxu0 0.0
    %5274 = vmatpush1.msra.mxu0 0.0
    %5275 = vmatprep.subr.mxu0 0.0
    %5276 = vmatpush1.msra.mxu0 0.0
    %5277 = vmatprep.subr.mxu0 0.0
    %5278 = vmatpush1.msra.mxu0 0.0
    %5279 = vmatprep.subr.mxu0 0.0
    %5280 = vmatpush1.msra.mxu0 0.0
    %5281 = vmatprep.subr.mxu0 0.0
    %5282 = vmatpush1.msra.mxu0 0.0
    %5283 = vmatprep.subr.mxu0 0.0
    %5284 = vmatpush1.msra.mxu0 0.0
    %5285 = vmatprep.subr.mxu0 0.0
    %5286 = vmatpush1.msra.mxu0 0.0
    %5287 = vmatprep.subr.mxu0 0.0
    %5288 = vmatpush1.msra.mxu0 0.0
    %5289 = vmatprep.subr.mxu0 0.0
    %5290 = vmatpush1.msra.mxu0 0.0
    %5291 = vmatprep.subr.mxu0 0.0
    %5292 = vmatpush1.msra.mxu0 0.0
    %5293 = vmatprep.subr.mxu0 0.0
    %5294 = vmatpush1.msra.mxu0 0.0
    %5295 = vmatprep.subr.mxu0 0.0
    %5296 = vmatpush1.msra.mxu0 0.0
    %5297 = vmatprep.subr.mxu0 0.0
    %5298 = vmatpush1.msra.mxu0 0.0
    %5299 = vmatprep.subr.mxu0 0.0
    %5300 = vmatpush1.msra.mxu0 0.0
    %5301 = vmatprep.subr.mxu0 0.0
    %5302 = vmatpush1.msra.mxu0 0.0
    %5303 = vmatprep.subr.mxu0 0.0
    %5304 = vmatpush1.msra.mxu0 0.0
    %5305 = vmatprep.subr.mxu0 0.0
    %5306 = vmatpush1.msra.mxu0 0.0
    %5307 = vmatprep.subr.mxu0 0.0
    %5308 = vmatpush1.msra.mxu0 0.0
    %5309 = vmatprep.subr.mxu0 0.0
    %5310 = vmatpush1.msra.mxu0 0.0
    %5311 = vmatprep.subr.mxu0 0.0
    %5312 = vmatpush1.msra.mxu0 0.0
    %5313 = vmatprep.subr.mxu0 0.0
    %5314 = vmatpush1.msra.mxu0 0.0
    %5315 = vmatprep.subr.mxu0 0.0
    %5316 = vmatpush1.msra.mxu0 0.0
    %5317 = vmatprep.subr.mxu0 0.0
    %5318 = vmatpush1.msra.mxu0 0.0
    %5319 = vmatprep.subr.mxu0 0.0
    %5320 = vmatpush1.msra.mxu0 0.0
    %5321 = vmatprep.subr.mxu0 0.0
    %5322 = vmatpush1.msra.mxu0 0.0
    %5323 = vmatprep.subr.mxu0 0.0
    %5324 = vmatpush1.msra.mxu0 0.0
    %5325 = vmatprep.mubr.f32.mxu0 0.0
    %5326 = vmatmul.mubr.f32.gmra.mrb[0].mxu0 %v5238
    %v5327 = vpop.f32.mrb[0].mxu0
    %v5328 = vadd.f32 0.0, %v5327
    %v5329 = vpop.f32.mrb[0].mxu0
    %5330 = vmatprep.mubr.f32.mxu0 0.0
    %5331 = vmatmul.mubr.f32.gmra.mrb[0].mxu0 %v5241
    %v5332 = vpop.f32.mrb[0].mxu0
    %v5333 = vadd.f32 0.0, %v5332
    %v5334 = vpop.f32.mrb[0].mxu0
    %5335 = vmatprep.mubr.f32.mxu0 0.0
    %5336 = vmatmul.mubr.f32.gmra.mrb[0].mxu0 %v5244
    %v5337 = vpop.f32.mrb[0].mxu0
    %v5338 = vadd.f32 0.0, %v5337
    %v5339 = vpop.f32.mrb[0].mxu0
    %5340 = vmatprep.mubr.f32.mxu0 0.0
    %5341 = vmatmul.mubr.f32.gmra.mrb[0].mxu0 %v5247
    %v5342 = vpop.f32.mrb[0].mxu0
    %v5343 = vadd.f32 0.0, %v5342
    %v5344 = vpop.f32.mrb[0].mxu0
    %5345 = vmatprep.mubr.f32.mxu0 0.0
    %5346 = vmatmul.mubr.f32.gmra.mrb[0].mxu0 %v5250
    %v5347 = vpop.f32.mrb[0].mxu0
    %v5348 = vadd.f32 0.0, %v5347
    %v5349 = vpop.f32.mrb[0].mxu0
    %5350 = vmatprep.mubr.f32.mxu0 0.0
    %5351 = vmatmul.mubr.f32.gmra.mrb[0].mxu0 %v5253
    %v5352 = vpop.f32.mrb[0].mxu0
    %v5353 = vadd.f32 0.0, %v5352
    %v5354 = vpop.f32.mrb[0].mxu0
    %5355 = vmatprep.mubr.f32.mxu0 0.0
    %5356 = vmatmul.mubr.f32.gmra.mrb[0].mxu0 %v5256
    %v5357 = vpop.f32.mrb[0].mxu0
    %v5358 = vadd.f32 0.0, %v5357
    %v5359 = vpop.f32.mrb[0].mxu0
    %5360 = vmatprep.mubr.f32.mxu0 0.0
    %5361 = vmatmul.mubr.f32.gmra.mrb[0].mxu0 %v5259
    %v5362 = vpop.f32.mrb[0].mxu0
    %v5363 = vadd.f32 0.0, %v5362
    %v5364 = vpop.f32.mrb[0].mxu0
    %5365 = vdwg.mxu0
    %v5366 = vadd.f32 %v5194, %v5328
    %v5367 = vadd.f32 %v5199, %v5333
    %v5368 = vadd.f32 %v5204, %v5338
    %v5369 = vadd.f32 %v5209, %v5343
    %v5370 = vadd.f32 %v5214, %v5348
    %v5371 = vadd.f32 %v5219, %v5353
    %v5372 = vadd.f32 %v5224, %v5358
    %v5373 = vadd.f32 %v5229, %v5363
    %s5374 = scalar_lea.vmem [#allocation10], 1
    %v5375 = vld [vmem:[%s5374] sm:$0x1]
    %v5377 = vlaneseq
    %v5378 = vshrl.u32 %v5377, 7
    %v5379 = vsub.s32 0, %v5378
    %v5380 = vrot.slane %v5375, %v5379
    %v5382 = vadd.f32 %v5366, %v5380
    %v5383 = vadd.f32 %v5367, %v5380
    %v5384 = vadd.f32 %v5368, %v5380
    %v5385 = vadd.f32 %v5369, %v5380
    %v5386 = vadd.f32 %v5370, %v5380
    %v5387 = vadd.f32 %v5371, %v5380
    %v5388 = vadd.f32 %v5372, %v5380
    %v5389 = vadd.f32 %v5373, %v5380
    %v5390 = vadd.f32 %v5382, %v3352
    %v5391 = vadd.f32 %v5383, %v3353
    %v5392 = vadd.f32 %v5384, %v3354
    %v5393 = vadd.f32 %v5385, %v3355
    %v5394 = vadd.f32 %v5386, %v3358
    %v5395 = vadd.f32 %v5387, %v3359
    %v5396 = vadd.f32 %v5388, %v3360
    %v5397 = vadd.f32 %v5389, %v3361
    %s5398 = scalar_lea.vmem [#allocation12], 1
    %v5399 = vld [vmem:[%s5398] sm:$0x1]
    %v5401 = vlaneseq
    %v5402 = vshrl.u32 %v5401, 7
    %v5403 = vsub.s32 0, %v5402
    %v5404 = vrot.slane %v5399, %v5403
    %v5406 = vmul.f32 %v5390, %v5404
    %v5407 = vmul.f32 %v5391, %v5404
    %v5408 = vmul.f32 %v5392, %v5404
    %v5409 = vmul.f32 %v5393, %v5404
    %v5410 = vmul.f32 %v5394, %v5404
    %v5411 = vmul.f32 %v5395, %v5404
    %v5412 = vmul.f32 %v5396, %v5404
    %v5413 = vmul.f32 %v5397, %v5404
    %s5414 = scalar_lea.vmem [#allocation13], 1
    %v5415 = vld [vmem:[%s5414] sm:$0x1]
    %v5417 = vlaneseq
    %v5418 = vshrl.u32 %v5417, 7
    %v5419 = vsub.s32 0, %v5418
    %v5420 = vrot.slane %v5415, %v5419
    %v5422 = vadd.f32 %v5406, %v5420
    %v5423 = vadd.f32 %v5407, %v5420
    %v5424 = vadd.f32 %v5408, %v5420
    %v5425 = vadd.f32 %v5409, %v5420
    %v5426 = vadd.f32 %v5410, %v5420
    %v5427 = vadd.f32 %v5411, %v5420
    %v5428 = vadd.f32 %v5412, %v5420
    %v5429 = vadd.f32 %v5413, %v5420
    %s5430 = scalar_lea.vmem %s5, 64
    %v5431 = vld [vmem:[%s5430] sm:$0xff]
    %v5432 = vld [vmem:[%s5430 + $0x8] sm:$0xff]
    %v5433 = vld [vmem:[%s5430 + $0x10] sm:$0xff]
    %v5434 = vld [vmem:[%s5430 + $0x18] sm:$0xff]
    %s5435 = scalar_lea.vmem %s6, 64
    %v5436 = vld [vmem:[%s5435] sm:$0xff]
    %v5437 = vld [vmem:[%s5435 + $0x8] sm:$0xff]
    %v5438 = vld [vmem:[%s5435 + $0x10] sm:$0xff]
    %v5439 = vld [vmem:[%s5435 + $0x18] sm:$0xff]
    %v5441 = vsel %vm521, %v5423, 0
    %v5444 = vsel %vm521, %v5424, 0
    %v5447 = vsel %vm521, %v5425, 0
    %v5450 = vsel %vm521, %v5427, 0
    %v5453 = vsel %vm521, %v5428, 0
    %v5456 = vsel %vm521, %v5429, 0
    %5458 = vmatprep.subr.mxu0 0.0
    %5459 = vmatpush1.msra.mxu0 %v5436
    %5460 = vmatprep.subr.mxu0 0.0
    %5461 = vmatpush1.msra.mxu0 %v5437
    %5462 = vmatprep.subr.mxu0 0.0
    %5463 = vmatpush1.msra.mxu0 %v5438
    %5464 = vmatprep.subr.mxu0 0.0
    %5465 = vmatpush1.msra.mxu0 %v5439
    %5466 = vmatprep.subr.mxu0 0.0
    %5467 = vmatpush1.msra.mxu0 0.0
    %5468 = vmatprep.subr.mxu0 0.0
    %5469 = vmatpush1.msra.mxu0 0.0
    %5470 = vmatprep.subr.mxu0 0.0
    %5471 = vmatpush1.msra.mxu0 0.0
    %5472 = vmatprep.subr.mxu0 0.0
    %5473 = vmatpush1.msra.mxu0 0.0
    %5474 = vmatprep.subr.mxu0 0.0
    %5475 = vmatpush1.msra.mxu0 0.0
    %5476 = vmatprep.subr.mxu0 0.0
    %5477 = vmatpush1.msra.mxu0 0.0
    %5478 = vmatprep.subr.mxu0 0.0
    %5479 = vmatpush1.msra.mxu0 0.0
    %5480 = vmatprep.subr.mxu0 0.0
    %5481 = vmatpush1.msra.mxu0 0.0
    %5482 = vmatprep.subr.mxu0 0.0
    %5483 = vmatpush1.msra.mxu0 0.0
    %5484 = vmatprep.subr.mxu0 0.0
    %5485 = vmatpush1.msra.mxu0 0.0
    %5486 = vmatprep.subr.mxu0 0.0
    %5487 = vmatpush1.msra.mxu0 0.0
    %5488 = vmatprep.subr.mxu0 0.0
    %5489 = vmatpush1.msra.mxu0 0.0
    %5490 = vmatprep.subr.mxu0 0.0
    %5491 = vmatpush1.msra.mxu0 0.0
    %5492 = vmatprep.subr.mxu0 0.0
    %5493 = vmatpush1.msra.mxu0 0.0
    %5494 = vmatprep.subr.mxu0 0.0
    %5495 = vmatpush1.msra.mxu0 0.0
    %5496 = vmatprep.subr.mxu0 0.0
    %5497 = vmatpush1.msra.mxu0 0.0
    %5498 = vmatprep.subr.mxu0 0.0
    %5499 = vmatpush1.msra.mxu0 0.0
    %5500 = vmatprep.subr.mxu0 0.0
    %5501 = vmatpush1.msra.mxu0 0.0
    %5502 = vmatprep.subr.mxu0 0.0
    %5503 = vmatpush1.msra.mxu0 0.0
    %5504 = vmatprep.subr.mxu0 0.0
    %5505 = vmatpush1.msra.mxu0 0.0
    %5506 = vmatprep.subr.mxu0 0.0
    %5507 = vmatpush1.msra.mxu0 0.0
    %5508 = vmatprep.subr.mxu0 0.0
    %5509 = vmatpush1.msra.mxu0 0.0
    %5510 = vmatprep.subr.mxu0 0.0
    %5511 = vmatpush1.msra.mxu0 0.0
    %5512 = vmatprep.subr.mxu0 0.0
    %5513 = vmatpush1.msra.mxu0 0.0
    %5514 = vmatprep.subr.mxu0 0.0
    %5515 = vmatpush1.msra.mxu0 0.0
    %5516 = vmatprep.subr.mxu0 0.0
    %5517 = vmatpush1.msra.mxu0 0.0
    %5518 = vmatprep.subr.mxu0 0.0
    %5519 = vmatpush1.msra.mxu0 0.0
    %5520 = vmatprep.subr.mxu0 0.0
    %5521 = vmatpush1.msra.mxu0 0.0
    %5522 = vmatprep.mubr.f32.mxu0 0.0
    %5523 = vmatmul.mubr.f32.gmra.mrb[0].mxu0 %v5441
    %v5524 = vpop.f32.mrb[0].mxu0
    %v5525 = vadd.f32 0.0, %v5524
    %v5526 = vpop.f32.mrb[0].mxu0
    %5527 = vmatprep.mubr.f32.mxu0 0.0
    %5528 = vmatmul.mubr.f32.gmra.mrb[0].mxu0 %v5444
    %v5529 = vpop.f32.mrb[0].mxu0
    %v5530 = vadd.f32 0.0, %v5529
    %v5531 = vpop.f32.mrb[0].mxu0
    %5532 = vmatprep.mubr.f32.mxu0 0.0
    %5533 = vmatmul.mubr.f32.gmra.mrb[0].mxu0 %v5447
    %v5534 = vpop.f32.mrb[0].mxu0
    %v5535 = vadd.f32 0.0, %v5534
    %v5536 = vpop.f32.mrb[0].mxu0
    %5537 = vmatprep.mubr.f32.mxu0 0.0
    %5538 = vmatmul.mubr.f32.gmra.mrb[0].mxu0 %v5450
    %v5539 = vpop.f32.mrb[0].mxu0
    %v5540 = vadd.f32 0.0, %v5539
    %v5541 = vpop.f32.mrb[0].mxu0
    %5542 = vmatprep.mubr.f32.mxu0 0.0
    %5543 = vmatmul.mubr.f32.gmra.mrb[0].mxu0 %v5453
    %v5544 = vpop.f32.mrb[0].mxu0
    %v5545 = vadd.f32 0.0, %v5544
    %v5546 = vpop.f32.mrb[0].mxu0
    %5547 = vmatprep.mubr.f32.mxu0 0.0
    %5548 = vmatmul.mubr.f32.gmra.mrb[0].mxu0 %v5456
    %v5549 = vpop.f32.mrb[0].mxu0
    %v5550 = vadd.f32 0.0, %v5549
    %v5551 = vpop.f32.mrb[0].mxu0
    %5552 = vdwg.mxu0
    %v5554 = vsel %vm521, %v5422, 0
    %v5557 = vsel %vm521, %v5426, 0
    %5559 = vmatprep.subr.mxu0 0.0
    %5560 = vmatpush1.msra.mxu0 %v5431
    %5561 = vmatprep.subr.mxu0 0.0
    %5562 = vmatpush1.msra.mxu0 %v5432
    %5563 = vmatprep.subr.mxu0 0.0
    %5564 = vmatpush1.msra.mxu0 %v5433
    %5565 = vmatprep.subr.mxu0 0.0
    %5566 = vmatpush1.msra.mxu0 %v5434
    %5567 = vmatprep.subr.mxu0 0.0
    %5568 = vmatpush1.msra.mxu0 0.0
    %5569 = vmatprep.subr.mxu0 0.0
    %5570 = vmatpush1.msra.mxu0 0.0
    %5571 = vmatprep.subr.mxu0 0.0
    %5572 = vmatpush1.msra.mxu0 0.0
    %5573 = vmatprep.subr.mxu0 0.0
    %5574 = vmatpush1.msra.mxu0 0.0
    %5575 = vmatprep.subr.mxu0 0.0
    %5576 = vmatpush1.msra.mxu0 0.0
    %5577 = vmatprep.subr.mxu0 0.0
    %5578 = vmatpush1.msra.mxu0 0.0
    %5579 = vmatprep.subr.mxu0 0.0
    %5580 = vmatpush1.msra.mxu0 0.0
    %5581 = vmatprep.subr.mxu0 0.0
    %5582 = vmatpush1.msra.mxu0 0.0
    %5583 = vmatprep.subr.mxu0 0.0
    %5584 = vmatpush1.msra.mxu0 0.0
    %5585 = vmatprep.subr.mxu0 0.0
    %5586 = vmatpush1.msra.mxu0 0.0
    %5587 = vmatprep.subr.mxu0 0.0
    %5588 = vmatpush1.msra.mxu0 0.0
    %5589 = vmatprep.subr.mxu0 0.0
    %5590 = vmatpush1.msra.mxu0 0.0
    %5591 = vmatprep.subr.mxu0 0.0
    %5592 = vmatpush1.msra.mxu0 0.0
    %5593 = vmatprep.subr.mxu0 0.0
    %5594 = vmatpush1.msra.mxu0 0.0
    %5595 = vmatprep.subr.mxu0 0.0
    %5596 = vmatpush1.msra.mxu0 0.0
    %5597 = vmatprep.subr.mxu0 0.0
    %5598 = vmatpush1.msra.mxu0 0.0
    %5599 = vmatprep.subr.mxu0 0.0
    %5600 = vmatpush1.msra.mxu0 0.0
    %5601 = vmatprep.subr.mxu0 0.0
    %5602 = vmatpush1.msra.mxu0 0.0
    %5603 = vmatprep.subr.mxu0 0.0
    %5604 = vmatpush1.msra.mxu0 0.0
    %5605 = vmatprep.subr.mxu0 0.0
    %5606 = vmatpush1.msra.mxu0 0.0
    %5607 = vmatprep.subr.mxu0 0.0
    %5608 = vmatpush1.msra.mxu0 0.0
    %5609 = vmatprep.subr.mxu0 0.0
    %5610 = vmatpush1.msra.mxu0 0.0
    %5611 = vmatprep.subr.mxu0 0.0
    %5612 = vmatpush1.msra.mxu0 0.0
    %5613 = vmatprep.subr.mxu0 0.0
    %5614 = vmatpush1.msra.mxu0 0.0
    %5615 = vmatprep.subr.mxu0 0.0
    %5616 = vmatpush1.msra.mxu0 0.0
    %5617 = vmatprep.subr.mxu0 0.0
    %5618 = vmatpush1.msra.mxu0 0.0
    %5619 = vmatprep.subr.mxu0 0.0
    %5620 = vmatpush1.msra.mxu0 0.0
    %5621 = vmatprep.subr.mxu0 0.0
    %5622 = vmatpush1.msra.mxu0 0.0
    %5623 = vmatprep.mubr.f32.mxu0 0.0
    %5624 = vmatmul.mubr.f32.gmra.mrb[0].mxu0 %v5554
    %v5625 = vpop.f32.mrb[0].mxu0
    %v5626 = vadd.f32 %v5525, %v5625
    %v5627 = vpop.f32.mrb[0].mxu0
    %5628 = vmatprep.mubr.f32.mxu0 0.0
    %5629 = vmatmul.mubr.f32.gmra.mrb[0].mxu0 %v5441
    %v5630 = vpop.f32.mrb[0].mxu0
    %v5631 = vadd.f32 %v5530, %v5630
    %v5632 = vpop.f32.mrb[0].mxu0
    %5633 = vmatprep.mubr.f32.mxu0 0.0
    %5634 = vmatmul.mubr.f32.gmra.mrb[0].mxu0 %v5444
    %v5635 = vpop.f32.mrb[0].mxu0
    %v5636 = vadd.f32 %v5535, %v5635
    %v5637 = vpop.f32.mrb[0].mxu0
    %5638 = vmatprep.mubr.f32.mxu0 0.0
    %5639 = vmatmul.mubr.f32.gmra.mrb[0].mxu0 %v5557
    %v5640 = vpop.f32.mrb[0].mxu0
    %v5641 = vadd.f32 %v5540, %v5640
    %v5642 = vpop.f32.mrb[0].mxu0
    %5643 = vmatprep.mubr.f32.mxu0 0.0
    %5644 = vmatmul.mubr.f32.gmra.mrb[0].mxu0 %v5450
    %v5645 = vpop.f32.mrb[0].mxu0
    %v5646 = vadd.f32 %v5545, %v5645
    %v5647 = vpop.f32.mrb[0].mxu0
    %5648 = vmatprep.mubr.f32.mxu0 0.0
    %5649 = vmatmul.mubr.f32.gmra.mrb[0].mxu0 %v5453
    %v5650 = vpop.f32.mrb[0].mxu0
    %v5651 = vadd.f32 %v5550, %v5650
    %v5652 = vpop.f32.mrb[0].mxu0
    %5653 = vdwg.mxu0
    %s5654 = scalar_lea.vmem [#allocation4], 2
    %v5655 = vld [vmem:[%s5654] sm:$0x1]
    %v5657 = vlaneseq
    %v5658 = vshrl.u32 %v5657, 7
    %v5659 = vsub.s32 0, %v5658
    %v5660 = vrot.slane %v5655, %v5659
    %v5662 = vadd.f32 %v5626, %v5660
    %v5663 = vadd.f32 %v5631, %v5660
    %v5664 = vadd.f32 %v5636, %v5660
    %v5665 = vadd.f32 %v5641, %v5660
    %v5666 = vadd.f32 %v5646, %v5660
    %v5667 = vadd.f32 %v5651, %v5660
    %v5668 = vtanh.pop %v5662
    %v5669 = vtanh.pop %v5663
    %v5670 = vtanh.pop %v5664
    %v5671 = vtanh.pop %v5665
    %v5672 = vtanh.pop %v5666
    %v5673 = vtanh.pop %v5667
    %v5674 = vxor.u32 %v5662, 2147483648
    %v5675 = vxor.u32 %v5663, 2147483648
    %v5676 = vxor.u32 %v5664, 2147483648
    %v5677 = vxor.u32 %v5665, 2147483648
    %v5678 = vxor.u32 %v5666, 2147483648
    %v5679 = vxor.u32 %v5667, 2147483648
    %v5680 = vmul.f32 %v5674, 1.442695
    %v5681 = vpow.pop %v5680
    %v5682 = vmul.f32 %v5675, 1.442695
    %v5683 = vpow.pop %v5682
    %v5684 = vmul.f32 %v5676, 1.442695
    %v5685 = vpow.pop %v5684
    %v5686 = vmul.f32 %v5677, 1.442695
    %v5687 = vpow.pop %v5686
    %v5688 = vmul.f32 %v5678, 1.442695
    %v5689 = vpow.pop %v5688
    %v5690 = vmul.f32 %v5679, 1.442695
    %v5691 = vpow.pop %v5690
    %v5692 = vadd.f32 %v5681, 1.0
    %v5693 = vadd.f32 %v5683, 1.0
    %v5694 = vadd.f32 %v5685, 1.0
    %v5695 = vadd.f32 %v5687, 1.0
    %v5696 = vadd.f32 %v5689, 1.0
    %v5697 = vadd.f32 %v5691, 1.0
    %v5698 = vrcp.pop %v5692
    %v5699 = vmul.f32 1.0, %v5698
    %v5700 = vrcp.pop %v5693
    %v5701 = vmul.f32 1.0, %v5700
    %v5702 = vrcp.pop %v5694
    %v5703 = vmul.f32 1.0, %v5702
    %v5704 = vrcp.pop %v5695
    %v5705 = vmul.f32 1.0, %v5704
    %v5706 = vrcp.pop %v5696
    %v5707 = vmul.f32 1.0, %v5706
    %v5708 = vrcp.pop %v5697
    %v5709 = vmul.f32 1.0, %v5708
    %5716 = vrot.lane.b32.xlu0 %v5699, 96
    %v5717 = vpop.permute.xlu0 %5716
    %5718 = vrot.lane.b32.xlu0 %v5701, 96
    %v5719 = vpop.permute.xlu0 %5718
    %5720 = vrot.lane.b32.xlu0 %v5703, 96
    %v5721 = vpop.permute.xlu0 %5720
    %5722 = vrot.lane.b32.xlu0 %v5705, 96
    %v5723 = vpop.permute.xlu0 %5722
    %5724 = vrot.lane.b32.xlu0 %v5707, 96
    %v5725 = vpop.permute.xlu0 %5724
    %5726 = vrot.lane.b32.xlu0 %v5709, 96
    %v5727 = vpop.permute.xlu0 %5726
    %v5734 = vmul.f32 %v5668, %v5717
    %v5735 = vmul.f32 %v5669, %v5719
    %v5736 = vmul.f32 %v5670, %v5721
    %v5737 = vmul.f32 %v5671, %v5723
    %v5738 = vmul.f32 %v5672, %v5725
    %v5739 = vmul.f32 %v5673, %v5727
    %s5740 = scalar_lea.vmem %s8, 64
    %v5741 = vld [vmem:[%s5740] sm:$0xff]
    %v5742 = vld [vmem:[%s5740 + $0x8] sm:$0xff]
    %v5743 = vld [vmem:[%s5740 + $0x10] sm:$0xff]
    %v5744 = vld [vmem:[%s5740 + $0x18] sm:$0xff]
    %s5745 = scalar_lea.vmem [#allocation6], 2
    %v5746 = vld [vmem:[%s5745] sm:$0x1]
    %v5748 = vlaneseq
    %v5749 = vshrl.u32 %v5748, 7
    %v5750 = vsub.s32 0, %v5749
    %v5751 = vrot.slane %v5746, %v5750
    %v5754 = vsel %vm521, %v5734, 0
    %v5757 = vsel %vm521, %v5735, 0
    %v5760 = vsel %vm521, %v5736, 0
    %v5763 = vsel %vm521, %v5737, 0
    %v5766 = vsel %vm521, %v5738, 0
    %v5769 = vsel %vm521, %v5739, 0
    %5771 = vmatprep.subr.mxu0 0.0
    %5772 = vmatpush1.msra.mxu0 %v5741
    %5773 = vmatprep.subr.mxu0 0.0
    %5774 = vmatpush1.msra.mxu0 %v5742
    %5775 = vmatprep.subr.mxu0 0.0
    %5776 = vmatpush1.msra.mxu0 %v5743
    %5777 = vmatprep.subr.mxu0 0.0
    %5778 = vmatpush1.msra.mxu0 %v5744
    %5779 = vmatprep.subr.mxu0 0.0
    %5780 = vmatpush1.msra.mxu0 0.0
    %5781 = vmatprep.subr.mxu0 0.0
    %5782 = vmatpush1.msra.mxu0 0.0
    %5783 = vmatprep.subr.mxu0 0.0
    %5784 = vmatpush1.msra.mxu0 0.0
    %5785 = vmatprep.subr.mxu0 0.0
    %5786 = vmatpush1.msra.mxu0 0.0
    %5787 = vmatprep.subr.mxu0 0.0
    %5788 = vmatpush1.msra.mxu0 0.0
    %5789 = vmatprep.subr.mxu0 0.0
    %5790 = vmatpush1.msra.mxu0 0.0
    %5791 = vmatprep.subr.mxu0 0.0
    %5792 = vmatpush1.msra.mxu0 0.0
    %5793 = vmatprep.subr.mxu0 0.0
    %5794 = vmatpush1.msra.mxu0 0.0
    %5795 = vmatprep.subr.mxu0 0.0
    %5796 = vmatpush1.msra.mxu0 0.0
    %5797 = vmatprep.subr.mxu0 0.0
    %5798 = vmatpush1.msra.mxu0 0.0
    %5799 = vmatprep.subr.mxu0 0.0
    %5800 = vmatpush1.msra.mxu0 0.0
    %5801 = vmatprep.subr.mxu0 0.0
    %5802 = vmatpush1.msra.mxu0 0.0
    %5803 = vmatprep.subr.mxu0 0.0
    %5804 = vmatpush1.msra.mxu0 0.0
    %5805 = vmatprep.subr.mxu0 0.0
    %5806 = vmatpush1.msra.mxu0 0.0
    %5807 = vmatprep.subr.mxu0 0.0
    %5808 = vmatpush1.msra.mxu0 0.0
    %5809 = vmatprep.subr.mxu0 0.0
    %5810 = vmatpush1.msra.mxu0 0.0
    %5811 = vmatprep.subr.mxu0 0.0
    %5812 = vmatpush1.msra.mxu0 0.0
    %5813 = vmatprep.subr.mxu0 0.0
    %5814 = vmatpush1.msra.mxu0 0.0
    %5815 = vmatprep.subr.mxu0 0.0
    %5816 = vmatpush1.msra.mxu0 0.0
    %5817 = vmatprep.subr.mxu0 0.0
    %5818 = vmatpush1.msra.mxu0 0.0
    %5819 = vmatprep.subr.mxu0 0.0
    %5820 = vmatpush1.msra.mxu0 0.0
    %5821 = vmatprep.subr.mxu0 0.0
    %5822 = vmatpush1.msra.mxu0 0.0
    %5823 = vmatprep.subr.mxu0 0.0
    %5824 = vmatpush1.msra.mxu0 0.0
    %5825 = vmatprep.subr.mxu0 0.0
    %5826 = vmatpush1.msra.mxu0 0.0
    %5827 = vmatprep.subr.mxu0 0.0
    %5828 = vmatpush1.msra.mxu0 0.0
    %5829 = vmatprep.subr.mxu0 0.0
    %5830 = vmatpush1.msra.mxu0 0.0
    %5831 = vmatprep.subr.mxu0 0.0
    %5832 = vmatpush1.msra.mxu0 0.0
    %5833 = vmatprep.subr.mxu0 0.0
    %5834 = vmatpush1.msra.mxu0 0.0
    %5835 = vmatprep.mubr.f32.mxu0 0.0
    %5836 = vmatmul.mubr.f32.gmra.mrb[0].mxu0 %v5754
    %v5837 = vpop.f32.mrb[0].mxu0
    %v5838 = vpop.f32.mrb[0].mxu0
    %5839 = vmatprep.mubr.f32.mxu0 0.0
    %5840 = vmatmul.mubr.f32.gmra.mrb[0].mxu0 %v5757
    %v5841 = vpop.f32.mrb[0].mxu0
    %v5842 = vpop.f32.mrb[0].mxu0
    %5843 = vmatprep.mubr.f32.mxu0 0.0
    %5844 = vmatmul.mubr.f32.gmra.mrb[0].mxu0 %v5760
    %v5845 = vpop.f32.mrb[0].mxu0
    %v5846 = vadd.f32 %v5751, %v5845
    %v5847 = vpop.f32.mrb[0].mxu0
    %5848 = vmatprep.mubr.f32.mxu0 0.0
    %5849 = vmatmul.mubr.f32.gmra.mrb[0].mxu0 %v5763
    %v5850 = vpop.f32.mrb[0].mxu0
    %v5851 = vpop.f32.mrb[0].mxu0
    %5852 = vmatprep.mubr.f32.mxu0 0.0
    %5853 = vmatmul.mubr.f32.gmra.mrb[0].mxu0 %v5766
    %v5854 = vpop.f32.mrb[0].mxu0
    %v5855 = vpop.f32.mrb[0].mxu0
    %5856 = vmatprep.mubr.f32.mxu0 0.0
    %5857 = vmatmul.mubr.f32.gmra.mrb[0].mxu0 %v5769
    %v5858 = vpop.f32.mrb[0].mxu0
    %v5859 = vadd.f32 %v5751, %v5858
    %v5860 = vpop.f32.mrb[0].mxu0
    %5861 = vdwg.mxu0
    %v5862 = vadd.f32 %v5846, %v3866
    %v5863 = vadd.f32 %v5859, %v3867
    %5864 = vmatprep.subr.mxu0 0.0
    %5865 = vmatpush1.msra.mxu0 %v5734
    %5866 = vmatprep.subr.mxu0 0.0
    %5867 = vmatpush1.msra.mxu0 0.0
    %5868 = vmatprep.subr.mxu0 0.0
    %5869 = vmatpush1.msra.mxu0 0.0
    %5870 = vmatprep.subr.mxu0 0.0
    %5871 = vmatpush1.msra.mxu0 0.0
    %5872 = vmatprep.subr.mxu0 0.0
    %5873 = vmatpush1.msra.mxu0 0.0
    %5874 = vmatprep.subr.mxu0 0.0
    %5875 = vmatpush1.msra.mxu0 0.0
    %5876 = vmatprep.subr.mxu0 0.0
    %5877 = vmatpush1.msra.mxu0 0.0
    %5878 = vmatprep.subr.mxu0 0.0
    %5879 = vmatpush1.msra.mxu0 0.0
    %5880 = vmatprep.subr.mxu0 0.0
    %5881 = vmatpush1.msra.mxu0 0.0
    %5882 = vmatprep.subr.mxu0 0.0
    %5883 = vmatpush1.msra.mxu0 0.0
    %5884 = vmatprep.subr.mxu0 0.0
    %5885 = vmatpush1.msra.mxu0 0.0
    %5886 = vmatprep.subr.mxu0 0.0
    %5887 = vmatpush1.msra.mxu0 0.0
    %5888 = vmatprep.subr.mxu0 0.0
    %5889 = vmatpush1.msra.mxu0 0.0
    %5890 = vmatprep.subr.mxu0 0.0
    %5891 = vmatpush1.msra.mxu0 0.0
    %5892 = vmatprep.subr.mxu0 0.0
    %5893 = vmatpush1.msra.mxu0 0.0
    %5894 = vmatprep.subr.mxu0 0.0
    %5895 = vmatpush1.msra.mxu0 0.0
    %5896 = vmatprep.subr.mxu0 0.0
    %5897 = vmatpush1.msra.mxu0 0.0
    %5898 = vmatprep.subr.mxu0 0.0
    %5899 = vmatpush1.msra.mxu0 0.0
    %5900 = vmatprep.subr.mxu0 0.0
    %5901 = vmatpush1.msra.mxu0 0.0
    %5902 = vmatprep.subr.mxu0 0.0
    %5903 = vmatpush1.msra.mxu0 0.0
    %5904 = vmatprep.subr.mxu0 0.0
    %5905 = vmatpush1.msra.mxu0 0.0
    %5906 = vmatprep.subr.mxu0 0.0
    %5907 = vmatpush1.msra.mxu0 0.0
    %5908 = vmatprep.subr.mxu0 0.0
    %5909 = vmatpush1.msra.mxu0 0.0
    %5910 = vmatprep.subr.mxu0 0.0
    %5911 = vmatpush1.msra.mxu0 0.0
    %5912 = vmatprep.subr.mxu0 0.0
    %5913 = vmatpush1.msra.mxu0 0.0
    %5914 = vmatprep.subr.mxu0 0.0
    %5915 = vmatpush1.msra.mxu0 0.0
    %5916 = vmatprep.subr.mxu0 0.0
    %5917 = vmatpush1.msra.mxu0 0.0
    %5918 = vmatprep.subr.mxu0 0.0
    %5919 = vmatpush1.msra.mxu0 0.0
    %5920 = vmatprep.subr.mxu0 0.0
    %5921 = vmatpush1.msra.mxu0 0.0
    %5922 = vmatprep.subr.mxu0 0.0
    %5923 = vmatpush1.msra.mxu0 0.0
    %5924 = vmatprep.subr.mxu0 0.0
    %5925 = vmatpush1.msra.mxu0 0.0
    %5926 = vmatprep.subr.mxu0 0.0
    %5927 = vmatpush1.msra.mxu0 0.0
    %5928 = vmatprep.mubr.f32.mxu0 0.0
    %5929 = vmatmul.mubr.f32.gmra.mrb[0].mxu0 %v1140
    %v5930 = vpop.f32.mrb[0].mxu0
    %v5931 = vadd.f32 0.0, %v5930
    %v5932 = vpop.f32.mrb[0].mxu0
    %5933 = vdwg.mxu0
    %5934 = vmatprep.subr.mxu0 0.0
    %5935 = vmatpush1.msra.mxu0 %v5735
    %5936 = vmatprep.subr.mxu0 0.0
    %5937 = vmatpush1.msra.mxu0 0.0
    %5938 = vmatprep.subr.mxu0 0.0
    %5939 = vmatpush1.msra.mxu0 0.0
    %5940 = vmatprep.subr.mxu0 0.0
    %5941 = vmatpush1.msra.mxu0 0.0
    %5942 = vmatprep.subr.mxu0 0.0
    %5943 = vmatpush1.msra.mxu0 0.0
    %5944 = vmatprep.subr.mxu0 0.0
    %5945 = vmatpush1.msra.mxu0 0.0
    %5946 = vmatprep.subr.mxu0 0.0
    %5947 = vmatpush1.msra.mxu0 0.0
    %5948 = vmatprep.subr.mxu0 0.0
    %5949 = vmatpush1.msra.mxu0 0.0
    %5950 = vmatprep.subr.mxu0 0.0
    %5951 = vmatpush1.msra.mxu0 0.0
    %5952 = vmatprep.subr.mxu0 0.0
    %5953 = vmatpush1.msra.mxu0 0.0
    %5954 = vmatprep.subr.mxu0 0.0
    %5955 = vmatpush1.msra.mxu0 0.0
    %5956 = vmatprep.subr.mxu0 0.0
    %5957 = vmatpush1.msra.mxu0 0.0
    %5958 = vmatprep.subr.mxu0 0.0
    %5959 = vmatpush1.msra.mxu0 0.0
    %5960 = vmatprep.subr.mxu0 0.0
    %5961 = vmatpush1.msra.mxu0 0.0
    %5962 = vmatprep.subr.mxu0 0.0
    %5963 = vmatpush1.msra.mxu0 0.0
    %5964 = vmatprep.subr.mxu0 0.0
    %5965 = vmatpush1.msra.mxu0 0.0
    %5966 = vmatprep.subr.mxu0 0.0
    %5967 = vmatpush1.msra.mxu0 0.0
    %5968 = vmatprep.subr.mxu0 0.0
    %5969 = vmatpush1.msra.mxu0 0.0
    %5970 = vmatprep.subr.mxu0 0.0
    %5971 = vmatpush1.msra.mxu0 0.0
    %5972 = vmatprep.subr.mxu0 0.0
    %5973 = vmatpush1.msra.mxu0 0.0
    %5974 = vmatprep.subr.mxu0 0.0
    %5975 = vmatpush1.msra.mxu0 0.0
    %5976 = vmatprep.subr.mxu0 0.0
    %5977 = vmatpush1.msra.mxu0 0.0
    %5978 = vmatprep.subr.mxu0 0.0
    %5979 = vmatpush1.msra.mxu0 0.0
    %5980 = vmatprep.subr.mxu0 0.0
    %5981 = vmatpush1.msra.mxu0 0.0
    %5982 = vmatprep.subr.mxu0 0.0
    %5983 = vmatpush1.msra.mxu0 0.0
    %5984 = vmatprep.subr.mxu0 0.0
    %5985 = vmatpush1.msra.mxu0 0.0
    %5986 = vmatprep.subr.mxu0 0.0
    %5987 = vmatpush1.msra.mxu0 0.0
    %5988 = vmatprep.subr.mxu0 0.0
    %5989 = vmatpush1.msra.mxu0 0.0
    %5990 = vmatprep.subr.mxu0 0.0
    %5991 = vmatpush1.msra.mxu0 0.0
    %5992 = vmatprep.subr.mxu0 0.0
    %5993 = vmatpush1.msra.mxu0 0.0
    %5994 = vmatprep.subr.mxu0 0.0
    %5995 = vmatpush1.msra.mxu0 0.0
    %5996 = vmatprep.subr.mxu0 0.0
    %5997 = vmatpush1.msra.mxu0 0.0
    %5998 = vmatprep.mubr.f32.mxu0 0.0
    %5999 = vmatmul.mubr.f32.gmra.mrb[0].mxu0 %v1140
    %v6000 = vpop.f32.mrb[0].mxu0
    %v6001 = vadd.f32 0.0, %v6000
    %v6002 = vpop.f32.mrb[0].mxu0
    %6003 = vdwg.mxu0
    %6004 = vmatprep.subr.mxu0 0.0
    %6005 = vmatpush1.msra.mxu0 %v5736
    %6006 = vmatprep.subr.mxu0 0.0
    %6007 = vmatpush1.msra.mxu0 0.0
    %6008 = vmatprep.subr.mxu0 0.0
    %6009 = vmatpush1.msra.mxu0 0.0
    %6010 = vmatprep.subr.mxu0 0.0
    %6011 = vmatpush1.msra.mxu0 0.0
    %6012 = vmatprep.subr.mxu0 0.0
    %6013 = vmatpush1.msra.mxu0 0.0
    %6014 = vmatprep.subr.mxu0 0.0
    %6015 = vmatpush1.msra.mxu0 0.0
    %6016 = vmatprep.subr.mxu0 0.0
    %6017 = vmatpush1.msra.mxu0 0.0
    %6018 = vmatprep.subr.mxu0 0.0
    %6019 = vmatpush1.msra.mxu0 0.0
    %6020 = vmatprep.subr.mxu0 0.0
    %6021 = vmatpush1.msra.mxu0 0.0
    %6022 = vmatprep.subr.mxu0 0.0
    %6023 = vmatpush1.msra.mxu0 0.0
    %6024 = vmatprep.subr.mxu0 0.0
    %6025 = vmatpush1.msra.mxu0 0.0
    %6026 = vmatprep.subr.mxu0 0.0
    %6027 = vmatpush1.msra.mxu0 0.0
    %6028 = vmatprep.subr.mxu0 0.0
    %6029 = vmatpush1.msra.mxu0 0.0
    %6030 = vmatprep.subr.mxu0 0.0
    %6031 = vmatpush1.msra.mxu0 0.0
    %6032 = vmatprep.subr.mxu0 0.0
    %6033 = vmatpush1.msra.mxu0 0.0
    %6034 = vmatprep.subr.mxu0 0.0
    %6035 = vmatpush1.msra.mxu0 0.0
    %6036 = vmatprep.subr.mxu0 0.0
    %6037 = vmatpush1.msra.mxu0 0.0
    %6038 = vmatprep.subr.mxu0 0.0
    %6039 = vmatpush1.msra.mxu0 0.0
    %6040 = vmatprep.subr.mxu0 0.0
    %6041 = vmatpush1.msra.mxu0 0.0
    %6042 = vmatprep.subr.mxu0 0.0
    %6043 = vmatpush1.msra.mxu0 0.0
    %6044 = vmatprep.subr.mxu0 0.0
    %6045 = vmatpush1.msra.mxu0 0.0
    %6046 = vmatprep.subr.mxu0 0.0
    %6047 = vmatpush1.msra.mxu0 0.0
    %6048 = vmatprep.subr.mxu0 0.0
    %6049 = vmatpush1.msra.mxu0 0.0
    %6050 = vmatprep.subr.mxu0 0.0
    %6051 = vmatpush1.msra.mxu0 0.0
    %6052 = vmatprep.subr.mxu0 0.0
    %6053 = vmatpush1.msra.mxu0 0.0
    %6054 = vmatprep.subr.mxu0 0.0
    %6055 = vmatpush1.msra.mxu0 0.0
    %6056 = vmatprep.subr.mxu0 0.0
    %6057 = vmatpush1.msra.mxu0 0.0
    %6058 = vmatprep.subr.mxu0 0.0
    %6059 = vmatpush1.msra.mxu0 0.0
    %6060 = vmatprep.subr.mxu0 0.0
    %6061 = vmatpush1.msra.mxu0 0.0
    %6062 = vmatprep.subr.mxu0 0.0
    %6063 = vmatpush1.msra.mxu0 0.0
    %6064 = vmatprep.subr.mxu0 0.0
    %6065 = vmatpush1.msra.mxu0 0.0
    %6066 = vmatprep.subr.mxu0 0.0
    %6067 = vmatpush1.msra.mxu0 0.0
    %6068 = vmatprep.mubr.f32.mxu0 0.0
    %6069 = vmatmul.mubr.f32.gmra.mrb[0].mxu0 %v1140
    %v6070 = vpop.f32.mrb[0].mxu0
    %v6071 = vadd.f32 0.0, %v6070
    %v6072 = vpop.f32.mrb[0].mxu0
    %6073 = vdwg.mxu0
    %6074 = vmatprep.subr.mxu0 0.0
    %6075 = vmatpush1.msra.mxu0 %v5737
    %6076 = vmatprep.subr.mxu0 0.0
    %6077 = vmatpush1.msra.mxu0 0.0
    %6078 = vmatprep.subr.mxu0 0.0
    %6079 = vmatpush1.msra.mxu0 0.0
    %6080 = vmatprep.subr.mxu0 0.0
    %6081 = vmatpush1.msra.mxu0 0.0
    %6082 = vmatprep.subr.mxu0 0.0
    %6083 = vmatpush1.msra.mxu0 0.0
    %6084 = vmatprep.subr.mxu0 0.0
    %6085 = vmatpush1.msra.mxu0 0.0
    %6086 = vmatprep.subr.mxu0 0.0
    %6087 = vmatpush1.msra.mxu0 0.0
    %6088 = vmatprep.subr.mxu0 0.0
    %6089 = vmatpush1.msra.mxu0 0.0
    %6090 = vmatprep.subr.mxu0 0.0
    %6091 = vmatpush1.msra.mxu0 0.0
    %6092 = vmatprep.subr.mxu0 0.0
    %6093 = vmatpush1.msra.mxu0 0.0
    %6094 = vmatprep.subr.mxu0 0.0
    %6095 = vmatpush1.msra.mxu0 0.0
    %6096 = vmatprep.subr.mxu0 0.0
    %6097 = vmatpush1.msra.mxu0 0.0
    %6098 = vmatprep.subr.mxu0 0.0
    %6099 = vmatpush1.msra.mxu0 0.0
    %6100 = vmatprep.subr.mxu0 0.0
    %6101 = vmatpush1.msra.mxu0 0.0
    %6102 = vmatprep.subr.mxu0 0.0
    %6103 = vmatpush1.msra.mxu0 0.0
    %6104 = vmatprep.subr.mxu0 0.0
    %6105 = vmatpush1.msra.mxu0 0.0
    %6106 = vmatprep.subr.mxu0 0.0
    %6107 = vmatpush1.msra.mxu0 0.0
    %6108 = vmatprep.subr.mxu0 0.0
    %6109 = vmatpush1.msra.mxu0 0.0
    %6110 = vmatprep.subr.mxu0 0.0
    %6111 = vmatpush1.msra.mxu0 0.0
    %6112 = vmatprep.subr.mxu0 0.0
    %6113 = vmatpush1.msra.mxu0 0.0
    %6114 = vmatprep.subr.mxu0 0.0
    %6115 = vmatpush1.msra.mxu0 0.0
    %6116 = vmatprep.subr.mxu0 0.0
    %6117 = vmatpush1.msra.mxu0 0.0
    %6118 = vmatprep.subr.mxu0 0.0
    %6119 = vmatpush1.msra.mxu0 0.0
    %6120 = vmatprep.subr.mxu0 0.0
    %6121 = vmatpush1.msra.mxu0 0.0
    %6122 = vmatprep.subr.mxu0 0.0
    %6123 = vmatpush1.msra.mxu0 0.0
    %6124 = vmatprep.subr.mxu0 0.0
    %6125 = vmatpush1.msra.mxu0 0.0
    %6126 = vmatprep.subr.mxu0 0.0
    %6127 = vmatpush1.msra.mxu0 0.0
    %6128 = vmatprep.subr.mxu0 0.0
    %6129 = vmatpush1.msra.mxu0 0.0
    %6130 = vmatprep.subr.mxu0 0.0
    %6131 = vmatpush1.msra.mxu0 0.0
    %6132 = vmatprep.subr.mxu0 0.0
    %6133 = vmatpush1.msra.mxu0 0.0
    %6134 = vmatprep.subr.mxu0 0.0
    %6135 = vmatpush1.msra.mxu0 0.0
    %6136 = vmatprep.subr.mxu0 0.0
    %6137 = vmatpush1.msra.mxu0 0.0
    %6138 = vmatprep.mubr.f32.mxu0 0.0
    %6139 = vmatmul.mubr.f32.gmra.mrb[0].mxu0 %v1140
    %v6140 = vpop.f32.mrb[0].mxu0
    %v6141 = vadd.f32 0.0, %v6140
    %v6142 = vpop.f32.mrb[0].mxu0
    %6143 = vdwg.mxu0
    %6144 = vmatprep.subr.mxu0 0.0
    %6145 = vmatpush1.msra.mxu0 %v5738
    %6146 = vmatprep.subr.mxu0 0.0
    %6147 = vmatpush1.msra.mxu0 0.0
    %6148 = vmatprep.subr.mxu0 0.0
    %6149 = vmatpush1.msra.mxu0 0.0
    %6150 = vmatprep.subr.mxu0 0.0
    %6151 = vmatpush1.msra.mxu0 0.0
    %6152 = vmatprep.subr.mxu0 0.0
    %6153 = vmatpush1.msra.mxu0 0.0
    %6154 = vmatprep.subr.mxu0 0.0
    %6155 = vmatpush1.msra.mxu0 0.0
    %6156 = vmatprep.subr.mxu0 0.0
    %6157 = vmatpush1.msra.mxu0 0.0
    %6158 = vmatprep.subr.mxu0 0.0
    %6159 = vmatpush1.msra.mxu0 0.0
    %6160 = vmatprep.subr.mxu0 0.0
    %6161 = vmatpush1.msra.mxu0 0.0
    %6162 = vmatprep.subr.mxu0 0.0
    %6163 = vmatpush1.msra.mxu0 0.0
    %6164 = vmatprep.subr.mxu0 0.0
    %6165 = vmatpush1.msra.mxu0 0.0
    %6166 = vmatprep.subr.mxu0 0.0
    %6167 = vmatpush1.msra.mxu0 0.0
    %6168 = vmatprep.subr.mxu0 0.0
    %6169 = vmatpush1.msra.mxu0 0.0
    %6170 = vmatprep.subr.mxu0 0.0
    %6171 = vmatpush1.msra.mxu0 0.0
    %6172 = vmatprep.subr.mxu0 0.0
    %6173 = vmatpush1.msra.mxu0 0.0
    %6174 = vmatprep.subr.mxu0 0.0
    %6175 = vmatpush1.msra.mxu0 0.0
    %6176 = vmatprep.subr.mxu0 0.0
    %6177 = vmatpush1.msra.mxu0 0.0
    %6178 = vmatprep.subr.mxu0 0.0
    %6179 = vmatpush1.msra.mxu0 0.0
    %6180 = vmatprep.subr.mxu0 0.0
    %6181 = vmatpush1.msra.mxu0 0.0
    %6182 = vmatprep.subr.mxu0 0.0
    %6183 = vmatpush1.msra.mxu0 0.0
    %6184 = vmatprep.subr.mxu0 0.0
    %6185 = vmatpush1.msra.mxu0 0.0
    %6186 = vmatprep.subr.mxu0 0.0
    %6187 = vmatpush1.msra.mxu0 0.0
    %6188 = vmatprep.subr.mxu0 0.0
    %6189 = vmatpush1.msra.mxu0 0.0
    %6190 = vmatprep.subr.mxu0 0.0
    %6191 = vmatpush1.msra.mxu0 0.0
    %6192 = vmatprep.subr.mxu0 0.0
    %6193 = vmatpush1.msra.mxu0 0.0
    %6194 = vmatprep.subr.mxu0 0.0
    %6195 = vmatpush1.msra.mxu0 0.0
    %6196 = vmatprep.subr.mxu0 0.0
    %6197 = vmatpush1.msra.mxu0 0.0
    %6198 = vmatprep.subr.mxu0 0.0
    %6199 = vmatpush1.msra.mxu0 0.0
    %6200 = vmatprep.subr.mxu0 0.0
    %6201 = vmatpush1.msra.mxu0 0.0
    %6202 = vmatprep.subr.mxu0 0.0
    %6203 = vmatpush1.msra.mxu0 0.0
    %6204 = vmatprep.subr.mxu0 0.0
    %6205 = vmatpush1.msra.mxu0 0.0
    %6206 = vmatprep.subr.mxu0 0.0
    %6207 = vmatpush1.msra.mxu0 0.0
    %6208 = vmatprep.mubr.f32.mxu0 0.0
    %6209 = vmatmul.mubr.f32.gmra.mrb[0].mxu0 %v1140
    %v6210 = vpop.f32.mrb[0].mxu0
    %v6211 = vadd.f32 0.0, %v6210
    %v6212 = vpop.f32.mrb[0].mxu0
    %6213 = vdwg.mxu0
    %6214 = vmatprep.subr.mxu0 0.0
    %6215 = vmatpush1.msra.mxu0 %v5739
    %6216 = vmatprep.subr.mxu0 0.0
    %6217 = vmatpush1.msra.mxu0 0.0
    %6218 = vmatprep.subr.mxu0 0.0
    %6219 = vmatpush1.msra.mxu0 0.0
    %6220 = vmatprep.subr.mxu0 0.0
    %6221 = vmatpush1.msra.mxu0 0.0
    %6222 = vmatprep.subr.mxu0 0.0
    %6223 = vmatpush1.msra.mxu0 0.0
    %6224 = vmatprep.subr.mxu0 0.0
    %6225 = vmatpush1.msra.mxu0 0.0
    %6226 = vmatprep.subr.mxu0 0.0
    %6227 = vmatpush1.msra.mxu0 0.0
    %6228 = vmatprep.subr.mxu0 0.0
    %6229 = vmatpush1.msra.mxu0 0.0
    %6230 = vmatprep.subr.mxu0 0.0
    %6231 = vmatpush1.msra.mxu0 0.0
    %6232 = vmatprep.subr.mxu0 0.0
    %6233 = vmatpush1.msra.mxu0 0.0
    %6234 = vmatprep.subr.mxu0 0.0
    %6235 = vmatpush1.msra.mxu0 0.0
    %6236 = vmatprep.subr.mxu0 0.0
    %6237 = vmatpush1.msra.mxu0 0.0
    %6238 = vmatprep.subr.mxu0 0.0
    %6239 = vmatpush1.msra.mxu0 0.0
    %6240 = vmatprep.subr.mxu0 0.0
    %6241 = vmatpush1.msra.mxu0 0.0
    %6242 = vmatprep.subr.mxu0 0.0
    %6243 = vmatpush1.msra.mxu0 0.0
    %6244 = vmatprep.subr.mxu0 0.0
    %6245 = vmatpush1.msra.mxu0 0.0
    %6246 = vmatprep.subr.mxu0 0.0
    %6247 = vmatpush1.msra.mxu0 0.0
    %6248 = vmatprep.subr.mxu0 0.0
    %6249 = vmatpush1.msra.mxu0 0.0
    %6250 = vmatprep.subr.mxu0 0.0
    %6251 = vmatpush1.msra.mxu0 0.0
    %6252 = vmatprep.subr.mxu0 0.0
    %6253 = vmatpush1.msra.mxu0 0.0
    %6254 = vmatprep.subr.mxu0 0.0
    %6255 = vmatpush1.msra.mxu0 0.0
    %6256 = vmatprep.subr.mxu0 0.0
    %6257 = vmatpush1.msra.mxu0 0.0
    %6258 = vmatprep.subr.mxu0 0.0
    %6259 = vmatpush1.msra.mxu0 0.0
    %6260 = vmatprep.subr.mxu0 0.0
    %6261 = vmatpush1.msra.mxu0 0.0
    %6262 = vmatprep.subr.mxu0 0.0
    %6263 = vmatpush1.msra.mxu0 0.0
    %6264 = vmatprep.subr.mxu0 0.0
    %6265 = vmatpush1.msra.mxu0 0.0
    %6266 = vmatprep.subr.mxu0 0.0
    %6267 = vmatpush1.msra.mxu0 0.0
    %6268 = vmatprep.subr.mxu0 0.0
    %6269 = vmatpush1.msra.mxu0 0.0
    %6270 = vmatprep.subr.mxu0 0.0
    %6271 = vmatpush1.msra.mxu0 0.0
    %6272 = vmatprep.subr.mxu0 0.0
    %6273 = vmatpush1.msra.mxu0 0.0
    %6274 = vmatprep.subr.mxu0 0.0
    %6275 = vmatpush1.msra.mxu0 0.0
    %6276 = vmatprep.subr.mxu0 0.0
    %6277 = vmatpush1.msra.mxu0 0.0
    %6278 = vmatprep.mubr.f32.mxu0 0.0
    %6279 = vmatmul.mubr.f32.gmra.mrb[0].mxu0 %v1140
    %v6280 = vpop.f32.mrb[0].mxu0
    %v6281 = vadd.f32 0.0, %v6280
    %v6282 = vpop.f32.mrb[0].mxu0
    %6283 = vdwg.mxu0
    %6284 = vmatprep.subr.mxu0 0.0
    %6285 = vmatpush1.msra.mxu0 %v5931
    %6286 = vmatprep.subr.mxu0 0.0
    %6287 = vmatpush1.msra.mxu0 0.0
    %6288 = vmatprep.subr.mxu0 0.0
    %6289 = vmatpush1.msra.mxu0 0.0
    %6290 = vmatprep.subr.mxu0 0.0
    %6291 = vmatpush1.msra.mxu0 0.0
    %6292 = vmatprep.subr.mxu0 0.0
    %6293 = vmatpush1.msra.mxu0 0.0
    %6294 = vmatprep.subr.mxu0 0.0
    %6295 = vmatpush1.msra.mxu0 0.0
    %6296 = vmatprep.subr.mxu0 0.0
    %6297 = vmatpush1.msra.mxu0 0.0
    %6298 = vmatprep.subr.mxu0 0.0
    %6299 = vmatpush1.msra.mxu0 0.0
    %6300 = vmatprep.subr.mxu0 0.0
    %6301 = vmatpush1.msra.mxu0 0.0
    %6302 = vmatprep.subr.mxu0 0.0
    %6303 = vmatpush1.msra.mxu0 0.0
    %6304 = vmatprep.subr.mxu0 0.0
    %6305 = vmatpush1.msra.mxu0 0.0
    %6306 = vmatprep.subr.mxu0 0.0
    %6307 = vmatpush1.msra.mxu0 0.0
    %6308 = vmatprep.subr.mxu0 0.0
    %6309 = vmatpush1.msra.mxu0 0.0
    %6310 = vmatprep.subr.mxu0 0.0
    %6311 = vmatpush1.msra.mxu0 0.0
    %6312 = vmatprep.subr.mxu0 0.0
    %6313 = vmatpush1.msra.mxu0 0.0
    %6314 = vmatprep.subr.mxu0 0.0
    %6315 = vmatpush1.msra.mxu0 0.0
    %6316 = vmatprep.subr.mxu0 0.0
    %6317 = vmatpush1.msra.mxu0 0.0
    %6318 = vmatprep.subr.mxu0 0.0
    %6319 = vmatpush1.msra.mxu0 0.0
    %6320 = vmatprep.subr.mxu0 0.0
    %6321 = vmatpush1.msra.mxu0 0.0
    %6322 = vmatprep.subr.mxu0 0.0
    %6323 = vmatpush1.msra.mxu0 0.0
    %6324 = vmatprep.subr.mxu0 0.0
    %6325 = vmatpush1.msra.mxu0 0.0
    %6326 = vmatprep.subr.mxu0 0.0
    %6327 = vmatpush1.msra.mxu0 0.0
    %6328 = vmatprep.subr.mxu0 0.0
    %6329 = vmatpush1.msra.mxu0 0.0
    %6330 = vmatprep.subr.mxu0 0.0
    %6331 = vmatpush1.msra.mxu0 0.0
    %6332 = vmatprep.subr.mxu0 0.0
    %6333 = vmatpush1.msra.mxu0 0.0
    %6334 = vmatprep.subr.mxu0 0.0
    %6335 = vmatpush1.msra.mxu0 0.0
    %6336 = vmatprep.subr.mxu0 0.0
    %6337 = vmatpush1.msra.mxu0 0.0
    %6338 = vmatprep.subr.mxu0 0.0
    %6339 = vmatpush1.msra.mxu0 0.0
    %6340 = vmatprep.subr.mxu0 0.0
    %6341 = vmatpush1.msra.mxu0 0.0
    %6342 = vmatprep.subr.mxu0 0.0
    %6343 = vmatpush1.msra.mxu0 0.0
    %6344 = vmatprep.subr.mxu0 0.0
    %6345 = vmatpush1.msra.mxu0 0.0
    %6346 = vmatprep.subr.mxu0 0.0
    %6347 = vmatpush1.msra.mxu0 0.0
    %6348 = vmatprep.mubr.f32.mxu0 0.0
    %6349 = vmatmul.mubr.f32.gmra.mrb[0].mxu0 %v1140
    %v6350 = vpop.f32.mrb[0].mxu0
    %v6351 = vadd.f32 0.0, %v6350
    %v6352 = vpop.f32.mrb[0].mxu0
    %6353 = vdwg.mxu0
    %6354 = vmatprep.subr.mxu0 0.0
    %6355 = vmatpush1.msra.mxu0 %v6001
    %6356 = vmatprep.subr.mxu0 0.0
    %6357 = vmatpush1.msra.mxu0 0.0
    %6358 = vmatprep.subr.mxu0 0.0
    %6359 = vmatpush1.msra.mxu0 0.0
    %6360 = vmatprep.subr.mxu0 0.0
    %6361 = vmatpush1.msra.mxu0 0.0
    %6362 = vmatprep.subr.mxu0 0.0
    %6363 = vmatpush1.msra.mxu0 0.0
    %6364 = vmatprep.subr.mxu0 0.0
    %6365 = vmatpush1.msra.mxu0 0.0
    %6366 = vmatprep.subr.mxu0 0.0
    %6367 = vmatpush1.msra.mxu0 0.0
    %6368 = vmatprep.subr.mxu0 0.0
    %6369 = vmatpush1.msra.mxu0 0.0
    %6370 = vmatprep.subr.mxu0 0.0
    %6371 = vmatpush1.msra.mxu0 0.0
    %6372 = vmatprep.subr.mxu0 0.0
    %6373 = vmatpush1.msra.mxu0 0.0
    %6374 = vmatprep.subr.mxu0 0.0
    %6375 = vmatpush1.msra.mxu0 0.0
    %6376 = vmatprep.subr.mxu0 0.0
    %6377 = vmatpush1.msra.mxu0 0.0
    %6378 = vmatprep.subr.mxu0 0.0
    %6379 = vmatpush1.msra.mxu0 0.0
    %6380 = vmatprep.subr.mxu0 0.0
    %6381 = vmatpush1.msra.mxu0 0.0
    %6382 = vmatprep.subr.mxu0 0.0
    %6383 = vmatpush1.msra.mxu0 0.0
    %6384 = vmatprep.subr.mxu0 0.0
    %6385 = vmatpush1.msra.mxu0 0.0
    %6386 = vmatprep.subr.mxu0 0.0
    %6387 = vmatpush1.msra.mxu0 0.0
    %6388 = vmatprep.subr.mxu0 0.0
    %6389 = vmatpush1.msra.mxu0 0.0
    %6390 = vmatprep.subr.mxu0 0.0
    %6391 = vmatpush1.msra.mxu0 0.0
    %6392 = vmatprep.subr.mxu0 0.0
    %6393 = vmatpush1.msra.mxu0 0.0
    %6394 = vmatprep.subr.mxu0 0.0
    %6395 = vmatpush1.msra.mxu0 0.0
    %6396 = vmatprep.subr.mxu0 0.0
    %6397 = vmatpush1.msra.mxu0 0.0
    %6398 = vmatprep.subr.mxu0 0.0
    %6399 = vmatpush1.msra.mxu0 0.0
    %6400 = vmatprep.subr.mxu0 0.0
    %6401 = vmatpush1.msra.mxu0 0.0
    %6402 = vmatprep.subr.mxu0 0.0
    %6403 = vmatpush1.msra.mxu0 0.0
    %6404 = vmatprep.subr.mxu0 0.0
    %6405 = vmatpush1.msra.mxu0 0.0
    %6406 = vmatprep.subr.mxu0 0.0
    %6407 = vmatpush1.msra.mxu0 0.0
    %6408 = vmatprep.subr.mxu0 0.0
    %6409 = vmatpush1.msra.mxu0 0.0
    %6410 = vmatprep.subr.mxu0 0.0
    %6411 = vmatpush1.msra.mxu0 0.0
    %6412 = vmatprep.subr.mxu0 0.0
    %6413 = vmatpush1.msra.mxu0 0.0
    %6414 = vmatprep.subr.mxu0 0.0
    %6415 = vmatpush1.msra.mxu0 0.0
    %6416 = vmatprep.subr.mxu0 0.0
    %6417 = vmatpush1.msra.mxu0 0.0
    %6418 = vmatprep.mubr.f32.mxu0 0.0
    %6419 = vmatmul.mubr.f32.gmra.mrb[0].mxu0 %v1140
    %v6420 = vpop.f32.mrb[0].mxu0
    %v6421 = vadd.f32 0.0, %v6420
    %v6422 = vpop.f32.mrb[0].mxu0
    %6423 = vdwg.mxu0
    %6424 = vmatprep.subr.mxu0 0.0
    %6425 = vmatpush1.msra.mxu0 %v6071
    %6426 = vmatprep.subr.mxu0 0.0
    %6427 = vmatpush1.msra.mxu0 0.0
    %6428 = vmatprep.subr.mxu0 0.0
    %6429 = vmatpush1.msra.mxu0 0.0
    %6430 = vmatprep.subr.mxu0 0.0
    %6431 = vmatpush1.msra.mxu0 0.0
    %6432 = vmatprep.subr.mxu0 0.0
    %6433 = vmatpush1.msra.mxu0 0.0
    %6434 = vmatprep.subr.mxu0 0.0
    %6435 = vmatpush1.msra.mxu0 0.0
    %6436 = vmatprep.subr.mxu0 0.0
    %6437 = vmatpush1.msra.mxu0 0.0
    %6438 = vmatprep.subr.mxu0 0.0
    %6439 = vmatpush1.msra.mxu0 0.0
    %6440 = vmatprep.subr.mxu0 0.0
    %6441 = vmatpush1.msra.mxu0 0.0
    %6442 = vmatprep.subr.mxu0 0.0
    %6443 = vmatpush1.msra.mxu0 0.0
    %6444 = vmatprep.subr.mxu0 0.0
    %6445 = vmatpush1.msra.mxu0 0.0
    %6446 = vmatprep.subr.mxu0 0.0
    %6447 = vmatpush1.msra.mxu0 0.0
    %6448 = vmatprep.subr.mxu0 0.0
    %6449 = vmatpush1.msra.mxu0 0.0
    %6450 = vmatprep.subr.mxu0 0.0
    %6451 = vmatpush1.msra.mxu0 0.0
    %6452 = vmatprep.subr.mxu0 0.0
    %6453 = vmatpush1.msra.mxu0 0.0
    %6454 = vmatprep.subr.mxu0 0.0
    %6455 = vmatpush1.msra.mxu0 0.0
    %6456 = vmatprep.subr.mxu0 0.0
    %6457 = vmatpush1.msra.mxu0 0.0
    %6458 = vmatprep.subr.mxu0 0.0
    %6459 = vmatpush1.msra.mxu0 0.0
    %6460 = vmatprep.subr.mxu0 0.0
    %6461 = vmatpush1.msra.mxu0 0.0
    %6462 = vmatprep.subr.mxu0 0.0
    %6463 = vmatpush1.msra.mxu0 0.0
    %6464 = vmatprep.subr.mxu0 0.0
    %6465 = vmatpush1.msra.mxu0 0.0
    %6466 = vmatprep.subr.mxu0 0.0
    %6467 = vmatpush1.msra.mxu0 0.0
    %6468 = vmatprep.subr.mxu0 0.0
    %6469 = vmatpush1.msra.mxu0 0.0
    %6470 = vmatprep.subr.mxu0 0.0
    %6471 = vmatpush1.msra.mxu0 0.0
    %6472 = vmatprep.subr.mxu0 0.0
    %6473 = vmatpush1.msra.mxu0 0.0
    %6474 = vmatprep.subr.mxu0 0.0
    %6475 = vmatpush1.msra.mxu0 0.0
    %6476 = vmatprep.subr.mxu0 0.0
    %6477 = vmatpush1.msra.mxu0 0.0
    %6478 = vmatprep.subr.mxu0 0.0
    %6479 = vmatpush1.msra.mxu0 0.0
    %6480 = vmatprep.subr.mxu0 0.0
    %6481 = vmatpush1.msra.mxu0 0.0
    %6482 = vmatprep.subr.mxu0 0.0
    %6483 = vmatpush1.msra.mxu0 0.0
    %6484 = vmatprep.subr.mxu0 0.0
    %6485 = vmatpush1.msra.mxu0 0.0
    %6486 = vmatprep.subr.mxu0 0.0
    %6487 = vmatpush1.msra.mxu0 0.0
    %6488 = vmatprep.mubr.f32.mxu0 0.0
    %6489 = vmatmul.mubr.f32.gmra.mrb[0].mxu0 %v1140
    %v6490 = vpop.f32.mrb[0].mxu0
    %v6491 = vadd.f32 0.0, %v6490
    %v6492 = vpop.f32.mrb[0].mxu0
    %6493 = vdwg.mxu0
    %6494 = vmatprep.subr.mxu0 0.0
    %6495 = vmatpush1.msra.mxu0 %v6141
    %6496 = vmatprep.subr.mxu0 0.0
    %6497 = vmatpush1.msra.mxu0 0.0
    %6498 = vmatprep.subr.mxu0 0.0
    %6499 = vmatpush1.msra.mxu0 0.0
    %6500 = vmatprep.subr.mxu0 0.0
    %6501 = vmatpush1.msra.mxu0 0.0
    %6502 = vmatprep.subr.mxu0 0.0
    %6503 = vmatpush1.msra.mxu0 0.0
    %6504 = vmatprep.subr.mxu0 0.0
    %6505 = vmatpush1.msra.mxu0 0.0
    %6506 = vmatprep.subr.mxu0 0.0
    %6507 = vmatpush1.msra.mxu0 0.0
    %6508 = vmatprep.subr.mxu0 0.0
    %6509 = vmatpush1.msra.mxu0 0.0
    %6510 = vmatprep.subr.mxu0 0.0
    %6511 = vmatpush1.msra.mxu0 0.0
    %6512 = vmatprep.subr.mxu0 0.0
    %6513 = vmatpush1.msra.mxu0 0.0
    %6514 = vmatprep.subr.mxu0 0.0
    %6515 = vmatpush1.msra.mxu0 0.0
    %6516 = vmatprep.subr.mxu0 0.0
    %6517 = vmatpush1.msra.mxu0 0.0
    %6518 = vmatprep.subr.mxu0 0.0
    %6519 = vmatpush1.msra.mxu0 0.0
    %6520 = vmatprep.subr.mxu0 0.0
    %6521 = vmatpush1.msra.mxu0 0.0
    %6522 = vmatprep.subr.mxu0 0.0
    %6523 = vmatpush1.msra.mxu0 0.0
    %6524 = vmatprep.subr.mxu0 0.0
    %6525 = vmatpush1.msra.mxu0 0.0
    %6526 = vmatprep.subr.mxu0 0.0
    %6527 = vmatpush1.msra.mxu0 0.0
    %6528 = vmatprep.subr.mxu0 0.0
    %6529 = vmatpush1.msra.mxu0 0.0
    %6530 = vmatprep.subr.mxu0 0.0
    %6531 = vmatpush1.msra.mxu0 0.0
    %6532 = vmatprep.subr.mxu0 0.0
    %6533 = vmatpush1.msra.mxu0 0.0
    %6534 = vmatprep.subr.mxu0 0.0
    %6535 = vmatpush1.msra.mxu0 0.0
    %6536 = vmatprep.subr.mxu0 0.0
    %6537 = vmatpush1.msra.mxu0 0.0
    %6538 = vmatprep.subr.mxu0 0.0
    %6539 = vmatpush1.msra.mxu0 0.0
    %6540 = vmatprep.subr.mxu0 0.0
    %6541 = vmatpush1.msra.mxu0 0.0
    %6542 = vmatprep.subr.mxu0 0.0
    %6543 = vmatpush1.msra.mxu0 0.0
    %6544 = vmatprep.subr.mxu0 0.0
    %6545 = vmatpush1.msra.mxu0 0.0
    %6546 = vmatprep.subr.mxu0 0.0
    %6547 = vmatpush1.msra.mxu0 0.0
    %6548 = vmatprep.subr.mxu0 0.0
    %6549 = vmatpush1.msra.mxu0 0.0
    %6550 = vmatprep.subr.mxu0 0.0
    %6551 = vmatpush1.msra.mxu0 0.0
    %6552 = vmatprep.subr.mxu0 0.0
    %6553 = vmatpush1.msra.mxu0 0.0
    %6554 = vmatprep.subr.mxu0 0.0
    %6555 = vmatpush1.msra.mxu0 0.0
    %6556 = vmatprep.subr.mxu0 0.0
    %6557 = vmatpush1.msra.mxu0 0.0
    %6558 = vmatprep.mubr.f32.mxu0 0.0
    %6559 = vmatmul.mubr.f32.gmra.mrb[0].mxu0 %v1140
    %v6560 = vpop.f32.mrb[0].mxu0
    %v6561 = vadd.f32 0.0, %v6560
    %v6562 = vpop.f32.mrb[0].mxu0
    %6563 = vdwg.mxu0
    %6564 = vmatprep.subr.mxu0 0.0
    %6565 = vmatpush1.msra.mxu0 %v6211
    %6566 = vmatprep.subr.mxu0 0.0
    %6567 = vmatpush1.msra.mxu0 0.0
    %6568 = vmatprep.subr.mxu0 0.0
    %6569 = vmatpush1.msra.mxu0 0.0
    %6570 = vmatprep.subr.mxu0 0.0
    %6571 = vmatpush1.msra.mxu0 0.0
    %6572 = vmatprep.subr.mxu0 0.0
    %6573 = vmatpush1.msra.mxu0 0.0
    %6574 = vmatprep.subr.mxu0 0.0
    %6575 = vmatpush1.msra.mxu0 0.0
    %6576 = vmatprep.subr.mxu0 0.0
    %6577 = vmatpush1.msra.mxu0 0.0
    %6578 = vmatprep.subr.mxu0 0.0
    %6579 = vmatpush1.msra.mxu0 0.0
    %6580 = vmatprep.subr.mxu0 0.0
    %6581 = vmatpush1.msra.mxu0 0.0
    %6582 = vmatprep.subr.mxu0 0.0
    %6583 = vmatpush1.msra.mxu0 0.0
    %6584 = vmatprep.subr.mxu0 0.0
    %6585 = vmatpush1.msra.mxu0 0.0
    %6586 = vmatprep.subr.mxu0 0.0
    %6587 = vmatpush1.msra.mxu0 0.0
    %6588 = vmatprep.subr.mxu0 0.0
    %6589 = vmatpush1.msra.mxu0 0.0
    %6590 = vmatprep.subr.mxu0 0.0
    %6591 = vmatpush1.msra.mxu0 0.0
    %6592 = vmatprep.subr.mxu0 0.0
    %6593 = vmatpush1.msra.mxu0 0.0
    %6594 = vmatprep.subr.mxu0 0.0
    %6595 = vmatpush1.msra.mxu0 0.0
    %6596 = vmatprep.subr.mxu0 0.0
    %6597 = vmatpush1.msra.mxu0 0.0
    %6598 = vmatprep.subr.mxu0 0.0
    %6599 = vmatpush1.msra.mxu0 0.0
    %6600 = vmatprep.subr.mxu0 0.0
    %6601 = vmatpush1.msra.mxu0 0.0
    %6602 = vmatprep.subr.mxu0 0.0
    %6603 = vmatpush1.msra.mxu0 0.0
    %6604 = vmatprep.subr.mxu0 0.0
    %6605 = vmatpush1.msra.mxu0 0.0
    %6606 = vmatprep.subr.mxu0 0.0
    %6607 = vmatpush1.msra.mxu0 0.0
    %6608 = vmatprep.subr.mxu0 0.0
    %6609 = vmatpush1.msra.mxu0 0.0
    %6610 = vmatprep.subr.mxu0 0.0
    %6611 = vmatpush1.msra.mxu0 0.0
    %6612 = vmatprep.subr.mxu0 0.0
    %6613 = vmatpush1.msra.mxu0 0.0
    %6614 = vmatprep.subr.mxu0 0.0
    %6615 = vmatpush1.msra.mxu0 0.0
    %6616 = vmatprep.subr.mxu0 0.0
    %6617 = vmatpush1.msra.mxu0 0.0
    %6618 = vmatprep.subr.mxu0 0.0
    %6619 = vmatpush1.msra.mxu0 0.0
    %6620 = vmatprep.subr.mxu0 0.0
    %6621 = vmatpush1.msra.mxu0 0.0
    %6622 = vmatprep.subr.mxu0 0.0
    %6623 = vmatpush1.msra.mxu0 0.0
    %6624 = vmatprep.subr.mxu0 0.0
    %6625 = vmatpush1.msra.mxu0 0.0
    %6626 = vmatprep.subr.mxu0 0.0
    %6627 = vmatpush1.msra.mxu0 0.0
    %6628 = vmatprep.mubr.f32.mxu0 0.0
    %6629 = vmatmul.mubr.f32.gmra.mrb[0].mxu0 %v1140
    %v6630 = vpop.f32.mrb[0].mxu0
    %v6631 = vadd.f32 0.0, %v6630
    %v6632 = vpop.f32.mrb[0].mxu0
    %6633 = vdwg.mxu0
    %6634 = vmatprep.subr.mxu0 0.0
    %6635 = vmatpush1.msra.mxu0 %v6281
    %6636 = vmatprep.subr.mxu0 0.0
    %6637 = vmatpush1.msra.mxu0 0.0
    %6638 = vmatprep.subr.mxu0 0.0
    %6639 = vmatpush1.msra.mxu0 0.0
    %6640 = vmatprep.subr.mxu0 0.0
    %6641 = vmatpush1.msra.mxu0 0.0
    %6642 = vmatprep.subr.mxu0 0.0
    %6643 = vmatpush1.msra.mxu0 0.0
    %6644 = vmatprep.subr.mxu0 0.0
    %6645 = vmatpush1.msra.mxu0 0.0
    %6646 = vmatprep.subr.mxu0 0.0
    %6647 = vmatpush1.msra.mxu0 0.0
    %6648 = vmatprep.subr.mxu0 0.0
    %6649 = vmatpush1.msra.mxu0 0.0
    %6650 = vmatprep.subr.mxu0 0.0
    %6651 = vmatpush1.msra.mxu0 0.0
    %6652 = vmatprep.subr.mxu0 0.0
    %6653 = vmatpush1.msra.mxu0 0.0
    %6654 = vmatprep.subr.mxu0 0.0
    %6655 = vmatpush1.msra.mxu0 0.0
    %6656 = vmatprep.subr.mxu0 0.0
    %6657 = vmatpush1.msra.mxu0 0.0
    %6658 = vmatprep.subr.mxu0 0.0
    %6659 = vmatpush1.msra.mxu0 0.0
    %6660 = vmatprep.subr.mxu0 0.0
    %6661 = vmatpush1.msra.mxu0 0.0
    %6662 = vmatprep.subr.mxu0 0.0
    %6663 = vmatpush1.msra.mxu0 0.0
    %6664 = vmatprep.subr.mxu0 0.0
    %6665 = vmatpush1.msra.mxu0 0.0
    %6666 = vmatprep.subr.mxu0 0.0
    %6667 = vmatpush1.msra.mxu0 0.0
    %6668 = vmatprep.subr.mxu0 0.0
    %6669 = vmatpush1.msra.mxu0 0.0
    %6670 = vmatprep.subr.mxu0 0.0
    %6671 = vmatpush1.msra.mxu0 0.0
    %6672 = vmatprep.subr.mxu0 0.0
    %6673 = vmatpush1.msra.mxu0 0.0
    %6674 = vmatprep.subr.mxu0 0.0
    %6675 = vmatpush1.msra.mxu0 0.0
    %6676 = vmatprep.subr.mxu0 0.0
    %6677 = vmatpush1.msra.mxu0 0.0
    %6678 = vmatprep.subr.mxu0 0.0
    %6679 = vmatpush1.msra.mxu0 0.0
    %6680 = vmatprep.subr.mxu0 0.0
    %6681 = vmatpush1.msra.mxu0 0.0
    %6682 = vmatprep.subr.mxu0 0.0
    %6683 = vmatpush1.msra.mxu0 0.0
    %6684 = vmatprep.subr.mxu0 0.0
    %6685 = vmatpush1.msra.mxu0 0.0
    %6686 = vmatprep.subr.mxu0 0.0
    %6687 = vmatpush1.msra.mxu0 0.0
    %6688 = vmatprep.subr.mxu0 0.0
    %6689 = vmatpush1.msra.mxu0 0.0
    %6690 = vmatprep.subr.mxu0 0.0
    %6691 = vmatpush1.msra.mxu0 0.0
    %6692 = vmatprep.subr.mxu0 0.0
    %6693 = vmatpush1.msra.mxu0 0.0
    %6694 = vmatprep.subr.mxu0 0.0
    %6695 = vmatpush1.msra.mxu0 0.0
    %6696 = vmatprep.subr.mxu0 0.0
    %6697 = vmatpush1.msra.mxu0 0.0
    %6698 = vmatprep.mubr.f32.mxu0 0.0
    %6699 = vmatmul.mubr.f32.gmra.mrb[0].mxu0 %v1140
    %v6700 = vpop.f32.mrb[0].mxu0
    %v6701 = vadd.f32 0.0, %v6700
    %v6702 = vpop.f32.mrb[0].mxu0
    %6703 = vdwg.mxu0
    %s6704 = scalar_lea.vmem %s10, 64
    %v6705 = vld [vmem:[%s6704] sm:$0xff]
    %v6706 = vld [vmem:[%s6704 + $0x8] sm:$0xff]
    %v6707 = vld [vmem:[%s6704 + $0x10] sm:$0xff]
    %v6708 = vld [vmem:[%s6704 + $0x18] sm:$0xff]
    %s6709 = scalar_lea.vmem [#allocation7], 64
    %v6710 = vld [vmem:[%s6709] sm:$0xff]
    %v6711 = vld [vmem:[%s6709 + $0x8] sm:$0xff]
    %v6712 = vld [vmem:[%s6709 + $0x10] sm:$0xff]
    %v6713 = vld [vmem:[%s6709 + $0x18] sm:$0xff]
    %v6715 = vsel %vm521, %v5931, 0
    %v6718 = vsel %vm521, %v6001, 0
    %v6721 = vsel %vm521, %v6071, 0
    %v6724 = vsel %vm521, %v6141, 0
    %v6727 = vsel %vm521, %v6211, 0
    %v6730 = vsel %vm521, %v6281, 0
    %6732 = vmatprep.subr.mxu0 0.0
    %6733 = vmatpush1.msra.mxu0 %v6710
    %6734 = vmatprep.subr.mxu0 0.0
    %6735 = vmatpush1.msra.mxu0 %v6711
    %6736 = vmatprep.subr.mxu0 0.0
    %6737 = vmatpush1.msra.mxu0 %v6712
    %6738 = vmatprep.subr.mxu0 0.0
    %6739 = vmatpush1.msra.mxu0 %v6713
    %6740 = vmatprep.subr.mxu0 0.0
    %6741 = vmatpush1.msra.mxu0 0.0
    %6742 = vmatprep.subr.mxu0 0.0
    %6743 = vmatpush1.msra.mxu0 0.0
    %6744 = vmatprep.subr.mxu0 0.0
    %6745 = vmatpush1.msra.mxu0 0.0
    %6746 = vmatprep.subr.mxu0 0.0
    %6747 = vmatpush1.msra.mxu0 0.0
    %6748 = vmatprep.subr.mxu0 0.0
    %6749 = vmatpush1.msra.mxu0 0.0
    %6750 = vmatprep.subr.mxu0 0.0
    %6751 = vmatpush1.msra.mxu0 0.0
    %6752 = vmatprep.subr.mxu0 0.0
    %6753 = vmatpush1.msra.mxu0 0.0
    %6754 = vmatprep.subr.mxu0 0.0
    %6755 = vmatpush1.msra.mxu0 0.0
    %6756 = vmatprep.subr.mxu0 0.0
    %6757 = vmatpush1.msra.mxu0 0.0
    %6758 = vmatprep.subr.mxu0 0.0
    %6759 = vmatpush1.msra.mxu0 0.0
    %6760 = vmatprep.subr.mxu0 0.0
    %6761 = vmatpush1.msra.mxu0 0.0
    %6762 = vmatprep.subr.mxu0 0.0
    %6763 = vmatpush1.msra.mxu0 0.0
    %6764 = vmatprep.subr.mxu0 0.0
    %6765 = vmatpush1.msra.mxu0 0.0
    %6766 = vmatprep.subr.mxu0 0.0
    %6767 = vmatpush1.msra.mxu0 0.0
    %6768 = vmatprep.subr.mxu0 0.0
    %6769 = vmatpush1.msra.mxu0 0.0
    %6770 = vmatprep.subr.mxu0 0.0
    %6771 = vmatpush1.msra.mxu0 0.0
    %6772 = vmatprep.subr.mxu0 0.0
    %6773 = vmatpush1.msra.mxu0 0.0
    %6774 = vmatprep.subr.mxu0 0.0
    %6775 = vmatpush1.msra.mxu0 0.0
    %6776 = vmatprep.subr.mxu0 0.0
    %6777 = vmatpush1.msra.mxu0 0.0
    %6778 = vmatprep.subr.mxu0 0.0
    %6779 = vmatpush1.msra.mxu0 0.0
    %6780 = vmatprep.subr.mxu0 0.0
    %6781 = vmatpush1.msra.mxu0 0.0
    %6782 = vmatprep.subr.mxu0 0.0
    %6783 = vmatpush1.msra.mxu0 0.0
    %6784 = vmatprep.subr.mxu0 0.0
    %6785 = vmatpush1.msra.mxu0 0.0
    %6786 = vmatprep.subr.mxu0 0.0
    %6787 = vmatpush1.msra.mxu0 0.0
    %6788 = vmatprep.subr.mxu0 0.0
    %6789 = vmatpush1.msra.mxu0 0.0
    %6790 = vmatprep.subr.mxu0 0.0
    %6791 = vmatpush1.msra.mxu0 0.0
    %6792 = vmatprep.subr.mxu0 0.0
    %6793 = vmatpush1.msra.mxu0 0.0
    %6794 = vmatprep.subr.mxu0 0.0
    %6795 = vmatpush1.msra.mxu0 0.0
    %6796 = vmatprep.mubr.f32.mxu0 0.0
    %6797 = vmatmul.mubr.f32.gmra.mrb[0].mxu0 %v6715
    %v6798 = vpop.f32.mrb[0].mxu0
    %v6799 = vadd.f32 0.0, %v6798
    %v6800 = vpop.f32.mrb[0].mxu0
    %6801 = vmatprep.mubr.f32.mxu0 0.0
    %6802 = vmatmul.mubr.f32.gmra.mrb[0].mxu0 %v6718
    %v6803 = vpop.f32.mrb[0].mxu0
    %v6804 = vpop.f32.mrb[0].mxu0
    %6805 = vmatprep.mubr.f32.mxu0 0.0
    %6806 = vmatmul.mubr.f32.gmra.mrb[0].mxu0 %v6721
    %v6807 = vpop.f32.mrb[0].mxu0
    %v6808 = vadd.f32 0.0, %v6807
    %v6809 = vpop.f32.mrb[0].mxu0
    %6810 = vmatprep.mubr.f32.mxu0 0.0
    %6811 = vmatmul.mubr.f32.gmra.mrb[0].mxu0 %v6724
    %v6812 = vpop.f32.mrb[0].mxu0
    %v6813 = vadd.f32 0.0, %v6812
    %v6814 = vpop.f32.mrb[0].mxu0
    %6815 = vmatprep.mubr.f32.mxu0 0.0
    %6816 = vmatmul.mubr.f32.gmra.mrb[0].mxu0 %v6727
    %v6817 = vpop.f32.mrb[0].mxu0
    %v6818 = vpop.f32.mrb[0].mxu0
    %6819 = vmatprep.mubr.f32.mxu0 0.0
    %6820 = vmatmul.mubr.f32.gmra.mrb[0].mxu0 %v6730
    %v6821 = vpop.f32.mrb[0].mxu0
    %v6822 = vadd.f32 0.0, %v6821
    %v6823 = vpop.f32.mrb[0].mxu0
    %6824 = vdwg.mxu0
    %6825 = vmatprep.subr.mxu0 0.0
    %6826 = vmatpush1.msra.mxu0 %v6705
    %6827 = vmatprep.subr.mxu0 0.0
    %6828 = vmatpush1.msra.mxu0 %v6706
    %6829 = vmatprep.subr.mxu0 0.0
    %6830 = vmatpush1.msra.mxu0 %v6707
    %6831 = vmatprep.subr.mxu0 0.0
    %6832 = vmatpush1.msra.mxu0 %v6708
    %6833 = vmatprep.subr.mxu0 0.0
    %6834 = vmatpush1.msra.mxu0 0.0
    %6835 = vmatprep.subr.mxu0 0.0
    %6836 = vmatpush1.msra.mxu0 0.0
    %6837 = vmatprep.subr.mxu0 0.0
    %6838 = vmatpush1.msra.mxu0 0.0
    %6839 = vmatprep.subr.mxu0 0.0
    %6840 = vmatpush1.msra.mxu0 0.0
    %6841 = vmatprep.subr.mxu0 0.0
    %6842 = vmatpush1.msra.mxu0 0.0
    %6843 = vmatprep.subr.mxu0 0.0
    %6844 = vmatpush1.msra.mxu0 0.0
    %6845 = vmatprep.subr.mxu0 0.0
    %6846 = vmatpush1.msra.mxu0 0.0
    %6847 = vmatprep.subr.mxu0 0.0
    %6848 = vmatpush1.msra.mxu0 0.0
    %6849 = vmatprep.subr.mxu0 0.0
    %6850 = vmatpush1.msra.mxu0 0.0
    %6851 = vmatprep.subr.mxu0 0.0
    %6852 = vmatpush1.msra.mxu0 0.0
    %6853 = vmatprep.subr.mxu0 0.0
    %6854 = vmatpush1.msra.mxu0 0.0
    %6855 = vmatprep.subr.mxu0 0.0
    %6856 = vmatpush1.msra.mxu0 0.0
    %6857 = vmatprep.subr.mxu0 0.0
    %6858 = vmatpush1.msra.mxu0 0.0
    %6859 = vmatprep.subr.mxu0 0.0
    %6860 = vmatpush1.msra.mxu0 0.0
    %6861 = vmatprep.subr.mxu0 0.0
    %6862 = vmatpush1.msra.mxu0 0.0
    %6863 = vmatprep.subr.mxu0 0.0
    %6864 = vmatpush1.msra.mxu0 0.0
    %6865 = vmatprep.subr.mxu0 0.0
    %6866 = vmatpush1.msra.mxu0 0.0
    %6867 = vmatprep.subr.mxu0 0.0
    %6868 = vmatpush1.msra.mxu0 0.0
    %6869 = vmatprep.subr.mxu0 0.0
    %6870 = vmatpush1.msra.mxu0 0.0
    %6871 = vmatprep.subr.mxu0 0.0
    %6872 = vmatpush1.msra.mxu0 0.0
    %6873 = vmatprep.subr.mxu0 0.0
    %6874 = vmatpush1.msra.mxu0 0.0
    %6875 = vmatprep.subr.mxu0 0.0
    %6876 = vmatpush1.msra.mxu0 0.0
    %6877 = vmatprep.subr.mxu0 0.0
    %6878 = vmatpush1.msra.mxu0 0.0
    %6879 = vmatprep.subr.mxu0 0.0
    %6880 = vmatpush1.msra.mxu0 0.0
    %6881 = vmatprep.subr.mxu0 0.0
    %6882 = vmatpush1.msra.mxu0 0.0
    %6883 = vmatprep.subr.mxu0 0.0
    %6884 = vmatpush1.msra.mxu0 0.0
    %6885 = vmatprep.subr.mxu0 0.0
    %6886 = vmatpush1.msra.mxu0 0.0
    %6887 = vmatprep.subr.mxu0 0.0
    %6888 = vmatpush1.msra.mxu0 0.0
    %6889 = vmatprep.mubr.f32.mxu0 0.0
    %6890 = vmatmul.mubr.f32.gmra.mrb[0].mxu0 %v5754
    %v6891 = vpop.f32.mrb[0].mxu0
    %v6892 = vadd.f32 %v6799, %v6891
    %v6893 = vpop.f32.mrb[0].mxu0
    %6894 = vmatprep.mubr.f32.mxu0 0.0
    %6895 = vmatmul.mubr.f32.gmra.mrb[0].mxu0 %v5757
    %v6896 = vpop.f32.mrb[0].mxu0
    %v6897 = vpop.f32.mrb[0].mxu0
    %6898 = vmatprep.mubr.f32.mxu0 0.0
    %6899 = vmatmul.mubr.f32.gmra.mrb[0].mxu0 %v5760
    %v6900 = vpop.f32.mrb[0].mxu0
    %v6901 = vadd.f32 %v6808, %v6900
    %v6902 = vpop.f32.mrb[0].mxu0
    %6903 = vmatprep.mubr.f32.mxu0 0.0
    %6904 = vmatmul.mubr.f32.gmra.mrb[0].mxu0 %v5763
    %v6905 = vpop.f32.mrb[0].mxu0
    %v6906 = vadd.f32 %v6813, %v6905
    %v6907 = vpop.f32.mrb[0].mxu0
    %6908 = vmatprep.mubr.f32.mxu0 0.0
    %6909 = vmatmul.mubr.f32.gmra.mrb[0].mxu0 %v5766
    %v6910 = vpop.f32.mrb[0].mxu0
    %v6911 = vpop.f32.mrb[0].mxu0
    %6912 = vmatprep.mubr.f32.mxu0 0.0
    %6913 = vmatmul.mubr.f32.gmra.mrb[0].mxu0 %v5769
    %v6914 = vpop.f32.mrb[0].mxu0
    %v6915 = vadd.f32 %v6822, %v6914
    %v6916 = vpop.f32.mrb[0].mxu0
    %6917 = vdwg.mxu0
    %s6918 = scalar_lea.vmem [#allocation9], 64
    %v6919 = vld [vmem:[%s6918] sm:$0xff]
    %v6920 = vld [vmem:[%s6918 + $0x8] sm:$0xff]
    %v6921 = vld [vmem:[%s6918 + $0x10] sm:$0xff]
    %v6922 = vld [vmem:[%s6918 + $0x18] sm:$0xff]
    %v6924 = vsel %vm521, %v6351, 0
    %v6927 = vsel %vm521, %v6421, 0
    %v6930 = vsel %vm521, %v6491, 0
    %v6933 = vsel %vm521, %v6561, 0
    %v6936 = vsel %vm521, %v6631, 0
    %v6939 = vsel %vm521, %v6701, 0
    %6941 = vmatprep.subr.mxu0 0.0
    %6942 = vmatpush1.msra.mxu0 %v6919
    %6943 = vmatprep.subr.mxu0 0.0
    %6944 = vmatpush1.msra.mxu0 %v6920
    %6945 = vmatprep.subr.mxu0 0.0
    %6946 = vmatpush1.msra.mxu0 %v6921
    %6947 = vmatprep.subr.mxu0 0.0
    %6948 = vmatpush1.msra.mxu0 %v6922
    %6949 = vmatprep.subr.mxu0 0.0
    %6950 = vmatpush1.msra.mxu0 0.0
    %6951 = vmatprep.subr.mxu0 0.0
    %6952 = vmatpush1.msra.mxu0 0.0
    %6953 = vmatprep.subr.mxu0 0.0
    %6954 = vmatpush1.msra.mxu0 0.0
    %6955 = vmatprep.subr.mxu0 0.0
    %6956 = vmatpush1.msra.mxu0 0.0
    %6957 = vmatprep.subr.mxu0 0.0
    %6958 = vmatpush1.msra.mxu0 0.0
    %6959 = vmatprep.subr.mxu0 0.0
    %6960 = vmatpush1.msra.mxu0 0.0
    %6961 = vmatprep.subr.mxu0 0.0
    %6962 = vmatpush1.msra.mxu0 0.0
    %6963 = vmatprep.subr.mxu0 0.0
    %6964 = vmatpush1.msra.mxu0 0.0
    %6965 = vmatprep.subr.mxu0 0.0
    %6966 = vmatpush1.msra.mxu0 0.0
    %6967 = vmatprep.subr.mxu0 0.0
    %6968 = vmatpush1.msra.mxu0 0.0
    %6969 = vmatprep.subr.mxu0 0.0
    %6970 = vmatpush1.msra.mxu0 0.0
    %6971 = vmatprep.subr.mxu0 0.0
    %6972 = vmatpush1.msra.mxu0 0.0
    %6973 = vmatprep.subr.mxu0 0.0
    %6974 = vmatpush1.msra.mxu0 0.0
    %6975 = vmatprep.subr.mxu0 0.0
    %6976 = vmatpush1.msra.mxu0 0.0
    %6977 = vmatprep.subr.mxu0 0.0
    %6978 = vmatpush1.msra.mxu0 0.0
    %6979 = vmatprep.subr.mxu0 0.0
    %6980 = vmatpush1.msra.mxu0 0.0
    %6981 = vmatprep.subr.mxu0 0.0
    %6982 = vmatpush1.msra.mxu0 0.0
    %6983 = vmatprep.subr.mxu0 0.0
    %6984 = vmatpush1.msra.mxu0 0.0
    %6985 = vmatprep.subr.mxu0 0.0
    %6986 = vmatpush1.msra.mxu0 0.0
    %6987 = vmatprep.subr.mxu0 0.0
    %6988 = vmatpush1.msra.mxu0 0.0
    %6989 = vmatprep.subr.mxu0 0.0
    %6990 = vmatpush1.msra.mxu0 0.0
    %6991 = vmatprep.subr.mxu0 0.0
    %6992 = vmatpush1.msra.mxu0 0.0
    %6993 = vmatprep.subr.mxu0 0.0
    %6994 = vmatpush1.msra.mxu0 0.0
    %6995 = vmatprep.subr.mxu0 0.0
    %6996 = vmatpush1.msra.mxu0 0.0
    %6997 = vmatprep.subr.mxu0 0.0
    %6998 = vmatpush1.msra.mxu0 0.0
    %6999 = vmatprep.subr.mxu0 0.0
    %7000 = vmatpush1.msra.mxu0 0.0
    %7001 = vmatprep.subr.mxu0 0.0
    %7002 = vmatpush1.msra.mxu0 0.0
    %7003 = vmatprep.subr.mxu0 0.0
    %7004 = vmatpush1.msra.mxu0 0.0
    %7005 = vmatprep.mubr.f32.mxu0 0.0
    %7006 = vmatmul.mubr.f32.gmra.mrb[0].mxu0 %v6924
    %v7007 = vpop.f32.mrb[0].mxu0
    %v7008 = vadd.f32 0.0, %v7007
    %v7009 = vpop.f32.mrb[0].mxu0
    %7010 = vmatprep.mubr.f32.mxu0 0.0
    %7011 = vmatmul.mubr.f32.gmra.mrb[0].mxu0 %v6927
    %v7012 = vpop.f32.mrb[0].mxu0
    %v7013 = vpop.f32.mrb[0].mxu0
    %7014 = vmatprep.mubr.f32.mxu0 0.0
    %7015 = vmatmul.mubr.f32.gmra.mrb[0].mxu0 %v6930
    %v7016 = vpop.f32.mrb[0].mxu0
    %v7017 = vadd.f32 0.0, %v7016
    %v7018 = vpop.f32.mrb[0].mxu0
    %7019 = vmatprep.mubr.f32.mxu0 0.0
    %7020 = vmatmul.mubr.f32.gmra.mrb[0].mxu0 %v6933
    %v7021 = vpop.f32.mrb[0].mxu0
    %v7022 = vadd.f32 0.0, %v7021
    %v7023 = vpop.f32.mrb[0].mxu0
    %7024 = vmatprep.mubr.f32.mxu0 0.0
    %7025 = vmatmul.mubr.f32.gmra.mrb[0].mxu0 %v6936
    %v7026 = vpop.f32.mrb[0].mxu0
    %v7027 = vpop.f32.mrb[0].mxu0
    %7028 = vmatprep.mubr.f32.mxu0 0.0
    %7029 = vmatmul.mubr.f32.gmra.mrb[0].mxu0 %v6939
    %v7030 = vpop.f32.mrb[0].mxu0
    %v7031 = vadd.f32 0.0, %v7030
    %v7032 = vpop.f32.mrb[0].mxu0
    %7033 = vdwg.mxu0
    %v7034 = vadd.f32 %v6892, %v7008
    %v7035 = vadd.f32 %v6901, %v7017
    %v7036 = vadd.f32 %v6906, %v7022
    %v7037 = vadd.f32 %v6915, %v7031
    %s7038 = scalar_lea.vmem [#allocation10], 2
    %v7039 = vld [vmem:[%s7038] sm:$0x1]
    %v7041 = vlaneseq
    %v7042 = vshrl.u32 %v7041, 7
    %v7043 = vsub.s32 0, %v7042
    %v7044 = vrot.slane %v7039, %v7043
    %v7046 = vadd.f32 %v7034, %v7044
    %v7047 = vadd.f32 %v7035, %v7044
    %v7048 = vadd.f32 %v7036, %v7044
    %v7049 = vadd.f32 %v7037, %v7044
    %v7050 = vadd.f32 %v7046, %v5423
    %v7051 = vadd.f32 %v7047, %v5425
    %v7052 = vadd.f32 %v7048, %v5427
    %v7053 = vadd.f32 %v7049, %v5429
    %s7054 = scalar_lea.vmem [#allocation12], 2
    %v7055 = vld [vmem:[%s7054] sm:$0x1]
    %v7057 = vlaneseq
    %v7058 = vshrl.u32 %v7057, 7
    %v7059 = vsub.s32 0, %v7058
    %v7060 = vrot.slane %v7055, %v7059
    %v7062 = vmul.f32 %v7050, %v7060
    %v7063 = vmul.f32 %v7051, %v7060
    %v7064 = vmul.f32 %v7052, %v7060
    %v7065 = vmul.f32 %v7053, %v7060
    %s7066 = scalar_lea.vmem [#allocation13], 2
    %v7067 = vld [vmem:[%s7066] sm:$0x1]
    %v7069 = vlaneseq
    %v7070 = vshrl.u32 %v7069, 7
    %v7071 = vsub.s32 0, %v7070
    %v7072 = vrot.slane %v7067, %v7071
    %v7074 = vadd.f32 %v7062, %v7072
    %v7075 = vadd.f32 %v7063, %v7072
    %v7076 = vadd.f32 %v7064, %v7072
    %v7077 = vadd.f32 %v7065, %v7072
    %s7078 = scalar_lea.vmem %s5, 96
    %v7079 = vld [vmem:[%s7078] sm:$0xff]
    %v7080 = vld [vmem:[%s7078 + $0x8] sm:$0xff]
    %v7081 = vld [vmem:[%s7078 + $0x10] sm:$0xff]
    %v7082 = vld [vmem:[%s7078 + $0x18] sm:$0xff]
    %s7083 = scalar_lea.vmem %s6, 96
    %v7084 = vld [vmem:[%s7083] sm:$0xff]
    %v7085 = vld [vmem:[%s7083 + $0x8] sm:$0xff]
    %v7086 = vld [vmem:[%s7083 + $0x10] sm:$0xff]
    %v7087 = vld [vmem:[%s7083 + $0x18] sm:$0xff]
    %v7089 = vsel %vm521, %v7075, 0
    %v7092 = vsel %vm521, %v7077, 0
    %7094 = vmatprep.subr.mxu0 0.0
    %7095 = vmatpush1.msra.mxu0 %v7084
    %7096 = vmatprep.subr.mxu0 0.0
    %7097 = vmatpush1.msra.mxu0 %v7085
    %7098 = vmatprep.subr.mxu0 0.0
    %7099 = vmatpush1.msra.mxu0 %v7086
    %7100 = vmatprep.subr.mxu0 0.0
    %7101 = vmatpush1.msra.mxu0 %v7087
    %7102 = vmatprep.subr.mxu0 0.0
    %7103 = vmatpush1.msra.mxu0 0.0
    %7104 = vmatprep.subr.mxu0 0.0
    %7105 = vmatpush1.msra.mxu0 0.0
    %7106 = vmatprep.subr.mxu0 0.0
    %7107 = vmatpush1.msra.mxu0 0.0
    %7108 = vmatprep.subr.mxu0 0.0
    %7109 = vmatpush1.msra.mxu0 0.0
    %7110 = vmatprep.subr.mxu0 0.0
    %7111 = vmatpush1.msra.mxu0 0.0
    %7112 = vmatprep.subr.mxu0 0.0
    %7113 = vmatpush1.msra.mxu0 0.0
    %7114 = vmatprep.subr.mxu0 0.0
    %7115 = vmatpush1.msra.mxu0 0.0
    %7116 = vmatprep.subr.mxu0 0.0
    %7117 = vmatpush1.msra.mxu0 0.0
    %7118 = vmatprep.subr.mxu0 0.0
    %7119 = vmatpush1.msra.mxu0 0.0
    %7120 = vmatprep.subr.mxu0 0.0
    %7121 = vmatpush1.msra.mxu0 0.0
    %7122 = vmatprep.subr.mxu0 0.0
    %7123 = vmatpush1.msra.mxu0 0.0
    %7124 = vmatprep.subr.mxu0 0.0
    %7125 = vmatpush1.msra.mxu0 0.0
    %7126 = vmatprep.subr.mxu0 0.0
    %7127 = vmatpush1.msra.mxu0 0.0
    %7128 = vmatprep.subr.mxu0 0.0
    %7129 = vmatpush1.msra.mxu0 0.0
    %7130 = vmatprep.subr.mxu0 0.0
    %7131 = vmatpush1.msra.mxu0 0.0
    %7132 = vmatprep.subr.mxu0 0.0
    %7133 = vmatpush1.msra.mxu0 0.0
    %7134 = vmatprep.subr.mxu0 0.0
    %7135 = vmatpush1.msra.mxu0 0.0
    %7136 = vmatprep.subr.mxu0 0.0
    %7137 = vmatpush1.msra.mxu0 0.0
    %7138 = vmatprep.subr.mxu0 0.0
    %7139 = vmatpush1.msra.mxu0 0.0
    %7140 = vmatprep.subr.mxu0 0.0
    %7141 = vmatpush1.msra.mxu0 0.0
    %7142 = vmatprep.subr.mxu0 0.0
    %7143 = vmatpush1.msra.mxu0 0.0
    %7144 = vmatprep.subr.mxu0 0.0
    %7145 = vmatpush1.msra.mxu0 0.0
    %7146 = vmatprep.subr.mxu0 0.0
    %7147 = vmatpush1.msra.mxu0 0.0
    %7148 = vmatprep.subr.mxu0 0.0
    %7149 = vmatpush1.msra.mxu0 0.0
    %7150 = vmatprep.subr.mxu0 0.0
    %7151 = vmatpush1.msra.mxu0 0.0
    %7152 = vmatprep.subr.mxu0 0.0
    %7153 = vmatpush1.msra.mxu0 0.0
    %7154 = vmatprep.subr.mxu0 0.0
    %7155 = vmatpush1.msra.mxu0 0.0
    %7156 = vmatprep.subr.mxu0 0.0
    %7157 = vmatpush1.msra.mxu0 0.0
    %7158 = vmatprep.mubr.f32.mxu0 0.0
    %7159 = vmatmul.mubr.f32.gmra.mrb[0].mxu0 %v7089
    %v7160 = vpop.f32.mrb[0].mxu0
    %v7161 = vadd.f32 0.0, %v7160
    %v7162 = vpop.f32.mrb[0].mxu0
    %7163 = vmatprep.mubr.f32.mxu0 0.0
    %7164 = vmatmul.mubr.f32.gmra.mrb[0].mxu0 %v7092
    %v7165 = vpop.f32.mrb[0].mxu0
    %v7166 = vadd.f32 0.0, %v7165
    %v7167 = vpop.f32.mrb[0].mxu0
    %7168 = vdwg.mxu0
    %v7170 = vsel %vm521, %v7074, 0
    %v7173 = vsel %vm521, %v7076, 0
    %7175 = vmatprep.subr.mxu0 0.0
    %7176 = vmatpush1.msra.mxu0 %v7079
    %7177 = vmatprep.subr.mxu0 0.0
    %7178 = vmatpush1.msra.mxu0 %v7080
    %7179 = vmatprep.subr.mxu0 0.0
    %7180 = vmatpush1.msra.mxu0 %v7081
    %7181 = vmatprep.subr.mxu0 0.0
    %7182 = vmatpush1.msra.mxu0 %v7082
    %7183 = vmatprep.subr.mxu0 0.0
    %7184 = vmatpush1.msra.mxu0 0.0
    %7185 = vmatprep.subr.mxu0 0.0
    %7186 = vmatpush1.msra.mxu0 0.0
    %7187 = vmatprep.subr.mxu0 0.0
    %7188 = vmatpush1.msra.mxu0 0.0
    %7189 = vmatprep.subr.mxu0 0.0
    %7190 = vmatpush1.msra.mxu0 0.0
    %7191 = vmatprep.subr.mxu0 0.0
    %7192 = vmatpush1.msra.mxu0 0.0
    %7193 = vmatprep.subr.mxu0 0.0
    %7194 = vmatpush1.msra.mxu0 0.0
    %7195 = vmatprep.subr.mxu0 0.0
    %7196 = vmatpush1.msra.mxu0 0.0
    %7197 = vmatprep.subr.mxu0 0.0
    %7198 = vmatpush1.msra.mxu0 0.0
    %7199 = vmatprep.subr.mxu0 0.0
    %7200 = vmatpush1.msra.mxu0 0.0
    %7201 = vmatprep.subr.mxu0 0.0
    %7202 = vmatpush1.msra.mxu0 0.0
    %7203 = vmatprep.subr.mxu0 0.0
    %7204 = vmatpush1.msra.mxu0 0.0
    %7205 = vmatprep.subr.mxu0 0.0
    %7206 = vmatpush1.msra.mxu0 0.0
    %7207 = vmatprep.subr.mxu0 0.0
    %7208 = vmatpush1.msra.mxu0 0.0
    %7209 = vmatprep.subr.mxu0 0.0
    %7210 = vmatpush1.msra.mxu0 0.0
    %7211 = vmatprep.subr.mxu0 0.0
    %7212 = vmatpush1.msra.mxu0 0.0
    %7213 = vmatprep.subr.mxu0 0.0
    %7214 = vmatpush1.msra.mxu0 0.0
    %7215 = vmatprep.subr.mxu0 0.0
    %7216 = vmatpush1.msra.mxu0 0.0
    %7217 = vmatprep.subr.mxu0 0.0
    %7218 = vmatpush1.msra.mxu0 0.0
    %7219 = vmatprep.subr.mxu0 0.0
    %7220 = vmatpush1.msra.mxu0 0.0
    %7221 = vmatprep.subr.mxu0 0.0
    %7222 = vmatpush1.msra.mxu0 0.0
    %7223 = vmatprep.subr.mxu0 0.0
    %7224 = vmatpush1.msra.mxu0 0.0
    %7225 = vmatprep.subr.mxu0 0.0
    %7226 = vmatpush1.msra.mxu0 0.0
    %7227 = vmatprep.subr.mxu0 0.0
    %7228 = vmatpush1.msra.mxu0 0.0
    %7229 = vmatprep.subr.mxu0 0.0
    %7230 = vmatpush1.msra.mxu0 0.0
    %7231 = vmatprep.subr.mxu0 0.0
    %7232 = vmatpush1.msra.mxu0 0.0
    %7233 = vmatprep.subr.mxu0 0.0
    %7234 = vmatpush1.msra.mxu0 0.0
    %7235 = vmatprep.subr.mxu0 0.0
    %7236 = vmatpush1.msra.mxu0 0.0
    %7237 = vmatprep.subr.mxu0 0.0
    %7238 = vmatpush1.msra.mxu0 0.0
    %7239 = vmatprep.mubr.f32.mxu0 0.0
    %7240 = vmatmul.mubr.f32.gmra.mrb[0].mxu0 %v7170
    %v7241 = vpop.f32.mrb[0].mxu0
    %v7242 = vadd.f32 %v7161, %v7241
    %v7243 = vpop.f32.mrb[0].mxu0
    %7244 = vmatprep.mubr.f32.mxu0 0.0
    %7245 = vmatmul.mubr.f32.gmra.mrb[0].mxu0 %v7173
    %v7246 = vpop.f32.mrb[0].mxu0
    %v7247 = vadd.f32 %v7166, %v7246
    %v7248 = vpop.f32.mrb[0].mxu0
    %7249 = vdwg.mxu0
    %s7250 = scalar_lea.vmem [#allocation4], 3
    %v7251 = vld [vmem:[%s7250] sm:$0x1]
    %v7253 = vlaneseq
    %v7254 = vshrl.u32 %v7253, 7
    %v7255 = vsub.s32 0, %v7254
    %v7256 = vrot.slane %v7251, %v7255
    %v7258 = vadd.f32 %v7242, %v7256
    %v7259 = vadd.f32 %v7247, %v7256
    %v7260 = vtanh.pop %v7258
    %v7261 = vtanh.pop %v7259
    %v7262 = vxor.u32 %v7258, 2147483648
    %v7263 = vxor.u32 %v7259, 2147483648
    %v7264 = vmul.f32 %v7262, 1.442695
    %v7265 = vpow.pop %v7264
    %v7266 = vmul.f32 %v7263, 1.442695
    %v7267 = vpow.pop %v7266
    %v7268 = vadd.f32 %v7265, 1.0
    %v7269 = vadd.f32 %v7267, 1.0
    %v7270 = vrcp.pop %v7268
    %v7271 = vmul.f32 1.0, %v7270
    %v7272 = vrcp.pop %v7269
    %v7273 = vmul.f32 1.0, %v7272
    %7276 = vrot.lane.b32.xlu0 %v7271, 96
    %v7277 = vpop.permute.xlu0 %7276
    %7278 = vrot.lane.b32.xlu0 %v7273, 96
    %v7279 = vpop.permute.xlu0 %7278
    %v7282 = vmul.f32 %v7260, %v7277
    %v7283 = vmul.f32 %v7261, %v7279
    %s7284 = scalar_lea.vmem %s8, 96
    %v7285 = vld [vmem:[%s7284] sm:$0xff]
    %v7286 = vld [vmem:[%s7284 + $0x8] sm:$0xff]
    %v7287 = vld [vmem:[%s7284 + $0x10] sm:$0xff]
    %v7288 = vld [vmem:[%s7284 + $0x18] sm:$0xff]
    %s7289 = scalar_lea.vmem [#allocation6], 3
    %v7290 = vld [vmem:[%s7289] sm:$0x1]
    %v7292 = vlaneseq
    %v7293 = vshrl.u32 %v7292, 7
    %v7294 = vsub.s32 0, %v7293
    %v7295 = vrot.slane %v7290, %v7294
    %v7298 = vsel %vm521, %v7282, 0
    %v7301 = vsel %vm521, %v7283, 0
    %7303 = vmatprep.subr.mxu0 0.0
    %7304 = vmatpush1.msra.mxu0 %v7285
    %7305 = vmatprep.subr.mxu0 0.0
    %7306 = vmatpush1.msra.mxu0 %v7286
    %7307 = vmatprep.subr.mxu0 0.0
    %7308 = vmatpush1.msra.mxu0 %v7287
    %7309 = vmatprep.subr.mxu0 0.0
    %7310 = vmatpush1.msra.mxu0 %v7288
    %7311 = vmatprep.subr.mxu0 0.0
    %7312 = vmatpush1.msra.mxu0 0.0
    %7313 = vmatprep.subr.mxu0 0.0
    %7314 = vmatpush1.msra.mxu0 0.0
    %7315 = vmatprep.subr.mxu0 0.0
    %7316 = vmatpush1.msra.mxu0 0.0
    %7317 = vmatprep.subr.mxu0 0.0
    %7318 = vmatpush1.msra.mxu0 0.0
    %7319 = vmatprep.subr.mxu0 0.0
    %7320 = vmatpush1.msra.mxu0 0.0
    %7321 = vmatprep.subr.mxu0 0.0
    %7322 = vmatpush1.msra.mxu0 0.0
    %7323 = vmatprep.subr.mxu0 0.0
    %7324 = vmatpush1.msra.mxu0 0.0
    %7325 = vmatprep.subr.mxu0 0.0
    %7326 = vmatpush1.msra.mxu0 0.0
    %7327 = vmatprep.subr.mxu0 0.0
    %7328 = vmatpush1.msra.mxu0 0.0
    %7329 = vmatprep.subr.mxu0 0.0
    %7330 = vmatpush1.msra.mxu0 0.0
    %7331 = vmatprep.subr.mxu0 0.0
    %7332 = vmatpush1.msra.mxu0 0.0
    %7333 = vmatprep.subr.mxu0 0.0
    %7334 = vmatpush1.msra.mxu0 0.0
    %7335 = vmatprep.subr.mxu0 0.0
    %7336 = vmatpush1.msra.mxu0 0.0
    %7337 = vmatprep.subr.mxu0 0.0
    %7338 = vmatpush1.msra.mxu0 0.0
    %7339 = vmatprep.subr.mxu0 0.0
    %7340 = vmatpush1.msra.mxu0 0.0
    %7341 = vmatprep.subr.mxu0 0.0
    %7342 = vmatpush1.msra.mxu0 0.0
    %7343 = vmatprep.subr.mxu0 0.0
    %7344 = vmatpush1.msra.mxu0 0.0
    %7345 = vmatprep.subr.mxu0 0.0
    %7346 = vmatpush1.msra.mxu0 0.0
    %7347 = vmatprep.subr.mxu0 0.0
    %7348 = vmatpush1.msra.mxu0 0.0
    %7349 = vmatprep.subr.mxu0 0.0
    %7350 = vmatpush1.msra.mxu0 0.0
    %7351 = vmatprep.subr.mxu0 0.0
    %7352 = vmatpush1.msra.mxu0 0.0
    %7353 = vmatprep.subr.mxu0 0.0
    %7354 = vmatpush1.msra.mxu0 0.0
    %7355 = vmatprep.subr.mxu0 0.0
    %7356 = vmatpush1.msra.mxu0 0.0
    %7357 = vmatprep.subr.mxu0 0.0
    %7358 = vmatpush1.msra.mxu0 0.0
    %7359 = vmatprep.subr.mxu0 0.0
    %7360 = vmatpush1.msra.mxu0 0.0
    %7361 = vmatprep.subr.mxu0 0.0
    %7362 = vmatpush1.msra.mxu0 0.0
    %7363 = vmatprep.subr.mxu0 0.0
    %7364 = vmatpush1.msra.mxu0 0.0
    %7365 = vmatprep.subr.mxu0 0.0
    %7366 = vmatpush1.msra.mxu0 0.0
    %7367 = vmatprep.mubr.f32.mxu0 0.0
    %7368 = vmatmul.mubr.f32.gmra.mrb[0].mxu0 %v7298
    %v7369 = vpop.f32.mrb[0].mxu0
    %v7370 = vadd.f32 %v7295, %v7369
    %v7371 = vpop.f32.mrb[0].mxu0
    %7372 = vmatprep.mubr.f32.mxu0 0.0
    %7373 = vmatmul.mubr.f32.gmra.mrb[0].mxu0 %v7301
    %v7374 = vpop.f32.mrb[0].mxu0
    %v7375 = vadd.f32 %v7295, %v7374
    %v7376 = vpop.f32.mrb[0].mxu0
    %7377 = vdwg.mxu0
    %v7378 = vadd.f32 %v7370, %v5862
    %v7379 = vadd.f32 %v7375, %v5863
    %v7380 = vmax.f32 %v7378, 0.0
    %v7381 = vmax.f32 %v7379, 0.0
    %v7382 = vld [vmem:[#allocation15] sm:$0xff]
    %v7383 = vld [vmem:[#allocation15 + $0x8] sm:$0xff]
    %v7384 = vld [vmem:[#allocation15 + $0x10] sm:$0xff]
    %v7385 = vld [vmem:[#allocation15 + $0x18] sm:$0xff]
    %v7386 = vld [vmem:[#allocation15 + $0x20] sm:$0xff]
    %v7387 = vld [vmem:[#allocation15 + $0x28] sm:$0xff]
    %v7388 = vld [vmem:[#allocation15 + $0x30] sm:$0xff]
    %v7389 = vld [vmem:[#allocation15 + $0x38] sm:$0xff]
    %v7390 = vld [vmem:[#allocation16] sm:$0x1]
    %v7392 = vlaneseq
    %v7393 = vshrl.u32 %v7392, 7
    %v7394 = vsub.s32 0, %v7393
    %v7395 = vrot.slane %v7390, %v7394
    %vm7397 = vcmask 523264
    %v7399 = vsel %vm7397, %v7380, 0
    %v7402 = vsel %vm7397, %v7381, 0
    %7404 = vmatprep.subr.mxu0 0.0
    %7405 = vmatpush1.msra.mxu0 %v7382
    %7406 = vmatprep.subr.mxu0 0.0
    %7407 = vmatpush1.msra.mxu0 %v7383
    %7408 = vmatprep.subr.mxu0 0.0
    %7409 = vmatpush1.msra.mxu0 %v7384
    %7410 = vmatprep.subr.mxu0 0.0
    %7411 = vmatpush1.msra.mxu0 %v7385
    %7412 = vmatprep.subr.mxu0 0.0
    %7413 = vmatpush1.msra.mxu0 %v7386
    %7414 = vmatprep.subr.mxu0 0.0
    %7415 = vmatpush1.msra.mxu0 %v7387
    %7416 = vmatprep.subr.mxu0 0.0
    %7417 = vmatpush1.msra.mxu0 %v7388
    %7418 = vmatprep.subr.mxu0 0.0
    %7419 = vmatpush1.msra.mxu0 %v7389
    %7420 = vmatprep.subr.mxu0 0.0
    %7421 = vmatpush1.msra.mxu0 0.0
    %7422 = vmatprep.subr.mxu0 0.0
    %7423 = vmatpush1.msra.mxu0 0.0
    %7424 = vmatprep.subr.mxu0 0.0
    %7425 = vmatpush1.msra.mxu0 0.0
    %7426 = vmatprep.subr.mxu0 0.0
    %7427 = vmatpush1.msra.mxu0 0.0
    %7428 = vmatprep.subr.mxu0 0.0
    %7429 = vmatpush1.msra.mxu0 0.0
    %7430 = vmatprep.subr.mxu0 0.0
    %7431 = vmatpush1.msra.mxu0 0.0
    %7432 = vmatprep.subr.mxu0 0.0
    %7433 = vmatpush1.msra.mxu0 0.0
    %7434 = vmatprep.subr.mxu0 0.0
    %7435 = vmatpush1.msra.mxu0 0.0
    %7436 = vmatprep.subr.mxu0 0.0
    %7437 = vmatpush1.msra.mxu0 0.0
    %7438 = vmatprep.subr.mxu0 0.0
    %7439 = vmatpush1.msra.mxu0 0.0
    %7440 = vmatprep.subr.mxu0 0.0
    %7441 = vmatpush1.msra.mxu0 0.0
    %7442 = vmatprep.subr.mxu0 0.0
    %7443 = vmatpush1.msra.mxu0 0.0
    %7444 = vmatprep.subr.mxu0 0.0
    %7445 = vmatpush1.msra.mxu0 0.0
    %7446 = vmatprep.subr.mxu0 0.0
    %7447 = vmatpush1.msra.mxu0 0.0
    %7448 = vmatprep.subr.mxu0 0.0
    %7449 = vmatpush1.msra.mxu0 0.0
    %7450 = vmatprep.subr.mxu0 0.0
    %7451 = vmatpush1.msra.mxu0 0.0
    %7452 = vmatprep.subr.mxu0 0.0
    %7453 = vmatpush1.msra.mxu0 0.0
    %7454 = vmatprep.subr.mxu0 0.0
    %7455 = vmatpush1.msra.mxu0 0.0
    %7456 = vmatprep.subr.mxu0 0.0
    %7457 = vmatpush1.msra.mxu0 0.0
    %7458 = vmatprep.subr.mxu0 0.0
    %7459 = vmatpush1.msra.mxu0 0.0
    %7460 = vmatprep.subr.mxu0 0.0
    %7461 = vmatpush1.msra.mxu0 0.0
    %7462 = vmatprep.subr.mxu0 0.0
    %7463 = vmatpush1.msra.mxu0 0.0
    %7464 = vmatprep.subr.mxu0 0.0
    %7465 = vmatpush1.msra.mxu0 0.0
    %7466 = vmatprep.subr.mxu0 0.0
    %7467 = vmatpush1.msra.mxu0 0.0
    %7468 = vmatprep.mubr.f32.mxu0 0.0
    %7469 = vmatmul.mubr.f32.gmra.mrb[0].mxu0 %v7399
    %v7470 = vpop.f32.mrb[0].mxu0
    %v7471 = vadd.f32 %v7395, %v7470
    %v7472 = vpop.f32.mrb[0].mxu0
    %7473 = vmatprep.mubr.f32.mxu0 0.0
    %7474 = vmatmul.mubr.f32.gmra.mrb[0].mxu0 %v7402
    %v7475 = vpop.f32.mrb[0].mxu0
    %v7476 = vadd.f32 %v7395, %v7475
    %v7477 = vpop.f32.mrb[0].mxu0
    %7478 = vdwg.mxu0
    %v7479 = vmax.f32 %v7471, 0.0
    %v7480 = vmax.f32 %v7476, 0.0
    %v7481 = vld [vmem:[%s18] sm:$0xff]
    %v7482 = vld [vmem:[%s18 + $0x8] sm:$0xff]
    %v7483 = vld [vmem:[%s18 + $0x10] sm:$0xff]
    %v7484 = vld [vmem:[%s18 + $0x18] sm:$0xff]
    %v7485 = vld [vmem:[%s18 + $0x20] sm:$0xff]
    %v7486 = vld [vmem:[%s18 + $0x28] sm:$0xff]
    %v7487 = vld [vmem:[%s18 + $0x30] sm:$0xff]
    %v7488 = vld [vmem:[%s18 + $0x38] sm:$0xff]
    %v7489 = vld [vmem:[%s18 + $0x40] sm:$0xff]
    %v7490 = vld [vmem:[%s18 + $0x48] sm:$0xff]
    %v7491 = vld [vmem:[%s18 + $0x50] sm:$0xff]
    %v7492 = vld [vmem:[%s18 + $0x58] sm:$0xff]
    %v7493 = vld [vmem:[%s18 + $0x60] sm:$0xff]
    %v7494 = vld [vmem:[%s18 + $0x68] sm:$0xff]
    %v7495 = vld [vmem:[%s18 + $0x70] sm:$0xff]
    %v7496 = vld [vmem:[%s18 + $0x78] sm:$0xff]
    %v7497 = vld [vmem:[#allocation18] sm:$0x1]
    %v7499 = vlaneseq
    %v7500 = vshrl.u32 %v7499, 7
    %v7501 = vsub.s32 0, %v7500
    %v7502 = vrot.slane %v7497, %v7501
    %7504 = vmatprep.subr.mxu0 0.0
    %7505 = vmatpush1.msra.mxu0 %v7481
    %7506 = vmatprep.subr.mxu0 0.0
    %7507 = vmatpush1.msra.mxu0 %v7482
    %7508 = vmatprep.subr.mxu0 0.0
    %7509 = vmatpush1.msra.mxu0 %v7483
    %7510 = vmatprep.subr.mxu0 0.0
    %7511 = vmatpush1.msra.mxu0 %v7484
    %7512 = vmatprep.subr.mxu0 0.0
    %7513 = vmatpush1.msra.mxu0 %v7485
    %7514 = vmatprep.subr.mxu0 0.0
    %7515 = vmatpush1.msra.mxu0 %v7486
    %7516 = vmatprep.subr.mxu0 0.0
    %7517 = vmatpush1.msra.mxu0 %v7487
    %7518 = vmatprep.subr.mxu0 0.0
    %7519 = vmatpush1.msra.mxu0 %v7488
    %7520 = vmatprep.subr.mxu0 0.0
    %7521 = vmatpush1.msra.mxu0 %v7489
    %7522 = vmatprep.subr.mxu0 0.0
    %7523 = vmatpush1.msra.mxu0 %v7490
    %7524 = vmatprep.subr.mxu0 0.0
    %7525 = vmatpush1.msra.mxu0 %v7491
    %7526 = vmatprep.subr.mxu0 0.0
    %7527 = vmatpush1.msra.mxu0 %v7492
    %7528 = vmatprep.subr.mxu0 0.0
    %7529 = vmatpush1.msra.mxu0 %v7493
    %7530 = vmatprep.subr.mxu0 0.0
    %7531 = vmatpush1.msra.mxu0 %v7494
    %7532 = vmatprep.subr.mxu0 0.0
    %7533 = vmatpush1.msra.mxu0 %v7495
    %7534 = vmatprep.subr.mxu0 0.0
    %7535 = vmatpush1.msra.mxu0 %v7496
    %7536 = vmatprep.subr.mxu0 0.0
    %7537 = vmatpush1.msra.mxu0 0.0
    %7538 = vmatprep.subr.mxu0 0.0
    %7539 = vmatpush1.msra.mxu0 0.0
    %7540 = vmatprep.subr.mxu0 0.0
    %7541 = vmatpush1.msra.mxu0 0.0
    %7542 = vmatprep.subr.mxu0 0.0
    %7543 = vmatpush1.msra.mxu0 0.0
    %7544 = vmatprep.subr.mxu0 0.0
    %7545 = vmatpush1.msra.mxu0 0.0
    %7546 = vmatprep.subr.mxu0 0.0
    %7547 = vmatpush1.msra.mxu0 0.0
    %7548 = vmatprep.subr.mxu0 0.0
    %7549 = vmatpush1.msra.mxu0 0.0
    %7550 = vmatprep.subr.mxu0 0.0
    %7551 = vmatpush1.msra.mxu0 0.0
    %7552 = vmatprep.subr.mxu0 0.0
    %7553 = vmatpush1.msra.mxu0 0.0
    %7554 = vmatprep.subr.mxu0 0.0
    %7555 = vmatpush1.msra.mxu0 0.0
    %7556 = vmatprep.subr.mxu0 0.0
    %7557 = vmatpush1.msra.mxu0 0.0
    %7558 = vmatprep.subr.mxu0 0.0
    %7559 = vmatpush1.msra.mxu0 0.0
    %7560 = vmatprep.subr.mxu0 0.0
    %7561 = vmatpush1.msra.mxu0 0.0
    %7562 = vmatprep.subr.mxu0 0.0
    %7563 = vmatpush1.msra.mxu0 0.0
    %7564 = vmatprep.subr.mxu0 0.0
    %7565 = vmatpush1.msra.mxu0 0.0
    %7566 = vmatprep.subr.mxu0 0.0
    %7567 = vmatpush1.msra.mxu0 0.0
    %7568 = vmatprep.mubr.f32.mxu0 0.0
    %7569 = vmatmul.mubr.f32.gmra.mrb[0].mxu0 %v7479
    %v7570 = vpop.f32.mrb[0].mxu0
    %v7571 = vadd.f32 %v7502, %v7570
    %v7572 = vpop.f32.mrb[0].mxu0
    %7573 = vmatprep.mubr.f32.mxu0 0.0
    %7574 = vmatmul.mubr.f32.gmra.mrb[0].mxu0 %v7480
    %v7575 = vpop.f32.mrb[0].mxu0
    %v7576 = vadd.f32 %v7502, %v7575
    %v7577 = vpop.f32.mrb[0].mxu0
    %7578 = vdwg.mxu0
    %7579 = vst.msk [vmem:[%s20] sm:$0xff] %vm210, %v7571
    %7580 = vst.msk [vmem:[%s20 + $0x8] sm:$0xff] %vm210, %v7576
    // Predicated region
    $region126: #{_lambda_.1} parent=1 // pred_check
      _
    $region127: #{_lambda_.1} parent=1 // pred_check_branch
      %7582 = sbr.rel (0) target = $region129
    $region128: #{_lambda_.1} parent=1 // pred_region
      _
    $region129: #{_lambda_.1} parent=1 // pred_fallthru
      _
    // Predicated region
    $region130: #{_lambda_.1} parent=1 // pred_check
      _
    $region131: #{_lambda_.1} parent=1 // pred_check_branch
      %7584 = sbr.rel (0) target = $region133
    $region132: #{_lambda_.1} parent=1 // pred_region
      _
    $region133: #{_lambda_.1} parent=1 // pred_fallthru
      _
    %7585 = vsyncpa [#allocation3], 1
    %7586 = vsyncpa [#allocation5], 1
    %7587 = vsyncpa [#allocation8], 1
    %7588 = vsyncpa [#allocation11], 1
    %7589 = vsyncpa [#allocation14], 1
    %7590 = vsyncpa [#allocation17], 1

</llo_original>
